<compile_context>
chip_gen: v7x
topology: tpu7x:2x2x1
jax: 0.10.0
libtpu: 0.0.40
codegen_flags: <defaults>
</compile_context>

<pallas_src>
import functools

import numpy as np

import jax
import jax.numpy as jnp
from jax import lax
from jax.experimental import pallas as pl
from jax.experimental.pallas import tpu as pltpu


# ---------------------------------------------------------------------------
# Static network geometry (fixed by the PyTorch module: MNIST 1x28x28 input).
# ---------------------------------------------------------------------------
_K = 5                         # conv kernel size
_C1_OUT = 10                   # conv1 output channels
_C2_OUT = 20                   # conv2 output channels
_H0 = 28                       # input spatial size
_H1 = _H0 - _K + 1             # 24 : conv1 output spatial
_P1 = _H1 // 2                 # 12 : pool1 output spatial
_H2 = _P1 - _K + 1             # 8  : conv2 output spatial
_P2 = _H2 // 2                 # 4  : pool2 output spatial
_FC1_IN = _C2_OUT * _P2 * _P2  # 320
_FC1_OUT = 50
_FC2_OUT = 10


# ---------------------------------------------------------------------------
# The fused Pallas kernel: conv1+pool+relu -> conv2+pool+relu -> fc1+relu
# -> fc2 -> log_softmax, for one batch tile.
# ---------------------------------------------------------------------------
def _net_kernel(x_ref, r1_ref, wb1_ref, b1_ref, pr1_ref, pc1_ref,
                r2_ref, wb2_ref, b2_ref, pr2_ref, pc2_ref,
                efc_ref, wfc1_ref, bfc1_ref, wfc2_ref, bfc2_ref,
                o_ref):
    f32 = jnp.float32
    cdt = wb1_ref.dtype                     # compute dtype for conv/fc matmuls

    x = x_ref[...]                          # [TB*28, 28] f32, rows = (b, h)

    # ---- conv1 as banded matmuls over the W axis, + bias + relu -------------
    h1 = None
    for ki in range(_K):
        rows = jnp.dot(r1_ref[ki], x, preferred_element_type=f32)       # [TB*24, 28]
        part = jnp.dot(rows.astype(cdt), wb1_ref[ki],
                       preferred_element_type=f32)                      # [TB*24, 240]
        h1 = part if h1 is None else h1 + part
    h1 = jnp.maximum(h1 + b1_ref[...], 0.0)                             # cols = (c, x)

    # ---- 2x2 max-pool: even/odd row and column selections as matmuls --------
    hr = jnp.maximum(jnp.dot(pr1_ref[0], h1, preferred_element_type=f32),
                     jnp.dot(pr1_ref[1], h1, preferred_element_type=f32))   # [TB*12, 240]
    p1 = jnp.maximum(jnp.dot(hr, pc1_ref[0], preferred_element_type=f32),
                     jnp.dot(hr, pc1_ref[1], preferred_element_type=f32))   # [TB*12, 120]

    # ---- conv2 (banded) + bias + relu ----------------------------------------
    # TODO(synk): nn.Dropout2d is the inference-mode identity here.
    h2 = None
    for ki in range(_K):
        rows = jnp.dot(r2_ref[ki], p1, preferred_element_type=f32)      # [TB*8, 120]
        part = jnp.dot(rows.astype(cdt), wb2_ref[ki],
                       preferred_element_type=f32)                      # [TB*8, 160]
        h2 = part if h2 is None else h2 + part
    h2 = jnp.maximum(h2 + b2_ref[...], 0.0)

    hr2 = jnp.maximum(jnp.dot(pr2_ref[0], h2, preferred_element_type=f32),
                      jnp.dot(pr2_ref[1], h2, preferred_element_type=f32))  # [TB*4, 160]
    p2 = jnp.maximum(jnp.dot(hr2, pc2_ref[0], preferred_element_type=f32),
                     jnp.dot(hr2, pc2_ref[1], preferred_element_type=f32))  # [TB*4, 80]

    # ---- fc1 + relu : PyTorch .view(-1, 320) folded into 4 row-block matmuls -
    a1 = None
    for y in range(_P2):
        rows = jnp.dot(efc_ref[y], p2, preferred_element_type=f32)      # [TB, 80]
        part = jnp.dot(rows.astype(cdt), wfc1_ref[y],
                       preferred_element_type=f32)                      # [TB, 50]
        a1 = part if a1 is None else a1 + part
    a1 = jnp.maximum(a1 + bfc1_ref[...], 0.0)
    # TODO(synk): F.dropout is the inference-mode identity here.

    # ---- fc2 + log_softmax (f32 epilogue) ------------------------------------
    z = jnp.dot(a1, wfc2_ref[...], preferred_element_type=f32) + bfc2_ref[...]
    z = z - jnp.max(z, axis=-1, keepdims=True)
    z = z - jnp.log(jnp.sum(jnp.exp(z), axis=-1, keepdims=True))
    o_ref[...] = z.astype(o_ref.dtype)


# ---------------------------------------------------------------------------
# Host-side (trace-time) construction of banded weights and 0/1 selectors.
# ---------------------------------------------------------------------------
def _banded_conv_weight(w, out_w, dtype):
    """[O, C, K, K] conv weight -> [K, C*in_w, O*out_w] banded matrices with
       Wb[ki][c*in_w + x, o*out_w + j] = w[o, c, ki, x - j] for 0 <= x-j < K."""
    o_ch, c_ch, k, _ = w.shape
    in_w = out_w + k - 1
    xi = np.arange(in_w)[:, None]
    jo = np.arange(out_w)[None, :]
    kj = xi - jo
    valid = (kj >= 0) & (kj < k)
    wg = w[:, :, :, np.clip(kj, 0, k - 1)]                  # [O, C, K, in_w, out_w]
    wg = jnp.where(valid[None, None, None], wg, 0.0)
    wb = jnp.transpose(wg, (2, 1, 3, 0, 4)).reshape(k, c_ch * in_w, o_ch * out_w)
    return wb.astype(dtype)


def _conv_row_selectors(nb, in_h, out_h, k):
    """sel[ki][b*out_h + i, b*in_h + i + ki] = 1  (block-diagonal per image)."""
    s = np.zeros((k, nb * out_h, nb * in_h), np.float32)
    for ki in range(k):
        for b in range(nb):
            for i in range(out_h):
                s[ki, b * out_h + i, b * in_h + i + ki] = 1.0
    return s


def _pool_row_selectors(nb, out_h):
    """sel[p][b*out_h + i, b*2*out_h + 2*i + p] = 1 (even/odd row pick)."""
    s = np.zeros((2, nb * out_h, nb * 2 * out_h), np.float32)
    for p in range(2):
        for b in range(nb):
            for i in range(out_h):
                s[p, b * out_h + i, b * 2 * out_h + 2 * i + p] = 1.0
    return s


def _pool_col_selectors(channels, in_w):
    """sel[p][c*in_w + 2*j + p, c*(in_w//2) + j] = 1 (even/odd column pick)."""
    out_w = in_w // 2
    s = np.zeros((2, channels * in_w, channels * out_w), np.float32)
    for p in range(2):
        for c in range(channels):
            for j in range(out_w):
                s[p, c * in_w + 2 * j + p, c * out_w + j] = 1.0
    return s


def _fc_row_selectors(nb, h):
    """sel[y][b, b*h + y] = 1 (pick spatial row y for every image)."""
    s = np.zeros((h, nb, nb * h), np.float32)
    for y in range(h):
        for b in range(nb):
            s[y, b, b * h + y] = 1.0
    return s


# ---------------------------------------------------------------------------
# Parameters (PyTorch shapes: conv [O,C,k,k], linear stored as [in, out]).
# ---------------------------------------------------------------------------
def init_params(key):
    ks = jax.random.split(key, 8)
    scale = 0.05
    return {
        "conv1_w": scale * jax.random.normal(ks[0], (10, 1, 5, 5), jnp.float32),
        "conv1_b": scale * jax.random.normal(ks[1], (10,), jnp.float32),
        "conv2_w": scale * jax.random.normal(ks[2], (20, 10, 5, 5), jnp.float32),
        "conv2_b": scale * jax.random.normal(ks[3], (20,), jnp.float32),
        "fc1_w": scale * jax.random.normal(ks[4], (320, 50), jnp.float32),
        "fc1_b": scale * jax.random.normal(ks[5], (50,), jnp.float32),
        "fc2_w": scale * jax.random.normal(ks[6], (50, 10), jnp.float32),
        "fc2_b": scale * jax.random.normal(ks[7], (10,), jnp.float32),
    }


# ---------------------------------------------------------------------------
# Forward pass: single fused pallas_call, grid over batch tiles.
# ---------------------------------------------------------------------------
def net_forward(params, x, *, block_b=8, compute_dtype=jnp.bfloat16):
    b = x.shape[0]
    assert x.shape[1:] == (1, _H0, _H0), x.shape
    tb = block_b
    bp = ((b + tb - 1) // tb) * tb
    nblk = bp // tb

    # Input: drop the singleton channel, pad batch, flatten to a 2-D (rows, W) slab.
    x2 = x.reshape(b, _H0, _H0).astype(jnp.float32)
    if bp != b:
        x2 = jnp.pad(x2, ((0, bp - b), (0, 0), (0, 0)))
    x2d = x2.reshape(bp * _H0, _H0)

    # Weight preprocessing (tiny, traced once under jit).
    wb1 = _banded_conv_weight(params["conv1_w"], _H1, compute_dtype)          # [5, 28, 240]
    wb2 = _banded_conv_weight(params["conv2_w"], _H2, compute_dtype)          # [5, 120, 160]
    b1v = jnp.repeat(params["conv1_b"].astype(jnp.float32), _H1)[None, :]     # [1, 240]
    b2v = jnp.repeat(params["conv2_b"].astype(jnp.float32), _H2)[None, :]     # [1, 160]
    # fc1 rows re-ordered from PyTorch (c, y, x) flatten order to (y, (c, x)).
    wfc1 = (params["fc1_w"].reshape(_C2_OUT, _P2, _P2, _FC1_OUT)
            .transpose(1, 0, 2, 3).reshape(_P2, _C2_OUT * _P2, _FC1_OUT)
            .astype(compute_dtype))                                           # [4, 80, 50]
    bfc1 = params["fc1_b"].astype(jnp.float32)[None, :]                       # [1, 50]
    wfc2 = params["fc2_w"].astype(jnp.float32)                                # [50, 10]
    bfc2 = params["fc2_b"].astype(jnp.float32)[None, :]                       # [1, 10]

    # 0/1 selector matrices (constants; depend only on tile size).
    r1 = _conv_row_selectors(tb, _H0, _H1, _K)       # [5, tb*24, tb*28]
    pr1 = _pool_row_selectors(tb, _P1)               # [2, tb*12, tb*24]
    pc1 = _pool_col_selectors(_C1_OUT, _H1)          # [2, 240, 120]
    r2 = _conv_row_selectors(tb, _P1, _H2, _K)       # [5, tb*8,  tb*12]
    pr2 = _pool_row_selectors(tb, _P2)               # [2, tb*4,  tb*8]
    pc2 = _pool_col_selectors(_C2_OUT, _H2)          # [2, 160, 80]
    efc = _fc_row_selectors(tb, _P2)                 # [4, tb, tb*4]

    operands = (x2d, r1, wb1, b1v, pr1, pc1, r2, wb2, b2v, pr2, pc2,
                efc, wfc1, bfc1, wfc2, bfc2)

    def _full(a):
        nd = a.ndim
        return pl.BlockSpec(tuple(a.shape), lambda i, _nd=nd: (0,) * _nd)

    in_specs = [pl.BlockSpec((tb * _H0, _H0), lambda i: (i, 0))]
    in_specs += [_full(a) for a in operands[1:]]
    out_specs = pl.BlockSpec((tb, _FC2_OUT), lambda i: (i, 0))

    # Advisory cost estimate (MXU MACs of all in-kernel dots).
    macs = 0
    macs += _K * (tb * _H1) * (tb * _H0) * _H0                      # conv1 row select
    macs += _K * (tb * _H1) * _H0 * (_C1_OUT * _H1)                 # conv1 banded
    macs += 2 * (tb * _P1) * (tb * _H1) * (_C1_OUT * _H1)           # pool1 rows
    macs += 2 * (tb * _P1) * (_C1_OUT * _H1) * (_C1_OUT * _P1)      # pool1 cols
    macs += _K * (tb * _H2) * (tb * _P1) * (_C1_OUT * _P1)          # conv2 row select
    macs += _K * (tb * _H2) * (_C1_OUT * _P1) * (_C2_OUT * _H2)     # conv2 banded
    macs += 2 * (tb * _P2) * (tb * _H2) * (_C2_OUT * _H2)           # pool2 rows
    macs += 2 * (tb * _P2) * (_C2_OUT * _H2) * (_C2_OUT * _P2)      # pool2 cols
    macs += _P2 * tb * (tb * _P2) * (_C2_OUT * _P2)                 # fc1 row select
    macs += _P2 * tb * (_C2_OUT * _P2) * _FC1_OUT                   # fc1
    macs += tb * _FC1_OUT * _FC2_OUT                                # fc2
    bytes_accessed = int(sum(int(np.prod(a.shape)) * a.dtype.itemsize
                             for a in operands) + bp * _FC2_OUT * 4)
    cost = pl.CostEstimate(flops=2 * macs * nblk,
                           transcendentals=bp * (_FC2_OUT + 1),
                           bytes_accessed=bytes_accessed)

    out = pl.pallas_call(
        _net_kernel,
        out_shape=jax.ShapeDtypeStruct((bp, _FC2_OUT), jnp.float32),
        grid=(nblk,),
        in_specs=in_specs,
        out_specs=out_specs,
        compiler_params=pltpu.CompilerParams(
            dimension_semantics=("parallel",)),
        cost_estimate=cost,
    )(*operands)
    return out[:b]


# ---------------------------------------------------------------------------
# Plain-JAX reference (inference-mode dropout) -- validation only.
# ---------------------------------------------------------------------------
def _maxpool2x2_nchw(x):
    n, c, h, w = x.shape
    return x.reshape(n, c, h // 2, 2, w // 2, 2).max(axis=(3, 5))


def net_forward_reference(params, x):
    dn = ("NCHW", "OIHW", "NCHW")
    h = lax.conv_general_dilated(x, params["conv1_w"], (1, 1), "VALID",
                                 dimension_numbers=dn)
    h = h + params["conv1_b"][None, :, None, None]
    h = jnp.maximum(_maxpool2x2_nchw(h), 0.0)
    h = lax.conv_general_dilated(h, params["conv2_w"], (1, 1), "VALID",
                                 dimension_numbers=dn)
    h = h + params["conv2_b"][None, :, None, None]
    h = jnp.maximum(_maxpool2x2_nchw(h), 0.0)
    h = h.reshape(h.shape[0], _FC1_IN)
    h = jnp.maximum(h @ params["fc1_w"] + params["fc1_b"], 0.0)
    z = h @ params["fc2_w"] + params["fc2_b"]
    return jax.nn.log_softmax(z, axis=-1)


if __name__ == "__main__":
    key = jax.random.PRNGKey(0)
    pkey, xkey = jax.random.split(key)
    params = init_params(pkey)
    # MNIST geometry is baked into the architecture (320 = 20*4*4 flatten).
    x = jax.random.normal(xkey, (2, 1, 28, 28), jnp.float32)

    # f32-matmul kernel vs. plain-JAX reference: validates the banded-conv /
    # selector-matmul construction end to end.
    f32_fwd = jax.jit(functools.partial(net_forward, compute_dtype=jnp.float32))
    out_f32 = jax.block_until_ready(f32_fwd(params, x))
    ref = jax.block_until_ready(jax.jit(net_forward_reference)(params, x))
    assert out_f32.shape == (2, 10)
    max_err = float(jnp.max(jnp.abs(out_f32 - ref)))
    assert max_err < 5e-2, f"kernel/reference mismatch: {max_err}"

    # Default path: bf16 conv/fc matmul operands, f32 epilogues.
    fwd = jax.jit(net_forward)
    out = jax.block_until_ready(fwd(params, x))
    assert out.shape == (2, 10)
    assert jnp.allclose(jnp.sum(jnp.exp(out), axis=1), 1.0, atol=1e-4)
    print("KERNEL_OK")
</pallas_src>

<mosaic_0001>
module attributes {stable_mosaic.version = 11 : i64} {
  func.func @_net_kernel(%arg0: i32, %arg1: memref<224x28xf32, #tpu.memory_space<vmem>>, %arg2: memref<5x192x224xf32, #tpu.memory_space<vmem>>, %arg3: memref<5x28x240xf32, #tpu.memory_space<vmem>>, %arg4: memref<1x240xf32, #tpu.memory_space<vmem>>, %arg5: memref<2x96x192xf32, #tpu.memory_space<vmem>>, %arg6: memref<2x240x120xf32, #tpu.memory_space<vmem>>, %arg7: memref<5x64x96xf32, #tpu.memory_space<vmem>>, %arg8: memref<5x120x160xf32, #tpu.memory_space<vmem>>, %arg9: memref<1x160xf32, #tpu.memory_space<vmem>>, %arg10: memref<2x32x64xf32, #tpu.memory_space<vmem>>, %arg11: memref<2x160x80xf32, #tpu.memory_space<vmem>>, %arg12: memref<4x8x32xf32, #tpu.memory_space<vmem>>, %arg13: memref<4x80x50xf32, #tpu.memory_space<vmem>>, %arg14: memref<1x50xf32, #tpu.memory_space<vmem>>, %arg15: memref<50x10xf32, #tpu.memory_space<vmem>>, %arg16: memref<1x10xf32, #tpu.memory_space<vmem>>, %arg17: memref<8x10xf32, #tpu.memory_space<vmem>>) attributes {dimension_semantics = [#tpu.dimension_semantics<parallel>], iteration_bounds = array<i64: 1>, scalar_prefetch = 0 : i64, scratch_operands = 0 : i64, tpu.core_type = #tpu.core_type<tc>, window_params = [{transform_indices = @transform_0, window_bounds = array<i64: 224, 28>}, {pipeline_mode = #tpu.pipeline_mode<synchronous>, transform_indices = @transform_1, window_bounds = array<i64: 5, 192, 224>}, {pipeline_mode = #tpu.pipeline_mode<synchronous>, transform_indices = @transform_2, window_bounds = array<i64: 5, 28, 240>}, {pipeline_mode = #tpu.pipeline_mode<synchronous>, transform_indices = @transform_3, window_bounds = array<i64: 1, 240>}, {pipeline_mode = #tpu.pipeline_mode<synchronous>, transform_indices = @transform_4, window_bounds = array<i64: 2, 96, 192>}, {pipeline_mode = #tpu.pipeline_mode<synchronous>, transform_indices = @transform_5, window_bounds = array<i64: 2, 240, 120>}, {pipeline_mode = #tpu.pipeline_mode<synchronous>, transform_indices = @transform_6, window_bounds = array<i64: 5, 64, 96>}, {pipeline_mode = #tpu.pipeline_mode<synchronous>, transform_indices = @transform_7, window_bounds = array<i64: 5, 120, 160>}, {pipeline_mode = #tpu.pipeline_mode<synchronous>, transform_indices = @transform_8, window_bounds = array<i64: 1, 160>}, {pipeline_mode = #tpu.pipeline_mode<synchronous>, transform_indices = @transform_9, window_bounds = array<i64: 2, 32, 64>}, {pipeline_mode = #tpu.pipeline_mode<synchronous>, transform_indices = @transform_10, window_bounds = array<i64: 2, 160, 80>}, {pipeline_mode = #tpu.pipeline_mode<synchronous>, transform_indices = @transform_11, window_bounds = array<i64: 4, 8, 32>}, {pipeline_mode = #tpu.pipeline_mode<synchronous>, transform_indices = @transform_12, window_bounds = array<i64: 4, 80, 50>}, {pipeline_mode = #tpu.pipeline_mode<synchronous>, transform_indices = @transform_13, window_bounds = array<i64: 1, 50>}, {pipeline_mode = #tpu.pipeline_mode<synchronous>, transform_indices = @transform_14, window_bounds = array<i64: 50, 10>}, {pipeline_mode = #tpu.pipeline_mode<synchronous>, transform_indices = @transform_15, window_bounds = array<i64: 1, 10>}, {transform_indices = @transform_16, window_bounds = array<i64: 8, 10>}]} {
    %c0 = arith.constant 0 : index
    %c0_0 = arith.constant 0 : index
    %0 = vector.load %arg1[%c0, %c0_0] : memref<224x28xf32, #tpu.memory_space<vmem>>, vector<224x28xf32>
    %c0_1 = arith.constant 0 : index
    %c0_2 = arith.constant 0 : index
    %c0_3 = arith.constant 0 : index
    %1 = vector.load %arg2[%c0_1, %c0_2, %c0_3] : memref<5x192x224xf32, #tpu.memory_space<vmem>>, vector<1x192x224xf32>
    %2 = vector.shape_cast %1 : vector<1x192x224xf32> to vector<192x224xf32>
    %cst = arith.constant dense<0.000000e+00> : vector<192x28xf32>
    %3 = tpu.matmul %2, %0, %cst {dimension_numbers = #tpu.dot_dimension_numbers<[1], [0], [0], [1], [0, 0, 1, 1], [], []>} : vector<192x224xf32>, vector<224x28xf32>, vector<192x28xf32> -> vector<192x28xf32>
    %c0_4 = arith.constant 0 : index
    %c0_5 = arith.constant 0 : index
    %c0_6 = arith.constant 0 : index
    %4 = vector.load %arg3[%c0_4, %c0_5, %c0_6] : memref<5x28x240xf32, #tpu.memory_space<vmem>>, vector<1x28x240xf32>
    %5 = vector.shape_cast %4 : vector<1x28x240xf32> to vector<28x240xf32>
    %cst_7 = arith.constant dense<0.000000e+00> : vector<192x240xf32>
    %6 = tpu.matmul %3, %5, %cst_7 {dimension_numbers = #tpu.dot_dimension_numbers<[1], [0], [0], [1], [0, 0, 1, 1], [], []>} : vector<192x28xf32>, vector<28x240xf32>, vector<192x240xf32> -> vector<192x240xf32>
    %c1 = arith.constant 1 : index
    %c0_8 = arith.constant 0 : index
    %c0_9 = arith.constant 0 : index
    %7 = vector.load %arg2[%c1, %c0_8, %c0_9] : memref<5x192x224xf32, #tpu.memory_space<vmem>>, vector<1x192x224xf32>
    %8 = vector.shape_cast %7 : vector<1x192x224xf32> to vector<192x224xf32>
    %cst_10 = arith.constant dense<0.000000e+00> : vector<192x28xf32>
    %9 = tpu.matmul %8, %0, %cst_10 {dimension_numbers = #tpu.dot_dimension_numbers<[1], [0], [0], [1], [0, 0, 1, 1], [], []>} : vector<192x224xf32>, vector<224x28xf32>, vector<192x28xf32> -> vector<192x28xf32>
    %c1_11 = arith.constant 1 : index
    %c0_12 = arith.constant 0 : index
    %c0_13 = arith.constant 0 : index
    %10 = vector.load %arg3[%c1_11, %c0_12, %c0_13] : memref<5x28x240xf32, #tpu.memory_space<vmem>>, vector<1x28x240xf32>
    %11 = vector.shape_cast %10 : vector<1x28x240xf32> to vector<28x240xf32>
    %cst_14 = arith.constant dense<0.000000e+00> : vector<192x240xf32>
    %12 = tpu.matmul %9, %11, %cst_14 {dimension_numbers = #tpu.dot_dimension_numbers<[1], [0], [0], [1], [0, 0, 1, 1], [], []>} : vector<192x28xf32>, vector<28x240xf32>, vector<192x240xf32> -> vector<192x240xf32>
    %13 = arith.addf %6, %12 : vector<192x240xf32>
    %c2 = arith.constant 2 : index
    %c0_15 = arith.constant 0 : index
    %c0_16 = arith.constant 0 : index
    %14 = vector.load %arg2[%c2, %c0_15, %c0_16] : memref<5x192x224xf32, #tpu.memory_space<vmem>>, vector<1x192x224xf32>
    %15 = vector.shape_cast %14 : vector<1x192x224xf32> to vector<192x224xf32>
    %cst_17 = arith.constant dense<0.000000e+00> : vector<192x28xf32>
    %16 = tpu.matmul %15, %0, %cst_17 {dimension_numbers = #tpu.dot_dimension_numbers<[1], [0], [0], [1], [0, 0, 1, 1], [], []>} : vector<192x224xf32>, vector<224x28xf32>, vector<192x28xf32> -> vector<192x28xf32>
    %c2_18 = arith.constant 2 : index
    %c0_19 = arith.constant 0 : index
    %c0_20 = arith.constant 0 : index
    %17 = vector.load %arg3[%c2_18, %c0_19, %c0_20] : memref<5x28x240xf32, #tpu.memory_space<vmem>>, vector<1x28x240xf32>
    %18 = vector.shape_cast %17 : vector<1x28x240xf32> to vector<28x240xf32>
    %cst_21 = arith.constant dense<0.000000e+00> : vector<192x240xf32>
    %19 = tpu.matmul %16, %18, %cst_21 {dimension_numbers = #tpu.dot_dimension_numbers<[1], [0], [0], [1], [0, 0, 1, 1], [], []>} : vector<192x28xf32>, vector<28x240xf32>, vector<192x240xf32> -> vector<192x240xf32>
    %20 = arith.addf %13, %19 : vector<192x240xf32>
    %c3 = arith.constant 3 : index
    %c0_22 = arith.constant 0 : index
    %c0_23 = arith.constant 0 : index
    %21 = vector.load %arg2[%c3, %c0_22, %c0_23] : memref<5x192x224xf32, #tpu.memory_space<vmem>>, vector<1x192x224xf32>
    %22 = vector.shape_cast %21 : vector<1x192x224xf32> to vector<192x224xf32>
    %cst_24 = arith.constant dense<0.000000e+00> : vector<192x28xf32>
    %23 = tpu.matmul %22, %0, %cst_24 {dimension_numbers = #tpu.dot_dimension_numbers<[1], [0], [0], [1], [0, 0, 1, 1], [], []>} : vector<192x224xf32>, vector<224x28xf32>, vector<192x28xf32> -> vector<192x28xf32>
    %c3_25 = arith.constant 3 : index
    %c0_26 = arith.constant 0 : index
    %c0_27 = arith.constant 0 : index
    %24 = vector.load %arg3[%c3_25, %c0_26, %c0_27] : memref<5x28x240xf32, #tpu.memory_space<vmem>>, vector<1x28x240xf32>
    %25 = vector.shape_cast %24 : vector<1x28x240xf32> to vector<28x240xf32>
    %cst_28 = arith.constant dense<0.000000e+00> : vector<192x240xf32>
    %26 = tpu.matmul %23, %25, %cst_28 {dimension_numbers = #tpu.dot_dimension_numbers<[1], [0], [0], [1], [0, 0, 1, 1], [], []>} : vector<192x28xf32>, vector<28x240xf32>, vector<192x240xf32> -> vector<192x240xf32>
    %27 = arith.addf %20, %26 : vector<192x240xf32>
    %c4 = arith.constant 4 : index
    %c0_29 = arith.constant 0 : index
    %c0_30 = arith.constant 0 : index
    %28 = vector.load %arg2[%c4, %c0_29, %c0_30] : memref<5x192x224xf32, #tpu.memory_space<vmem>>, vector<1x192x224xf32>
    %29 = vector.shape_cast %28 : vector<1x192x224xf32> to vector<192x224xf32>
    %cst_31 = arith.constant dense<0.000000e+00> : vector<192x28xf32>
    %30 = tpu.matmul %29, %0, %cst_31 {dimension_numbers = #tpu.dot_dimension_numbers<[1], [0], [0], [1], [0, 0, 1, 1], [], []>} : vector<192x224xf32>, vector<224x28xf32>, vector<192x28xf32> -> vector<192x28xf32>
    %c4_32 = arith.constant 4 : index
    %c0_33 = arith.constant 0 : index
    %c0_34 = arith.constant 0 : index
    %31 = vector.load %arg3[%c4_32, %c0_33, %c0_34] : memref<5x28x240xf32, #tpu.memory_space<vmem>>, vector<1x28x240xf32>
    %32 = vector.shape_cast %31 : vector<1x28x240xf32> to vector<28x240xf32>
    %cst_35 = arith.constant dense<0.000000e+00> : vector<192x240xf32>
    %33 = tpu.matmul %30, %32, %cst_35 {dimension_numbers = #tpu.dot_dimension_numbers<[1], [0], [0], [1], [0, 0, 1, 1], [], []>} : vector<192x28xf32>, vector<28x240xf32>, vector<192x240xf32> -> vector<192x240xf32>
    %34 = arith.addf %27, %33 : vector<192x240xf32>
    %c0_36 = arith.constant 0 : index
    %c0_37 = arith.constant 0 : index
    %35 = vector.load %arg4[%c0_36, %c0_37] : memref<1x240xf32, #tpu.memory_space<vmem>>, vector<1x240xf32>
    %36 = vector.broadcast %35 : vector<1x240xf32> to vector<192x240xf32>
    %37 = arith.addf %34, %36 : vector<192x240xf32>
    %cst_38 = arith.constant 0.000000e+00 : f32
    %38 = vector.broadcast %cst_38 : f32 to vector<192x240xf32>
    %39 = arith.maximumf %37, %38 : vector<192x240xf32>
    %c0_39 = arith.constant 0 : index
    %c0_40 = arith.constant 0 : index
    %c0_41 = arith.constant 0 : index
    %40 = vector.load %arg5[%c0_39, %c0_40, %c0_41] : memref<2x96x192xf32, #tpu.memory_space<vmem>>, vector<1x96x192xf32>
    %41 = vector.shape_cast %40 : vector<1x96x192xf32> to vector<96x192xf32>
    %cst_42 = arith.constant dense<0.000000e+00> : vector<96x240xf32>
    %42 = tpu.matmul %41, %39, %cst_42 {dimension_numbers = #tpu.dot_dimension_numbers<[1], [0], [0], [1], [0, 0, 1, 1], [], []>} : vector<96x192xf32>, vector<192x240xf32>, vector<96x240xf32> -> vector<96x240xf32>
    %c1_43 = arith.constant 1 : index
    %c0_44 = arith.constant 0 : index
    %c0_45 = arith.constant 0 : index
    %43 = vector.load %arg5[%c1_43, %c0_44, %c0_45] : memref<2x96x192xf32, #tpu.memory_space<vmem>>, vector<1x96x192xf32>
    %44 = vector.shape_cast %43 : vector<1x96x192xf32> to vector<96x192xf32>
    %cst_46 = arith.constant dense<0.000000e+00> : vector<96x240xf32>
    %45 = tpu.matmul %44, %39, %cst_46 {dimension_numbers = #tpu.dot_dimension_numbers<[1], [0], [0], [1], [0, 0, 1, 1], [], []>} : vector<96x192xf32>, vector<192x240xf32>, vector<96x240xf32> -> vector<96x240xf32>
    %46 = arith.maximumf %42, %45 : vector<96x240xf32>
    %c0_47 = arith.constant 0 : index
    %c0_48 = arith.constant 0 : index
    %c0_49 = arith.constant 0 : index
    %47 = vector.load %arg6[%c0_47, %c0_48, %c0_49] : memref<2x240x120xf32, #tpu.memory_space<vmem>>, vector<1x240x120xf32>
    %48 = vector.shape_cast %47 : vector<1x240x120xf32> to vector<240x120xf32>
    %cst_50 = arith.constant dense<0.000000e+00> : vector<96x120xf32>
    %49 = tpu.matmul %46, %48, %cst_50 {dimension_numbers = #tpu.dot_dimension_numbers<[1], [0], [0], [1], [0, 0, 1, 1], [], []>} : vector<96x240xf32>, vector<240x120xf32>, vector<96x120xf32> -> vector<96x120xf32>
    %c1_51 = arith.constant 1 : index
    %c0_52 = arith.constant 0 : index
    %c0_53 = arith.constant 0 : index
    %50 = vector.load %arg6[%c1_51, %c0_52, %c0_53] : memref<2x240x120xf32, #tpu.memory_space<vmem>>, vector<1x240x120xf32>
    %51 = vector.shape_cast %50 : vector<1x240x120xf32> to vector<240x120xf32>
    %cst_54 = arith.constant dense<0.000000e+00> : vector<96x120xf32>
    %52 = tpu.matmul %46, %51, %cst_54 {dimension_numbers = #tpu.dot_dimension_numbers<[1], [0], [0], [1], [0, 0, 1, 1], [], []>} : vector<96x240xf32>, vector<240x120xf32>, vector<96x120xf32> -> vector<96x120xf32>
    %53 = arith.maximumf %49, %52 : vector<96x120xf32>
    %c0_55 = arith.constant 0 : index
    %c0_56 = arith.constant 0 : index
    %c0_57 = arith.constant 0 : index
    %54 = vector.load %arg7[%c0_55, %c0_56, %c0_57] : memref<5x64x96xf32, #tpu.memory_space<vmem>>, vector<1x64x96xf32>
    %55 = vector.shape_cast %54 : vector<1x64x96xf32> to vector<64x96xf32>
    %cst_58 = arith.constant dense<0.000000e+00> : vector<64x120xf32>
    %56 = tpu.matmul %55, %53, %cst_58 {dimension_numbers = #tpu.dot_dimension_numbers<[1], [0], [0], [1], [0, 0, 1, 1], [], []>} : vector<64x96xf32>, vector<96x120xf32>, vector<64x120xf32> -> vector<64x120xf32>
    %c0_59 = arith.constant 0 : index
    %c0_60 = arith.constant 0 : index
    %c0_61 = arith.constant 0 : index
    %57 = vector.load %arg8[%c0_59, %c0_60, %c0_61] : memref<5x120x160xf32, #tpu.memory_space<vmem>>, vector<1x120x160xf32>
    %58 = vector.shape_cast %57 : vector<1x120x160xf32> to vector<120x160xf32>
    %cst_62 = arith.constant dense<0.000000e+00> : vector<64x160xf32>
    %59 = tpu.matmul %56, %58, %cst_62 {dimension_numbers = #tpu.dot_dimension_numbers<[1], [0], [0], [1], [0, 0, 1, 1], [], []>} : vector<64x120xf32>, vector<120x160xf32>, vector<64x160xf32> -> vector<64x160xf32>
    %c1_63 = arith.constant 1 : index
    %c0_64 = arith.constant 0 : index
    %c0_65 = arith.constant 0 : index
    %60 = vector.load %arg7[%c1_63, %c0_64, %c0_65] : memref<5x64x96xf32, #tpu.memory_space<vmem>>, vector<1x64x96xf32>
    %61 = vector.shape_cast %60 : vector<1x64x96xf32> to vector<64x96xf32>
    %cst_66 = arith.constant dense<0.000000e+00> : vector<64x120xf32>
    %62 = tpu.matmul %61, %53, %cst_66 {dimension_numbers = #tpu.dot_dimension_numbers<[1], [0], [0], [1], [0, 0, 1, 1], [], []>} : vector<64x96xf32>, vector<96x120xf32>, vector<64x120xf32> -> vector<64x120xf32>
    %c1_67 = arith.constant 1 : index
    %c0_68 = arith.constant 0 : index
    %c0_69 = arith.constant 0 : index
    %63 = vector.load %arg8[%c1_67, %c0_68, %c0_69] : memref<5x120x160xf32, #tpu.memory_space<vmem>>, vector<1x120x160xf32>
    %64 = vector.shape_cast %63 : vector<1x120x160xf32> to vector<120x160xf32>
    %cst_70 = arith.constant dense<0.000000e+00> : vector<64x160xf32>
    %65 = tpu.matmul %62, %64, %cst_70 {dimension_numbers = #tpu.dot_dimension_numbers<[1], [0], [0], [1], [0, 0, 1, 1], [], []>} : vector<64x120xf32>, vector<120x160xf32>, vector<64x160xf32> -> vector<64x160xf32>
    %66 = arith.addf %59, %65 : vector<64x160xf32>
    %c2_71 = arith.constant 2 : index
    %c0_72 = arith.constant 0 : index
    %c0_73 = arith.constant 0 : index
    %67 = vector.load %arg7[%c2_71, %c0_72, %c0_73] : memref<5x64x96xf32, #tpu.memory_space<vmem>>, vector<1x64x96xf32>
    %68 = vector.shape_cast %67 : vector<1x64x96xf32> to vector<64x96xf32>
    %cst_74 = arith.constant dense<0.000000e+00> : vector<64x120xf32>
    %69 = tpu.matmul %68, %53, %cst_74 {dimension_numbers = #tpu.dot_dimension_numbers<[1], [0], [0], [1], [0, 0, 1, 1], [], []>} : vector<64x96xf32>, vector<96x120xf32>, vector<64x120xf32> -> vector<64x120xf32>
    %c2_75 = arith.constant 2 : index
    %c0_76 = arith.constant 0 : index
    %c0_77 = arith.constant 0 : index
    %70 = vector.load %arg8[%c2_75, %c0_76, %c0_77] : memref<5x120x160xf32, #tpu.memory_space<vmem>>, vector<1x120x160xf32>
    %71 = vector.shape_cast %70 : vector<1x120x160xf32> to vector<120x160xf32>
    %cst_78 = arith.constant dense<0.000000e+00> : vector<64x160xf32>
    %72 = tpu.matmul %69, %71, %cst_78 {dimension_numbers = #tpu.dot_dimension_numbers<[1], [0], [0], [1], [0, 0, 1, 1], [], []>} : vector<64x120xf32>, vector<120x160xf32>, vector<64x160xf32> -> vector<64x160xf32>
    %73 = arith.addf %66, %72 : vector<64x160xf32>
    %c3_79 = arith.constant 3 : index
    %c0_80 = arith.constant 0 : index
    %c0_81 = arith.constant 0 : index
    %74 = vector.load %arg7[%c3_79, %c0_80, %c0_81] : memref<5x64x96xf32, #tpu.memory_space<vmem>>, vector<1x64x96xf32>
    %75 = vector.shape_cast %74 : vector<1x64x96xf32> to vector<64x96xf32>
    %cst_82 = arith.constant dense<0.000000e+00> : vector<64x120xf32>
    %76 = tpu.matmul %75, %53, %cst_82 {dimension_numbers = #tpu.dot_dimension_numbers<[1], [0], [0], [1], [0, 0, 1, 1], [], []>} : vector<64x96xf32>, vector<96x120xf32>, vector<64x120xf32> -> vector<64x120xf32>
    %c3_83 = arith.constant 3 : index
    %c0_84 = arith.constant 0 : index
    %c0_85 = arith.constant 0 : index
    %77 = vector.load %arg8[%c3_83, %c0_84, %c0_85] : memref<5x120x160xf32, #tpu.memory_space<vmem>>, vector<1x120x160xf32>
    %78 = vector.shape_cast %77 : vector<1x120x160xf32> to vector<120x160xf32>
    %cst_86 = arith.constant dense<0.000000e+00> : vector<64x160xf32>
    %79 = tpu.matmul %76, %78, %cst_86 {dimension_numbers = #tpu.dot_dimension_numbers<[1], [0], [0], [1], [0, 0, 1, 1], [], []>} : vector<64x120xf32>, vector<120x160xf32>, vector<64x160xf32> -> vector<64x160xf32>
    %80 = arith.addf %73, %79 : vector<64x160xf32>
    %c4_87 = arith.constant 4 : index
    %c0_88 = arith.constant 0 : index
    %c0_89 = arith.constant 0 : index
    %81 = vector.load %arg7[%c4_87, %c0_88, %c0_89] : memref<5x64x96xf32, #tpu.memory_space<vmem>>, vector<1x64x96xf32>
    %82 = vector.shape_cast %81 : vector<1x64x96xf32> to vector<64x96xf32>
    %cst_90 = arith.constant dense<0.000000e+00> : vector<64x120xf32>
    %83 = tpu.matmul %82, %53, %cst_90 {dimension_numbers = #tpu.dot_dimension_numbers<[1], [0], [0], [1], [0, 0, 1, 1], [], []>} : vector<64x96xf32>, vector<96x120xf32>, vector<64x120xf32> -> vector<64x120xf32>
    %c4_91 = arith.constant 4 : index
    %c0_92 = arith.constant 0 : index
    %c0_93 = arith.constant 0 : index
    %84 = vector.load %arg8[%c4_91, %c0_92, %c0_93] : memref<5x120x160xf32, #tpu.memory_space<vmem>>, vector<1x120x160xf32>
    %85 = vector.shape_cast %84 : vector<1x120x160xf32> to vector<120x160xf32>
    %cst_94 = arith.constant dense<0.000000e+00> : vector<64x160xf32>
    %86 = tpu.matmul %83, %85, %cst_94 {dimension_numbers = #tpu.dot_dimension_numbers<[1], [0], [0], [1], [0, 0, 1, 1], [], []>} : vector<64x120xf32>, vector<120x160xf32>, vector<64x160xf32> -> vector<64x160xf32>
    %87 = arith.addf %80, %86 : vector<64x160xf32>
    %c0_95 = arith.constant 0 : index
    %c0_96 = arith.constant 0 : index
    %88 = vector.load %arg9[%c0_95, %c0_96] : memref<1x160xf32, #tpu.memory_space<vmem>>, vector<1x160xf32>
    %89 = vector.broadcast %88 : vector<1x160xf32> to vector<64x160xf32>
    %90 = arith.addf %87, %89 : vector<64x160xf32>
    %cst_97 = arith.constant 0.000000e+00 : f32
    %91 = vector.broadcast %cst_97 : f32 to vector<64x160xf32>
    %92 = arith.maximumf %90, %91 : vector<64x160xf32>
    %c0_98 = arith.constant 0 : index
    %c0_99 = arith.constant 0 : index
    %c0_100 = arith.constant 0 : index
    %93 = vector.load %arg10[%c0_98, %c0_99, %c0_100] : memref<2x32x64xf32, #tpu.memory_space<vmem>>, vector<1x32x64xf32>
    %94 = vector.shape_cast %93 : vector<1x32x64xf32> to vector<32x64xf32>
    %cst_101 = arith.constant dense<0.000000e+00> : vector<32x160xf32>
    %95 = tpu.matmul %94, %92, %cst_101 {dimension_numbers = #tpu.dot_dimension_numbers<[1], [0], [0], [1], [0, 0, 1, 1], [], []>} : vector<32x64xf32>, vector<64x160xf32>, vector<32x160xf32> -> vector<32x160xf32>
    %c1_102 = arith.constant 1 : index
    %c0_103 = arith.constant 0 : index
    %c0_104 = arith.constant 0 : index
    %96 = vector.load %arg10[%c1_102, %c0_103, %c0_104] : memref<2x32x64xf32, #tpu.memory_space<vmem>>, vector<1x32x64xf32>
    %97 = vector.shape_cast %96 : vector<1x32x64xf32> to vector<32x64xf32>
    %cst_105 = arith.constant dense<0.000000e+00> : vector<32x160xf32>
    %98 = tpu.matmul %97, %92, %cst_105 {dimension_numbers = #tpu.dot_dimension_numbers<[1], [0], [0], [1], [0, 0, 1, 1], [], []>} : vector<32x64xf32>, vector<64x160xf32>, vector<32x160xf32> -> vector<32x160xf32>
    %99 = arith.maximumf %95, %98 : vector<32x160xf32>
    %c0_106 = arith.constant 0 : index
    %c0_107 = arith.constant 0 : index
    %c0_108 = arith.constant 0 : index
    %100 = vector.load %arg11[%c0_106, %c0_107, %c0_108] : memref<2x160x80xf32, #tpu.memory_space<vmem>>, vector<1x160x80xf32>
    %101 = vector.shape_cast %100 : vector<1x160x80xf32> to vector<160x80xf32>
    %cst_109 = arith.constant dense<0.000000e+00> : vector<32x80xf32>
    %102 = tpu.matmul %99, %101, %cst_109 {dimension_numbers = #tpu.dot_dimension_numbers<[1], [0], [0], [1], [0, 0, 1, 1], [], []>} : vector<32x160xf32>, vector<160x80xf32>, vector<32x80xf32> -> vector<32x80xf32>
    %c1_110 = arith.constant 1 : index
    %c0_111 = arith.constant 0 : index
    %c0_112 = arith.constant 0 : index
    %103 = vector.load %arg11[%c1_110, %c0_111, %c0_112] : memref<2x160x80xf32, #tpu.memory_space<vmem>>, vector<1x160x80xf32>
    %104 = vector.shape_cast %103 : vector<1x160x80xf32> to vector<160x80xf32>
    %cst_113 = arith.constant dense<0.000000e+00> : vector<32x80xf32>
    %105 = tpu.matmul %99, %104, %cst_113 {dimension_numbers = #tpu.dot_dimension_numbers<[1], [0], [0], [1], [0, 0, 1, 1], [], []>} : vector<32x160xf32>, vector<160x80xf32>, vector<32x80xf32> -> vector<32x80xf32>
    %106 = arith.maximumf %102, %105 : vector<32x80xf32>
    %c0_114 = arith.constant 0 : index
    %c0_115 = arith.constant 0 : index
    %c0_116 = arith.constant 0 : index
    %107 = vector.load %arg12[%c0_114, %c0_115, %c0_116] : memref<4x8x32xf32, #tpu.memory_space<vmem>>, vector<1x8x32xf32>
    %108 = vector.shape_cast %107 : vector<1x8x32xf32> to vector<8x32xf32>
    %cst_117 = arith.constant dense<0.000000e+00> : vector<8x80xf32>
    %109 = tpu.matmul %108, %106, %cst_117 {dimension_numbers = #tpu.dot_dimension_numbers<[1], [0], [0], [1], [0, 0, 1, 1], [], []>} : vector<8x32xf32>, vector<32x80xf32>, vector<8x80xf32> -> vector<8x80xf32>
    %c0_118 = arith.constant 0 : index
    %c0_119 = arith.constant 0 : index
    %c0_120 = arith.constant 0 : index
    %110 = vector.load %arg13[%c0_118, %c0_119, %c0_120] : memref<4x80x50xf32, #tpu.memory_space<vmem>>, vector<1x80x50xf32>
    %111 = vector.shape_cast %110 : vector<1x80x50xf32> to vector<80x50xf32>
    %cst_121 = arith.constant dense<0.000000e+00> : vector<8x50xf32>
    %112 = tpu.matmul %109, %111, %cst_121 {dimension_numbers = #tpu.dot_dimension_numbers<[1], [0], [0], [1], [0, 0, 1, 1], [], []>} : vector<8x80xf32>, vector<80x50xf32>, vector<8x50xf32> -> vector<8x50xf32>
    %c1_122 = arith.constant 1 : index
    %c0_123 = arith.constant 0 : index
    %c0_124 = arith.constant 0 : index
    %113 = vector.load %arg12[%c1_122, %c0_123, %c0_124] : memref<4x8x32xf32, #tpu.memory_space<vmem>>, vector<1x8x32xf32>
    %114 = vector.shape_cast %113 : vector<1x8x32xf32> to vector<8x32xf32>
    %cst_125 = arith.constant dense<0.000000e+00> : vector<8x80xf32>
    %115 = tpu.matmul %114, %106, %cst_125 {dimension_numbers = #tpu.dot_dimension_numbers<[1], [0], [0], [1], [0, 0, 1, 1], [], []>} : vector<8x32xf32>, vector<32x80xf32>, vector<8x80xf32> -> vector<8x80xf32>
    %c1_126 = arith.constant 1 : index
    %c0_127 = arith.constant 0 : index
    %c0_128 = arith.constant 0 : index
    %116 = vector.load %arg13[%c1_126, %c0_127, %c0_128] : memref<4x80x50xf32, #tpu.memory_space<vmem>>, vector<1x80x50xf32>
    %117 = vector.shape_cast %116 : vector<1x80x50xf32> to vector<80x50xf32>
    %cst_129 = arith.constant dense<0.000000e+00> : vector<8x50xf32>
    %118 = tpu.matmul %115, %117, %cst_129 {dimension_numbers = #tpu.dot_dimension_numbers<[1], [0], [0], [1], [0, 0, 1, 1], [], []>} : vector<8x80xf32>, vector<80x50xf32>, vector<8x50xf32> -> vector<8x50xf32>
    %119 = arith.addf %112, %118 : vector<8x50xf32>
    %c2_130 = arith.constant 2 : index
    %c0_131 = arith.constant 0 : index
    %c0_132 = arith.constant 0 : index
    %120 = vector.load %arg12[%c2_130, %c0_131, %c0_132] : memref<4x8x32xf32, #tpu.memory_space<vmem>>, vector<1x8x32xf32>
    %121 = vector.shape_cast %120 : vector<1x8x32xf32> to vector<8x32xf32>
    %cst_133 = arith.constant dense<0.000000e+00> : vector<8x80xf32>
    %122 = tpu.matmul %121, %106, %cst_133 {dimension_numbers = #tpu.dot_dimension_numbers<[1], [0], [0], [1], [0, 0, 1, 1], [], []>} : vector<8x32xf32>, vector<32x80xf32>, vector<8x80xf32> -> vector<8x80xf32>
    %c2_134 = arith.constant 2 : index
    %c0_135 = arith.constant 0 : index
    %c0_136 = arith.constant 0 : index
    %123 = vector.load %arg13[%c2_134, %c0_135, %c0_136] : memref<4x80x50xf32, #tpu.memory_space<vmem>>, vector<1x80x50xf32>
    %124 = vector.shape_cast %123 : vector<1x80x50xf32> to vector<80x50xf32>
    %cst_137 = arith.constant dense<0.000000e+00> : vector<8x50xf32>
    %125 = tpu.matmul %122, %124, %cst_137 {dimension_numbers = #tpu.dot_dimension_numbers<[1], [0], [0], [1], [0, 0, 1, 1], [], []>} : vector<8x80xf32>, vector<80x50xf32>, vector<8x50xf32> -> vector<8x50xf32>
    %126 = arith.addf %119, %125 : vector<8x50xf32>
    %c3_138 = arith.constant 3 : index
    %c0_139 = arith.constant 0 : index
    %c0_140 = arith.constant 0 : index
    %127 = vector.load %arg12[%c3_138, %c0_139, %c0_140] : memref<4x8x32xf32, #tpu.memory_space<vmem>>, vector<1x8x32xf32>
    %128 = vector.shape_cast %127 : vector<1x8x32xf32> to vector<8x32xf32>
    %cst_141 = arith.constant dense<0.000000e+00> : vector<8x80xf32>
    %129 = tpu.matmul %128, %106, %cst_141 {dimension_numbers = #tpu.dot_dimension_numbers<[1], [0], [0], [1], [0, 0, 1, 1], [], []>} : vector<8x32xf32>, vector<32x80xf32>, vector<8x80xf32> -> vector<8x80xf32>
    %c3_142 = arith.constant 3 : index
    %c0_143 = arith.constant 0 : index
    %c0_144 = arith.constant 0 : index
    %130 = vector.load %arg13[%c3_142, %c0_143, %c0_144] : memref<4x80x50xf32, #tpu.memory_space<vmem>>, vector<1x80x50xf32>
    %131 = vector.shape_cast %130 : vector<1x80x50xf32> to vector<80x50xf32>
    %cst_145 = arith.constant dense<0.000000e+00> : vector<8x50xf32>
    %132 = tpu.matmul %129, %131, %cst_145 {dimension_numbers = #tpu.dot_dimension_numbers<[1], [0], [0], [1], [0, 0, 1, 1], [], []>} : vector<8x80xf32>, vector<80x50xf32>, vector<8x50xf32> -> vector<8x50xf32>
    %133 = arith.addf %126, %132 : vector<8x50xf32>
    %c0_146 = arith.constant 0 : index
    %c0_147 = arith.constant 0 : index
    %134 = vector.load %arg14[%c0_146, %c0_147] : memref<1x50xf32, #tpu.memory_space<vmem>>, vector<1x50xf32>
    %135 = vector.broadcast %134 : vector<1x50xf32> to vector<8x50xf32>
    %136 = arith.addf %133, %135 : vector<8x50xf32>
    %cst_148 = arith.constant 0.000000e+00 : f32
    %137 = vector.broadcast %cst_148 : f32 to vector<8x50xf32>
    %138 = arith.maximumf %136, %137 : vector<8x50xf32>
    %c0_149 = arith.constant 0 : index
    %c0_150 = arith.constant 0 : index
    %139 = vector.load %arg15[%c0_149, %c0_150] : memref<50x10xf32, #tpu.memory_space<vmem>>, vector<50x10xf32>
    %cst_151 = arith.constant dense<0.000000e+00> : vector<8x10xf32>
    %140 = tpu.matmul %138, %139, %cst_151 {dimension_numbers = #tpu.dot_dimension_numbers<[1], [0], [0], [1], [0, 0, 1, 1], [], []>} : vector<8x50xf32>, vector<50x10xf32>, vector<8x10xf32> -> vector<8x10xf32>
    %c0_152 = arith.constant 0 : index
    %c0_153 = arith.constant 0 : index
    %141 = vector.load %arg16[%c0_152, %c0_153] : memref<1x10xf32, #tpu.memory_space<vmem>>, vector<1x10xf32>
    %142 = vector.broadcast %141 : vector<1x10xf32> to vector<8x10xf32>
    %143 = arith.addf %140, %142 : vector<8x10xf32>
    %cst_154 = arith.constant dense<0xFF800000> : vector<8xf32>
    %144 = vector.multi_reduction <maximumf>, %143, %cst_154 [1] : vector<8x10xf32> to vector<8xf32>
    %145 = vector.shape_cast %144 : vector<8xf32> to vector<8x1xf32>
    %146 = vector.broadcast %145 : vector<8x1xf32> to vector<8x10xf32>
    %147 = arith.subf %143, %146 : vector<8x10xf32>
    %148 = math.exp %147 : vector<8x10xf32>
    %cst_155 = arith.constant dense<0.000000e+00> : vector<8xf32>
    %149 = vector.multi_reduction <add>, %148, %cst_155 [1] : vector<8x10xf32> to vector<8xf32>
    %150 = vector.shape_cast %149 : vector<8xf32> to vector<8x1xf32>
    %151 = math.log %150 : vector<8x1xf32>
    %152 = vector.broadcast %151 : vector<8x1xf32> to vector<8x10xf32>
    %153 = arith.subf %147, %152 : vector<8x10xf32>
    %c0_156 = arith.constant 0 : index
    %c0_157 = arith.constant 0 : index
    %154 = vector.load %arg17[%c0_156, %c0_157] : memref<8x10xf32, #tpu.memory_space<vmem>>, vector<8x10xf32>
    tpu.vector_store %arg17[%c0_156, %c0_157], %153 {strides = array<i32>} : memref<8x10xf32, #tpu.memory_space<vmem>>, vector<8x10xf32>,
    return
  }
  func.func @transform_0(%arg0: i32) -> (i32, i32) {
    %c0_i32 = arith.constant 0 : i32
    %c0_i32_0 = arith.constant 0 : i32
    return %arg0, %c0_i32 : i32, i32
  }
  func.func @transform_1(%arg0: i32) -> (i32, i32, i32) {
    %c0_i32 = arith.constant 0 : i32
    %c0_i32_0 = arith.constant 0 : i32
    %c0_i32_1 = arith.constant 0 : i32
    %c0_i32_2 = arith.constant 0 : i32
    return %c0_i32, %c0_i32_0, %c0_i32_1 : i32, i32, i32
  }
  func.func @transform_2(%arg0: i32) -> (i32, i32, i32) {
    %c0_i32 = arith.constant 0 : i32
    %c0_i32_0 = arith.constant 0 : i32
    %c0_i32_1 = arith.constant 0 : i32
    %c0_i32_2 = arith.constant 0 : i32
    return %c0_i32, %c0_i32_0, %c0_i32_1 : i32, i32, i32
  }
  func.func @transform_3(%arg0: i32) -> (i32, i32) {
    %c0_i32 = arith.constant 0 : i32
    %c0_i32_0 = arith.constant 0 : i32
    %c0_i32_1 = arith.constant 0 : i32
    return %c0_i32, %c0_i32_0 : i32, i32
  }
  func.func @transform_4(%arg0: i32) -> (i32, i32, i32) {
    %c0_i32 = arith.constant 0 : i32
    %c0_i32_0 = arith.constant 0 : i32
    %c0_i32_1 = arith.constant 0 : i32
    %c0_i32_2 = arith.constant 0 : i32
    return %c0_i32, %c0_i32_0, %c0_i32_1 : i32, i32, i32
  }
  func.func @transform_5(%arg0: i32) -> (i32, i32, i32) {
    %c0_i32 = arith.constant 0 : i32
    %c0_i32_0 = arith.constant 0 : i32
    %c0_i32_1 = arith.constant 0 : i32
    %c0_i32_2 = arith.constant 0 : i32
    return %c0_i32, %c0_i32_0, %c0_i32_1 : i32, i32, i32
  }
  func.func @transform_6(%arg0: i32) -> (i32, i32, i32) {
    %c0_i32 = arith.constant 0 : i32
    %c0_i32_0 = arith.constant 0 : i32
    %c0_i32_1 = arith.constant 0 : i32
    %c0_i32_2 = arith.constant 0 : i32
    return %c0_i32, %c0_i32_0, %c0_i32_1 : i32, i32, i32
  }
  func.func @transform_7(%arg0: i32) -> (i32, i32, i32) {
    %c0_i32 = arith.constant 0 : i32
    %c0_i32_0 = arith.constant 0 : i32
    %c0_i32_1 = arith.constant 0 : i32
    %c0_i32_2 = arith.constant 0 : i32
    return %c0_i32, %c0_i32_0, %c0_i32_1 : i32, i32, i32
  }
  func.func @transform_8(%arg0: i32) -> (i32, i32) {
    %c0_i32 = arith.constant 0 : i32
    %c0_i32_0 = arith.constant 0 : i32
    %c0_i32_1 = arith.constant 0 : i32
    return %c0_i32, %c0_i32_0 : i32, i32
  }
  func.func @transform_9(%arg0: i32) -> (i32, i32, i32) {
    %c0_i32 = arith.constant 0 : i32
    %c0_i32_0 = arith.constant 0 : i32
    %c0_i32_1 = arith.constant 0 : i32
    %c0_i32_2 = arith.constant 0 : i32
    return %c0_i32, %c0_i32_0, %c0_i32_1 : i32, i32, i32
  }
  func.func @transform_10(%arg0: i32) -> (i32, i32, i32) {
    %c0_i32 = arith.constant 0 : i32
    %c0_i32_0 = arith.constant 0 : i32
    %c0_i32_1 = arith.constant 0 : i32
    %c0_i32_2 = arith.constant 0 : i32
    return %c0_i32, %c0_i32_0, %c0_i32_1 : i32, i32, i32
  }
  func.func @transform_11(%arg0: i32) -> (i32, i32, i32) {
    %c0_i32 = arith.constant 0 : i32
    %c0_i32_0 = arith.constant 0 : i32
    %c0_i32_1 = arith.constant 0 : i32
    %c0_i32_2 = arith.constant 0 : i32
    return %c0_i32, %c0_i32_0, %c0_i32_1 : i32, i32, i32
  }
  func.func @transform_12(%arg0: i32) -> (i32, i32, i32) {
    %c0_i32 = arith.constant 0 : i32
    %c0_i32_0 = arith.constant 0 : i32
    %c0_i32_1 = arith.constant 0 : i32
    %c0_i32_2 = arith.constant 0 : i32
    return %c0_i32, %c0_i32_0, %c0_i32_1 : i32, i32, i32
  }
  func.func @transform_13(%arg0: i32) -> (i32, i32) {
    %c0_i32 = arith.constant 0 : i32
    %c0_i32_0 = arith.constant 0 : i32
    %c0_i32_1 = arith.constant 0 : i32
    return %c0_i32, %c0_i32_0 : i32, i32
  }
  func.func @transform_14(%arg0: i32) -> (i32, i32) {
    %c0_i32 = arith.constant 0 : i32
    %c0_i32_0 = arith.constant 0 : i32
    %c0_i32_1 = arith.constant 0 : i32
    return %c0_i32, %c0_i32_0 : i32, i32
  }
  func.func @transform_15(%arg0: i32) -> (i32, i32) {
    %c0_i32 = arith.constant 0 : i32
    %c0_i32_0 = arith.constant 0 : i32
    %c0_i32_1 = arith.constant 0 : i32
    return %c0_i32, %c0_i32_0 : i32, i32
  }
  func.func @transform_16(%arg0: i32) -> (i32, i32) {
    %c0_i32 = arith.constant 0 : i32
    %c0_i32_0 = arith.constant 0 : i32
    return %arg0, %c0_i32 : i32, i32
  }
}

</mosaic_0001>

<llo_original>
// kernel: net_forward.1
$region0: #{net_forward.1}
  #allocation0 [shape = 'u32[]', space=smem, size = 0x4, offset = 0x4, fixed_abs, tag = 'smem constant byte address 0x4 - core index']
  #allocation1 [shape = 'u32[144,128]{1,0:T(1,128)}', space=vmem, size = 0x12000, scoped, tag = 'internal scratch']
  %s0 = inlined_call_operand.vmem [shape: f32[224,28], index: 0, kind: input, shape index: {}]
  %s1 = inlined_call_operand.vmem [shape: f32[5,192,224], index: 1, kind: input, shape index: {}]
  %s2 = inlined_call_operand.vmem [shape: f32[5,28,240], index: 2, kind: input, shape index: {}]
  %s3 = inlined_call_operand.vmem [shape: f32[1,240], index: 3, kind: input, shape index: {}]
  %s4 = inlined_call_operand.vmem [shape: f32[2,96,192], index: 4, kind: input, shape index: {}]
  %s5 = inlined_call_operand.vmem [shape: f32[2,240,120], index: 5, kind: input, shape index: {}]
  %s6 = inlined_call_operand.vmem [shape: f32[5,64,96], index: 6, kind: input, shape index: {}]
  %s7 = inlined_call_operand.vmem [shape: f32[5,120,160], index: 7, kind: input, shape index: {}]
  %s8 = inlined_call_operand.vmem [shape: f32[1,160], index: 8, kind: input, shape index: {}]
  %s9 = inlined_call_operand.vmem [shape: f32[2,32,64], index: 9, kind: input, shape index: {}]
  %s10 = inlined_call_operand.vmem [shape: f32[2,160,80], index: 10, kind: input, shape index: {}]
  %s11 = inlined_call_operand.vmem [shape: f32[4,8,32], index: 11, kind: input, shape index: {}]
  %s12 = inlined_call_operand.vmem [shape: f32[4,80,50], index: 12, kind: input, shape index: {}]
  %s13 = inlined_call_operand.vmem [shape: f32[1,50], index: 13, kind: input, shape index: {}]
  %s14 = inlined_call_operand.vmem [shape: f32[50,10], index: 14, kind: input, shape index: {}]
  %s15 = inlined_call_operand.vmem [shape: f32[1,10], index: 15, kind: input, shape index: {}]
  %s16 = inlined_call_operand.vmem [shape: f32[8,10], index: 16, kind: output, shape index: {}]
  %s17 = sld [smem:[#allocation0]]
  $region74: #{net_forward.1} parent=0
    _
  %s19 = ssub.s32 1, %s17
  %s20 = scalar_select 0, %s19, %s17
  // Predicated region
  $region2: #{net_forward.1} parent=0 // pred_check
    _
  $region3: #{net_forward.1} parent=0 // pred_check_branch
    %22 = sbr.rel (0) target = $region5
  $region4: #{net_forward.1} parent=0 // pred_region
    _
  $region5: #{net_forward.1} parent=0 // pred_fallthru
    _
  // Predicated region
  $region6: #{net_forward.1} parent=0 // pred_check
    _
  $region7: #{net_forward.1} parent=0 // pred_check_branch
    %24 = sbr.rel (0) target = $region9
  $region8: #{net_forward.1} parent=0 // pred_region
    _
  $region9: #{net_forward.1} parent=0 // pred_fallthru
    _
  // Predicated region
  $region10: #{net_forward.1} parent=0 // pred_check
    _
  $region11: #{net_forward.1} parent=0 // pred_check_branch
    %26 = sbr.rel (0) target = $region13
  $region12: #{net_forward.1} parent=0 // pred_region
    _
  $region13: #{net_forward.1} parent=0 // pred_fallthru
    _
  // Predicated region
  $region14: #{net_forward.1} parent=0 // pred_check
    _
  $region15: #{net_forward.1} parent=0 // pred_check_branch
    %28 = sbr.rel (0) target = $region17
  $region16: #{net_forward.1} parent=0 // pred_region
    _
  $region17: #{net_forward.1} parent=0 // pred_fallthru
    _
  // Predicated region
  $region18: #{net_forward.1} parent=0 // pred_check
    _
  $region19: #{net_forward.1} parent=0 // pred_check_branch
    %30 = sbr.rel (0) target = $region21
  $region20: #{net_forward.1} parent=0 // pred_region
    _
  $region21: #{net_forward.1} parent=0 // pred_fallthru
    _
  // Predicated region
  $region22: #{net_forward.1} parent=0 // pred_check
    _
  $region23: #{net_forward.1} parent=0 // pred_check_branch
    %32 = sbr.rel (0) target = $region25
  $region24: #{net_forward.1} parent=0 // pred_region
    _
  $region25: #{net_forward.1} parent=0 // pred_fallthru
    _
  // Predicated region
  $region26: #{net_forward.1} parent=0 // pred_check
    _
  $region27: #{net_forward.1} parent=0 // pred_check_branch
    %34 = sbr.rel (0) target = $region29
  $region28: #{net_forward.1} parent=0 // pred_region
    _
  $region29: #{net_forward.1} parent=0 // pred_fallthru
    _
  // Predicated region
  $region30: #{net_forward.1} parent=0 // pred_check
    _
  $region31: #{net_forward.1} parent=0 // pred_check_branch
    %36 = sbr.rel (0) target = $region33
  $region32: #{net_forward.1} parent=0 // pred_region
    _
  $region33: #{net_forward.1} parent=0 // pred_fallthru
    _
  // Predicated region
  $region34: #{net_forward.1} parent=0 // pred_check
    _
  $region35: #{net_forward.1} parent=0 // pred_check_branch
    %38 = sbr.rel (0) target = $region37
  $region36: #{net_forward.1} parent=0 // pred_region
    _
  $region37: #{net_forward.1} parent=0 // pred_fallthru
    _
  // Predicated region
  $region38: #{net_forward.1} parent=0 // pred_check
    _
  $region39: #{net_forward.1} parent=0 // pred_check_branch
    %40 = sbr.rel (0) target = $region41
  $region40: #{net_forward.1} parent=0 // pred_region
    _
  $region41: #{net_forward.1} parent=0 // pred_fallthru
    _
  // Predicated region
  $region42: #{net_forward.1} parent=0 // pred_check
    _
  $region43: #{net_forward.1} parent=0 // pred_check_branch
    %42 = sbr.rel (0) target = $region45
  $region44: #{net_forward.1} parent=0 // pred_region
    _
  $region45: #{net_forward.1} parent=0 // pred_fallthru
    _
  // Predicated region
  $region46: #{net_forward.1} parent=0 // pred_check
    _
  $region47: #{net_forward.1} parent=0 // pred_check_branch
    %44 = sbr.rel (0) target = $region49
  $region48: #{net_forward.1} parent=0 // pred_region
    _
  $region49: #{net_forward.1} parent=0 // pred_fallthru
    _
  // Predicated region
  $region50: #{net_forward.1} parent=0 // pred_check
    _
  $region51: #{net_forward.1} parent=0 // pred_check_branch
    %46 = sbr.rel (0) target = $region53
  $region52: #{net_forward.1} parent=0 // pred_region
    _
  $region53: #{net_forward.1} parent=0 // pred_fallthru
    _
  // Predicated region
  $region54: #{net_forward.1} parent=0 // pred_check
    _
  $region55: #{net_forward.1} parent=0 // pred_check_branch
    %48 = sbr.rel (0) target = $region57
  $region56: #{net_forward.1} parent=0 // pred_region
    _
  $region57: #{net_forward.1} parent=0 // pred_fallthru
    _
  // Predicated region
  $region58: #{net_forward.1} parent=0 // pred_check
    _
  $region59: #{net_forward.1} parent=0 // pred_check_branch
    %50 = sbr.rel (0) target = $region61
  $region60: #{net_forward.1} parent=0 // pred_region
    _
  $region61: #{net_forward.1} parent=0 // pred_fallthru
    _
  // Predicated region
  $region62: #{net_forward.1} parent=0 // pred_check
    _
  $region63: #{net_forward.1} parent=0 // pred_check_branch
    %52 = sbr.rel (0) target = $region65
  $region64: #{net_forward.1} parent=0 // pred_region
    _
  $region65: #{net_forward.1} parent=0 // pred_fallthru
    _
  %v53 = vld [vmem:[%s0] sm:$0xff]
  %v54 = vld [vmem:[%s0 + $0x8] sm:$0xff]
  %v55 = vld [vmem:[%s0 + $0x10] sm:$0xff]
  %v56 = vld [vmem:[%s0 + $0x18] sm:$0xff]
  %v57 = vld [vmem:[%s0 + $0x20] sm:$0xff]
  %v58 = vld [vmem:[%s0 + $0x28] sm:$0xff]
  %v59 = vld [vmem:[%s0 + $0x30] sm:$0xff]
  %v60 = vld [vmem:[%s0 + $0x38] sm:$0xff]
  %v61 = vld [vmem:[%s0 + $0x40] sm:$0xff]
  %v62 = vld [vmem:[%s0 + $0x48] sm:$0xff]
  %v63 = vld [vmem:[%s0 + $0x50] sm:$0xff]
  %v64 = vld [vmem:[%s0 + $0x58] sm:$0xff]
  %v65 = vld [vmem:[%s0 + $0x60] sm:$0xff]
  %v66 = vld [vmem:[%s0 + $0x68] sm:$0xff]
  %v67 = vld [vmem:[%s0 + $0x70] sm:$0xff]
  %v68 = vld [vmem:[%s0 + $0x78] sm:$0xff]
  %v69 = vld [vmem:[%s0 + $0x80] sm:$0xff]
  %v70 = vld [vmem:[%s0 + $0x88] sm:$0xff]
  %v71 = vld [vmem:[%s0 + $0x90] sm:$0xff]
  %v72 = vld [vmem:[%s0 + $0x98] sm:$0xff]
  %v73 = vld [vmem:[%s0 + $0xa0] sm:$0xff]
  %v74 = vld [vmem:[%s0 + $0xa8] sm:$0xff]
  %v75 = vld [vmem:[%s0 + $0xb0] sm:$0xff]
  %v76 = vld [vmem:[%s0 + $0xb8] sm:$0xff]
  %v77 = vld [vmem:[%s0 + $0xc0] sm:$0xff]
  %v78 = vld [vmem:[%s0 + $0xc8] sm:$0xff]
  %v79 = vld [vmem:[%s0 + $0xd0] sm:$0xff]
  %v80 = vld [vmem:[%s0 + $0xd8] sm:$0xff]
  %v81 = vld [vmem:[%s1] sm:$0xff]
  %v82 = vld [vmem:[%s1 + $0x8] sm:$0xff]
  %v83 = vld [vmem:[%s1 + $0x10] sm:$0xff]
  %v84 = vld [vmem:[%s1 + $0x18] sm:$0xff]
  %v85 = vld [vmem:[%s1 + $0x20] sm:$0xff]
  %v86 = vld [vmem:[%s1 + $0x28] sm:$0xff]
  %v87 = vld [vmem:[%s1 + $0x30] sm:$0xff]
  %v88 = vld [vmem:[%s1 + $0x38] sm:$0xff]
  %v89 = vld [vmem:[%s1 + $0x40] sm:$0xff]
  %v90 = vld [vmem:[%s1 + $0x48] sm:$0xff]
  %v91 = vld [vmem:[%s1 + $0x50] sm:$0xff]
  %v92 = vld [vmem:[%s1 + $0x58] sm:$0xff]
  %v93 = vld [vmem:[%s1 + $0x60] sm:$0xff]
  %v94 = vld [vmem:[%s1 + $0x68] sm:$0xff]
  %v95 = vld [vmem:[%s1 + $0x70] sm:$0xff]
  %v96 = vld [vmem:[%s1 + $0x78] sm:$0xff]
  %v97 = vld [vmem:[%s1 + $0x80] sm:$0xff]
  %v98 = vld [vmem:[%s1 + $0x88] sm:$0xff]
  %v99 = vld [vmem:[%s1 + $0x90] sm:$0xff]
  %v100 = vld [vmem:[%s1 + $0x98] sm:$0xff]
  %v101 = vld [vmem:[%s1 + $0xa0] sm:$0xff]
  %v102 = vld [vmem:[%s1 + $0xa8] sm:$0xff]
  %v103 = vld [vmem:[%s1 + $0xb0] sm:$0xff]
  %v104 = vld [vmem:[%s1 + $0xb8] sm:$0xff]
  %v105 = vld [vmem:[%s1 + $0xc0] sm:$0xff]
  %v106 = vld [vmem:[%s1 + $0xc8] sm:$0xff]
  %v107 = vld [vmem:[%s1 + $0xd0] sm:$0xff]
  %v108 = vld [vmem:[%s1 + $0xd8] sm:$0xff]
  %v109 = vld [vmem:[%s1 + $0xe0] sm:$0xff]
  %v110 = vld [vmem:[%s1 + $0xe8] sm:$0xff]
  %v111 = vld [vmem:[%s1 + $0xf0] sm:$0xff]
  %v112 = vld [vmem:[%s1 + $0xf8] sm:$0xff]
  %v113 = vld [vmem:[%s1 + $0x100] sm:$0xff]
  %v114 = vld [vmem:[%s1 + $0x108] sm:$0xff]
  %v115 = vld [vmem:[%s1 + $0x110] sm:$0xff]
  %v116 = vld [vmem:[%s1 + $0x118] sm:$0xff]
  %v117 = vld [vmem:[%s1 + $0x120] sm:$0xff]
  %v118 = vld [vmem:[%s1 + $0x128] sm:$0xff]
  %v119 = vld [vmem:[%s1 + $0x130] sm:$0xff]
  %v120 = vld [vmem:[%s1 + $0x138] sm:$0xff]
  %v121 = vld [vmem:[%s1 + $0x140] sm:$0xff]
  %v122 = vld [vmem:[%s1 + $0x148] sm:$0xff]
  %v123 = vld [vmem:[%s1 + $0x150] sm:$0xff]
  %v124 = vld [vmem:[%s1 + $0x158] sm:$0xff]
  %v125 = vld [vmem:[%s1 + $0x160] sm:$0xff]
  %v126 = vld [vmem:[%s1 + $0x168] sm:$0xff]
  %v127 = vld [vmem:[%s1 + $0x170] sm:$0xff]
  %v128 = vld [vmem:[%s1 + $0x178] sm:$0xff]
  %vm129 = vcmask 785408
  %v131 = vsel %vm129, %v82, 0
  %v134 = vsel %vm129, %v84, 0
  %v137 = vsel %vm129, %v86, 0
  %v140 = vsel %vm129, %v88, 0
  %v143 = vsel %vm129, %v90, 0
  %v146 = vsel %vm129, %v92, 0
  %v149 = vsel %vm129, %v94, 0
  %v152 = vsel %vm129, %v96, 0
  %v155 = vsel %vm129, %v98, 0
  %v158 = vsel %vm129, %v100, 0
  %v161 = vsel %vm129, %v102, 0
  %v164 = vsel %vm129, %v104, 0
  %v167 = vsel %vm129, %v106, 0
  %v170 = vsel %vm129, %v108, 0
  %v173 = vsel %vm129, %v110, 0
  %v176 = vsel %vm129, %v112, 0
  %v179 = vsel %vm129, %v114, 0
  %v182 = vsel %vm129, %v116, 0
  %v185 = vsel %vm129, %v118, 0
  %v188 = vsel %vm129, %v120, 0
  %v191 = vsel %vm129, %v122, 0
  %v194 = vsel %vm129, %v124, 0
  %v197 = vsel %vm129, %v126, 0
  %v200 = vsel %vm129, %v128, 0
  %202 = vmatprep.subr.mxu0 0.0
  %203 = vmatpush1.msra.mxu0 %v53
  %204 = vmatprep.subr.mxu0 0.0
  %205 = vmatpush1.msra.mxu0 %v54
  %206 = vmatprep.subr.mxu0 0.0
  %207 = vmatpush1.msra.mxu0 %v55
  %208 = vmatprep.subr.mxu0 0.0
  %209 = vmatpush1.msra.mxu0 %v56
  %210 = vmatprep.subr.mxu0 0.0
  %211 = vmatpush1.msra.mxu0 %v57
  %212 = vmatprep.subr.mxu0 0.0
  %213 = vmatpush1.msra.mxu0 %v58
  %214 = vmatprep.subr.mxu0 0.0
  %215 = vmatpush1.msra.mxu0 %v59
  %216 = vmatprep.subr.mxu0 0.0
  %217 = vmatpush1.msra.mxu0 %v60
  %218 = vmatprep.subr.mxu0 0.0
  %219 = vmatpush1.msra.mxu0 %v61
  %220 = vmatprep.subr.mxu0 0.0
  %221 = vmatpush1.msra.mxu0 %v62
  %222 = vmatprep.subr.mxu0 0.0
  %223 = vmatpush1.msra.mxu0 %v63
  %224 = vmatprep.subr.mxu0 0.0
  %225 = vmatpush1.msra.mxu0 %v64
  %226 = vmatprep.subr.mxu0 0.0
  %227 = vmatpush1.msra.mxu0 %v65
  %228 = vmatprep.subr.mxu0 0.0
  %229 = vmatpush1.msra.mxu0 %v66
  %230 = vmatprep.subr.mxu0 0.0
  %231 = vmatpush1.msra.mxu0 %v67
  %232 = vmatprep.subr.mxu0 0.0
  %233 = vmatpush1.msra.mxu0 %v68
  %234 = vmatprep.subr.mxu0 0.0
  %235 = vmatpush1.msra.mxu0 %v69
  %236 = vmatprep.subr.mxu0 0.0
  %237 = vmatpush1.msra.mxu0 %v70
  %238 = vmatprep.subr.mxu0 0.0
  %239 = vmatpush1.msra.mxu0 %v71
  %240 = vmatprep.subr.mxu0 0.0
  %241 = vmatpush1.msra.mxu0 %v72
  %242 = vmatprep.subr.mxu0 0.0
  %243 = vmatpush1.msra.mxu0 %v73
  %244 = vmatprep.subr.mxu0 0.0
  %245 = vmatpush1.msra.mxu0 %v74
  %246 = vmatprep.subr.mxu0 0.0
  %247 = vmatpush1.msra.mxu0 %v75
  %248 = vmatprep.subr.mxu0 0.0
  %249 = vmatpush1.msra.mxu0 %v76
  %250 = vmatprep.subr.mxu0 0.0
  %251 = vmatpush1.msra.mxu0 %v77
  %252 = vmatprep.subr.mxu0 0.0
  %253 = vmatpush1.msra.mxu0 %v78
  %254 = vmatprep.subr.mxu0 0.0
  %255 = vmatpush1.msra.mxu0 %v79
  %256 = vmatprep.subr.mxu0 0.0
  %257 = vmatpush1.msra.mxu0 %v80
  %258 = vmatprep.subr.mxu0 0.0
  %259 = vmatpush1.msra.mxu0 0.0
  %260 = vmatprep.subr.mxu0 0.0
  %261 = vmatpush1.msra.mxu0 0.0
  %262 = vmatprep.subr.mxu0 0.0
  %263 = vmatpush1.msra.mxu0 0.0
  %264 = vmatprep.subr.mxu0 0.0
  %265 = vmatpush1.msra.mxu0 0.0
  %266 = vmatprep.mubr.f32.mxu0 %v131
  %267 = vmatmul.mubr.f32.gmra.mrb[0].mxu0 %v81
  %v268 = vpop.f32.mrb[0].mxu0
  %v269 = vadd.f32 0.0, %v268
  %v270 = vpop.f32.mrb[0].mxu0
  %271 = vmatprep.mubr.f32.mxu0 %v134
  %272 = vmatmul.mubr.f32.gmra.mrb[0].mxu0 %v83
  %v273 = vpop.f32.mrb[0].mxu0
  %v274 = vadd.f32 0.0, %v273
  %v275 = vpop.f32.mrb[0].mxu0
  %276 = vmatprep.mubr.f32.mxu0 %v137
  %277 = vmatmul.mubr.f32.gmra.mrb[0].mxu0 %v85
  %v278 = vpop.f32.mrb[0].mxu0
  %v279 = vadd.f32 0.0, %v278
  %v280 = vpop.f32.mrb[0].mxu0
  %281 = vmatprep.mubr.f32.mxu0 %v140
  %282 = vmatmul.mubr.f32.gmra.mrb[0].mxu0 %v87
  %v283 = vpop.f32.mrb[0].mxu0
  %v284 = vadd.f32 0.0, %v283
  %v285 = vpop.f32.mrb[0].mxu0
  %286 = vmatprep.mubr.f32.mxu0 %v143
  %287 = vmatmul.mubr.f32.gmra.mrb[0].mxu0 %v89
  %v288 = vpop.f32.mrb[0].mxu0
  %v289 = vadd.f32 0.0, %v288
  %v290 = vpop.f32.mrb[0].mxu0
  %291 = vmatprep.mubr.f32.mxu0 %v146
  %292 = vmatmul.mubr.f32.gmra.mrb[0].mxu0 %v91
  %v293 = vpop.f32.mrb[0].mxu0
  %v294 = vadd.f32 0.0, %v293
  %v295 = vpop.f32.mrb[0].mxu0
  %296 = vmatprep.mubr.f32.mxu0 %v149
  %297 = vmatmul.mubr.f32.gmra.mrb[0].mxu0 %v93
  %v298 = vpop.f32.mrb[0].mxu0
  %v299 = vadd.f32 0.0, %v298
  %v300 = vpop.f32.mrb[0].mxu0
  %301 = vmatprep.mubr.f32.mxu0 %v152
  %302 = vmatmul.mubr.f32.gmra.mrb[0].mxu0 %v95
  %v303 = vpop.f32.mrb[0].mxu0
  %v304 = vadd.f32 0.0, %v303
  %v305 = vpop.f32.mrb[0].mxu0
  %306 = vmatprep.mubr.f32.mxu0 %v155
  %307 = vmatmul.mubr.f32.gmra.mrb[0].mxu0 %v97
  %v308 = vpop.f32.mrb[0].mxu0
  %v309 = vadd.f32 0.0, %v308
  %v310 = vpop.f32.mrb[0].mxu0
  %311 = vmatprep.mubr.f32.mxu0 %v158
  %312 = vmatmul.mubr.f32.gmra.mrb[0].mxu0 %v99
  %v313 = vpop.f32.mrb[0].mxu0
  %v314 = vadd.f32 0.0, %v313
  %v315 = vpop.f32.mrb[0].mxu0
  %316 = vmatprep.mubr.f32.mxu0 %v161
  %317 = vmatmul.mubr.f32.gmra.mrb[0].mxu0 %v101
  %v318 = vpop.f32.mrb[0].mxu0
  %v319 = vadd.f32 0.0, %v318
  %v320 = vpop.f32.mrb[0].mxu0
  %321 = vmatprep.mubr.f32.mxu0 %v164
  %322 = vmatmul.mubr.f32.gmra.mrb[0].mxu0 %v103
  %v323 = vpop.f32.mrb[0].mxu0
  %v324 = vadd.f32 0.0, %v323
  %v325 = vpop.f32.mrb[0].mxu0
  %326 = vmatprep.mubr.f32.mxu0 %v167
  %327 = vmatmul.mubr.f32.gmra.mrb[0].mxu0 %v105
  %v328 = vpop.f32.mrb[0].mxu0
  %v329 = vadd.f32 0.0, %v328
  %v330 = vpop.f32.mrb[0].mxu0
  %331 = vmatprep.mubr.f32.mxu0 %v170
  %332 = vmatmul.mubr.f32.gmra.mrb[0].mxu0 %v107
  %v333 = vpop.f32.mrb[0].mxu0
  %v334 = vadd.f32 0.0, %v333
  %v335 = vpop.f32.mrb[0].mxu0
  %336 = vmatprep.mubr.f32.mxu0 %v173
  %337 = vmatmul.mubr.f32.gmra.mrb[0].mxu0 %v109
  %v338 = vpop.f32.mrb[0].mxu0
  %v339 = vadd.f32 0.0, %v338
  %v340 = vpop.f32.mrb[0].mxu0
  %341 = vmatprep.mubr.f32.mxu0 %v176
  %342 = vmatmul.mubr.f32.gmra.mrb[0].mxu0 %v111
  %v343 = vpop.f32.mrb[0].mxu0
  %v344 = vadd.f32 0.0, %v343
  %v345 = vpop.f32.mrb[0].mxu0
  %346 = vmatprep.mubr.f32.mxu0 %v179
  %347 = vmatmul.mubr.f32.gmra.mrb[0].mxu0 %v113
  %v348 = vpop.f32.mrb[0].mxu0
  %v349 = vadd.f32 0.0, %v348
  %v350 = vpop.f32.mrb[0].mxu0
  %351 = vmatprep.mubr.f32.mxu0 %v182
  %352 = vmatmul.mubr.f32.gmra.mrb[0].mxu0 %v115
  %v353 = vpop.f32.mrb[0].mxu0
  %v354 = vadd.f32 0.0, %v353
  %v355 = vpop.f32.mrb[0].mxu0
  %356 = vmatprep.mubr.f32.mxu0 %v185
  %357 = vmatmul.mubr.f32.gmra.mrb[0].mxu0 %v117
  %v358 = vpop.f32.mrb[0].mxu0
  %v359 = vadd.f32 0.0, %v358
  %v360 = vpop.f32.mrb[0].mxu0
  %361 = vmatprep.mubr.f32.mxu0 %v188
  %362 = vmatmul.mubr.f32.gmra.mrb[0].mxu0 %v119
  %v363 = vpop.f32.mrb[0].mxu0
  %v364 = vadd.f32 0.0, %v363
  %v365 = vpop.f32.mrb[0].mxu0
  %366 = vmatprep.mubr.f32.mxu0 %v191
  %367 = vmatmul.mubr.f32.gmra.mrb[0].mxu0 %v121
  %v368 = vpop.f32.mrb[0].mxu0
  %v369 = vadd.f32 0.0, %v368
  %v370 = vpop.f32.mrb[0].mxu0
  %371 = vmatprep.mubr.f32.mxu0 %v194
  %372 = vmatmul.mubr.f32.gmra.mrb[0].mxu0 %v123
  %v373 = vpop.f32.mrb[0].mxu0
  %v374 = vadd.f32 0.0, %v373
  %v375 = vpop.f32.mrb[0].mxu0
  %376 = vmatprep.mubr.f32.mxu0 %v197
  %377 = vmatmul.mubr.f32.gmra.mrb[0].mxu0 %v125
  %v378 = vpop.f32.mrb[0].mxu0
  %v379 = vadd.f32 0.0, %v378
  %v380 = vpop.f32.mrb[0].mxu0
  %381 = vmatprep.mubr.f32.mxu0 %v200
  %382 = vmatmul.mubr.f32.gmra.mrb[0].mxu0 %v127
  %v383 = vpop.f32.mrb[0].mxu0
  %v384 = vadd.f32 0.0, %v383
  %v385 = vpop.f32.mrb[0].mxu0
  %386 = vdwg.mxu0
  %v387 = vld [vmem:[%s2] sm:$0xff]
  %v388 = vld [vmem:[%s2 + $0x8] sm:$0xff]
  %v389 = vld [vmem:[%s2 + $0x10] sm:$0xff]
  %v390 = vld [vmem:[%s2 + $0x18] sm:$0xff]
  %v391 = vld [vmem:[%s2 + $0x20] sm:$0xff]
  %v392 = vld [vmem:[%s2 + $0x28] sm:$0xff]
  %v393 = vld [vmem:[%s2 + $0x30] sm:$0xf]
  %v394 = vld [vmem:[%s2 + $0x38] sm:$0xf]
  %s395 = scalar_lea.vmem %s1, 384
  %v396 = vld [vmem:[%s395] sm:$0xff]
  %v397 = vld [vmem:[%s395 + $0x8] sm:$0xff]
  %v398 = vld [vmem:[%s395 + $0x10] sm:$0xff]
  %v399 = vld [vmem:[%s395 + $0x18] sm:$0xff]
  %v400 = vld [vmem:[%s395 + $0x20] sm:$0xff]
  %v401 = vld [vmem:[%s395 + $0x28] sm:$0xff]
  %v402 = vld [vmem:[%s395 + $0x30] sm:$0xff]
  %v403 = vld [vmem:[%s395 + $0x38] sm:$0xff]
  %v404 = vld [vmem:[%s395 + $0x40] sm:$0xff]
  %v405 = vld [vmem:[%s395 + $0x48] sm:$0xff]
  %v406 = vld [vmem:[%s395 + $0x50] sm:$0xff]
  %v407 = vld [vmem:[%s395 + $0x58] sm:$0xff]
  %v408 = vld [vmem:[%s395 + $0x60] sm:$0xff]
  %v409 = vld [vmem:[%s395 + $0x68] sm:$0xff]
  %v410 = vld [vmem:[%s395 + $0x70] sm:$0xff]
  %v411 = vld [vmem:[%s395 + $0x78] sm:$0xff]
  %v412 = vld [vmem:[%s395 + $0x80] sm:$0xff]
  %v413 = vld [vmem:[%s395 + $0x88] sm:$0xff]
  %v414 = vld [vmem:[%s395 + $0x90] sm:$0xff]
  %v415 = vld [vmem:[%s395 + $0x98] sm:$0xff]
  %v416 = vld [vmem:[%s395 + $0xa0] sm:$0xff]
  %v417 = vld [vmem:[%s395 + $0xa8] sm:$0xff]
  %v418 = vld [vmem:[%s395 + $0xb0] sm:$0xff]
  %v419 = vld [vmem:[%s395 + $0xb8] sm:$0xff]
  %v420 = vld [vmem:[%s395 + $0xc0] sm:$0xff]
  %v421 = vld [vmem:[%s395 + $0xc8] sm:$0xff]
  %v422 = vld [vmem:[%s395 + $0xd0] sm:$0xff]
  %v423 = vld [vmem:[%s395 + $0xd8] sm:$0xff]
  %v424 = vld [vmem:[%s395 + $0xe0] sm:$0xff]
  %v425 = vld [vmem:[%s395 + $0xe8] sm:$0xff]
  %v426 = vld [vmem:[%s395 + $0xf0] sm:$0xff]
  %v427 = vld [vmem:[%s395 + $0xf8] sm:$0xff]
  %v428 = vld [vmem:[%s395 + $0x100] sm:$0xff]
  %v429 = vld [vmem:[%s395 + $0x108] sm:$0xff]
  %v430 = vld [vmem:[%s395 + $0x110] sm:$0xff]
  %v431 = vld [vmem:[%s395 + $0x118] sm:$0xff]
  %v432 = vld [vmem:[%s395 + $0x120] sm:$0xff]
  %v433 = vld [vmem:[%s395 + $0x128] sm:$0xff]
  %v434 = vld [vmem:[%s395 + $0x130] sm:$0xff]
  %v435 = vld [vmem:[%s395 + $0x138] sm:$0xff]
  %v436 = vld [vmem:[%s395 + $0x140] sm:$0xff]
  %v437 = vld [vmem:[%s395 + $0x148] sm:$0xff]
  %v438 = vld [vmem:[%s395 + $0x150] sm:$0xff]
  %v439 = vld [vmem:[%s395 + $0x158] sm:$0xff]
  %v440 = vld [vmem:[%s395 + $0x160] sm:$0xff]
  %v441 = vld [vmem:[%s395 + $0x168] sm:$0xff]
  %v442 = vld [vmem:[%s395 + $0x170] sm:$0xff]
  %v443 = vld [vmem:[%s395 + $0x178] sm:$0xff]
  %v445 = vsel %vm129, %v397, 0
  %v448 = vsel %vm129, %v399, 0
  %v451 = vsel %vm129, %v401, 0
  %v454 = vsel %vm129, %v403, 0
  %v457 = vsel %vm129, %v405, 0
  %v460 = vsel %vm129, %v407, 0
  %v463 = vsel %vm129, %v409, 0
  %v466 = vsel %vm129, %v411, 0
  %v469 = vsel %vm129, %v413, 0
  %v472 = vsel %vm129, %v415, 0
  %v475 = vsel %vm129, %v417, 0
  %v478 = vsel %vm129, %v419, 0
  %v481 = vsel %vm129, %v421, 0
  %v484 = vsel %vm129, %v423, 0
  %v487 = vsel %vm129, %v425, 0
  %v490 = vsel %vm129, %v427, 0
  %v493 = vsel %vm129, %v429, 0
  %v496 = vsel %vm129, %v431, 0
  %v499 = vsel %vm129, %v433, 0
  %v502 = vsel %vm129, %v435, 0
  %v505 = vsel %vm129, %v437, 0
  %v508 = vsel %vm129, %v439, 0
  %v511 = vsel %vm129, %v441, 0
  %v514 = vsel %vm129, %v443, 0
  %516 = vmatprep.subr.mxu0 0.0
  %517 = vmatpush1.msra.mxu0 %v53
  %518 = vmatprep.subr.mxu0 0.0
  %519 = vmatpush1.msra.mxu0 %v54
  %520 = vmatprep.subr.mxu0 0.0
  %521 = vmatpush1.msra.mxu0 %v55
  %522 = vmatprep.subr.mxu0 0.0
  %523 = vmatpush1.msra.mxu0 %v56
  %524 = vmatprep.subr.mxu0 0.0
  %525 = vmatpush1.msra.mxu0 %v57
  %526 = vmatprep.subr.mxu0 0.0
  %527 = vmatpush1.msra.mxu0 %v58
  %528 = vmatprep.subr.mxu0 0.0
  %529 = vmatpush1.msra.mxu0 %v59
  %530 = vmatprep.subr.mxu0 0.0
  %531 = vmatpush1.msra.mxu0 %v60
  %532 = vmatprep.subr.mxu0 0.0
  %533 = vmatpush1.msra.mxu0 %v61
  %534 = vmatprep.subr.mxu0 0.0
  %535 = vmatpush1.msra.mxu0 %v62
  %536 = vmatprep.subr.mxu0 0.0
  %537 = vmatpush1.msra.mxu0 %v63
  %538 = vmatprep.subr.mxu0 0.0
  %539 = vmatpush1.msra.mxu0 %v64
  %540 = vmatprep.subr.mxu0 0.0
  %541 = vmatpush1.msra.mxu0 %v65
  %542 = vmatprep.subr.mxu0 0.0
  %543 = vmatpush1.msra.mxu0 %v66
  %544 = vmatprep.subr.mxu0 0.0
  %545 = vmatpush1.msra.mxu0 %v67
  %546 = vmatprep.subr.mxu0 0.0
  %547 = vmatpush1.msra.mxu0 %v68
  %548 = vmatprep.subr.mxu0 0.0
  %549 = vmatpush1.msra.mxu0 %v69
  %550 = vmatprep.subr.mxu0 0.0
  %551 = vmatpush1.msra.mxu0 %v70
  %552 = vmatprep.subr.mxu0 0.0
  %553 = vmatpush1.msra.mxu0 %v71
  %554 = vmatprep.subr.mxu0 0.0
  %555 = vmatpush1.msra.mxu0 %v72
  %556 = vmatprep.subr.mxu0 0.0
  %557 = vmatpush1.msra.mxu0 %v73
  %558 = vmatprep.subr.mxu0 0.0
  %559 = vmatpush1.msra.mxu0 %v74
  %560 = vmatprep.subr.mxu0 0.0
  %561 = vmatpush1.msra.mxu0 %v75
  %562 = vmatprep.subr.mxu0 0.0
  %563 = vmatpush1.msra.mxu0 %v76
  %564 = vmatprep.subr.mxu0 0.0
  %565 = vmatpush1.msra.mxu0 %v77
  %566 = vmatprep.subr.mxu0 0.0
  %567 = vmatpush1.msra.mxu0 %v78
  %568 = vmatprep.subr.mxu0 0.0
  %569 = vmatpush1.msra.mxu0 %v79
  %570 = vmatprep.subr.mxu0 0.0
  %571 = vmatpush1.msra.mxu0 %v80
  %572 = vmatprep.subr.mxu0 0.0
  %573 = vmatpush1.msra.mxu0 0.0
  %574 = vmatprep.subr.mxu0 0.0
  %575 = vmatpush1.msra.mxu0 0.0
  %576 = vmatprep.subr.mxu0 0.0
  %577 = vmatpush1.msra.mxu0 0.0
  %578 = vmatprep.subr.mxu0 0.0
  %579 = vmatpush1.msra.mxu0 0.0
  %580 = vmatprep.mubr.f32.mxu0 %v445
  %581 = vmatmul.mubr.f32.gmra.mrb[0].mxu0 %v396
  %v582 = vpop.f32.mrb[0].mxu0
  %v583 = vadd.f32 0.0, %v582
  %v584 = vpop.f32.mrb[0].mxu0
  %585 = vmatprep.mubr.f32.mxu0 %v448
  %586 = vmatmul.mubr.f32.gmra.mrb[0].mxu0 %v398
  %v587 = vpop.f32.mrb[0].mxu0
  %v588 = vadd.f32 0.0, %v587
  %v589 = vpop.f32.mrb[0].mxu0
  %590 = vmatprep.mubr.f32.mxu0 %v451
  %591 = vmatmul.mubr.f32.gmra.mrb[0].mxu0 %v400
  %v592 = vpop.f32.mrb[0].mxu0
  %v593 = vadd.f32 0.0, %v592
  %v594 = vpop.f32.mrb[0].mxu0
  %595 = vmatprep.mubr.f32.mxu0 %v454
  %596 = vmatmul.mubr.f32.gmra.mrb[0].mxu0 %v402
  %v597 = vpop.f32.mrb[0].mxu0
  %v598 = vadd.f32 0.0, %v597
  %v599 = vpop.f32.mrb[0].mxu0
  %600 = vmatprep.mubr.f32.mxu0 %v457
  %601 = vmatmul.mubr.f32.gmra.mrb[0].mxu0 %v404
  %v602 = vpop.f32.mrb[0].mxu0
  %v603 = vadd.f32 0.0, %v602
  %v604 = vpop.f32.mrb[0].mxu0
  %605 = vmatprep.mubr.f32.mxu0 %v460
  %606 = vmatmul.mubr.f32.gmra.mrb[0].mxu0 %v406
  %v607 = vpop.f32.mrb[0].mxu0
  %v608 = vadd.f32 0.0, %v607
  %v609 = vpop.f32.mrb[0].mxu0
  %610 = vmatprep.mubr.f32.mxu0 %v463
  %611 = vmatmul.mubr.f32.gmra.mrb[0].mxu0 %v408
  %v612 = vpop.f32.mrb[0].mxu0
  %v613 = vadd.f32 0.0, %v612
  %v614 = vpop.f32.mrb[0].mxu0
  %615 = vmatprep.mubr.f32.mxu0 %v466
  %616 = vmatmul.mubr.f32.gmra.mrb[0].mxu0 %v410
  %v617 = vpop.f32.mrb[0].mxu0
  %v618 = vadd.f32 0.0, %v617
  %v619 = vpop.f32.mrb[0].mxu0
  %620 = vmatprep.mubr.f32.mxu0 %v469
  %621 = vmatmul.mubr.f32.gmra.mrb[0].mxu0 %v412
  %v622 = vpop.f32.mrb[0].mxu0
  %v623 = vadd.f32 0.0, %v622
  %v624 = vpop.f32.mrb[0].mxu0
  %625 = vmatprep.mubr.f32.mxu0 %v472
  %626 = vmatmul.mubr.f32.gmra.mrb[0].mxu0 %v414
  %v627 = vpop.f32.mrb[0].mxu0
  %v628 = vadd.f32 0.0, %v627
  %v629 = vpop.f32.mrb[0].mxu0
  %630 = vmatprep.mubr.f32.mxu0 %v475
  %631 = vmatmul.mubr.f32.gmra.mrb[0].mxu0 %v416
  %v632 = vpop.f32.mrb[0].mxu0
  %v633 = vadd.f32 0.0, %v632
  %v634 = vpop.f32.mrb[0].mxu0
  %635 = vmatprep.mubr.f32.mxu0 %v478
  %636 = vmatmul.mubr.f32.gmra.mrb[0].mxu0 %v418
  %v637 = vpop.f32.mrb[0].mxu0
  %v638 = vadd.f32 0.0, %v637
  %v639 = vpop.f32.mrb[0].mxu0
  %640 = vmatprep.mubr.f32.mxu0 %v481
  %641 = vmatmul.mubr.f32.gmra.mrb[0].mxu0 %v420
  %v642 = vpop.f32.mrb[0].mxu0
  %v643 = vadd.f32 0.0, %v642
  %v644 = vpop.f32.mrb[0].mxu0
  %645 = vmatprep.mubr.f32.mxu0 %v484
  %646 = vmatmul.mubr.f32.gmra.mrb[0].mxu0 %v422
  %v647 = vpop.f32.mrb[0].mxu0
  %v648 = vadd.f32 0.0, %v647
  %v649 = vpop.f32.mrb[0].mxu0
  %650 = vmatprep.mubr.f32.mxu0 %v487
  %651 = vmatmul.mubr.f32.gmra.mrb[0].mxu0 %v424
  %v652 = vpop.f32.mrb[0].mxu0
  %v653 = vadd.f32 0.0, %v652
  %v654 = vpop.f32.mrb[0].mxu0
  %655 = vmatprep.mubr.f32.mxu0 %v490
  %656 = vmatmul.mubr.f32.gmra.mrb[0].mxu0 %v426
  %v657 = vpop.f32.mrb[0].mxu0
  %v658 = vadd.f32 0.0, %v657
  %v659 = vpop.f32.mrb[0].mxu0
  %660 = vmatprep.mubr.f32.mxu0 %v493
  %661 = vmatmul.mubr.f32.gmra.mrb[0].mxu0 %v428
  %v662 = vpop.f32.mrb[0].mxu0
  %v663 = vadd.f32 0.0, %v662
  %v664 = vpop.f32.mrb[0].mxu0
  %665 = vmatprep.mubr.f32.mxu0 %v496
  %666 = vmatmul.mubr.f32.gmra.mrb[0].mxu0 %v430
  %v667 = vpop.f32.mrb[0].mxu0
  %v668 = vadd.f32 0.0, %v667
  %v669 = vpop.f32.mrb[0].mxu0
  %670 = vmatprep.mubr.f32.mxu0 %v499
  %671 = vmatmul.mubr.f32.gmra.mrb[0].mxu0 %v432
  %v672 = vpop.f32.mrb[0].mxu0
  %v673 = vadd.f32 0.0, %v672
  %v674 = vpop.f32.mrb[0].mxu0
  %675 = vmatprep.mubr.f32.mxu0 %v502
  %676 = vmatmul.mubr.f32.gmra.mrb[0].mxu0 %v434
  %v677 = vpop.f32.mrb[0].mxu0
  %v678 = vadd.f32 0.0, %v677
  %v679 = vpop.f32.mrb[0].mxu0
  %680 = vmatprep.mubr.f32.mxu0 %v505
  %681 = vmatmul.mubr.f32.gmra.mrb[0].mxu0 %v436
  %v682 = vpop.f32.mrb[0].mxu0
  %v683 = vadd.f32 0.0, %v682
  %v684 = vpop.f32.mrb[0].mxu0
  %685 = vmatprep.mubr.f32.mxu0 %v508
  %686 = vmatmul.mubr.f32.gmra.mrb[0].mxu0 %v438
  %v687 = vpop.f32.mrb[0].mxu0
  %v688 = vadd.f32 0.0, %v687
  %v689 = vpop.f32.mrb[0].mxu0
  %690 = vmatprep.mubr.f32.mxu0 %v511
  %691 = vmatmul.mubr.f32.gmra.mrb[0].mxu0 %v440
  %v692 = vpop.f32.mrb[0].mxu0
  %v693 = vadd.f32 0.0, %v692
  %v694 = vpop.f32.mrb[0].mxu0
  %695 = vmatprep.mubr.f32.mxu0 %v514
  %696 = vmatmul.mubr.f32.gmra.mrb[0].mxu0 %v442
  %v697 = vpop.f32.mrb[0].mxu0
  %v698 = vadd.f32 0.0, %v697
  %v699 = vpop.f32.mrb[0].mxu0
  %700 = vdwg.mxu0
  %s701 = scalar_lea.vmem %s2, 64
  %v702 = vld [vmem:[%s701] sm:$0xff]
  %v703 = vld [vmem:[%s701 + $0x8] sm:$0xff]
  %v704 = vld [vmem:[%s701 + $0x10] sm:$0xff]
  %v705 = vld [vmem:[%s701 + $0x18] sm:$0xff]
  %v706 = vld [vmem:[%s701 + $0x20] sm:$0xff]
  %v707 = vld [vmem:[%s701 + $0x28] sm:$0xff]
  %v708 = vld [vmem:[%s701 + $0x30] sm:$0xf]
  %v709 = vld [vmem:[%s701 + $0x38] sm:$0xf]
  %vm710 = vcmask 228352
  %v712 = vsel %vm710, %v583, 0
  %v715 = vsel %vm710, %v588, 0
  %v718 = vsel %vm710, %v593, 0
  %v721 = vsel %vm710, %v598, 0
  %v724 = vsel %vm710, %v603, 0
  %v727 = vsel %vm710, %v608, 0
  %v730 = vsel %vm710, %v613, 0
  %v733 = vsel %vm710, %v618, 0
  %v736 = vsel %vm710, %v623, 0
  %v739 = vsel %vm710, %v628, 0
  %v742 = vsel %vm710, %v633, 0
  %v745 = vsel %vm710, %v638, 0
  %v748 = vsel %vm710, %v643, 0
  %v751 = vsel %vm710, %v648, 0
  %v754 = vsel %vm710, %v653, 0
  %v757 = vsel %vm710, %v658, 0
  %v760 = vsel %vm710, %v663, 0
  %v763 = vsel %vm710, %v668, 0
  %v766 = vsel %vm710, %v673, 0
  %v769 = vsel %vm710, %v678, 0
  %v772 = vsel %vm710, %v683, 0
  %v775 = vsel %vm710, %v688, 0
  %v778 = vsel %vm710, %v693, 0
  %v781 = vsel %vm710, %v698, 0
  %vm783 = vcmask 1043456
  %v785 = vsel %vm783, %v708, 0
  %v788 = vsel %vm783, %v709, 0
  %790 = vmatprep.subr.mxu0 %v703
  %791 = vmatpush1.msra.mxu0 %v702
  %792 = vmatprep.subr.mxu0 %v705
  %793 = vmatpush1.msra.mxu0 %v704
  %794 = vmatprep.subr.mxu0 %v707
  %795 = vmatpush1.msra.mxu0 %v706
  %796 = vmatprep.subr.mxu0 %v788
  %797 = vmatpush1.msra.mxu0 %v785
  %798 = vmatprep.subr.mxu0 0.0
  %799 = vmatpush1.msra.mxu0 0.0
  %800 = vmatprep.subr.mxu0 0.0
  %801 = vmatpush1.msra.mxu0 0.0
  %802 = vmatprep.subr.mxu0 0.0
  %803 = vmatpush1.msra.mxu0 0.0
  %804 = vmatprep.subr.mxu0 0.0
  %805 = vmatpush1.msra.mxu0 0.0
  %806 = vmatprep.subr.mxu0 0.0
  %807 = vmatpush1.msra.mxu0 0.0
  %808 = vmatprep.subr.mxu0 0.0
  %809 = vmatpush1.msra.mxu0 0.0
  %810 = vmatprep.subr.mxu0 0.0
  %811 = vmatpush1.msra.mxu0 0.0
  %812 = vmatprep.subr.mxu0 0.0
  %813 = vmatpush1.msra.mxu0 0.0
  %814 = vmatprep.subr.mxu0 0.0
  %815 = vmatpush1.msra.mxu0 0.0
  %816 = vmatprep.subr.mxu0 0.0
  %817 = vmatpush1.msra.mxu0 0.0
  %818 = vmatprep.subr.mxu0 0.0
  %819 = vmatpush1.msra.mxu0 0.0
  %820 = vmatprep.subr.mxu0 0.0
  %821 = vmatpush1.msra.mxu0 0.0
  %822 = vmatprep.subr.mxu0 0.0
  %823 = vmatpush1.msra.mxu0 0.0
  %824 = vmatprep.subr.mxu0 0.0
  %825 = vmatpush1.msra.mxu0 0.0
  %826 = vmatprep.subr.mxu0 0.0
  %827 = vmatpush1.msra.mxu0 0.0
  %828 = vmatprep.subr.mxu0 0.0
  %829 = vmatpush1.msra.mxu0 0.0
  %830 = vmatprep.subr.mxu0 0.0
  %831 = vmatpush1.msra.mxu0 0.0
  %832 = vmatprep.subr.mxu0 0.0
  %833 = vmatpush1.msra.mxu0 0.0
  %834 = vmatprep.subr.mxu0 0.0
  %835 = vmatpush1.msra.mxu0 0.0
  %836 = vmatprep.subr.mxu0 0.0
  %837 = vmatpush1.msra.mxu0 0.0
  %838 = vmatprep.subr.mxu0 0.0
  %839 = vmatpush1.msra.mxu0 0.0
  %840 = vmatprep.subr.mxu0 0.0
  %841 = vmatpush1.msra.mxu0 0.0
  %842 = vmatprep.subr.mxu0 0.0
  %843 = vmatpush1.msra.mxu0 0.0
  %844 = vmatprep.subr.mxu0 0.0
  %845 = vmatpush1.msra.mxu0 0.0
  %846 = vmatprep.subr.mxu0 0.0
  %847 = vmatpush1.msra.mxu0 0.0
  %848 = vmatprep.subr.mxu0 0.0
  %849 = vmatpush1.msra.mxu0 0.0
  %850 = vmatprep.subr.mxu0 0.0
  %851 = vmatpush1.msra.mxu0 0.0
  %852 = vmatprep.subr.mxu0 0.0
  %853 = vmatpush1.msra.mxu0 0.0
  %854 = vmatprep.mubr.f32.mxu0 0.0
  %855 = vmatmul.mubr.f32.gmra.mrb[0].mxu0 %v712
  %v856 = vpop.f32.mrb[0].mxu0
  %v857 = vadd.f32 0.0, %v856
  %v858 = vpop.f32.mrb[0].mxu0
  %v859 = vadd.f32 0.0, %v858
  %860 = vmatprep.mubr.f32.mxu0 0.0
  %861 = vmatmul.mubr.f32.gmra.mrb[0].mxu0 %v715
  %v862 = vpop.f32.mrb[0].mxu0
  %v863 = vadd.f32 0.0, %v862
  %v864 = vpop.f32.mrb[0].mxu0
  %v865 = vadd.f32 0.0, %v864
  %866 = vmatprep.mubr.f32.mxu0 0.0
  %867 = vmatmul.mubr.f32.gmra.mrb[0].mxu0 %v718
  %v868 = vpop.f32.mrb[0].mxu0
  %v869 = vadd.f32 0.0, %v868
  %v870 = vpop.f32.mrb[0].mxu0
  %v871 = vadd.f32 0.0, %v870
  %872 = vmatprep.mubr.f32.mxu0 0.0
  %873 = vmatmul.mubr.f32.gmra.mrb[0].mxu0 %v721
  %v874 = vpop.f32.mrb[0].mxu0
  %v875 = vadd.f32 0.0, %v874
  %v876 = vpop.f32.mrb[0].mxu0
  %v877 = vadd.f32 0.0, %v876
  %878 = vmatprep.mubr.f32.mxu0 0.0
  %879 = vmatmul.mubr.f32.gmra.mrb[0].mxu0 %v724
  %v880 = vpop.f32.mrb[0].mxu0
  %v881 = vadd.f32 0.0, %v880
  %v882 = vpop.f32.mrb[0].mxu0
  %v883 = vadd.f32 0.0, %v882
  %884 = vmatprep.mubr.f32.mxu0 0.0
  %885 = vmatmul.mubr.f32.gmra.mrb[0].mxu0 %v727
  %v886 = vpop.f32.mrb[0].mxu0
  %v887 = vadd.f32 0.0, %v886
  %v888 = vpop.f32.mrb[0].mxu0
  %v889 = vadd.f32 0.0, %v888
  %890 = vmatprep.mubr.f32.mxu0 0.0
  %891 = vmatmul.mubr.f32.gmra.mrb[0].mxu0 %v730
  %v892 = vpop.f32.mrb[0].mxu0
  %v893 = vadd.f32 0.0, %v892
  %v894 = vpop.f32.mrb[0].mxu0
  %v895 = vadd.f32 0.0, %v894
  %896 = vmatprep.mubr.f32.mxu0 0.0
  %897 = vmatmul.mubr.f32.gmra.mrb[0].mxu0 %v733
  %v898 = vpop.f32.mrb[0].mxu0
  %v899 = vadd.f32 0.0, %v898
  %v900 = vpop.f32.mrb[0].mxu0
  %v901 = vadd.f32 0.0, %v900
  %902 = vmatprep.mubr.f32.mxu0 0.0
  %903 = vmatmul.mubr.f32.gmra.mrb[0].mxu0 %v736
  %v904 = vpop.f32.mrb[0].mxu0
  %v905 = vadd.f32 0.0, %v904
  %v906 = vpop.f32.mrb[0].mxu0
  %v907 = vadd.f32 0.0, %v906
  %908 = vmatprep.mubr.f32.mxu0 0.0
  %909 = vmatmul.mubr.f32.gmra.mrb[0].mxu0 %v739
  %v910 = vpop.f32.mrb[0].mxu0
  %v911 = vadd.f32 0.0, %v910
  %v912 = vpop.f32.mrb[0].mxu0
  %v913 = vadd.f32 0.0, %v912
  %914 = vmatprep.mubr.f32.mxu0 0.0
  %915 = vmatmul.mubr.f32.gmra.mrb[0].mxu0 %v742
  %v916 = vpop.f32.mrb[0].mxu0
  %v917 = vadd.f32 0.0, %v916
  %v918 = vpop.f32.mrb[0].mxu0
  %v919 = vadd.f32 0.0, %v918
  %920 = vmatprep.mubr.f32.mxu0 0.0
  %921 = vmatmul.mubr.f32.gmra.mrb[0].mxu0 %v745
  %v922 = vpop.f32.mrb[0].mxu0
  %v923 = vadd.f32 0.0, %v922
  %v924 = vpop.f32.mrb[0].mxu0
  %v925 = vadd.f32 0.0, %v924
  %926 = vmatprep.mubr.f32.mxu0 0.0
  %927 = vmatmul.mubr.f32.gmra.mrb[0].mxu0 %v748
  %v928 = vpop.f32.mrb[0].mxu0
  %v929 = vadd.f32 0.0, %v928
  %v930 = vpop.f32.mrb[0].mxu0
  %v931 = vadd.f32 0.0, %v930
  %932 = vmatprep.mubr.f32.mxu0 0.0
  %933 = vmatmul.mubr.f32.gmra.mrb[0].mxu0 %v751
  %v934 = vpop.f32.mrb[0].mxu0
  %v935 = vadd.f32 0.0, %v934
  %v936 = vpop.f32.mrb[0].mxu0
  %v937 = vadd.f32 0.0, %v936
  %938 = vmatprep.mubr.f32.mxu0 0.0
  %939 = vmatmul.mubr.f32.gmra.mrb[0].mxu0 %v754
  %v940 = vpop.f32.mrb[0].mxu0
  %v941 = vadd.f32 0.0, %v940
  %v942 = vpop.f32.mrb[0].mxu0
  %v943 = vadd.f32 0.0, %v942
  %944 = vmatprep.mubr.f32.mxu0 0.0
  %945 = vmatmul.mubr.f32.gmra.mrb[0].mxu0 %v757
  %v946 = vpop.f32.mrb[0].mxu0
  %v947 = vadd.f32 0.0, %v946
  %v948 = vpop.f32.mrb[0].mxu0
  %v949 = vadd.f32 0.0, %v948
  %950 = vmatprep.mubr.f32.mxu0 0.0
  %951 = vmatmul.mubr.f32.gmra.mrb[0].mxu0 %v760
  %v952 = vpop.f32.mrb[0].mxu0
  %v953 = vadd.f32 0.0, %v952
  %v954 = vpop.f32.mrb[0].mxu0
  %v955 = vadd.f32 0.0, %v954
  %956 = vmatprep.mubr.f32.mxu0 0.0
  %957 = vmatmul.mubr.f32.gmra.mrb[0].mxu0 %v763
  %v958 = vpop.f32.mrb[0].mxu0
  %v959 = vadd.f32 0.0, %v958
  %v960 = vpop.f32.mrb[0].mxu0
  %v961 = vadd.f32 0.0, %v960
  %962 = vmatprep.mubr.f32.mxu0 0.0
  %963 = vmatmul.mubr.f32.gmra.mrb[0].mxu0 %v766
  %v964 = vpop.f32.mrb[0].mxu0
  %v965 = vadd.f32 0.0, %v964
  %v966 = vpop.f32.mrb[0].mxu0
  %v967 = vadd.f32 0.0, %v966
  %968 = vmatprep.mubr.f32.mxu0 0.0
  %969 = vmatmul.mubr.f32.gmra.mrb[0].mxu0 %v769
  %v970 = vpop.f32.mrb[0].mxu0
  %v971 = vadd.f32 0.0, %v970
  %v972 = vpop.f32.mrb[0].mxu0
  %v973 = vadd.f32 0.0, %v972
  %974 = vmatprep.mubr.f32.mxu0 0.0
  %975 = vmatmul.mubr.f32.gmra.mrb[0].mxu0 %v772
  %v976 = vpop.f32.mrb[0].mxu0
  %v977 = vadd.f32 0.0, %v976
  %v978 = vpop.f32.mrb[0].mxu0
  %v979 = vadd.f32 0.0, %v978
  %980 = vmatprep.mubr.f32.mxu0 0.0
  %981 = vmatmul.mubr.f32.gmra.mrb[0].mxu0 %v775
  %v982 = vpop.f32.mrb[0].mxu0
  %v983 = vadd.f32 0.0, %v982
  %v984 = vpop.f32.mrb[0].mxu0
  %v985 = vadd.f32 0.0, %v984
  %986 = vmatprep.mubr.f32.mxu0 0.0
  %987 = vmatmul.mubr.f32.gmra.mrb[0].mxu0 %v778
  %v988 = vpop.f32.mrb[0].mxu0
  %v989 = vadd.f32 0.0, %v988
  %v990 = vpop.f32.mrb[0].mxu0
  %v991 = vadd.f32 0.0, %v990
  %992 = vmatprep.mubr.f32.mxu0 0.0
  %993 = vmatmul.mubr.f32.gmra.mrb[0].mxu0 %v781
  %v994 = vpop.f32.mrb[0].mxu0
  %v995 = vadd.f32 0.0, %v994
  %v996 = vpop.f32.mrb[0].mxu0
  %v997 = vadd.f32 0.0, %v996
  %998 = vdwg.mxu0
  %v1000 = vsel %vm710, %v269, 0
  %v1003 = vsel %vm710, %v274, 0
  %v1006 = vsel %vm710, %v279, 0
  %v1009 = vsel %vm710, %v284, 0
  %v1012 = vsel %vm710, %v289, 0
  %v1015 = vsel %vm710, %v294, 0
  %v1018 = vsel %vm710, %v299, 0
  %v1021 = vsel %vm710, %v304, 0
  %v1024 = vsel %vm710, %v309, 0
  %v1027 = vsel %vm710, %v314, 0
  %v1030 = vsel %vm710, %v319, 0
  %v1033 = vsel %vm710, %v324, 0
  %v1036 = vsel %vm710, %v329, 0
  %v1039 = vsel %vm710, %v334, 0
  %v1042 = vsel %vm710, %v339, 0
  %v1045 = vsel %vm710, %v344, 0
  %v1048 = vsel %vm710, %v349, 0
  %v1051 = vsel %vm710, %v354, 0
  %v1054 = vsel %vm710, %v359, 0
  %v1057 = vsel %vm710, %v364, 0
  %v1060 = vsel %vm710, %v369, 0
  %v1063 = vsel %vm710, %v374, 0
  %v1066 = vsel %vm710, %v379, 0
  %v1069 = vsel %vm710, %v384, 0
  %v1072 = vsel %vm783, %v393, 0
  %v1075 = vsel %vm783, %v394, 0
  %1077 = vmatprep.subr.mxu0 %v388
  %1078 = vmatpush1.msra.mxu0 %v387
  %1079 = vmatprep.subr.mxu0 %v390
  %1080 = vmatpush1.msra.mxu0 %v389
  %1081 = vmatprep.subr.mxu0 %v392
  %1082 = vmatpush1.msra.mxu0 %v391
  %1083 = vmatprep.subr.mxu0 %v1075
  %1084 = vmatpush1.msra.mxu0 %v1072
  %1085 = vmatprep.subr.mxu0 0.0
  %1086 = vmatpush1.msra.mxu0 0.0
  %1087 = vmatprep.subr.mxu0 0.0
  %1088 = vmatpush1.msra.mxu0 0.0
  %1089 = vmatprep.subr.mxu0 0.0
  %1090 = vmatpush1.msra.mxu0 0.0
  %1091 = vmatprep.subr.mxu0 0.0
  %1092 = vmatpush1.msra.mxu0 0.0
  %1093 = vmatprep.subr.mxu0 0.0
  %1094 = vmatpush1.msra.mxu0 0.0
  %1095 = vmatprep.subr.mxu0 0.0
  %1096 = vmatpush1.msra.mxu0 0.0
  %1097 = vmatprep.subr.mxu0 0.0
  %1098 = vmatpush1.msra.mxu0 0.0
  %1099 = vmatprep.subr.mxu0 0.0
  %1100 = vmatpush1.msra.mxu0 0.0
  %1101 = vmatprep.subr.mxu0 0.0
  %1102 = vmatpush1.msra.mxu0 0.0
  %1103 = vmatprep.subr.mxu0 0.0
  %1104 = vmatpush1.msra.mxu0 0.0
  %1105 = vmatprep.subr.mxu0 0.0
  %1106 = vmatpush1.msra.mxu0 0.0
  %1107 = vmatprep.subr.mxu0 0.0
  %1108 = vmatpush1.msra.mxu0 0.0
  %1109 = vmatprep.subr.mxu0 0.0
  %1110 = vmatpush1.msra.mxu0 0.0
  %1111 = vmatprep.subr.mxu0 0.0
  %1112 = vmatpush1.msra.mxu0 0.0
  %1113 = vmatprep.subr.mxu0 0.0
  %1114 = vmatpush1.msra.mxu0 0.0
  %1115 = vmatprep.subr.mxu0 0.0
  %1116 = vmatpush1.msra.mxu0 0.0
  %1117 = vmatprep.subr.mxu0 0.0
  %1118 = vmatpush1.msra.mxu0 0.0
  %1119 = vmatprep.subr.mxu0 0.0
  %1120 = vmatpush1.msra.mxu0 0.0
  %1121 = vmatprep.subr.mxu0 0.0
  %1122 = vmatpush1.msra.mxu0 0.0
  %1123 = vmatprep.subr.mxu0 0.0
  %1124 = vmatpush1.msra.mxu0 0.0
  %1125 = vmatprep.subr.mxu0 0.0
  %1126 = vmatpush1.msra.mxu0 0.0
  %1127 = vmatprep.subr.mxu0 0.0
  %1128 = vmatpush1.msra.mxu0 0.0
  %1129 = vmatprep.subr.mxu0 0.0
  %1130 = vmatpush1.msra.mxu0 0.0
  %1131 = vmatprep.subr.mxu0 0.0
  %1132 = vmatpush1.msra.mxu0 0.0
  %1133 = vmatprep.subr.mxu0 0.0
  %1134 = vmatpush1.msra.mxu0 0.0
  %1135 = vmatprep.subr.mxu0 0.0
  %1136 = vmatpush1.msra.mxu0 0.0
  %1137 = vmatprep.subr.mxu0 0.0
  %1138 = vmatpush1.msra.mxu0 0.0
  %1139 = vmatprep.subr.mxu0 0.0
  %1140 = vmatpush1.msra.mxu0 0.0
  %1141 = vmatprep.mubr.f32.mxu0 0.0
  %1142 = vmatmul.mubr.f32.gmra.mrb[0].mxu0 %v1000
  %v1143 = vpop.f32.mrb[0].mxu0
  %v1144 = vadd.f32 %v857, %v1143
  %v1145 = vpop.f32.mrb[0].mxu0
  %v1146 = vadd.f32 %v859, %v1145
  %1147 = vmatprep.mubr.f32.mxu0 0.0
  %1148 = vmatmul.mubr.f32.gmra.mrb[0].mxu0 %v1003
  %v1149 = vpop.f32.mrb[0].mxu0
  %v1150 = vadd.f32 %v863, %v1149
  %v1151 = vpop.f32.mrb[0].mxu0
  %v1152 = vadd.f32 %v865, %v1151
  %1153 = vmatprep.mubr.f32.mxu0 0.0
  %1154 = vmatmul.mubr.f32.gmra.mrb[0].mxu0 %v1006
  %v1155 = vpop.f32.mrb[0].mxu0
  %v1156 = vadd.f32 %v869, %v1155
  %v1157 = vpop.f32.mrb[0].mxu0
  %v1158 = vadd.f32 %v871, %v1157
  %1159 = vmatprep.mubr.f32.mxu0 0.0
  %1160 = vmatmul.mubr.f32.gmra.mrb[0].mxu0 %v1009
  %v1161 = vpop.f32.mrb[0].mxu0
  %v1162 = vadd.f32 %v875, %v1161
  %v1163 = vpop.f32.mrb[0].mxu0
  %v1164 = vadd.f32 %v877, %v1163
  %1165 = vmatprep.mubr.f32.mxu0 0.0
  %1166 = vmatmul.mubr.f32.gmra.mrb[0].mxu0 %v1012
  %v1167 = vpop.f32.mrb[0].mxu0
  %v1168 = vadd.f32 %v881, %v1167
  %v1169 = vpop.f32.mrb[0].mxu0
  %v1170 = vadd.f32 %v883, %v1169
  %1171 = vmatprep.mubr.f32.mxu0 0.0
  %1172 = vmatmul.mubr.f32.gmra.mrb[0].mxu0 %v1015
  %v1173 = vpop.f32.mrb[0].mxu0
  %v1174 = vadd.f32 %v887, %v1173
  %v1175 = vpop.f32.mrb[0].mxu0
  %v1176 = vadd.f32 %v889, %v1175
  %1177 = vmatprep.mubr.f32.mxu0 0.0
  %1178 = vmatmul.mubr.f32.gmra.mrb[0].mxu0 %v1018
  %v1179 = vpop.f32.mrb[0].mxu0
  %v1180 = vadd.f32 %v893, %v1179
  %v1181 = vpop.f32.mrb[0].mxu0
  %v1182 = vadd.f32 %v895, %v1181
  %1183 = vmatprep.mubr.f32.mxu0 0.0
  %1184 = vmatmul.mubr.f32.gmra.mrb[0].mxu0 %v1021
  %v1185 = vpop.f32.mrb[0].mxu0
  %v1186 = vadd.f32 %v899, %v1185
  %v1187 = vpop.f32.mrb[0].mxu0
  %v1188 = vadd.f32 %v901, %v1187
  %1189 = vmatprep.mubr.f32.mxu0 0.0
  %1190 = vmatmul.mubr.f32.gmra.mrb[0].mxu0 %v1024
  %v1191 = vpop.f32.mrb[0].mxu0
  %v1192 = vadd.f32 %v905, %v1191
  %v1193 = vpop.f32.mrb[0].mxu0
  %v1194 = vadd.f32 %v907, %v1193
  %1195 = vmatprep.mubr.f32.mxu0 0.0
  %1196 = vmatmul.mubr.f32.gmra.mrb[0].mxu0 %v1027
  %v1197 = vpop.f32.mrb[0].mxu0
  %v1198 = vadd.f32 %v911, %v1197
  %v1199 = vpop.f32.mrb[0].mxu0
  %v1200 = vadd.f32 %v913, %v1199
  %1201 = vmatprep.mubr.f32.mxu0 0.0
  %1202 = vmatmul.mubr.f32.gmra.mrb[0].mxu0 %v1030
  %v1203 = vpop.f32.mrb[0].mxu0
  %v1204 = vadd.f32 %v917, %v1203
  %v1205 = vpop.f32.mrb[0].mxu0
  %v1206 = vadd.f32 %v919, %v1205
  %1207 = vmatprep.mubr.f32.mxu0 0.0
  %1208 = vmatmul.mubr.f32.gmra.mrb[0].mxu0 %v1033
  %v1209 = vpop.f32.mrb[0].mxu0
  %v1210 = vadd.f32 %v923, %v1209
  %v1211 = vpop.f32.mrb[0].mxu0
  %v1212 = vadd.f32 %v925, %v1211
  %1213 = vmatprep.mubr.f32.mxu0 0.0
  %1214 = vmatmul.mubr.f32.gmra.mrb[0].mxu0 %v1036
  %v1215 = vpop.f32.mrb[0].mxu0
  %v1216 = vadd.f32 %v929, %v1215
  %v1217 = vpop.f32.mrb[0].mxu0
  %v1218 = vadd.f32 %v931, %v1217
  %1219 = vmatprep.mubr.f32.mxu0 0.0
  %1220 = vmatmul.mubr.f32.gmra.mrb[0].mxu0 %v1039
  %v1221 = vpop.f32.mrb[0].mxu0
  %v1222 = vadd.f32 %v935, %v1221
  %v1223 = vpop.f32.mrb[0].mxu0
  %v1224 = vadd.f32 %v937, %v1223
  %1225 = vmatprep.mubr.f32.mxu0 0.0
  %1226 = vmatmul.mubr.f32.gmra.mrb[0].mxu0 %v1042
  %v1227 = vpop.f32.mrb[0].mxu0
  %v1228 = vadd.f32 %v941, %v1227
  %v1229 = vpop.f32.mrb[0].mxu0
  %v1230 = vadd.f32 %v943, %v1229
  %1231 = vmatprep.mubr.f32.mxu0 0.0
  %1232 = vmatmul.mubr.f32.gmra.mrb[0].mxu0 %v1045
  %v1233 = vpop.f32.mrb[0].mxu0
  %v1234 = vadd.f32 %v947, %v1233
  %v1235 = vpop.f32.mrb[0].mxu0
  %v1236 = vadd.f32 %v949, %v1235
  %1237 = vmatprep.mubr.f32.mxu0 0.0
  %1238 = vmatmul.mubr.f32.gmra.mrb[0].mxu0 %v1048
  %v1239 = vpop.f32.mrb[0].mxu0
  %v1240 = vadd.f32 %v953, %v1239
  %v1241 = vpop.f32.mrb[0].mxu0
  %v1242 = vadd.f32 %v955, %v1241
  %1243 = vmatprep.mubr.f32.mxu0 0.0
  %1244 = vmatmul.mubr.f32.gmra.mrb[0].mxu0 %v1051
  %v1245 = vpop.f32.mrb[0].mxu0
  %v1246 = vadd.f32 %v959, %v1245
  %v1247 = vpop.f32.mrb[0].mxu0
  %v1248 = vadd.f32 %v961, %v1247
  %1249 = vmatprep.mubr.f32.mxu0 0.0
  %1250 = vmatmul.mubr.f32.gmra.mrb[0].mxu0 %v1054
  %v1251 = vpop.f32.mrb[0].mxu0
  %v1252 = vadd.f32 %v965, %v1251
  %v1253 = vpop.f32.mrb[0].mxu0
  %v1254 = vadd.f32 %v967, %v1253
  %1255 = vmatprep.mubr.f32.mxu0 0.0
  %1256 = vmatmul.mubr.f32.gmra.mrb[0].mxu0 %v1057
  %v1257 = vpop.f32.mrb[0].mxu0
  %v1258 = vadd.f32 %v971, %v1257
  %v1259 = vpop.f32.mrb[0].mxu0
  %v1260 = vadd.f32 %v973, %v1259
  %1261 = vmatprep.mubr.f32.mxu0 0.0
  %1262 = vmatmul.mubr.f32.gmra.mrb[0].mxu0 %v1060
  %v1263 = vpop.f32.mrb[0].mxu0
  %v1264 = vadd.f32 %v977, %v1263
  %v1265 = vpop.f32.mrb[0].mxu0
  %v1266 = vadd.f32 %v979, %v1265
  %1267 = vmatprep.mubr.f32.mxu0 0.0
  %1268 = vmatmul.mubr.f32.gmra.mrb[0].mxu0 %v1063
  %v1269 = vpop.f32.mrb[0].mxu0
  %v1270 = vadd.f32 %v983, %v1269
  %v1271 = vpop.f32.mrb[0].mxu0
  %v1272 = vadd.f32 %v985, %v1271
  %1273 = vmatprep.mubr.f32.mxu0 0.0
  %1274 = vmatmul.mubr.f32.gmra.mrb[0].mxu0 %v1066
  %v1275 = vpop.f32.mrb[0].mxu0
  %v1276 = vadd.f32 %v989, %v1275
  %v1277 = vpop.f32.mrb[0].mxu0
  %v1278 = vadd.f32 %v991, %v1277
  %1279 = vmatprep.mubr.f32.mxu0 0.0
  %1280 = vmatmul.mubr.f32.gmra.mrb[0].mxu0 %v1069
  %v1281 = vpop.f32.mrb[0].mxu0
  %v1282 = vadd.f32 %v995, %v1281
  %v1283 = vpop.f32.mrb[0].mxu0
  %v1284 = vadd.f32 %v997, %v1283
  %1285 = vdwg.mxu0
  %s1286 = scalar_lea.vmem %s1, 768
  %v1287 = vld [vmem:[%s1286] sm:$0xff]
  %v1288 = vld [vmem:[%s1286 + $0x8] sm:$0xff]
  %v1289 = vld [vmem:[%s1286 + $0x10] sm:$0xff]
  %v1290 = vld [vmem:[%s1286 + $0x18] sm:$0xff]
  %v1291 = vld [vmem:[%s1286 + $0x20] sm:$0xff]
  %v1292 = vld [vmem:[%s1286 + $0x28] sm:$0xff]
  %v1293 = vld [vmem:[%s1286 + $0x30] sm:$0xff]
  %v1294 = vld [vmem:[%s1286 + $0x38] sm:$0xff]
  %v1295 = vld [vmem:[%s1286 + $0x40] sm:$0xff]
  %v1296 = vld [vmem:[%s1286 + $0x48] sm:$0xff]
  %v1297 = vld [vmem:[%s1286 + $0x50] sm:$0xff]
  %v1298 = vld [vmem:[%s1286 + $0x58] sm:$0xff]
  %v1299 = vld [vmem:[%s1286 + $0x60] sm:$0xff]
  %v1300 = vld [vmem:[%s1286 + $0x68] sm:$0xff]
  %v1301 = vld [vmem:[%s1286 + $0x70] sm:$0xff]
  %v1302 = vld [vmem:[%s1286 + $0x78] sm:$0xff]
  %v1303 = vld [vmem:[%s1286 + $0x80] sm:$0xff]
  %v1304 = vld [vmem:[%s1286 + $0x88] sm:$0xff]
  %v1305 = vld [vmem:[%s1286 + $0x90] sm:$0xff]
  %v1306 = vld [vmem:[%s1286 + $0x98] sm:$0xff]
  %v1307 = vld [vmem:[%s1286 + $0xa0] sm:$0xff]
  %v1308 = vld [vmem:[%s1286 + $0xa8] sm:$0xff]
  %v1309 = vld [vmem:[%s1286 + $0xb0] sm:$0xff]
  %v1310 = vld [vmem:[%s1286 + $0xb8] sm:$0xff]
  %v1311 = vld [vmem:[%s1286 + $0xc0] sm:$0xff]
  %v1312 = vld [vmem:[%s1286 + $0xc8] sm:$0xff]
  %v1313 = vld [vmem:[%s1286 + $0xd0] sm:$0xff]
  %v1314 = vld [vmem:[%s1286 + $0xd8] sm:$0xff]
  %v1315 = vld [vmem:[%s1286 + $0xe0] sm:$0xff]
  %v1316 = vld [vmem:[%s1286 + $0xe8] sm:$0xff]
  %v1317 = vld [vmem:[%s1286 + $0xf0] sm:$0xff]
  %v1318 = vld [vmem:[%s1286 + $0xf8] sm:$0xff]
  %v1319 = vld [vmem:[%s1286 + $0x100] sm:$0xff]
  %v1320 = vld [vmem:[%s1286 + $0x108] sm:$0xff]
  %v1321 = vld [vmem:[%s1286 + $0x110] sm:$0xff]
  %v1322 = vld [vmem:[%s1286 + $0x118] sm:$0xff]
  %v1323 = vld [vmem:[%s1286 + $0x120] sm:$0xff]
  %v1324 = vld [vmem:[%s1286 + $0x128] sm:$0xff]
  %v1325 = vld [vmem:[%s1286 + $0x130] sm:$0xff]
  %v1326 = vld [vmem:[%s1286 + $0x138] sm:$0xff]
  %v1327 = vld [vmem:[%s1286 + $0x140] sm:$0xff]
  %v1328 = vld [vmem:[%s1286 + $0x148] sm:$0xff]
  %v1329 = vld [vmem:[%s1286 + $0x150] sm:$0xff]
  %v1330 = vld [vmem:[%s1286 + $0x158] sm:$0xff]
  %v1331 = vld [vmem:[%s1286 + $0x160] sm:$0xff]
  %v1332 = vld [vmem:[%s1286 + $0x168] sm:$0xff]
  %v1333 = vld [vmem:[%s1286 + $0x170] sm:$0xff]
  %v1334 = vld [vmem:[%s1286 + $0x178] sm:$0xff]
  %v1336 = vsel %vm129, %v1288, 0
  %v1339 = vsel %vm129, %v1290, 0
  %v1342 = vsel %vm129, %v1292, 0
  %v1345 = vsel %vm129, %v1294, 0
  %v1348 = vsel %vm129, %v1296, 0
  %v1351 = vsel %vm129, %v1298, 0
  %v1354 = vsel %vm129, %v1300, 0
  %v1357 = vsel %vm129, %v1302, 0
  %v1360 = vsel %vm129, %v1304, 0
  %v1363 = vsel %vm129, %v1306, 0
  %v1366 = vsel %vm129, %v1308, 0
  %v1369 = vsel %vm129, %v1310, 0
  %v1372 = vsel %vm129, %v1312, 0
  %v1375 = vsel %vm129, %v1314, 0
  %v1378 = vsel %vm129, %v1316, 0
  %v1381 = vsel %vm129, %v1318, 0
  %v1384 = vsel %vm129, %v1320, 0
  %v1387 = vsel %vm129, %v1322, 0
  %v1390 = vsel %vm129, %v1324, 0
  %v1393 = vsel %vm129, %v1326, 0
  %v1396 = vsel %vm129, %v1328, 0
  %v1399 = vsel %vm129, %v1330, 0
  %v1402 = vsel %vm129, %v1332, 0
  %v1405 = vsel %vm129, %v1334, 0
  %1407 = vmatprep.subr.mxu0 0.0
  %1408 = vmatpush1.msra.mxu0 %v53
  %1409 = vmatprep.subr.mxu0 0.0
  %1410 = vmatpush1.msra.mxu0 %v54
  %1411 = vmatprep.subr.mxu0 0.0
  %1412 = vmatpush1.msra.mxu0 %v55
  %1413 = vmatprep.subr.mxu0 0.0
  %1414 = vmatpush1.msra.mxu0 %v56
  %1415 = vmatprep.subr.mxu0 0.0
  %1416 = vmatpush1.msra.mxu0 %v57
  %1417 = vmatprep.subr.mxu0 0.0
  %1418 = vmatpush1.msra.mxu0 %v58
  %1419 = vmatprep.subr.mxu0 0.0
  %1420 = vmatpush1.msra.mxu0 %v59
  %1421 = vmatprep.subr.mxu0 0.0
  %1422 = vmatpush1.msra.mxu0 %v60
  %1423 = vmatprep.subr.mxu0 0.0
  %1424 = vmatpush1.msra.mxu0 %v61
  %1425 = vmatprep.subr.mxu0 0.0
  %1426 = vmatpush1.msra.mxu0 %v62
  %1427 = vmatprep.subr.mxu0 0.0
  %1428 = vmatpush1.msra.mxu0 %v63
  %1429 = vmatprep.subr.mxu0 0.0
  %1430 = vmatpush1.msra.mxu0 %v64
  %1431 = vmatprep.subr.mxu0 0.0
  %1432 = vmatpush1.msra.mxu0 %v65
  %1433 = vmatprep.subr.mxu0 0.0
  %1434 = vmatpush1.msra.mxu0 %v66
  %1435 = vmatprep.subr.mxu0 0.0
  %1436 = vmatpush1.msra.mxu0 %v67
  %1437 = vmatprep.subr.mxu0 0.0
  %1438 = vmatpush1.msra.mxu0 %v68
  %1439 = vmatprep.subr.mxu0 0.0
  %1440 = vmatpush1.msra.mxu0 %v69
  %1441 = vmatprep.subr.mxu0 0.0
  %1442 = vmatpush1.msra.mxu0 %v70
  %1443 = vmatprep.subr.mxu0 0.0
  %1444 = vmatpush1.msra.mxu0 %v71
  %1445 = vmatprep.subr.mxu0 0.0
  %1446 = vmatpush1.msra.mxu0 %v72
  %1447 = vmatprep.subr.mxu0 0.0
  %1448 = vmatpush1.msra.mxu0 %v73
  %1449 = vmatprep.subr.mxu0 0.0
  %1450 = vmatpush1.msra.mxu0 %v74
  %1451 = vmatprep.subr.mxu0 0.0
  %1452 = vmatpush1.msra.mxu0 %v75
  %1453 = vmatprep.subr.mxu0 0.0
  %1454 = vmatpush1.msra.mxu0 %v76
  %1455 = vmatprep.subr.mxu0 0.0
  %1456 = vmatpush1.msra.mxu0 %v77
  %1457 = vmatprep.subr.mxu0 0.0
  %1458 = vmatpush1.msra.mxu0 %v78
  %1459 = vmatprep.subr.mxu0 0.0
  %1460 = vmatpush1.msra.mxu0 %v79
  %1461 = vmatprep.subr.mxu0 0.0
  %1462 = vmatpush1.msra.mxu0 %v80
  %1463 = vmatprep.subr.mxu0 0.0
  %1464 = vmatpush1.msra.mxu0 0.0
  %1465 = vmatprep.subr.mxu0 0.0
  %1466 = vmatpush1.msra.mxu0 0.0
  %1467 = vmatprep.subr.mxu0 0.0
  %1468 = vmatpush1.msra.mxu0 0.0
  %1469 = vmatprep.subr.mxu0 0.0
  %1470 = vmatpush1.msra.mxu0 0.0
  %1471 = vmatprep.mubr.f32.mxu0 %v1336
  %1472 = vmatmul.mubr.f32.gmra.mrb[0].mxu0 %v1287
  %v1473 = vpop.f32.mrb[0].mxu0
  %v1474 = vadd.f32 0.0, %v1473
  %v1475 = vpop.f32.mrb[0].mxu0
  %1476 = vmatprep.mubr.f32.mxu0 %v1339
  %1477 = vmatmul.mubr.f32.gmra.mrb[0].mxu0 %v1289
  %v1478 = vpop.f32.mrb[0].mxu0
  %v1479 = vadd.f32 0.0, %v1478
  %v1480 = vpop.f32.mrb[0].mxu0
  %1481 = vmatprep.mubr.f32.mxu0 %v1342
  %1482 = vmatmul.mubr.f32.gmra.mrb[0].mxu0 %v1291
  %v1483 = vpop.f32.mrb[0].mxu0
  %v1484 = vadd.f32 0.0, %v1483
  %v1485 = vpop.f32.mrb[0].mxu0
  %1486 = vmatprep.mubr.f32.mxu0 %v1345
  %1487 = vmatmul.mubr.f32.gmra.mrb[0].mxu0 %v1293
  %v1488 = vpop.f32.mrb[0].mxu0
  %v1489 = vadd.f32 0.0, %v1488
  %v1490 = vpop.f32.mrb[0].mxu0
  %1491 = vmatprep.mubr.f32.mxu0 %v1348
  %1492 = vmatmul.mubr.f32.gmra.mrb[0].mxu0 %v1295
  %v1493 = vpop.f32.mrb[0].mxu0
  %v1494 = vadd.f32 0.0, %v1493
  %v1495 = vpop.f32.mrb[0].mxu0
  %1496 = vmatprep.mubr.f32.mxu0 %v1351
  %1497 = vmatmul.mubr.f32.gmra.mrb[0].mxu0 %v1297
  %v1498 = vpop.f32.mrb[0].mxu0
  %v1499 = vadd.f32 0.0, %v1498
  %v1500 = vpop.f32.mrb[0].mxu0
  %1501 = vmatprep.mubr.f32.mxu0 %v1354
  %1502 = vmatmul.mubr.f32.gmra.mrb[0].mxu0 %v1299
  %v1503 = vpop.f32.mrb[0].mxu0
  %v1504 = vadd.f32 0.0, %v1503
  %v1505 = vpop.f32.mrb[0].mxu0
  %1506 = vmatprep.mubr.f32.mxu0 %v1357
  %1507 = vmatmul.mubr.f32.gmra.mrb[0].mxu0 %v1301
  %v1508 = vpop.f32.mrb[0].mxu0
  %v1509 = vadd.f32 0.0, %v1508
  %v1510 = vpop.f32.mrb[0].mxu0
  %1511 = vmatprep.mubr.f32.mxu0 %v1360
  %1512 = vmatmul.mubr.f32.gmra.mrb[0].mxu0 %v1303
  %v1513 = vpop.f32.mrb[0].mxu0
  %v1514 = vadd.f32 0.0, %v1513
  %v1515 = vpop.f32.mrb[0].mxu0
  %1516 = vmatprep.mubr.f32.mxu0 %v1363
  %1517 = vmatmul.mubr.f32.gmra.mrb[0].mxu0 %v1305
  %v1518 = vpop.f32.mrb[0].mxu0
  %v1519 = vadd.f32 0.0, %v1518
  %v1520 = vpop.f32.mrb[0].mxu0
  %1521 = vmatprep.mubr.f32.mxu0 %v1366
  %1522 = vmatmul.mubr.f32.gmra.mrb[0].mxu0 %v1307
  %v1523 = vpop.f32.mrb[0].mxu0
  %v1524 = vadd.f32 0.0, %v1523
  %v1525 = vpop.f32.mrb[0].mxu0
  %1526 = vmatprep.mubr.f32.mxu0 %v1369
  %1527 = vmatmul.mubr.f32.gmra.mrb[0].mxu0 %v1309
  %v1528 = vpop.f32.mrb[0].mxu0
  %v1529 = vadd.f32 0.0, %v1528
  %v1530 = vpop.f32.mrb[0].mxu0
  %1531 = vmatprep.mubr.f32.mxu0 %v1372
  %1532 = vmatmul.mubr.f32.gmra.mrb[0].mxu0 %v1311
  %v1533 = vpop.f32.mrb[0].mxu0
  %v1534 = vadd.f32 0.0, %v1533
  %v1535 = vpop.f32.mrb[0].mxu0
  %1536 = vmatprep.mubr.f32.mxu0 %v1375
  %1537 = vmatmul.mubr.f32.gmra.mrb[0].mxu0 %v1313
  %v1538 = vpop.f32.mrb[0].mxu0
  %v1539 = vadd.f32 0.0, %v1538
  %v1540 = vpop.f32.mrb[0].mxu0
  %1541 = vmatprep.mubr.f32.mxu0 %v1378
  %1542 = vmatmul.mubr.f32.gmra.mrb[0].mxu0 %v1315
  %v1543 = vpop.f32.mrb[0].mxu0
  %v1544 = vadd.f32 0.0, %v1543
  %v1545 = vpop.f32.mrb[0].mxu0
  %1546 = vmatprep.mubr.f32.mxu0 %v1381
  %1547 = vmatmul.mubr.f32.gmra.mrb[0].mxu0 %v1317
  %v1548 = vpop.f32.mrb[0].mxu0
  %v1549 = vadd.f32 0.0, %v1548
  %v1550 = vpop.f32.mrb[0].mxu0
  %1551 = vmatprep.mubr.f32.mxu0 %v1384
  %1552 = vmatmul.mubr.f32.gmra.mrb[0].mxu0 %v1319
  %v1553 = vpop.f32.mrb[0].mxu0
  %v1554 = vadd.f32 0.0, %v1553
  %v1555 = vpop.f32.mrb[0].mxu0
  %1556 = vmatprep.mubr.f32.mxu0 %v1387
  %1557 = vmatmul.mubr.f32.gmra.mrb[0].mxu0 %v1321
  %v1558 = vpop.f32.mrb[0].mxu0
  %v1559 = vadd.f32 0.0, %v1558
  %v1560 = vpop.f32.mrb[0].mxu0
  %1561 = vmatprep.mubr.f32.mxu0 %v1390
  %1562 = vmatmul.mubr.f32.gmra.mrb[0].mxu0 %v1323
  %v1563 = vpop.f32.mrb[0].mxu0
  %v1564 = vadd.f32 0.0, %v1563
  %v1565 = vpop.f32.mrb[0].mxu0
  %1566 = vmatprep.mubr.f32.mxu0 %v1393
  %1567 = vmatmul.mubr.f32.gmra.mrb[0].mxu0 %v1325
  %v1568 = vpop.f32.mrb[0].mxu0
  %v1569 = vadd.f32 0.0, %v1568
  %v1570 = vpop.f32.mrb[0].mxu0
  %1571 = vmatprep.mubr.f32.mxu0 %v1396
  %1572 = vmatmul.mubr.f32.gmra.mrb[0].mxu0 %v1327
  %v1573 = vpop.f32.mrb[0].mxu0
  %v1574 = vadd.f32 0.0, %v1573
  %v1575 = vpop.f32.mrb[0].mxu0
  %1576 = vmatprep.mubr.f32.mxu0 %v1399
  %1577 = vmatmul.mubr.f32.gmra.mrb[0].mxu0 %v1329
  %v1578 = vpop.f32.mrb[0].mxu0
  %v1579 = vadd.f32 0.0, %v1578
  %v1580 = vpop.f32.mrb[0].mxu0
  %1581 = vmatprep.mubr.f32.mxu0 %v1402
  %1582 = vmatmul.mubr.f32.gmra.mrb[0].mxu0 %v1331
  %v1583 = vpop.f32.mrb[0].mxu0
  %v1584 = vadd.f32 0.0, %v1583
  %v1585 = vpop.f32.mrb[0].mxu0
  %1586 = vmatprep.mubr.f32.mxu0 %v1405
  %1587 = vmatmul.mubr.f32.gmra.mrb[0].mxu0 %v1333
  %v1588 = vpop.f32.mrb[0].mxu0
  %v1589 = vadd.f32 0.0, %v1588
  %v1590 = vpop.f32.mrb[0].mxu0
  %1591 = vdwg.mxu0
  %s1592 = scalar_lea.vmem %s2, 128
  %v1593 = vld [vmem:[%s1592] sm:$0xff]
  %v1594 = vld [vmem:[%s1592 + $0x8] sm:$0xff]
  %v1595 = vld [vmem:[%s1592 + $0x10] sm:$0xff]
  %v1596 = vld [vmem:[%s1592 + $0x18] sm:$0xff]
  %v1597 = vld [vmem:[%s1592 + $0x20] sm:$0xff]
  %v1598 = vld [vmem:[%s1592 + $0x28] sm:$0xff]
  %v1599 = vld [vmem:[%s1592 + $0x30] sm:$0xf]
  %v1600 = vld [vmem:[%s1592 + $0x38] sm:$0xf]
  %v1602 = vsel %vm710, %v1474, 0
  %v1605 = vsel %vm710, %v1479, 0
  %v1608 = vsel %vm710, %v1484, 0
  %v1611 = vsel %vm710, %v1489, 0
  %v1614 = vsel %vm710, %v1494, 0
  %v1617 = vsel %vm710, %v1499, 0
  %v1620 = vsel %vm710, %v1504, 0
  %v1623 = vsel %vm710, %v1509, 0
  %v1626 = vsel %vm710, %v1514, 0
  %v1629 = vsel %vm710, %v1519, 0
  %v1632 = vsel %vm710, %v1524, 0
  %v1635 = vsel %vm710, %v1529, 0
  %v1638 = vsel %vm710, %v1534, 0
  %v1641 = vsel %vm710, %v1539, 0
  %v1644 = vsel %vm710, %v1544, 0
  %v1647 = vsel %vm710, %v1549, 0
  %v1650 = vsel %vm710, %v1554, 0
  %v1653 = vsel %vm710, %v1559, 0
  %v1656 = vsel %vm710, %v1564, 0
  %v1659 = vsel %vm710, %v1569, 0
  %v1662 = vsel %vm710, %v1574, 0
  %v1665 = vsel %vm710, %v1579, 0
  %v1668 = vsel %vm710, %v1584, 0
  %v1671 = vsel %vm710, %v1589, 0
  %v1674 = vsel %vm783, %v1599, 0
  %v1677 = vsel %vm783, %v1600, 0
  %1679 = vmatprep.subr.mxu0 %v1594
  %1680 = vmatpush1.msra.mxu0 %v1593
  %1681 = vmatprep.subr.mxu0 %v1596
  %1682 = vmatpush1.msra.mxu0 %v1595
  %1683 = vmatprep.subr.mxu0 %v1598
  %1684 = vmatpush1.msra.mxu0 %v1597
  %1685 = vmatprep.subr.mxu0 %v1677
  %1686 = vmatpush1.msra.mxu0 %v1674
  %1687 = vmatprep.subr.mxu0 0.0
  %1688 = vmatpush1.msra.mxu0 0.0
  %1689 = vmatprep.subr.mxu0 0.0
  %1690 = vmatpush1.msra.mxu0 0.0
  %1691 = vmatprep.subr.mxu0 0.0
  %1692 = vmatpush1.msra.mxu0 0.0
  %1693 = vmatprep.subr.mxu0 0.0
  %1694 = vmatpush1.msra.mxu0 0.0
  %1695 = vmatprep.subr.mxu0 0.0
  %1696 = vmatpush1.msra.mxu0 0.0
  %1697 = vmatprep.subr.mxu0 0.0
  %1698 = vmatpush1.msra.mxu0 0.0
  %1699 = vmatprep.subr.mxu0 0.0
  %1700 = vmatpush1.msra.mxu0 0.0
  %1701 = vmatprep.subr.mxu0 0.0
  %1702 = vmatpush1.msra.mxu0 0.0
  %1703 = vmatprep.subr.mxu0 0.0
  %1704 = vmatpush1.msra.mxu0 0.0
  %1705 = vmatprep.subr.mxu0 0.0
  %1706 = vmatpush1.msra.mxu0 0.0
  %1707 = vmatprep.subr.mxu0 0.0
  %1708 = vmatpush1.msra.mxu0 0.0
  %1709 = vmatprep.subr.mxu0 0.0
  %1710 = vmatpush1.msra.mxu0 0.0
  %1711 = vmatprep.subr.mxu0 0.0
  %1712 = vmatpush1.msra.mxu0 0.0
  %1713 = vmatprep.subr.mxu0 0.0
  %1714 = vmatpush1.msra.mxu0 0.0
  %1715 = vmatprep.subr.mxu0 0.0
  %1716 = vmatpush1.msra.mxu0 0.0
  %1717 = vmatprep.subr.mxu0 0.0
  %1718 = vmatpush1.msra.mxu0 0.0
  %1719 = vmatprep.subr.mxu0 0.0
  %1720 = vmatpush1.msra.mxu0 0.0
  %1721 = vmatprep.subr.mxu0 0.0
  %1722 = vmatpush1.msra.mxu0 0.0
  %1723 = vmatprep.subr.mxu0 0.0
  %1724 = vmatpush1.msra.mxu0 0.0
  %1725 = vmatprep.subr.mxu0 0.0
  %1726 = vmatpush1.msra.mxu0 0.0
  %1727 = vmatprep.subr.mxu0 0.0
  %1728 = vmatpush1.msra.mxu0 0.0
  %1729 = vmatprep.subr.mxu0 0.0
  %1730 = vmatpush1.msra.mxu0 0.0
  %1731 = vmatprep.subr.mxu0 0.0
  %1732 = vmatpush1.msra.mxu0 0.0
  %1733 = vmatprep.subr.mxu0 0.0
  %1734 = vmatpush1.msra.mxu0 0.0
  %1735 = vmatprep.subr.mxu0 0.0
  %1736 = vmatpush1.msra.mxu0 0.0
  %1737 = vmatprep.subr.mxu0 0.0
  %1738 = vmatpush1.msra.mxu0 0.0
  %1739 = vmatprep.subr.mxu0 0.0
  %1740 = vmatpush1.msra.mxu0 0.0
  %1741 = vmatprep.subr.mxu0 0.0
  %1742 = vmatpush1.msra.mxu0 0.0
  %1743 = vmatprep.mubr.f32.mxu0 0.0
  %1744 = vmatmul.mubr.f32.gmra.mrb[0].mxu0 %v1602
  %v1745 = vpop.f32.mrb[0].mxu0
  %v1746 = vadd.f32 0.0, %v1745
  %v1747 = vpop.f32.mrb[0].mxu0
  %v1748 = vadd.f32 0.0, %v1747
  %1749 = vmatprep.mubr.f32.mxu0 0.0
  %1750 = vmatmul.mubr.f32.gmra.mrb[0].mxu0 %v1605
  %v1751 = vpop.f32.mrb[0].mxu0
  %v1752 = vadd.f32 0.0, %v1751
  %v1753 = vpop.f32.mrb[0].mxu0
  %v1754 = vadd.f32 0.0, %v1753
  %1755 = vmatprep.mubr.f32.mxu0 0.0
  %1756 = vmatmul.mubr.f32.gmra.mrb[0].mxu0 %v1608
  %v1757 = vpop.f32.mrb[0].mxu0
  %v1758 = vadd.f32 0.0, %v1757
  %v1759 = vpop.f32.mrb[0].mxu0
  %v1760 = vadd.f32 0.0, %v1759
  %1761 = vmatprep.mubr.f32.mxu0 0.0
  %1762 = vmatmul.mubr.f32.gmra.mrb[0].mxu0 %v1611
  %v1763 = vpop.f32.mrb[0].mxu0
  %v1764 = vadd.f32 0.0, %v1763
  %v1765 = vpop.f32.mrb[0].mxu0
  %v1766 = vadd.f32 0.0, %v1765
  %1767 = vmatprep.mubr.f32.mxu0 0.0
  %1768 = vmatmul.mubr.f32.gmra.mrb[0].mxu0 %v1614
  %v1769 = vpop.f32.mrb[0].mxu0
  %v1770 = vadd.f32 0.0, %v1769
  %v1771 = vpop.f32.mrb[0].mxu0
  %v1772 = vadd.f32 0.0, %v1771
  %1773 = vmatprep.mubr.f32.mxu0 0.0
  %1774 = vmatmul.mubr.f32.gmra.mrb[0].mxu0 %v1617
  %v1775 = vpop.f32.mrb[0].mxu0
  %v1776 = vadd.f32 0.0, %v1775
  %v1777 = vpop.f32.mrb[0].mxu0
  %v1778 = vadd.f32 0.0, %v1777
  %1779 = vmatprep.mubr.f32.mxu0 0.0
  %1780 = vmatmul.mubr.f32.gmra.mrb[0].mxu0 %v1620
  %v1781 = vpop.f32.mrb[0].mxu0
  %v1782 = vadd.f32 0.0, %v1781
  %v1783 = vpop.f32.mrb[0].mxu0
  %v1784 = vadd.f32 0.0, %v1783
  %1785 = vmatprep.mubr.f32.mxu0 0.0
  %1786 = vmatmul.mubr.f32.gmra.mrb[0].mxu0 %v1623
  %v1787 = vpop.f32.mrb[0].mxu0
  %v1788 = vadd.f32 0.0, %v1787
  %v1789 = vpop.f32.mrb[0].mxu0
  %v1790 = vadd.f32 0.0, %v1789
  %1791 = vmatprep.mubr.f32.mxu0 0.0
  %1792 = vmatmul.mubr.f32.gmra.mrb[0].mxu0 %v1626
  %v1793 = vpop.f32.mrb[0].mxu0
  %v1794 = vadd.f32 0.0, %v1793
  %v1795 = vpop.f32.mrb[0].mxu0
  %v1796 = vadd.f32 0.0, %v1795
  %1797 = vmatprep.mubr.f32.mxu0 0.0
  %1798 = vmatmul.mubr.f32.gmra.mrb[0].mxu0 %v1629
  %v1799 = vpop.f32.mrb[0].mxu0
  %v1800 = vadd.f32 0.0, %v1799
  %v1801 = vpop.f32.mrb[0].mxu0
  %v1802 = vadd.f32 0.0, %v1801
  %1803 = vmatprep.mubr.f32.mxu0 0.0
  %1804 = vmatmul.mubr.f32.gmra.mrb[0].mxu0 %v1632
  %v1805 = vpop.f32.mrb[0].mxu0
  %v1806 = vadd.f32 0.0, %v1805
  %v1807 = vpop.f32.mrb[0].mxu0
  %v1808 = vadd.f32 0.0, %v1807
  %1809 = vmatprep.mubr.f32.mxu0 0.0
  %1810 = vmatmul.mubr.f32.gmra.mrb[0].mxu0 %v1635
  %v1811 = vpop.f32.mrb[0].mxu0
  %v1812 = vadd.f32 0.0, %v1811
  %v1813 = vpop.f32.mrb[0].mxu0
  %v1814 = vadd.f32 0.0, %v1813
  %1815 = vmatprep.mubr.f32.mxu0 0.0
  %1816 = vmatmul.mubr.f32.gmra.mrb[0].mxu0 %v1638
  %v1817 = vpop.f32.mrb[0].mxu0
  %v1818 = vadd.f32 0.0, %v1817
  %v1819 = vpop.f32.mrb[0].mxu0
  %v1820 = vadd.f32 0.0, %v1819
  %1821 = vmatprep.mubr.f32.mxu0 0.0
  %1822 = vmatmul.mubr.f32.gmra.mrb[0].mxu0 %v1641
  %v1823 = vpop.f32.mrb[0].mxu0
  %v1824 = vadd.f32 0.0, %v1823
  %v1825 = vpop.f32.mrb[0].mxu0
  %v1826 = vadd.f32 0.0, %v1825
  %1827 = vmatprep.mubr.f32.mxu0 0.0
  %1828 = vmatmul.mubr.f32.gmra.mrb[0].mxu0 %v1644
  %v1829 = vpop.f32.mrb[0].mxu0
  %v1830 = vadd.f32 0.0, %v1829
  %v1831 = vpop.f32.mrb[0].mxu0
  %v1832 = vadd.f32 0.0, %v1831
  %1833 = vmatprep.mubr.f32.mxu0 0.0
  %1834 = vmatmul.mubr.f32.gmra.mrb[0].mxu0 %v1647
  %v1835 = vpop.f32.mrb[0].mxu0
  %v1836 = vadd.f32 0.0, %v1835
  %v1837 = vpop.f32.mrb[0].mxu0
  %v1838 = vadd.f32 0.0, %v1837
  %1839 = vmatprep.mubr.f32.mxu0 0.0
  %1840 = vmatmul.mubr.f32.gmra.mrb[0].mxu0 %v1650
  %v1841 = vpop.f32.mrb[0].mxu0
  %v1842 = vadd.f32 0.0, %v1841
  %v1843 = vpop.f32.mrb[0].mxu0
  %v1844 = vadd.f32 0.0, %v1843
  %1845 = vmatprep.mubr.f32.mxu0 0.0
  %1846 = vmatmul.mubr.f32.gmra.mrb[0].mxu0 %v1653
  %v1847 = vpop.f32.mrb[0].mxu0
  %v1848 = vadd.f32 0.0, %v1847
  %v1849 = vpop.f32.mrb[0].mxu0
  %v1850 = vadd.f32 0.0, %v1849
  %1851 = vmatprep.mubr.f32.mxu0 0.0
  %1852 = vmatmul.mubr.f32.gmra.mrb[0].mxu0 %v1656
  %v1853 = vpop.f32.mrb[0].mxu0
  %v1854 = vadd.f32 0.0, %v1853
  %v1855 = vpop.f32.mrb[0].mxu0
  %v1856 = vadd.f32 0.0, %v1855
  %1857 = vmatprep.mubr.f32.mxu0 0.0
  %1858 = vmatmul.mubr.f32.gmra.mrb[0].mxu0 %v1659
  %v1859 = vpop.f32.mrb[0].mxu0
  %v1860 = vadd.f32 0.0, %v1859
  %v1861 = vpop.f32.mrb[0].mxu0
  %v1862 = vadd.f32 0.0, %v1861
  %1863 = vmatprep.mubr.f32.mxu0 0.0
  %1864 = vmatmul.mubr.f32.gmra.mrb[0].mxu0 %v1662
  %v1865 = vpop.f32.mrb[0].mxu0
  %v1866 = vadd.f32 0.0, %v1865
  %v1867 = vpop.f32.mrb[0].mxu0
  %v1868 = vadd.f32 0.0, %v1867
  %1869 = vmatprep.mubr.f32.mxu0 0.0
  %1870 = vmatmul.mubr.f32.gmra.mrb[0].mxu0 %v1665
  %v1871 = vpop.f32.mrb[0].mxu0
  %v1872 = vadd.f32 0.0, %v1871
  %v1873 = vpop.f32.mrb[0].mxu0
  %v1874 = vadd.f32 0.0, %v1873
  %1875 = vmatprep.mubr.f32.mxu0 0.0
  %1876 = vmatmul.mubr.f32.gmra.mrb[0].mxu0 %v1668
  %v1877 = vpop.f32.mrb[0].mxu0
  %v1878 = vadd.f32 0.0, %v1877
  %v1879 = vpop.f32.mrb[0].mxu0
  %v1880 = vadd.f32 0.0, %v1879
  %1881 = vmatprep.mubr.f32.mxu0 0.0
  %1882 = vmatmul.mubr.f32.gmra.mrb[0].mxu0 %v1671
  %v1883 = vpop.f32.mrb[0].mxu0
  %v1884 = vadd.f32 0.0, %v1883
  %v1885 = vpop.f32.mrb[0].mxu0
  %v1886 = vadd.f32 0.0, %v1885
  %1887 = vdwg.mxu0
  %v1888 = vadd.f32 %v1144, %v1746
  %v1889 = vadd.f32 %v1146, %v1748
  %v1890 = vadd.f32 %v1150, %v1752
  %v1891 = vadd.f32 %v1152, %v1754
  %v1892 = vadd.f32 %v1156, %v1758
  %v1893 = vadd.f32 %v1158, %v1760
  %v1894 = vadd.f32 %v1162, %v1764
  %v1895 = vadd.f32 %v1164, %v1766
  %v1896 = vadd.f32 %v1168, %v1770
  %v1897 = vadd.f32 %v1170, %v1772
  %v1898 = vadd.f32 %v1174, %v1776
  %v1899 = vadd.f32 %v1176, %v1778
  %v1900 = vadd.f32 %v1180, %v1782
  %v1901 = vadd.f32 %v1182, %v1784
  %v1902 = vadd.f32 %v1186, %v1788
  %v1903 = vadd.f32 %v1188, %v1790
  %v1904 = vadd.f32 %v1192, %v1794
  %v1905 = vadd.f32 %v1194, %v1796
  %v1906 = vadd.f32 %v1198, %v1800
  %v1907 = vadd.f32 %v1200, %v1802
  %v1908 = vadd.f32 %v1204, %v1806
  %v1909 = vadd.f32 %v1206, %v1808
  %v1910 = vadd.f32 %v1210, %v1812
  %v1911 = vadd.f32 %v1212, %v1814
  %v1912 = vadd.f32 %v1216, %v1818
  %v1913 = vadd.f32 %v1218, %v1820
  %v1914 = vadd.f32 %v1222, %v1824
  %v1915 = vadd.f32 %v1224, %v1826
  %v1916 = vadd.f32 %v1228, %v1830
  %v1917 = vadd.f32 %v1230, %v1832
  %v1918 = vadd.f32 %v1234, %v1836
  %v1919 = vadd.f32 %v1236, %v1838
  %v1920 = vadd.f32 %v1240, %v1842
  %v1921 = vadd.f32 %v1242, %v1844
  %v1922 = vadd.f32 %v1246, %v1848
  %v1923 = vadd.f32 %v1248, %v1850
  %v1924 = vadd.f32 %v1252, %v1854
  %v1925 = vadd.f32 %v1254, %v1856
  %v1926 = vadd.f32 %v1258, %v1860
  %v1927 = vadd.f32 %v1260, %v1862
  %v1928 = vadd.f32 %v1264, %v1866
  %v1929 = vadd.f32 %v1266, %v1868
  %v1930 = vadd.f32 %v1270, %v1872
  %v1931 = vadd.f32 %v1272, %v1874
  %v1932 = vadd.f32 %v1276, %v1878
  %v1933 = vadd.f32 %v1278, %v1880
  %v1934 = vadd.f32 %v1282, %v1884
  %v1935 = vadd.f32 %v1284, %v1886
  %s1936 = scalar_lea.vmem %s1, 1152
  %v1937 = vld [vmem:[%s1936] sm:$0xff]
  %v1938 = vld [vmem:[%s1936 + $0x8] sm:$0xff]
  %v1939 = vld [vmem:[%s1936 + $0x10] sm:$0xff]
  %v1940 = vld [vmem:[%s1936 + $0x18] sm:$0xff]
  %v1941 = vld [vmem:[%s1936 + $0x20] sm:$0xff]
  %v1942 = vld [vmem:[%s1936 + $0x28] sm:$0xff]
  %v1943 = vld [vmem:[%s1936 + $0x30] sm:$0xff]
  %v1944 = vld [vmem:[%s1936 + $0x38] sm:$0xff]
  %v1945 = vld [vmem:[%s1936 + $0x40] sm:$0xff]
  %v1946 = vld [vmem:[%s1936 + $0x48] sm:$0xff]
  %v1947 = vld [vmem:[%s1936 + $0x50] sm:$0xff]
  %v1948 = vld [vmem:[%s1936 + $0x58] sm:$0xff]
  %v1949 = vld [vmem:[%s1936 + $0x60] sm:$0xff]
  %v1950 = vld [vmem:[%s1936 + $0x68] sm:$0xff]
  %v1951 = vld [vmem:[%s1936 + $0x70] sm:$0xff]
  %v1952 = vld [vmem:[%s1936 + $0x78] sm:$0xff]
  %v1953 = vld [vmem:[%s1936 + $0x80] sm:$0xff]
  %v1954 = vld [vmem:[%s1936 + $0x88] sm:$0xff]
  %v1955 = vld [vmem:[%s1936 + $0x90] sm:$0xff]
  %v1956 = vld [vmem:[%s1936 + $0x98] sm:$0xff]
  %v1957 = vld [vmem:[%s1936 + $0xa0] sm:$0xff]
  %v1958 = vld [vmem:[%s1936 + $0xa8] sm:$0xff]
  %v1959 = vld [vmem:[%s1936 + $0xb0] sm:$0xff]
  %v1960 = vld [vmem:[%s1936 + $0xb8] sm:$0xff]
  %v1961 = vld [vmem:[%s1936 + $0xc0] sm:$0xff]
  %v1962 = vld [vmem:[%s1936 + $0xc8] sm:$0xff]
  %v1963 = vld [vmem:[%s1936 + $0xd0] sm:$0xff]
  %v1964 = vld [vmem:[%s1936 + $0xd8] sm:$0xff]
  %v1965 = vld [vmem:[%s1936 + $0xe0] sm:$0xff]
  %v1966 = vld [vmem:[%s1936 + $0xe8] sm:$0xff]
  %v1967 = vld [vmem:[%s1936 + $0xf0] sm:$0xff]
  %v1968 = vld [vmem:[%s1936 + $0xf8] sm:$0xff]
  %v1969 = vld [vmem:[%s1936 + $0x100] sm:$0xff]
  %v1970 = vld [vmem:[%s1936 + $0x108] sm:$0xff]
  %v1971 = vld [vmem:[%s1936 + $0x110] sm:$0xff]
  %v1972 = vld [vmem:[%s1936 + $0x118] sm:$0xff]
  %v1973 = vld [vmem:[%s1936 + $0x120] sm:$0xff]
  %v1974 = vld [vmem:[%s1936 + $0x128] sm:$0xff]
  %v1975 = vld [vmem:[%s1936 + $0x130] sm:$0xff]
  %v1976 = vld [vmem:[%s1936 + $0x138] sm:$0xff]
  %v1977 = vld [vmem:[%s1936 + $0x140] sm:$0xff]
  %v1978 = vld [vmem:[%s1936 + $0x148] sm:$0xff]
  %v1979 = vld [vmem:[%s1936 + $0x150] sm:$0xff]
  %v1980 = vld [vmem:[%s1936 + $0x158] sm:$0xff]
  %v1981 = vld [vmem:[%s1936 + $0x160] sm:$0xff]
  %v1982 = vld [vmem:[%s1936 + $0x168] sm:$0xff]
  %v1983 = vld [vmem:[%s1936 + $0x170] sm:$0xff]
  %v1984 = vld [vmem:[%s1936 + $0x178] sm:$0xff]
  %v1986 = vsel %vm129, %v1938, 0
  %v1989 = vsel %vm129, %v1940, 0
  %v1992 = vsel %vm129, %v1942, 0
  %v1995 = vsel %vm129, %v1944, 0
  %v1998 = vsel %vm129, %v1946, 0
  %v2001 = vsel %vm129, %v1948, 0
  %v2004 = vsel %vm129, %v1950, 0
  %v2007 = vsel %vm129, %v1952, 0
  %v2010 = vsel %vm129, %v1954, 0
  %v2013 = vsel %vm129, %v1956, 0
  %v2016 = vsel %vm129, %v1958, 0
  %v2019 = vsel %vm129, %v1960, 0
  %v2022 = vsel %vm129, %v1962, 0
  %v2025 = vsel %vm129, %v1964, 0
  %v2028 = vsel %vm129, %v1966, 0
  %v2031 = vsel %vm129, %v1968, 0
  %v2034 = vsel %vm129, %v1970, 0
  %v2037 = vsel %vm129, %v1972, 0
  %v2040 = vsel %vm129, %v1974, 0
  %v2043 = vsel %vm129, %v1976, 0
  %v2046 = vsel %vm129, %v1978, 0
  %v2049 = vsel %vm129, %v1980, 0
  %v2052 = vsel %vm129, %v1982, 0
  %v2055 = vsel %vm129, %v1984, 0
  %2057 = vmatprep.subr.mxu0 0.0
  %2058 = vmatpush1.msra.mxu0 %v53
  %2059 = vmatprep.subr.mxu0 0.0
  %2060 = vmatpush1.msra.mxu0 %v54
  %2061 = vmatprep.subr.mxu0 0.0
  %2062 = vmatpush1.msra.mxu0 %v55
  %2063 = vmatprep.subr.mxu0 0.0
  %2064 = vmatpush1.msra.mxu0 %v56
  %2065 = vmatprep.subr.mxu0 0.0
  %2066 = vmatpush1.msra.mxu0 %v57
  %2067 = vmatprep.subr.mxu0 0.0
  %2068 = vmatpush1.msra.mxu0 %v58
  %2069 = vmatprep.subr.mxu0 0.0
  %2070 = vmatpush1.msra.mxu0 %v59
  %2071 = vmatprep.subr.mxu0 0.0
  %2072 = vmatpush1.msra.mxu0 %v60
  %2073 = vmatprep.subr.mxu0 0.0
  %2074 = vmatpush1.msra.mxu0 %v61
  %2075 = vmatprep.subr.mxu0 0.0
  %2076 = vmatpush1.msra.mxu0 %v62
  %2077 = vmatprep.subr.mxu0 0.0
  %2078 = vmatpush1.msra.mxu0 %v63
  %2079 = vmatprep.subr.mxu0 0.0
  %2080 = vmatpush1.msra.mxu0 %v64
  %2081 = vmatprep.subr.mxu0 0.0
  %2082 = vmatpush1.msra.mxu0 %v65
  %2083 = vmatprep.subr.mxu0 0.0
  %2084 = vmatpush1.msra.mxu0 %v66
  %2085 = vmatprep.subr.mxu0 0.0
  %2086 = vmatpush1.msra.mxu0 %v67
  %2087 = vmatprep.subr.mxu0 0.0
  %2088 = vmatpush1.msra.mxu0 %v68
  %2089 = vmatprep.subr.mxu0 0.0
  %2090 = vmatpush1.msra.mxu0 %v69
  %2091 = vmatprep.subr.mxu0 0.0
  %2092 = vmatpush1.msra.mxu0 %v70
  %2093 = vmatprep.subr.mxu0 0.0
  %2094 = vmatpush1.msra.mxu0 %v71
  %2095 = vmatprep.subr.mxu0 0.0
  %2096 = vmatpush1.msra.mxu0 %v72
  %2097 = vmatprep.subr.mxu0 0.0
  %2098 = vmatpush1.msra.mxu0 %v73
  %2099 = vmatprep.subr.mxu0 0.0
  %2100 = vmatpush1.msra.mxu0 %v74
  %2101 = vmatprep.subr.mxu0 0.0
  %2102 = vmatpush1.msra.mxu0 %v75
  %2103 = vmatprep.subr.mxu0 0.0
  %2104 = vmatpush1.msra.mxu0 %v76
  %2105 = vmatprep.subr.mxu0 0.0
  %2106 = vmatpush1.msra.mxu0 %v77
  %2107 = vmatprep.subr.mxu0 0.0
  %2108 = vmatpush1.msra.mxu0 %v78
  %2109 = vmatprep.subr.mxu0 0.0
  %2110 = vmatpush1.msra.mxu0 %v79
  %2111 = vmatprep.subr.mxu0 0.0
  %2112 = vmatpush1.msra.mxu0 %v80
  %2113 = vmatprep.subr.mxu0 0.0
  %2114 = vmatpush1.msra.mxu0 0.0
  %2115 = vmatprep.subr.mxu0 0.0
  %2116 = vmatpush1.msra.mxu0 0.0
  %2117 = vmatprep.subr.mxu0 0.0
  %2118 = vmatpush1.msra.mxu0 0.0
  %2119 = vmatprep.subr.mxu0 0.0
  %2120 = vmatpush1.msra.mxu0 0.0
  %2121 = vmatprep.mubr.f32.mxu0 %v1986
  %2122 = vmatmul.mubr.f32.gmra.mrb[0].mxu0 %v1937
  %v2123 = vpop.f32.mrb[0].mxu0
  %v2124 = vadd.f32 0.0, %v2123
  %v2125 = vpop.f32.mrb[0].mxu0
  %2126 = vmatprep.mubr.f32.mxu0 %v1989
  %2127 = vmatmul.mubr.f32.gmra.mrb[0].mxu0 %v1939
  %v2128 = vpop.f32.mrb[0].mxu0
  %v2129 = vadd.f32 0.0, %v2128
  %v2130 = vpop.f32.mrb[0].mxu0
  %2131 = vmatprep.mubr.f32.mxu0 %v1992
  %2132 = vmatmul.mubr.f32.gmra.mrb[0].mxu0 %v1941
  %v2133 = vpop.f32.mrb[0].mxu0
  %v2134 = vadd.f32 0.0, %v2133
  %v2135 = vpop.f32.mrb[0].mxu0
  %2136 = vmatprep.mubr.f32.mxu0 %v1995
  %2137 = vmatmul.mubr.f32.gmra.mrb[0].mxu0 %v1943
  %v2138 = vpop.f32.mrb[0].mxu0
  %v2139 = vadd.f32 0.0, %v2138
  %v2140 = vpop.f32.mrb[0].mxu0
  %2141 = vmatprep.mubr.f32.mxu0 %v1998
  %2142 = vmatmul.mubr.f32.gmra.mrb[0].mxu0 %v1945
  %v2143 = vpop.f32.mrb[0].mxu0
  %v2144 = vadd.f32 0.0, %v2143
  %v2145 = vpop.f32.mrb[0].mxu0
  %2146 = vmatprep.mubr.f32.mxu0 %v2001
  %2147 = vmatmul.mubr.f32.gmra.mrb[0].mxu0 %v1947
  %v2148 = vpop.f32.mrb[0].mxu0
  %v2149 = vadd.f32 0.0, %v2148
  %v2150 = vpop.f32.mrb[0].mxu0
  %2151 = vmatprep.mubr.f32.mxu0 %v2004
  %2152 = vmatmul.mubr.f32.gmra.mrb[0].mxu0 %v1949
  %v2153 = vpop.f32.mrb[0].mxu0
  %v2154 = vadd.f32 0.0, %v2153
  %v2155 = vpop.f32.mrb[0].mxu0
  %2156 = vmatprep.mubr.f32.mxu0 %v2007
  %2157 = vmatmul.mubr.f32.gmra.mrb[0].mxu0 %v1951
  %v2158 = vpop.f32.mrb[0].mxu0
  %v2159 = vadd.f32 0.0, %v2158
  %v2160 = vpop.f32.mrb[0].mxu0
  %2161 = vmatprep.mubr.f32.mxu0 %v2010
  %2162 = vmatmul.mubr.f32.gmra.mrb[0].mxu0 %v1953
  %v2163 = vpop.f32.mrb[0].mxu0
  %v2164 = vadd.f32 0.0, %v2163
  %v2165 = vpop.f32.mrb[0].mxu0
  %2166 = vmatprep.mubr.f32.mxu0 %v2013
  %2167 = vmatmul.mubr.f32.gmra.mrb[0].mxu0 %v1955
  %v2168 = vpop.f32.mrb[0].mxu0
  %v2169 = vadd.f32 0.0, %v2168
  %v2170 = vpop.f32.mrb[0].mxu0
  %2171 = vmatprep.mubr.f32.mxu0 %v2016
  %2172 = vmatmul.mubr.f32.gmra.mrb[0].mxu0 %v1957
  %v2173 = vpop.f32.mrb[0].mxu0
  %v2174 = vadd.f32 0.0, %v2173
  %v2175 = vpop.f32.mrb[0].mxu0
  %2176 = vmatprep.mubr.f32.mxu0 %v2019
  %2177 = vmatmul.mubr.f32.gmra.mrb[0].mxu0 %v1959
  %v2178 = vpop.f32.mrb[0].mxu0
  %v2179 = vadd.f32 0.0, %v2178
  %v2180 = vpop.f32.mrb[0].mxu0
  %2181 = vmatprep.mubr.f32.mxu0 %v2022
  %2182 = vmatmul.mubr.f32.gmra.mrb[0].mxu0 %v1961
  %v2183 = vpop.f32.mrb[0].mxu0
  %v2184 = vadd.f32 0.0, %v2183
  %v2185 = vpop.f32.mrb[0].mxu0
  %2186 = vmatprep.mubr.f32.mxu0 %v2025
  %2187 = vmatmul.mubr.f32.gmra.mrb[0].mxu0 %v1963
  %v2188 = vpop.f32.mrb[0].mxu0
  %v2189 = vadd.f32 0.0, %v2188
  %v2190 = vpop.f32.mrb[0].mxu0
  %2191 = vmatprep.mubr.f32.mxu0 %v2028
  %2192 = vmatmul.mubr.f32.gmra.mrb[0].mxu0 %v1965
  %v2193 = vpop.f32.mrb[0].mxu0
  %v2194 = vadd.f32 0.0, %v2193
  %v2195 = vpop.f32.mrb[0].mxu0
  %2196 = vmatprep.mubr.f32.mxu0 %v2031
  %2197 = vmatmul.mubr.f32.gmra.mrb[0].mxu0 %v1967
  %v2198 = vpop.f32.mrb[0].mxu0
  %v2199 = vadd.f32 0.0, %v2198
  %v2200 = vpop.f32.mrb[0].mxu0
  %2201 = vmatprep.mubr.f32.mxu0 %v2034
  %2202 = vmatmul.mubr.f32.gmra.mrb[0].mxu0 %v1969
  %v2203 = vpop.f32.mrb[0].mxu0
  %v2204 = vadd.f32 0.0, %v2203
  %v2205 = vpop.f32.mrb[0].mxu0
  %2206 = vmatprep.mubr.f32.mxu0 %v2037
  %2207 = vmatmul.mubr.f32.gmra.mrb[0].mxu0 %v1971
  %v2208 = vpop.f32.mrb[0].mxu0
  %v2209 = vadd.f32 0.0, %v2208
  %v2210 = vpop.f32.mrb[0].mxu0
  %2211 = vmatprep.mubr.f32.mxu0 %v2040
  %2212 = vmatmul.mubr.f32.gmra.mrb[0].mxu0 %v1973
  %v2213 = vpop.f32.mrb[0].mxu0
  %v2214 = vadd.f32 0.0, %v2213
  %v2215 = vpop.f32.mrb[0].mxu0
  %2216 = vmatprep.mubr.f32.mxu0 %v2043
  %2217 = vmatmul.mubr.f32.gmra.mrb[0].mxu0 %v1975
  %v2218 = vpop.f32.mrb[0].mxu0
  %v2219 = vadd.f32 0.0, %v2218
  %v2220 = vpop.f32.mrb[0].mxu0
  %2221 = vmatprep.mubr.f32.mxu0 %v2046
  %2222 = vmatmul.mubr.f32.gmra.mrb[0].mxu0 %v1977
  %v2223 = vpop.f32.mrb[0].mxu0
  %v2224 = vadd.f32 0.0, %v2223
  %v2225 = vpop.f32.mrb[0].mxu0
  %2226 = vmatprep.mubr.f32.mxu0 %v2049
  %2227 = vmatmul.mubr.f32.gmra.mrb[0].mxu0 %v1979
  %v2228 = vpop.f32.mrb[0].mxu0
  %v2229 = vadd.f32 0.0, %v2228
  %v2230 = vpop.f32.mrb[0].mxu0
  %2231 = vmatprep.mubr.f32.mxu0 %v2052
  %2232 = vmatmul.mubr.f32.gmra.mrb[0].mxu0 %v1981
  %v2233 = vpop.f32.mrb[0].mxu0
  %v2234 = vadd.f32 0.0, %v2233
  %v2235 = vpop.f32.mrb[0].mxu0
  %2236 = vmatprep.mubr.f32.mxu0 %v2055
  %2237 = vmatmul.mubr.f32.gmra.mrb[0].mxu0 %v1983
  %v2238 = vpop.f32.mrb[0].mxu0
  %v2239 = vadd.f32 0.0, %v2238
  %v2240 = vpop.f32.mrb[0].mxu0
  %2241 = vdwg.mxu0
  %s2242 = scalar_lea.vmem %s2, 192
  %v2243 = vld [vmem:[%s2242] sm:$0xff]
  %v2244 = vld [vmem:[%s2242 + $0x8] sm:$0xff]
  %v2245 = vld [vmem:[%s2242 + $0x10] sm:$0xff]
  %v2246 = vld [vmem:[%s2242 + $0x18] sm:$0xff]
  %v2247 = vld [vmem:[%s2242 + $0x20] sm:$0xff]
  %v2248 = vld [vmem:[%s2242 + $0x28] sm:$0xff]
  %v2249 = vld [vmem:[%s2242 + $0x30] sm:$0xf]
  %v2250 = vld [vmem:[%s2242 + $0x38] sm:$0xf]
  %v2252 = vsel %vm710, %v2124, 0
  %v2255 = vsel %vm710, %v2129, 0
  %v2258 = vsel %vm710, %v2134, 0
  %v2261 = vsel %vm710, %v2139, 0
  %v2264 = vsel %vm710, %v2144, 0
  %v2267 = vsel %vm710, %v2149, 0
  %v2270 = vsel %vm710, %v2154, 0
  %v2273 = vsel %vm710, %v2159, 0
  %v2276 = vsel %vm710, %v2164, 0
  %v2279 = vsel %vm710, %v2169, 0
  %v2282 = vsel %vm710, %v2174, 0
  %v2285 = vsel %vm710, %v2179, 0
  %v2288 = vsel %vm710, %v2184, 0
  %v2291 = vsel %vm710, %v2189, 0
  %v2294 = vsel %vm710, %v2194, 0
  %v2297 = vsel %vm710, %v2199, 0
  %v2300 = vsel %vm710, %v2204, 0
  %v2303 = vsel %vm710, %v2209, 0
  %v2306 = vsel %vm710, %v2214, 0
  %v2309 = vsel %vm710, %v2219, 0
  %v2312 = vsel %vm710, %v2224, 0
  %v2315 = vsel %vm710, %v2229, 0
  %v2318 = vsel %vm710, %v2234, 0
  %v2321 = vsel %vm710, %v2239, 0
  %v2324 = vsel %vm783, %v2249, 0
  %v2327 = vsel %vm783, %v2250, 0
  %2329 = vmatprep.subr.mxu0 %v2244
  %2330 = vmatpush1.msra.mxu0 %v2243
  %2331 = vmatprep.subr.mxu0 %v2246
  %2332 = vmatpush1.msra.mxu0 %v2245
  %2333 = vmatprep.subr.mxu0 %v2248
  %2334 = vmatpush1.msra.mxu0 %v2247
  %2335 = vmatprep.subr.mxu0 %v2327
  %2336 = vmatpush1.msra.mxu0 %v2324
  %2337 = vmatprep.subr.mxu0 0.0
  %2338 = vmatpush1.msra.mxu0 0.0
  %2339 = vmatprep.subr.mxu0 0.0
  %2340 = vmatpush1.msra.mxu0 0.0
  %2341 = vmatprep.subr.mxu0 0.0
  %2342 = vmatpush1.msra.mxu0 0.0
  %2343 = vmatprep.subr.mxu0 0.0
  %2344 = vmatpush1.msra.mxu0 0.0
  %2345 = vmatprep.subr.mxu0 0.0
  %2346 = vmatpush1.msra.mxu0 0.0
  %2347 = vmatprep.subr.mxu0 0.0
  %2348 = vmatpush1.msra.mxu0 0.0
  %2349 = vmatprep.subr.mxu0 0.0
  %2350 = vmatpush1.msra.mxu0 0.0
  %2351 = vmatprep.subr.mxu0 0.0
  %2352 = vmatpush1.msra.mxu0 0.0
  %2353 = vmatprep.subr.mxu0 0.0
  %2354 = vmatpush1.msra.mxu0 0.0
  %2355 = vmatprep.subr.mxu0 0.0
  %2356 = vmatpush1.msra.mxu0 0.0
  %2357 = vmatprep.subr.mxu0 0.0
  %2358 = vmatpush1.msra.mxu0 0.0
  %2359 = vmatprep.subr.mxu0 0.0
  %2360 = vmatpush1.msra.mxu0 0.0
  %2361 = vmatprep.subr.mxu0 0.0
  %2362 = vmatpush1.msra.mxu0 0.0
  %2363 = vmatprep.subr.mxu0 0.0
  %2364 = vmatpush1.msra.mxu0 0.0
  %2365 = vmatprep.subr.mxu0 0.0
  %2366 = vmatpush1.msra.mxu0 0.0
  %2367 = vmatprep.subr.mxu0 0.0
  %2368 = vmatpush1.msra.mxu0 0.0
  %2369 = vmatprep.subr.mxu0 0.0
  %2370 = vmatpush1.msra.mxu0 0.0
  %2371 = vmatprep.subr.mxu0 0.0
  %2372 = vmatpush1.msra.mxu0 0.0
  %2373 = vmatprep.subr.mxu0 0.0
  %2374 = vmatpush1.msra.mxu0 0.0
  %2375 = vmatprep.subr.mxu0 0.0
  %2376 = vmatpush1.msra.mxu0 0.0
  %2377 = vmatprep.subr.mxu0 0.0
  %2378 = vmatpush1.msra.mxu0 0.0
  %2379 = vmatprep.subr.mxu0 0.0
  %2380 = vmatpush1.msra.mxu0 0.0
  %2381 = vmatprep.subr.mxu0 0.0
  %2382 = vmatpush1.msra.mxu0 0.0
  %2383 = vmatprep.subr.mxu0 0.0
  %2384 = vmatpush1.msra.mxu0 0.0
  %2385 = vmatprep.subr.mxu0 0.0
  %2386 = vmatpush1.msra.mxu0 0.0
  %2387 = vmatprep.subr.mxu0 0.0
  %2388 = vmatpush1.msra.mxu0 0.0
  %2389 = vmatprep.subr.mxu0 0.0
  %2390 = vmatpush1.msra.mxu0 0.0
  %2391 = vmatprep.subr.mxu0 0.0
  %2392 = vmatpush1.msra.mxu0 0.0
  %2393 = vmatprep.mubr.f32.mxu0 0.0
  %2394 = vmatmul.mubr.f32.gmra.mrb[0].mxu0 %v2252
  %v2395 = vpop.f32.mrb[0].mxu0
  %v2396 = vadd.f32 0.0, %v2395
  %v2397 = vpop.f32.mrb[0].mxu0
  %v2398 = vadd.f32 0.0, %v2397
  %2399 = vmatprep.mubr.f32.mxu0 0.0
  %2400 = vmatmul.mubr.f32.gmra.mrb[0].mxu0 %v2255
  %v2401 = vpop.f32.mrb[0].mxu0
  %v2402 = vadd.f32 0.0, %v2401
  %v2403 = vpop.f32.mrb[0].mxu0
  %v2404 = vadd.f32 0.0, %v2403
  %2405 = vmatprep.mubr.f32.mxu0 0.0
  %2406 = vmatmul.mubr.f32.gmra.mrb[0].mxu0 %v2258
  %v2407 = vpop.f32.mrb[0].mxu0
  %v2408 = vadd.f32 0.0, %v2407
  %v2409 = vpop.f32.mrb[0].mxu0
  %v2410 = vadd.f32 0.0, %v2409
  %2411 = vmatprep.mubr.f32.mxu0 0.0
  %2412 = vmatmul.mubr.f32.gmra.mrb[0].mxu0 %v2261
  %v2413 = vpop.f32.mrb[0].mxu0
  %v2414 = vadd.f32 0.0, %v2413
  %v2415 = vpop.f32.mrb[0].mxu0
  %v2416 = vadd.f32 0.0, %v2415
  %2417 = vmatprep.mubr.f32.mxu0 0.0
  %2418 = vmatmul.mubr.f32.gmra.mrb[0].mxu0 %v2264
  %v2419 = vpop.f32.mrb[0].mxu0
  %v2420 = vadd.f32 0.0, %v2419
  %v2421 = vpop.f32.mrb[0].mxu0
  %v2422 = vadd.f32 0.0, %v2421
  %2423 = vmatprep.mubr.f32.mxu0 0.0
  %2424 = vmatmul.mubr.f32.gmra.mrb[0].mxu0 %v2267
  %v2425 = vpop.f32.mrb[0].mxu0
  %v2426 = vadd.f32 0.0, %v2425
  %v2427 = vpop.f32.mrb[0].mxu0
  %v2428 = vadd.f32 0.0, %v2427
  %2429 = vmatprep.mubr.f32.mxu0 0.0
  %2430 = vmatmul.mubr.f32.gmra.mrb[0].mxu0 %v2270
  %v2431 = vpop.f32.mrb[0].mxu0
  %v2432 = vadd.f32 0.0, %v2431
  %v2433 = vpop.f32.mrb[0].mxu0
  %v2434 = vadd.f32 0.0, %v2433
  %2435 = vmatprep.mubr.f32.mxu0 0.0
  %2436 = vmatmul.mubr.f32.gmra.mrb[0].mxu0 %v2273
  %v2437 = vpop.f32.mrb[0].mxu0
  %v2438 = vadd.f32 0.0, %v2437
  %v2439 = vpop.f32.mrb[0].mxu0
  %v2440 = vadd.f32 0.0, %v2439
  %2441 = vmatprep.mubr.f32.mxu0 0.0
  %2442 = vmatmul.mubr.f32.gmra.mrb[0].mxu0 %v2276
  %v2443 = vpop.f32.mrb[0].mxu0
  %v2444 = vadd.f32 0.0, %v2443
  %v2445 = vpop.f32.mrb[0].mxu0
  %v2446 = vadd.f32 0.0, %v2445
  %2447 = vmatprep.mubr.f32.mxu0 0.0
  %2448 = vmatmul.mubr.f32.gmra.mrb[0].mxu0 %v2279
  %v2449 = vpop.f32.mrb[0].mxu0
  %v2450 = vadd.f32 0.0, %v2449
  %v2451 = vpop.f32.mrb[0].mxu0
  %v2452 = vadd.f32 0.0, %v2451
  %2453 = vmatprep.mubr.f32.mxu0 0.0
  %2454 = vmatmul.mubr.f32.gmra.mrb[0].mxu0 %v2282
  %v2455 = vpop.f32.mrb[0].mxu0
  %v2456 = vadd.f32 0.0, %v2455
  %v2457 = vpop.f32.mrb[0].mxu0
  %v2458 = vadd.f32 0.0, %v2457
  %2459 = vmatprep.mubr.f32.mxu0 0.0
  %2460 = vmatmul.mubr.f32.gmra.mrb[0].mxu0 %v2285
  %v2461 = vpop.f32.mrb[0].mxu0
  %v2462 = vadd.f32 0.0, %v2461
  %v2463 = vpop.f32.mrb[0].mxu0
  %v2464 = vadd.f32 0.0, %v2463
  %2465 = vmatprep.mubr.f32.mxu0 0.0
  %2466 = vmatmul.mubr.f32.gmra.mrb[0].mxu0 %v2288
  %v2467 = vpop.f32.mrb[0].mxu0
  %v2468 = vadd.f32 0.0, %v2467
  %v2469 = vpop.f32.mrb[0].mxu0
  %v2470 = vadd.f32 0.0, %v2469
  %2471 = vmatprep.mubr.f32.mxu0 0.0
  %2472 = vmatmul.mubr.f32.gmra.mrb[0].mxu0 %v2291
  %v2473 = vpop.f32.mrb[0].mxu0
  %v2474 = vadd.f32 0.0, %v2473
  %v2475 = vpop.f32.mrb[0].mxu0
  %v2476 = vadd.f32 0.0, %v2475
  %2477 = vmatprep.mubr.f32.mxu0 0.0
  %2478 = vmatmul.mubr.f32.gmra.mrb[0].mxu0 %v2294
  %v2479 = vpop.f32.mrb[0].mxu0
  %v2480 = vadd.f32 0.0, %v2479
  %v2481 = vpop.f32.mrb[0].mxu0
  %v2482 = vadd.f32 0.0, %v2481
  %2483 = vmatprep.mubr.f32.mxu0 0.0
  %2484 = vmatmul.mubr.f32.gmra.mrb[0].mxu0 %v2297
  %v2485 = vpop.f32.mrb[0].mxu0
  %v2486 = vadd.f32 0.0, %v2485
  %v2487 = vpop.f32.mrb[0].mxu0
  %v2488 = vadd.f32 0.0, %v2487
  %2489 = vmatprep.mubr.f32.mxu0 0.0
  %2490 = vmatmul.mubr.f32.gmra.mrb[0].mxu0 %v2300
  %v2491 = vpop.f32.mrb[0].mxu0
  %v2492 = vadd.f32 0.0, %v2491
  %v2493 = vpop.f32.mrb[0].mxu0
  %v2494 = vadd.f32 0.0, %v2493
  %2495 = vmatprep.mubr.f32.mxu0 0.0
  %2496 = vmatmul.mubr.f32.gmra.mrb[0].mxu0 %v2303
  %v2497 = vpop.f32.mrb[0].mxu0
  %v2498 = vadd.f32 0.0, %v2497
  %v2499 = vpop.f32.mrb[0].mxu0
  %v2500 = vadd.f32 0.0, %v2499
  %2501 = vmatprep.mubr.f32.mxu0 0.0
  %2502 = vmatmul.mubr.f32.gmra.mrb[0].mxu0 %v2306
  %v2503 = vpop.f32.mrb[0].mxu0
  %v2504 = vadd.f32 0.0, %v2503
  %v2505 = vpop.f32.mrb[0].mxu0
  %v2506 = vadd.f32 0.0, %v2505
  %2507 = vmatprep.mubr.f32.mxu0 0.0
  %2508 = vmatmul.mubr.f32.gmra.mrb[0].mxu0 %v2309
  %v2509 = vpop.f32.mrb[0].mxu0
  %v2510 = vadd.f32 0.0, %v2509
  %v2511 = vpop.f32.mrb[0].mxu0
  %v2512 = vadd.f32 0.0, %v2511
  %2513 = vmatprep.mubr.f32.mxu0 0.0
  %2514 = vmatmul.mubr.f32.gmra.mrb[0].mxu0 %v2312
  %v2515 = vpop.f32.mrb[0].mxu0
  %v2516 = vadd.f32 0.0, %v2515
  %v2517 = vpop.f32.mrb[0].mxu0
  %v2518 = vadd.f32 0.0, %v2517
  %2519 = vmatprep.mubr.f32.mxu0 0.0
  %2520 = vmatmul.mubr.f32.gmra.mrb[0].mxu0 %v2315
  %v2521 = vpop.f32.mrb[0].mxu0
  %v2522 = vadd.f32 0.0, %v2521
  %v2523 = vpop.f32.mrb[0].mxu0
  %v2524 = vadd.f32 0.0, %v2523
  %2525 = vmatprep.mubr.f32.mxu0 0.0
  %2526 = vmatmul.mubr.f32.gmra.mrb[0].mxu0 %v2318
  %v2527 = vpop.f32.mrb[0].mxu0
  %v2528 = vadd.f32 0.0, %v2527
  %v2529 = vpop.f32.mrb[0].mxu0
  %v2530 = vadd.f32 0.0, %v2529
  %2531 = vmatprep.mubr.f32.mxu0 0.0
  %2532 = vmatmul.mubr.f32.gmra.mrb[0].mxu0 %v2321
  %v2533 = vpop.f32.mrb[0].mxu0
  %v2534 = vadd.f32 0.0, %v2533
  %v2535 = vpop.f32.mrb[0].mxu0
  %v2536 = vadd.f32 0.0, %v2535
  %2537 = vdwg.mxu0
  %v2538 = vadd.f32 %v1888, %v2396
  %v2539 = vadd.f32 %v1889, %v2398
  %v2540 = vadd.f32 %v1890, %v2402
  %v2541 = vadd.f32 %v1891, %v2404
  %v2542 = vadd.f32 %v1892, %v2408
  %v2543 = vadd.f32 %v1893, %v2410
  %v2544 = vadd.f32 %v1894, %v2414
  %v2545 = vadd.f32 %v1895, %v2416
  %v2546 = vadd.f32 %v1896, %v2420
  %v2547 = vadd.f32 %v1897, %v2422
  %v2548 = vadd.f32 %v1898, %v2426
  %v2549 = vadd.f32 %v1899, %v2428
  %v2550 = vadd.f32 %v1900, %v2432
  %v2551 = vadd.f32 %v1901, %v2434
  %v2552 = vadd.f32 %v1902, %v2438
  %v2553 = vadd.f32 %v1903, %v2440
  %v2554 = vadd.f32 %v1904, %v2444
  %v2555 = vadd.f32 %v1905, %v2446
  %v2556 = vadd.f32 %v1906, %v2450
  %v2557 = vadd.f32 %v1907, %v2452
  %v2558 = vadd.f32 %v1908, %v2456
  %v2559 = vadd.f32 %v1909, %v2458
  %v2560 = vadd.f32 %v1910, %v2462
  %v2561 = vadd.f32 %v1911, %v2464
  %v2562 = vadd.f32 %v1912, %v2468
  %v2563 = vadd.f32 %v1913, %v2470
  %v2564 = vadd.f32 %v1914, %v2474
  %v2565 = vadd.f32 %v1915, %v2476
  %v2566 = vadd.f32 %v1916, %v2480
  %v2567 = vadd.f32 %v1917, %v2482
  %v2568 = vadd.f32 %v1918, %v2486
  %v2569 = vadd.f32 %v1919, %v2488
  %v2570 = vadd.f32 %v1920, %v2492
  %v2571 = vadd.f32 %v1921, %v2494
  %v2572 = vadd.f32 %v1922, %v2498
  %v2573 = vadd.f32 %v1923, %v2500
  %v2574 = vadd.f32 %v1924, %v2504
  %v2575 = vadd.f32 %v1925, %v2506
  %v2576 = vadd.f32 %v1926, %v2510
  %v2577 = vadd.f32 %v1927, %v2512
  %v2578 = vadd.f32 %v1928, %v2516
  %v2579 = vadd.f32 %v1929, %v2518
  %v2580 = vadd.f32 %v1930, %v2522
  %v2581 = vadd.f32 %v1931, %v2524
  %v2582 = vadd.f32 %v1932, %v2528
  %v2583 = vadd.f32 %v1933, %v2530
  %v2584 = vadd.f32 %v1934, %v2534
  %v2585 = vadd.f32 %v1935, %v2536
  %s2586 = scalar_lea.vmem %s1, 1536
  %v2587 = vld [vmem:[%s2586] sm:$0xff]
  %v2588 = vld [vmem:[%s2586 + $0x8] sm:$0xff]
  %v2589 = vld [vmem:[%s2586 + $0x10] sm:$0xff]
  %v2590 = vld [vmem:[%s2586 + $0x18] sm:$0xff]
  %v2591 = vld [vmem:[%s2586 + $0x20] sm:$0xff]
  %v2592 = vld [vmem:[%s2586 + $0x28] sm:$0xff]
  %v2593 = vld [vmem:[%s2586 + $0x30] sm:$0xff]
  %v2594 = vld [vmem:[%s2586 + $0x38] sm:$0xff]
  %v2595 = vld [vmem:[%s2586 + $0x40] sm:$0xff]
  %v2596 = vld [vmem:[%s2586 + $0x48] sm:$0xff]
  %v2597 = vld [vmem:[%s2586 + $0x50] sm:$0xff]
  %v2598 = vld [vmem:[%s2586 + $0x58] sm:$0xff]
  %v2599 = vld [vmem:[%s2586 + $0x60] sm:$0xff]
  %v2600 = vld [vmem:[%s2586 + $0x68] sm:$0xff]
  %v2601 = vld [vmem:[%s2586 + $0x70] sm:$0xff]
  %v2602 = vld [vmem:[%s2586 + $0x78] sm:$0xff]
  %v2603 = vld [vmem:[%s2586 + $0x80] sm:$0xff]
  %v2604 = vld [vmem:[%s2586 + $0x88] sm:$0xff]
  %v2605 = vld [vmem:[%s2586 + $0x90] sm:$0xff]
  %v2606 = vld [vmem:[%s2586 + $0x98] sm:$0xff]
  %v2607 = vld [vmem:[%s2586 + $0xa0] sm:$0xff]
  %v2608 = vld [vmem:[%s2586 + $0xa8] sm:$0xff]
  %v2609 = vld [vmem:[%s2586 + $0xb0] sm:$0xff]
  %v2610 = vld [vmem:[%s2586 + $0xb8] sm:$0xff]
  %v2611 = vld [vmem:[%s2586 + $0xc0] sm:$0xff]
  %v2612 = vld [vmem:[%s2586 + $0xc8] sm:$0xff]
  %v2613 = vld [vmem:[%s2586 + $0xd0] sm:$0xff]
  %v2614 = vld [vmem:[%s2586 + $0xd8] sm:$0xff]
  %v2615 = vld [vmem:[%s2586 + $0xe0] sm:$0xff]
  %v2616 = vld [vmem:[%s2586 + $0xe8] sm:$0xff]
  %v2617 = vld [vmem:[%s2586 + $0xf0] sm:$0xff]
  %v2618 = vld [vmem:[%s2586 + $0xf8] sm:$0xff]
  %v2619 = vld [vmem:[%s2586 + $0x100] sm:$0xff]
  %v2620 = vld [vmem:[%s2586 + $0x108] sm:$0xff]
  %v2621 = vld [vmem:[%s2586 + $0x110] sm:$0xff]
  %v2622 = vld [vmem:[%s2586 + $0x118] sm:$0xff]
  %v2623 = vld [vmem:[%s2586 + $0x120] sm:$0xff]
  %v2624 = vld [vmem:[%s2586 + $0x128] sm:$0xff]
  %v2625 = vld [vmem:[%s2586 + $0x130] sm:$0xff]
  %v2626 = vld [vmem:[%s2586 + $0x138] sm:$0xff]
  %v2627 = vld [vmem:[%s2586 + $0x140] sm:$0xff]
  %v2628 = vld [vmem:[%s2586 + $0x148] sm:$0xff]
  %v2629 = vld [vmem:[%s2586 + $0x150] sm:$0xff]
  %v2630 = vld [vmem:[%s2586 + $0x158] sm:$0xff]
  %v2631 = vld [vmem:[%s2586 + $0x160] sm:$0xff]
  %v2632 = vld [vmem:[%s2586 + $0x168] sm:$0xff]
  %v2633 = vld [vmem:[%s2586 + $0x170] sm:$0xff]
  %v2634 = vld [vmem:[%s2586 + $0x178] sm:$0xff]
  %v2636 = vsel %vm129, %v2588, 0
  %v2639 = vsel %vm129, %v2590, 0
  %v2642 = vsel %vm129, %v2592, 0
  %v2645 = vsel %vm129, %v2594, 0
  %v2648 = vsel %vm129, %v2596, 0
  %v2651 = vsel %vm129, %v2598, 0
  %v2654 = vsel %vm129, %v2600, 0
  %v2657 = vsel %vm129, %v2602, 0
  %v2660 = vsel %vm129, %v2604, 0
  %v2663 = vsel %vm129, %v2606, 0
  %v2666 = vsel %vm129, %v2608, 0
  %v2669 = vsel %vm129, %v2610, 0
  %v2672 = vsel %vm129, %v2612, 0
  %v2675 = vsel %vm129, %v2614, 0
  %v2678 = vsel %vm129, %v2616, 0
  %v2681 = vsel %vm129, %v2618, 0
  %v2684 = vsel %vm129, %v2620, 0
  %v2687 = vsel %vm129, %v2622, 0
  %v2690 = vsel %vm129, %v2624, 0
  %v2693 = vsel %vm129, %v2626, 0
  %v2696 = vsel %vm129, %v2628, 0
  %v2699 = vsel %vm129, %v2630, 0
  %v2702 = vsel %vm129, %v2632, 0
  %v2705 = vsel %vm129, %v2634, 0
  %2707 = vmatprep.subr.mxu0 0.0
  %2708 = vmatpush1.msra.mxu0 %v53
  %2709 = vmatprep.subr.mxu0 0.0
  %2710 = vmatpush1.msra.mxu0 %v54
  %2711 = vmatprep.subr.mxu0 0.0
  %2712 = vmatpush1.msra.mxu0 %v55
  %2713 = vmatprep.subr.mxu0 0.0
  %2714 = vmatpush1.msra.mxu0 %v56
  %2715 = vmatprep.subr.mxu0 0.0
  %2716 = vmatpush1.msra.mxu0 %v57
  %2717 = vmatprep.subr.mxu0 0.0
  %2718 = vmatpush1.msra.mxu0 %v58
  %2719 = vmatprep.subr.mxu0 0.0
  %2720 = vmatpush1.msra.mxu0 %v59
  %2721 = vmatprep.subr.mxu0 0.0
  %2722 = vmatpush1.msra.mxu0 %v60
  %2723 = vmatprep.subr.mxu0 0.0
  %2724 = vmatpush1.msra.mxu0 %v61
  %2725 = vmatprep.subr.mxu0 0.0
  %2726 = vmatpush1.msra.mxu0 %v62
  %2727 = vmatprep.subr.mxu0 0.0
  %2728 = vmatpush1.msra.mxu0 %v63
  %2729 = vmatprep.subr.mxu0 0.0
  %2730 = vmatpush1.msra.mxu0 %v64
  %2731 = vmatprep.subr.mxu0 0.0
  %2732 = vmatpush1.msra.mxu0 %v65
  %2733 = vmatprep.subr.mxu0 0.0
  %2734 = vmatpush1.msra.mxu0 %v66
  %2735 = vmatprep.subr.mxu0 0.0
  %2736 = vmatpush1.msra.mxu0 %v67
  %2737 = vmatprep.subr.mxu0 0.0
  %2738 = vmatpush1.msra.mxu0 %v68
  %2739 = vmatprep.subr.mxu0 0.0
  %2740 = vmatpush1.msra.mxu0 %v69
  %2741 = vmatprep.subr.mxu0 0.0
  %2742 = vmatpush1.msra.mxu0 %v70
  %2743 = vmatprep.subr.mxu0 0.0
  %2744 = vmatpush1.msra.mxu0 %v71
  %2745 = vmatprep.subr.mxu0 0.0
  %2746 = vmatpush1.msra.mxu0 %v72
  %2747 = vmatprep.subr.mxu0 0.0
  %2748 = vmatpush1.msra.mxu0 %v73
  %2749 = vmatprep.subr.mxu0 0.0
  %2750 = vmatpush1.msra.mxu0 %v74
  %2751 = vmatprep.subr.mxu0 0.0
  %2752 = vmatpush1.msra.mxu0 %v75
  %2753 = vmatprep.subr.mxu0 0.0
  %2754 = vmatpush1.msra.mxu0 %v76
  %2755 = vmatprep.subr.mxu0 0.0
  %2756 = vmatpush1.msra.mxu0 %v77
  %2757 = vmatprep.subr.mxu0 0.0
  %2758 = vmatpush1.msra.mxu0 %v78
  %2759 = vmatprep.subr.mxu0 0.0
  %2760 = vmatpush1.msra.mxu0 %v79
  %2761 = vmatprep.subr.mxu0 0.0
  %2762 = vmatpush1.msra.mxu0 %v80
  %2763 = vmatprep.subr.mxu0 0.0
  %2764 = vmatpush1.msra.mxu0 0.0
  %2765 = vmatprep.subr.mxu0 0.0
  %2766 = vmatpush1.msra.mxu0 0.0
  %2767 = vmatprep.subr.mxu0 0.0
  %2768 = vmatpush1.msra.mxu0 0.0
  %2769 = vmatprep.subr.mxu0 0.0
  %2770 = vmatpush1.msra.mxu0 0.0
  %2771 = vmatprep.mubr.f32.mxu0 %v2636
  %2772 = vmatmul.mubr.f32.gmra.mrb[0].mxu0 %v2587
  %v2773 = vpop.f32.mrb[0].mxu0
  %v2774 = vadd.f32 0.0, %v2773
  %v2775 = vpop.f32.mrb[0].mxu0
  %2776 = vmatprep.mubr.f32.mxu0 %v2639
  %2777 = vmatmul.mubr.f32.gmra.mrb[0].mxu0 %v2589
  %v2778 = vpop.f32.mrb[0].mxu0
  %v2779 = vadd.f32 0.0, %v2778
  %v2780 = vpop.f32.mrb[0].mxu0
  %2781 = vmatprep.mubr.f32.mxu0 %v2642
  %2782 = vmatmul.mubr.f32.gmra.mrb[0].mxu0 %v2591
  %v2783 = vpop.f32.mrb[0].mxu0
  %v2784 = vadd.f32 0.0, %v2783
  %v2785 = vpop.f32.mrb[0].mxu0
  %2786 = vmatprep.mubr.f32.mxu0 %v2645
  %2787 = vmatmul.mubr.f32.gmra.mrb[0].mxu0 %v2593
  %v2788 = vpop.f32.mrb[0].mxu0
  %v2789 = vadd.f32 0.0, %v2788
  %v2790 = vpop.f32.mrb[0].mxu0
  %2791 = vmatprep.mubr.f32.mxu0 %v2648
  %2792 = vmatmul.mubr.f32.gmra.mrb[0].mxu0 %v2595
  %v2793 = vpop.f32.mrb[0].mxu0
  %v2794 = vadd.f32 0.0, %v2793
  %v2795 = vpop.f32.mrb[0].mxu0
  %2796 = vmatprep.mubr.f32.mxu0 %v2651
  %2797 = vmatmul.mubr.f32.gmra.mrb[0].mxu0 %v2597
  %v2798 = vpop.f32.mrb[0].mxu0
  %v2799 = vadd.f32 0.0, %v2798
  %v2800 = vpop.f32.mrb[0].mxu0
  %2801 = vmatprep.mubr.f32.mxu0 %v2654
  %2802 = vmatmul.mubr.f32.gmra.mrb[0].mxu0 %v2599
  %v2803 = vpop.f32.mrb[0].mxu0
  %v2804 = vadd.f32 0.0, %v2803
  %v2805 = vpop.f32.mrb[0].mxu0
  %2806 = vmatprep.mubr.f32.mxu0 %v2657
  %2807 = vmatmul.mubr.f32.gmra.mrb[0].mxu0 %v2601
  %v2808 = vpop.f32.mrb[0].mxu0
  %v2809 = vadd.f32 0.0, %v2808
  %v2810 = vpop.f32.mrb[0].mxu0
  %2811 = vmatprep.mubr.f32.mxu0 %v2660
  %2812 = vmatmul.mubr.f32.gmra.mrb[0].mxu0 %v2603
  %v2813 = vpop.f32.mrb[0].mxu0
  %v2814 = vadd.f32 0.0, %v2813
  %v2815 = vpop.f32.mrb[0].mxu0
  %2816 = vmatprep.mubr.f32.mxu0 %v2663
  %2817 = vmatmul.mubr.f32.gmra.mrb[0].mxu0 %v2605
  %v2818 = vpop.f32.mrb[0].mxu0
  %v2819 = vadd.f32 0.0, %v2818
  %v2820 = vpop.f32.mrb[0].mxu0
  %2821 = vmatprep.mubr.f32.mxu0 %v2666
  %2822 = vmatmul.mubr.f32.gmra.mrb[0].mxu0 %v2607
  %v2823 = vpop.f32.mrb[0].mxu0
  %v2824 = vadd.f32 0.0, %v2823
  %v2825 = vpop.f32.mrb[0].mxu0
  %2826 = vmatprep.mubr.f32.mxu0 %v2669
  %2827 = vmatmul.mubr.f32.gmra.mrb[0].mxu0 %v2609
  %v2828 = vpop.f32.mrb[0].mxu0
  %v2829 = vadd.f32 0.0, %v2828
  %v2830 = vpop.f32.mrb[0].mxu0
  %2831 = vmatprep.mubr.f32.mxu0 %v2672
  %2832 = vmatmul.mubr.f32.gmra.mrb[0].mxu0 %v2611
  %v2833 = vpop.f32.mrb[0].mxu0
  %v2834 = vadd.f32 0.0, %v2833
  %v2835 = vpop.f32.mrb[0].mxu0
  %2836 = vmatprep.mubr.f32.mxu0 %v2675
  %2837 = vmatmul.mubr.f32.gmra.mrb[0].mxu0 %v2613
  %v2838 = vpop.f32.mrb[0].mxu0
  %v2839 = vadd.f32 0.0, %v2838
  %v2840 = vpop.f32.mrb[0].mxu0
  %2841 = vmatprep.mubr.f32.mxu0 %v2678
  %2842 = vmatmul.mubr.f32.gmra.mrb[0].mxu0 %v2615
  %v2843 = vpop.f32.mrb[0].mxu0
  %v2844 = vadd.f32 0.0, %v2843
  %v2845 = vpop.f32.mrb[0].mxu0
  %2846 = vmatprep.mubr.f32.mxu0 %v2681
  %2847 = vmatmul.mubr.f32.gmra.mrb[0].mxu0 %v2617
  %v2848 = vpop.f32.mrb[0].mxu0
  %v2849 = vadd.f32 0.0, %v2848
  %v2850 = vpop.f32.mrb[0].mxu0
  %2851 = vmatprep.mubr.f32.mxu0 %v2684
  %2852 = vmatmul.mubr.f32.gmra.mrb[0].mxu0 %v2619
  %v2853 = vpop.f32.mrb[0].mxu0
  %v2854 = vadd.f32 0.0, %v2853
  %v2855 = vpop.f32.mrb[0].mxu0
  %2856 = vmatprep.mubr.f32.mxu0 %v2687
  %2857 = vmatmul.mubr.f32.gmra.mrb[0].mxu0 %v2621
  %v2858 = vpop.f32.mrb[0].mxu0
  %v2859 = vadd.f32 0.0, %v2858
  %v2860 = vpop.f32.mrb[0].mxu0
  %2861 = vmatprep.mubr.f32.mxu0 %v2690
  %2862 = vmatmul.mubr.f32.gmra.mrb[0].mxu0 %v2623
  %v2863 = vpop.f32.mrb[0].mxu0
  %v2864 = vadd.f32 0.0, %v2863
  %v2865 = vpop.f32.mrb[0].mxu0
  %2866 = vmatprep.mubr.f32.mxu0 %v2693
  %2867 = vmatmul.mubr.f32.gmra.mrb[0].mxu0 %v2625
  %v2868 = vpop.f32.mrb[0].mxu0
  %v2869 = vadd.f32 0.0, %v2868
  %v2870 = vpop.f32.mrb[0].mxu0
  %2871 = vmatprep.mubr.f32.mxu0 %v2696
  %2872 = vmatmul.mubr.f32.gmra.mrb[0].mxu0 %v2627
  %v2873 = vpop.f32.mrb[0].mxu0
  %v2874 = vadd.f32 0.0, %v2873
  %v2875 = vpop.f32.mrb[0].mxu0
  %2876 = vmatprep.mubr.f32.mxu0 %v2699
  %2877 = vmatmul.mubr.f32.gmra.mrb[0].mxu0 %v2629
  %v2878 = vpop.f32.mrb[0].mxu0
  %v2879 = vadd.f32 0.0, %v2878
  %v2880 = vpop.f32.mrb[0].mxu0
  %2881 = vmatprep.mubr.f32.mxu0 %v2702
  %2882 = vmatmul.mubr.f32.gmra.mrb[0].mxu0 %v2631
  %v2883 = vpop.f32.mrb[0].mxu0
  %v2884 = vadd.f32 0.0, %v2883
  %v2885 = vpop.f32.mrb[0].mxu0
  %2886 = vmatprep.mubr.f32.mxu0 %v2705
  %2887 = vmatmul.mubr.f32.gmra.mrb[0].mxu0 %v2633
  %v2888 = vpop.f32.mrb[0].mxu0
  %v2889 = vadd.f32 0.0, %v2888
  %v2890 = vpop.f32.mrb[0].mxu0
  %2891 = vdwg.mxu0
  %s2892 = scalar_lea.vmem %s2, 256
  %v2893 = vld [vmem:[%s2892] sm:$0xff]
  %v2894 = vld [vmem:[%s2892 + $0x8] sm:$0xff]
  %v2895 = vld [vmem:[%s2892 + $0x10] sm:$0xff]
  %v2896 = vld [vmem:[%s2892 + $0x18] sm:$0xff]
  %v2897 = vld [vmem:[%s2892 + $0x20] sm:$0xff]
  %v2898 = vld [vmem:[%s2892 + $0x28] sm:$0xff]
  %v2899 = vld [vmem:[%s2892 + $0x30] sm:$0xf]
  %v2900 = vld [vmem:[%s2892 + $0x38] sm:$0xf]
  %v2902 = vsel %vm710, %v2774, 0
  %v2905 = vsel %vm710, %v2779, 0
  %v2908 = vsel %vm710, %v2784, 0
  %v2911 = vsel %vm710, %v2789, 0
  %v2914 = vsel %vm710, %v2794, 0
  %v2917 = vsel %vm710, %v2799, 0
  %v2920 = vsel %vm710, %v2804, 0
  %v2923 = vsel %vm710, %v2809, 0
  %v2926 = vsel %vm710, %v2814, 0
  %v2929 = vsel %vm710, %v2819, 0
  %v2932 = vsel %vm710, %v2824, 0
  %v2935 = vsel %vm710, %v2829, 0
  %v2938 = vsel %vm710, %v2834, 0
  %v2941 = vsel %vm710, %v2839, 0
  %v2944 = vsel %vm710, %v2844, 0
  %v2947 = vsel %vm710, %v2849, 0
  %v2950 = vsel %vm710, %v2854, 0
  %v2953 = vsel %vm710, %v2859, 0
  %v2956 = vsel %vm710, %v2864, 0
  %v2959 = vsel %vm710, %v2869, 0
  %v2962 = vsel %vm710, %v2874, 0
  %v2965 = vsel %vm710, %v2879, 0
  %v2968 = vsel %vm710, %v2884, 0
  %v2971 = vsel %vm710, %v2889, 0
  %v2974 = vsel %vm783, %v2899, 0
  %v2977 = vsel %vm783, %v2900, 0
  %2979 = vmatprep.subr.mxu0 %v2894
  %2980 = vmatpush1.msra.mxu0 %v2893
  %2981 = vmatprep.subr.mxu0 %v2896
  %2982 = vmatpush1.msra.mxu0 %v2895
  %2983 = vmatprep.subr.mxu0 %v2898
  %2984 = vmatpush1.msra.mxu0 %v2897
  %2985 = vmatprep.subr.mxu0 %v2977
  %2986 = vmatpush1.msra.mxu0 %v2974
  %2987 = vmatprep.subr.mxu0 0.0
  %2988 = vmatpush1.msra.mxu0 0.0
  %2989 = vmatprep.subr.mxu0 0.0
  %2990 = vmatpush1.msra.mxu0 0.0
  %2991 = vmatprep.subr.mxu0 0.0
  %2992 = vmatpush1.msra.mxu0 0.0
  %2993 = vmatprep.subr.mxu0 0.0
  %2994 = vmatpush1.msra.mxu0 0.0
  %2995 = vmatprep.subr.mxu0 0.0
  %2996 = vmatpush1.msra.mxu0 0.0
  %2997 = vmatprep.subr.mxu0 0.0
  %2998 = vmatpush1.msra.mxu0 0.0
  %2999 = vmatprep.subr.mxu0 0.0
  %3000 = vmatpush1.msra.mxu0 0.0
  %3001 = vmatprep.subr.mxu0 0.0
  %3002 = vmatpush1.msra.mxu0 0.0
  %3003 = vmatprep.subr.mxu0 0.0
  %3004 = vmatpush1.msra.mxu0 0.0
  %3005 = vmatprep.subr.mxu0 0.0
  %3006 = vmatpush1.msra.mxu0 0.0
  %3007 = vmatprep.subr.mxu0 0.0
  %3008 = vmatpush1.msra.mxu0 0.0
  %3009 = vmatprep.subr.mxu0 0.0
  %3010 = vmatpush1.msra.mxu0 0.0
  %3011 = vmatprep.subr.mxu0 0.0
  %3012 = vmatpush1.msra.mxu0 0.0
  %3013 = vmatprep.subr.mxu0 0.0
  %3014 = vmatpush1.msra.mxu0 0.0
  %3015 = vmatprep.subr.mxu0 0.0
  %3016 = vmatpush1.msra.mxu0 0.0
  %3017 = vmatprep.subr.mxu0 0.0
  %3018 = vmatpush1.msra.mxu0 0.0
  %3019 = vmatprep.subr.mxu0 0.0
  %3020 = vmatpush1.msra.mxu0 0.0
  %3021 = vmatprep.subr.mxu0 0.0
  %3022 = vmatpush1.msra.mxu0 0.0
  %3023 = vmatprep.subr.mxu0 0.0
  %3024 = vmatpush1.msra.mxu0 0.0
  %3025 = vmatprep.subr.mxu0 0.0
  %3026 = vmatpush1.msra.mxu0 0.0
  %3027 = vmatprep.subr.mxu0 0.0
  %3028 = vmatpush1.msra.mxu0 0.0
  %3029 = vmatprep.subr.mxu0 0.0
  %3030 = vmatpush1.msra.mxu0 0.0
  %3031 = vmatprep.subr.mxu0 0.0
  %3032 = vmatpush1.msra.mxu0 0.0
  %3033 = vmatprep.subr.mxu0 0.0
  %3034 = vmatpush1.msra.mxu0 0.0
  %3035 = vmatprep.subr.mxu0 0.0
  %3036 = vmatpush1.msra.mxu0 0.0
  %3037 = vmatprep.subr.mxu0 0.0
  %3038 = vmatpush1.msra.mxu0 0.0
  %3039 = vmatprep.subr.mxu0 0.0
  %3040 = vmatpush1.msra.mxu0 0.0
  %3041 = vmatprep.subr.mxu0 0.0
  %3042 = vmatpush1.msra.mxu0 0.0
  %3043 = vmatprep.mubr.f32.mxu0 0.0
  %3044 = vmatmul.mubr.f32.gmra.mrb[0].mxu0 %v2902
  %v3045 = vpop.f32.mrb[0].mxu0
  %v3046 = vadd.f32 0.0, %v3045
  %v3047 = vpop.f32.mrb[0].mxu0
  %v3048 = vadd.f32 0.0, %v3047
  %3049 = vmatprep.mubr.f32.mxu0 0.0
  %3050 = vmatmul.mubr.f32.gmra.mrb[0].mxu0 %v2905
  %v3051 = vpop.f32.mrb[0].mxu0
  %v3052 = vadd.f32 0.0, %v3051
  %v3053 = vpop.f32.mrb[0].mxu0
  %v3054 = vadd.f32 0.0, %v3053
  %3055 = vmatprep.mubr.f32.mxu0 0.0
  %3056 = vmatmul.mubr.f32.gmra.mrb[0].mxu0 %v2908
  %v3057 = vpop.f32.mrb[0].mxu0
  %v3058 = vadd.f32 0.0, %v3057
  %v3059 = vpop.f32.mrb[0].mxu0
  %v3060 = vadd.f32 0.0, %v3059
  %3061 = vmatprep.mubr.f32.mxu0 0.0
  %3062 = vmatmul.mubr.f32.gmra.mrb[0].mxu0 %v2911
  %v3063 = vpop.f32.mrb[0].mxu0
  %v3064 = vadd.f32 0.0, %v3063
  %v3065 = vpop.f32.mrb[0].mxu0
  %v3066 = vadd.f32 0.0, %v3065
  %3067 = vmatprep.mubr.f32.mxu0 0.0
  %3068 = vmatmul.mubr.f32.gmra.mrb[0].mxu0 %v2914
  %v3069 = vpop.f32.mrb[0].mxu0
  %v3070 = vadd.f32 0.0, %v3069
  %v3071 = vpop.f32.mrb[0].mxu0
  %v3072 = vadd.f32 0.0, %v3071
  %3073 = vmatprep.mubr.f32.mxu0 0.0
  %3074 = vmatmul.mubr.f32.gmra.mrb[0].mxu0 %v2917
  %v3075 = vpop.f32.mrb[0].mxu0
  %v3076 = vadd.f32 0.0, %v3075
  %v3077 = vpop.f32.mrb[0].mxu0
  %v3078 = vadd.f32 0.0, %v3077
  %3079 = vmatprep.mubr.f32.mxu0 0.0
  %3080 = vmatmul.mubr.f32.gmra.mrb[0].mxu0 %v2920
  %v3081 = vpop.f32.mrb[0].mxu0
  %v3082 = vadd.f32 0.0, %v3081
  %v3083 = vpop.f32.mrb[0].mxu0
  %v3084 = vadd.f32 0.0, %v3083
  %3085 = vmatprep.mubr.f32.mxu0 0.0
  %3086 = vmatmul.mubr.f32.gmra.mrb[0].mxu0 %v2923
  %v3087 = vpop.f32.mrb[0].mxu0
  %v3088 = vadd.f32 0.0, %v3087
  %v3089 = vpop.f32.mrb[0].mxu0
  %v3090 = vadd.f32 0.0, %v3089
  %3091 = vmatprep.mubr.f32.mxu0 0.0
  %3092 = vmatmul.mubr.f32.gmra.mrb[0].mxu0 %v2926
  %v3093 = vpop.f32.mrb[0].mxu0
  %v3094 = vadd.f32 0.0, %v3093
  %v3095 = vpop.f32.mrb[0].mxu0
  %v3096 = vadd.f32 0.0, %v3095
  %3097 = vmatprep.mubr.f32.mxu0 0.0
  %3098 = vmatmul.mubr.f32.gmra.mrb[0].mxu0 %v2929
  %v3099 = vpop.f32.mrb[0].mxu0
  %v3100 = vadd.f32 0.0, %v3099
  %v3101 = vpop.f32.mrb[0].mxu0
  %v3102 = vadd.f32 0.0, %v3101
  %3103 = vmatprep.mubr.f32.mxu0 0.0
  %3104 = vmatmul.mubr.f32.gmra.mrb[0].mxu0 %v2932
  %v3105 = vpop.f32.mrb[0].mxu0
  %v3106 = vadd.f32 0.0, %v3105
  %v3107 = vpop.f32.mrb[0].mxu0
  %v3108 = vadd.f32 0.0, %v3107
  %3109 = vmatprep.mubr.f32.mxu0 0.0
  %3110 = vmatmul.mubr.f32.gmra.mrb[0].mxu0 %v2935
  %v3111 = vpop.f32.mrb[0].mxu0
  %v3112 = vadd.f32 0.0, %v3111
  %v3113 = vpop.f32.mrb[0].mxu0
  %v3114 = vadd.f32 0.0, %v3113
  %3115 = vmatprep.mubr.f32.mxu0 0.0
  %3116 = vmatmul.mubr.f32.gmra.mrb[0].mxu0 %v2938
  %v3117 = vpop.f32.mrb[0].mxu0
  %v3118 = vadd.f32 0.0, %v3117
  %v3119 = vpop.f32.mrb[0].mxu0
  %v3120 = vadd.f32 0.0, %v3119
  %3121 = vmatprep.mubr.f32.mxu0 0.0
  %3122 = vmatmul.mubr.f32.gmra.mrb[0].mxu0 %v2941
  %v3123 = vpop.f32.mrb[0].mxu0
  %v3124 = vadd.f32 0.0, %v3123
  %v3125 = vpop.f32.mrb[0].mxu0
  %v3126 = vadd.f32 0.0, %v3125
  %3127 = vmatprep.mubr.f32.mxu0 0.0
  %3128 = vmatmul.mubr.f32.gmra.mrb[0].mxu0 %v2944
  %v3129 = vpop.f32.mrb[0].mxu0
  %v3130 = vadd.f32 0.0, %v3129
  %v3131 = vpop.f32.mrb[0].mxu0
  %v3132 = vadd.f32 0.0, %v3131
  %3133 = vmatprep.mubr.f32.mxu0 0.0
  %3134 = vmatmul.mubr.f32.gmra.mrb[0].mxu0 %v2947
  %v3135 = vpop.f32.mrb[0].mxu0
  %v3136 = vadd.f32 0.0, %v3135
  %v3137 = vpop.f32.mrb[0].mxu0
  %v3138 = vadd.f32 0.0, %v3137
  %3139 = vmatprep.mubr.f32.mxu0 0.0
  %3140 = vmatmul.mubr.f32.gmra.mrb[0].mxu0 %v2950
  %v3141 = vpop.f32.mrb[0].mxu0
  %v3142 = vadd.f32 0.0, %v3141
  %v3143 = vpop.f32.mrb[0].mxu0
  %v3144 = vadd.f32 0.0, %v3143
  %3145 = vmatprep.mubr.f32.mxu0 0.0
  %3146 = vmatmul.mubr.f32.gmra.mrb[0].mxu0 %v2953
  %v3147 = vpop.f32.mrb[0].mxu0
  %v3148 = vadd.f32 0.0, %v3147
  %v3149 = vpop.f32.mrb[0].mxu0
  %v3150 = vadd.f32 0.0, %v3149
  %3151 = vmatprep.mubr.f32.mxu0 0.0
  %3152 = vmatmul.mubr.f32.gmra.mrb[0].mxu0 %v2956
  %v3153 = vpop.f32.mrb[0].mxu0
  %v3154 = vadd.f32 0.0, %v3153
  %v3155 = vpop.f32.mrb[0].mxu0
  %v3156 = vadd.f32 0.0, %v3155
  %3157 = vmatprep.mubr.f32.mxu0 0.0
  %3158 = vmatmul.mubr.f32.gmra.mrb[0].mxu0 %v2959
  %v3159 = vpop.f32.mrb[0].mxu0
  %v3160 = vadd.f32 0.0, %v3159
  %v3161 = vpop.f32.mrb[0].mxu0
  %v3162 = vadd.f32 0.0, %v3161
  %3163 = vmatprep.mubr.f32.mxu0 0.0
  %3164 = vmatmul.mubr.f32.gmra.mrb[0].mxu0 %v2962
  %v3165 = vpop.f32.mrb[0].mxu0
  %v3166 = vadd.f32 0.0, %v3165
  %v3167 = vpop.f32.mrb[0].mxu0
  %v3168 = vadd.f32 0.0, %v3167
  %3169 = vmatprep.mubr.f32.mxu0 0.0
  %3170 = vmatmul.mubr.f32.gmra.mrb[0].mxu0 %v2965
  %v3171 = vpop.f32.mrb[0].mxu0
  %v3172 = vadd.f32 0.0, %v3171
  %v3173 = vpop.f32.mrb[0].mxu0
  %v3174 = vadd.f32 0.0, %v3173
  %3175 = vmatprep.mubr.f32.mxu0 0.0
  %3176 = vmatmul.mubr.f32.gmra.mrb[0].mxu0 %v2968
  %v3177 = vpop.f32.mrb[0].mxu0
  %v3178 = vadd.f32 0.0, %v3177
  %v3179 = vpop.f32.mrb[0].mxu0
  %v3180 = vadd.f32 0.0, %v3179
  %3181 = vmatprep.mubr.f32.mxu0 0.0
  %3182 = vmatmul.mubr.f32.gmra.mrb[0].mxu0 %v2971
  %v3183 = vpop.f32.mrb[0].mxu0
  %v3184 = vadd.f32 0.0, %v3183
  %v3185 = vpop.f32.mrb[0].mxu0
  %v3186 = vadd.f32 0.0, %v3185
  %3187 = vdwg.mxu0
  %v3188 = vadd.f32 %v2538, %v3046
  %v3189 = vadd.f32 %v2539, %v3048
  %v3190 = vadd.f32 %v2540, %v3052
  %v3191 = vadd.f32 %v2541, %v3054
  %v3192 = vadd.f32 %v2542, %v3058
  %v3193 = vadd.f32 %v2543, %v3060
  %v3194 = vadd.f32 %v2544, %v3064
  %v3195 = vadd.f32 %v2545, %v3066
  %v3196 = vadd.f32 %v2546, %v3070
  %v3197 = vadd.f32 %v2547, %v3072
  %v3198 = vadd.f32 %v2548, %v3076
  %v3199 = vadd.f32 %v2549, %v3078
  %v3200 = vadd.f32 %v2550, %v3082
  %v3201 = vadd.f32 %v2551, %v3084
  %v3202 = vadd.f32 %v2552, %v3088
  %v3203 = vadd.f32 %v2553, %v3090
  %v3204 = vadd.f32 %v2554, %v3094
  %v3205 = vadd.f32 %v2555, %v3096
  %v3206 = vadd.f32 %v2556, %v3100
  %v3207 = vadd.f32 %v2557, %v3102
  %v3208 = vadd.f32 %v2558, %v3106
  %v3209 = vadd.f32 %v2559, %v3108
  %v3210 = vadd.f32 %v2560, %v3112
  %v3211 = vadd.f32 %v2561, %v3114
  %v3212 = vadd.f32 %v2562, %v3118
  %v3213 = vadd.f32 %v2563, %v3120
  %v3214 = vadd.f32 %v2564, %v3124
  %v3215 = vadd.f32 %v2565, %v3126
  %v3216 = vadd.f32 %v2566, %v3130
  %v3217 = vadd.f32 %v2567, %v3132
  %v3218 = vadd.f32 %v2568, %v3136
  %v3219 = vadd.f32 %v2569, %v3138
  %v3220 = vadd.f32 %v2570, %v3142
  %v3221 = vadd.f32 %v2571, %v3144
  %v3222 = vadd.f32 %v2572, %v3148
  %v3223 = vadd.f32 %v2573, %v3150
  %v3224 = vadd.f32 %v2574, %v3154
  %v3225 = vadd.f32 %v2575, %v3156
  %v3226 = vadd.f32 %v2576, %v3160
  %v3227 = vadd.f32 %v2577, %v3162
  %v3228 = vadd.f32 %v2578, %v3166
  %v3229 = vadd.f32 %v2579, %v3168
  %v3230 = vadd.f32 %v2580, %v3172
  %v3231 = vadd.f32 %v2581, %v3174
  %v3232 = vadd.f32 %v2582, %v3178
  %v3233 = vadd.f32 %v2583, %v3180
  %v3234 = vadd.f32 %v2584, %v3184
  %v3235 = vadd.f32 %v2585, %v3186
  %v3236 = vld [vmem:[%s3] sm:$0x3]
  %v3238 = vlaneseq
  %v3239 = vshrl.u32 %v3238, 7
  %v3240 = vsub.s32 0, %v3239
  %v3241 = vrot.slane %v3236, %v3240
  %v3242 = vlaneseq
  %v3243 = vshrl.u32 %v3242, 7
  %v3244 = vsub.s32 1, %v3243
  %v3245 = vrot.slane %v3236, %v3244
  %v3248 = vadd.f32 %v3188, %v3241
  %v3249 = vadd.f32 %v3189, %v3245
  %v3250 = vadd.f32 %v3190, %v3241
  %v3251 = vadd.f32 %v3191, %v3245
  %v3252 = vadd.f32 %v3192, %v3241
  %v3253 = vadd.f32 %v3193, %v3245
  %v3254 = vadd.f32 %v3194, %v3241
  %v3255 = vadd.f32 %v3195, %v3245
  %v3256 = vadd.f32 %v3196, %v3241
  %v3257 = vadd.f32 %v3197, %v3245
  %v3258 = vadd.f32 %v3198, %v3241
  %v3259 = vadd.f32 %v3199, %v3245
  %v3260 = vadd.f32 %v3200, %v3241
  %v3261 = vadd.f32 %v3201, %v3245
  %v3262 = vadd.f32 %v3202, %v3241
  %v3263 = vadd.f32 %v3203, %v3245
  %v3264 = vadd.f32 %v3204, %v3241
  %v3265 = vadd.f32 %v3205, %v3245
  %v3266 = vadd.f32 %v3206, %v3241
  %v3267 = vadd.f32 %v3207, %v3245
  %v3268 = vadd.f32 %v3208, %v3241
  %v3269 = vadd.f32 %v3209, %v3245
  %v3270 = vadd.f32 %v3210, %v3241
  %v3271 = vadd.f32 %v3211, %v3245
  %v3272 = vadd.f32 %v3212, %v3241
  %v3273 = vadd.f32 %v3213, %v3245
  %v3274 = vadd.f32 %v3214, %v3241
  %v3275 = vadd.f32 %v3215, %v3245
  %v3276 = vadd.f32 %v3216, %v3241
  %v3277 = vadd.f32 %v3217, %v3245
  %v3278 = vadd.f32 %v3218, %v3241
  %v3279 = vadd.f32 %v3219, %v3245
  %v3280 = vadd.f32 %v3220, %v3241
  %v3281 = vadd.f32 %v3221, %v3245
  %v3282 = vadd.f32 %v3222, %v3241
  %v3283 = vadd.f32 %v3223, %v3245
  %v3284 = vadd.f32 %v3224, %v3241
  %v3285 = vadd.f32 %v3225, %v3245
  %v3286 = vadd.f32 %v3226, %v3241
  %v3287 = vadd.f32 %v3227, %v3245
  %v3288 = vadd.f32 %v3228, %v3241
  %v3289 = vadd.f32 %v3229, %v3245
  %v3290 = vadd.f32 %v3230, %v3241
  %v3291 = vadd.f32 %v3231, %v3245
  %v3292 = vadd.f32 %v3232, %v3241
  %v3293 = vadd.f32 %v3233, %v3245
  %v3294 = vadd.f32 %v3234, %v3241
  %v3295 = vadd.f32 %v3235, %v3245
  %v3296 = vmax.f32 %v3248, 0.0
  %v3297 = vmax.f32 %v3249, 0.0
  %v3298 = vmax.f32 %v3250, 0.0
  %v3299 = vmax.f32 %v3251, 0.0
  %v3300 = vmax.f32 %v3252, 0.0
  %v3301 = vmax.f32 %v3253, 0.0
  %v3302 = vmax.f32 %v3254, 0.0
  %v3303 = vmax.f32 %v3255, 0.0
  %v3304 = vmax.f32 %v3256, 0.0
  %v3305 = vmax.f32 %v3257, 0.0
  %v3306 = vmax.f32 %v3258, 0.0
  %v3307 = vmax.f32 %v3259, 0.0
  %v3308 = vmax.f32 %v3260, 0.0
  %v3309 = vmax.f32 %v3261, 0.0
  %v3310 = vmax.f32 %v3262, 0.0
  %v3311 = vmax.f32 %v3263, 0.0
  %v3312 = vmax.f32 %v3264, 0.0
  %v3313 = vmax.f32 %v3265, 0.0
  %v3314 = vmax.f32 %v3266, 0.0
  %v3315 = vmax.f32 %v3267, 0.0
  %v3316 = vmax.f32 %v3268, 0.0
  %v3317 = vmax.f32 %v3269, 0.0
  %v3318 = vmax.f32 %v3270, 0.0
  %v3319 = vmax.f32 %v3271, 0.0
  %v3320 = vmax.f32 %v3272, 0.0
  %v3321 = vmax.f32 %v3273, 0.0
  %v3322 = vmax.f32 %v3274, 0.0
  %v3323 = vmax.f32 %v3275, 0.0
  %v3324 = vmax.f32 %v3276, 0.0
  %v3325 = vmax.f32 %v3277, 0.0
  %v3326 = vmax.f32 %v3278, 0.0
  %v3327 = vmax.f32 %v3279, 0.0
  %v3328 = vmax.f32 %v3280, 0.0
  %v3329 = vmax.f32 %v3281, 0.0
  %v3330 = vmax.f32 %v3282, 0.0
  %v3331 = vmax.f32 %v3283, 0.0
  %v3332 = vmax.f32 %v3284, 0.0
  %v3333 = vmax.f32 %v3285, 0.0
  %v3334 = vmax.f32 %v3286, 0.0
  %v3335 = vmax.f32 %v3287, 0.0
  %v3336 = vmax.f32 %v3288, 0.0
  %v3337 = vmax.f32 %v3289, 0.0
  %v3338 = vmax.f32 %v3290, 0.0
  %v3339 = vmax.f32 %v3291, 0.0
  %v3340 = vmax.f32 %v3292, 0.0
  %v3341 = vmax.f32 %v3293, 0.0
  %v3342 = vmax.f32 %v3294, 0.0
  %v3343 = vmax.f32 %v3295, 0.0
  %v3344 = vld [vmem:[%s4] sm:$0xff]
  %v3345 = vld [vmem:[%s4 + $0x8] sm:$0xff]
  %v3346 = vld [vmem:[%s4 + $0x10] sm:$0xff]
  %v3347 = vld [vmem:[%s4 + $0x18] sm:$0xff]
  %v3348 = vld [vmem:[%s4 + $0x20] sm:$0xff]
  %v3349 = vld [vmem:[%s4 + $0x28] sm:$0xff]
  %v3350 = vld [vmem:[%s4 + $0x30] sm:$0xff]
  %v3351 = vld [vmem:[%s4 + $0x38] sm:$0xff]
  %v3352 = vld [vmem:[%s4 + $0x40] sm:$0xff]
  %v3353 = vld [vmem:[%s4 + $0x48] sm:$0xff]
  %v3354 = vld [vmem:[%s4 + $0x50] sm:$0xff]
  %v3355 = vld [vmem:[%s4 + $0x58] sm:$0xff]
  %v3356 = vld [vmem:[%s4 + $0x60] sm:$0xff]
  %v3357 = vld [vmem:[%s4 + $0x68] sm:$0xff]
  %v3358 = vld [vmem:[%s4 + $0x70] sm:$0xff]
  %v3359 = vld [vmem:[%s4 + $0x78] sm:$0xff]
  %v3360 = vld [vmem:[%s4 + $0x80] sm:$0xff]
  %v3361 = vld [vmem:[%s4 + $0x88] sm:$0xff]
  %v3362 = vld [vmem:[%s4 + $0x90] sm:$0xff]
  %v3363 = vld [vmem:[%s4 + $0x98] sm:$0xff]
  %v3364 = vld [vmem:[%s4 + $0xa0] sm:$0xff]
  %v3365 = vld [vmem:[%s4 + $0xa8] sm:$0xff]
  %v3366 = vld [vmem:[%s4 + $0xb0] sm:$0xff]
  %v3367 = vld [vmem:[%s4 + $0xb8] sm:$0xff]
  %vm3368 = vcmask 523264
  %v3370 = vsel %vm3368, %v3345, 0
  %v3373 = vsel %vm3368, %v3347, 0
  %v3376 = vsel %vm3368, %v3349, 0
  %v3379 = vsel %vm3368, %v3351, 0
  %v3382 = vsel %vm3368, %v3353, 0
  %v3385 = vsel %vm3368, %v3355, 0
  %v3388 = vsel %vm3368, %v3357, 0
  %v3391 = vsel %vm3368, %v3359, 0
  %v3394 = vsel %vm3368, %v3361, 0
  %v3397 = vsel %vm3368, %v3363, 0
  %v3400 = vsel %vm3368, %v3365, 0
  %v3403 = vsel %vm3368, %v3367, 0
  %3405 = vmatprep.subr.mxu0 %v3297
  %3406 = vmatpush1.msra.mxu0 %v3296
  %3407 = vmatprep.subr.mxu0 %v3299
  %3408 = vmatpush1.msra.mxu0 %v3298
  %3409 = vmatprep.subr.mxu0 %v3301
  %3410 = vmatpush1.msra.mxu0 %v3300
  %3411 = vmatprep.subr.mxu0 %v3303
  %3412 = vmatpush1.msra.mxu0 %v3302
  %3413 = vmatprep.subr.mxu0 %v3305
  %3414 = vmatpush1.msra.mxu0 %v3304
  %3415 = vmatprep.subr.mxu0 %v3307
  %3416 = vmatpush1.msra.mxu0 %v3306
  %3417 = vmatprep.subr.mxu0 %v3309
  %3418 = vmatpush1.msra.mxu0 %v3308
  %3419 = vmatprep.subr.mxu0 %v3311
  %3420 = vmatpush1.msra.mxu0 %v3310
  %3421 = vmatprep.subr.mxu0 %v3313
  %3422 = vmatpush1.msra.mxu0 %v3312
  %3423 = vmatprep.subr.mxu0 %v3315
  %3424 = vmatpush1.msra.mxu0 %v3314
  %3425 = vmatprep.subr.mxu0 %v3317
  %3426 = vmatpush1.msra.mxu0 %v3316
  %3427 = vmatprep.subr.mxu0 %v3319
  %3428 = vmatpush1.msra.mxu0 %v3318
  %3429 = vmatprep.subr.mxu0 %v3321
  %3430 = vmatpush1.msra.mxu0 %v3320
  %3431 = vmatprep.subr.mxu0 %v3323
  %3432 = vmatpush1.msra.mxu0 %v3322
  %3433 = vmatprep.subr.mxu0 %v3325
  %3434 = vmatpush1.msra.mxu0 %v3324
  %3435 = vmatprep.subr.mxu0 %v3327
  %3436 = vmatpush1.msra.mxu0 %v3326
  %3437 = vmatprep.subr.mxu0 %v3329
  %3438 = vmatpush1.msra.mxu0 %v3328
  %3439 = vmatprep.subr.mxu0 %v3331
  %3440 = vmatpush1.msra.mxu0 %v3330
  %3441 = vmatprep.subr.mxu0 %v3333
  %3442 = vmatpush1.msra.mxu0 %v3332
  %3443 = vmatprep.subr.mxu0 %v3335
  %3444 = vmatpush1.msra.mxu0 %v3334
  %3445 = vmatprep.subr.mxu0 %v3337
  %3446 = vmatpush1.msra.mxu0 %v3336
  %3447 = vmatprep.subr.mxu0 %v3339
  %3448 = vmatpush1.msra.mxu0 %v3338
  %3449 = vmatprep.subr.mxu0 %v3341
  %3450 = vmatpush1.msra.mxu0 %v3340
  %3451 = vmatprep.subr.mxu0 %v3343
  %3452 = vmatpush1.msra.mxu0 %v3342
  %3453 = vmatprep.subr.mxu0 0.0
  %3454 = vmatpush1.msra.mxu0 0.0
  %3455 = vmatprep.subr.mxu0 0.0
  %3456 = vmatpush1.msra.mxu0 0.0
  %3457 = vmatprep.subr.mxu0 0.0
  %3458 = vmatpush1.msra.mxu0 0.0
  %3459 = vmatprep.subr.mxu0 0.0
  %3460 = vmatpush1.msra.mxu0 0.0
  %3461 = vmatprep.subr.mxu0 0.0
  %3462 = vmatpush1.msra.mxu0 0.0
  %3463 = vmatprep.subr.mxu0 0.0
  %3464 = vmatpush1.msra.mxu0 0.0
  %3465 = vmatprep.subr.mxu0 0.0
  %3466 = vmatpush1.msra.mxu0 0.0
  %3467 = vmatprep.subr.mxu0 0.0
  %3468 = vmatpush1.msra.mxu0 0.0
  %3469 = vmatprep.mubr.f32.mxu0 %v3370
  %3470 = vmatmul.mubr.f32.gmra.mrb[0].mxu0 %v3344
  %v3471 = vpop.f32.mrb[0].mxu0
  %v3472 = vadd.f32 0.0, %v3471
  %v3473 = vpop.f32.mrb[0].mxu0
  %v3474 = vadd.f32 0.0, %v3473
  %3475 = vmatprep.mubr.f32.mxu0 %v3373
  %3476 = vmatmul.mubr.f32.gmra.mrb[0].mxu0 %v3346
  %v3477 = vpop.f32.mrb[0].mxu0
  %v3478 = vadd.f32 0.0, %v3477
  %v3479 = vpop.f32.mrb[0].mxu0
  %v3480 = vadd.f32 0.0, %v3479
  %3481 = vmatprep.mubr.f32.mxu0 %v3376
  %3482 = vmatmul.mubr.f32.gmra.mrb[0].mxu0 %v3348
  %v3483 = vpop.f32.mrb[0].mxu0
  %v3484 = vadd.f32 0.0, %v3483
  %v3485 = vpop.f32.mrb[0].mxu0
  %v3486 = vadd.f32 0.0, %v3485
  %3487 = vmatprep.mubr.f32.mxu0 %v3379
  %3488 = vmatmul.mubr.f32.gmra.mrb[0].mxu0 %v3350
  %v3489 = vpop.f32.mrb[0].mxu0
  %v3490 = vadd.f32 0.0, %v3489
  %v3491 = vpop.f32.mrb[0].mxu0
  %v3492 = vadd.f32 0.0, %v3491
  %3493 = vmatprep.mubr.f32.mxu0 %v3382
  %3494 = vmatmul.mubr.f32.gmra.mrb[0].mxu0 %v3352
  %v3495 = vpop.f32.mrb[0].mxu0
  %v3496 = vadd.f32 0.0, %v3495
  %v3497 = vpop.f32.mrb[0].mxu0
  %v3498 = vadd.f32 0.0, %v3497
  %3499 = vmatprep.mubr.f32.mxu0 %v3385
  %3500 = vmatmul.mubr.f32.gmra.mrb[0].mxu0 %v3354
  %v3501 = vpop.f32.mrb[0].mxu0
  %v3502 = vadd.f32 0.0, %v3501
  %v3503 = vpop.f32.mrb[0].mxu0
  %v3504 = vadd.f32 0.0, %v3503
  %3505 = vmatprep.mubr.f32.mxu0 %v3388
  %3506 = vmatmul.mubr.f32.gmra.mrb[0].mxu0 %v3356
  %v3507 = vpop.f32.mrb[0].mxu0
  %v3508 = vadd.f32 0.0, %v3507
  %v3509 = vpop.f32.mrb[0].mxu0
  %v3510 = vadd.f32 0.0, %v3509
  %3511 = vmatprep.mubr.f32.mxu0 %v3391
  %3512 = vmatmul.mubr.f32.gmra.mrb[0].mxu0 %v3358
  %v3513 = vpop.f32.mrb[0].mxu0
  %v3514 = vadd.f32 0.0, %v3513
  %v3515 = vpop.f32.mrb[0].mxu0
  %v3516 = vadd.f32 0.0, %v3515
  %3517 = vmatprep.mubr.f32.mxu0 %v3394
  %3518 = vmatmul.mubr.f32.gmra.mrb[0].mxu0 %v3360
  %v3519 = vpop.f32.mrb[0].mxu0
  %v3520 = vadd.f32 0.0, %v3519
  %v3521 = vpop.f32.mrb[0].mxu0
  %v3522 = vadd.f32 0.0, %v3521
  %3523 = vmatprep.mubr.f32.mxu0 %v3397
  %3524 = vmatmul.mubr.f32.gmra.mrb[0].mxu0 %v3362
  %v3525 = vpop.f32.mrb[0].mxu0
  %v3526 = vadd.f32 0.0, %v3525
  %v3527 = vpop.f32.mrb[0].mxu0
  %v3528 = vadd.f32 0.0, %v3527
  %3529 = vmatprep.mubr.f32.mxu0 %v3400
  %3530 = vmatmul.mubr.f32.gmra.mrb[0].mxu0 %v3364
  %v3531 = vpop.f32.mrb[0].mxu0
  %v3532 = vadd.f32 0.0, %v3531
  %v3533 = vpop.f32.mrb[0].mxu0
  %v3534 = vadd.f32 0.0, %v3533
  %3535 = vmatprep.mubr.f32.mxu0 %v3403
  %3536 = vmatmul.mubr.f32.gmra.mrb[0].mxu0 %v3366
  %v3537 = vpop.f32.mrb[0].mxu0
  %v3538 = vadd.f32 0.0, %v3537
  %v3539 = vpop.f32.mrb[0].mxu0
  %v3540 = vadd.f32 0.0, %v3539
  %3541 = vdwg.mxu0
  %s3542 = scalar_lea.vmem %s4, 192
  %v3543 = vld [vmem:[%s3542] sm:$0xff]
  %v3544 = vld [vmem:[%s3542 + $0x8] sm:$0xff]
  %v3545 = vld [vmem:[%s3542 + $0x10] sm:$0xff]
  %v3546 = vld [vmem:[%s3542 + $0x18] sm:$0xff]
  %v3547 = vld [vmem:[%s3542 + $0x20] sm:$0xff]
  %v3548 = vld [vmem:[%s3542 + $0x28] sm:$0xff]
  %v3549 = vld [vmem:[%s3542 + $0x30] sm:$0xff]
  %v3550 = vld [vmem:[%s3542 + $0x38] sm:$0xff]
  %v3551 = vld [vmem:[%s3542 + $0x40] sm:$0xff]
  %v3552 = vld [vmem:[%s3542 + $0x48] sm:$0xff]
  %v3553 = vld [vmem:[%s3542 + $0x50] sm:$0xff]
  %v3554 = vld [vmem:[%s3542 + $0x58] sm:$0xff]
  %v3555 = vld [vmem:[%s3542 + $0x60] sm:$0xff]
  %v3556 = vld [vmem:[%s3542 + $0x68] sm:$0xff]
  %v3557 = vld [vmem:[%s3542 + $0x70] sm:$0xff]
  %v3558 = vld [vmem:[%s3542 + $0x78] sm:$0xff]
  %v3559 = vld [vmem:[%s3542 + $0x80] sm:$0xff]
  %v3560 = vld [vmem:[%s3542 + $0x88] sm:$0xff]
  %v3561 = vld [vmem:[%s3542 + $0x90] sm:$0xff]
  %v3562 = vld [vmem:[%s3542 + $0x98] sm:$0xff]
  %v3563 = vld [vmem:[%s3542 + $0xa0] sm:$0xff]
  %v3564 = vld [vmem:[%s3542 + $0xa8] sm:$0xff]
  %v3565 = vld [vmem:[%s3542 + $0xb0] sm:$0xff]
  %v3566 = vld [vmem:[%s3542 + $0xb8] sm:$0xff]
  %v3568 = vsel %vm3368, %v3544, 0
  %v3571 = vsel %vm3368, %v3546, 0
  %v3574 = vsel %vm3368, %v3548, 0
  %v3577 = vsel %vm3368, %v3550, 0
  %v3580 = vsel %vm3368, %v3552, 0
  %v3583 = vsel %vm3368, %v3554, 0
  %v3586 = vsel %vm3368, %v3556, 0
  %v3589 = vsel %vm3368, %v3558, 0
  %v3592 = vsel %vm3368, %v3560, 0
  %v3595 = vsel %vm3368, %v3562, 0
  %v3598 = vsel %vm3368, %v3564, 0
  %v3601 = vsel %vm3368, %v3566, 0
  %3603 = vmatprep.subr.mxu0 %v3297
  %3604 = vmatpush1.msra.mxu0 %v3296
  %3605 = vmatprep.subr.mxu0 %v3299
  %3606 = vmatpush1.msra.mxu0 %v3298
  %3607 = vmatprep.subr.mxu0 %v3301
  %3608 = vmatpush1.msra.mxu0 %v3300
  %3609 = vmatprep.subr.mxu0 %v3303
  %3610 = vmatpush1.msra.mxu0 %v3302
  %3611 = vmatprep.subr.mxu0 %v3305
  %3612 = vmatpush1.msra.mxu0 %v3304
  %3613 = vmatprep.subr.mxu0 %v3307
  %3614 = vmatpush1.msra.mxu0 %v3306
  %3615 = vmatprep.subr.mxu0 %v3309
  %3616 = vmatpush1.msra.mxu0 %v3308
  %3617 = vmatprep.subr.mxu0 %v3311
  %3618 = vmatpush1.msra.mxu0 %v3310
  %3619 = vmatprep.subr.mxu0 %v3313
  %3620 = vmatpush1.msra.mxu0 %v3312
  %3621 = vmatprep.subr.mxu0 %v3315
  %3622 = vmatpush1.msra.mxu0 %v3314
  %3623 = vmatprep.subr.mxu0 %v3317
  %3624 = vmatpush1.msra.mxu0 %v3316
  %3625 = vmatprep.subr.mxu0 %v3319
  %3626 = vmatpush1.msra.mxu0 %v3318
  %3627 = vmatprep.subr.mxu0 %v3321
  %3628 = vmatpush1.msra.mxu0 %v3320
  %3629 = vmatprep.subr.mxu0 %v3323
  %3630 = vmatpush1.msra.mxu0 %v3322
  %3631 = vmatprep.subr.mxu0 %v3325
  %3632 = vmatpush1.msra.mxu0 %v3324
  %3633 = vmatprep.subr.mxu0 %v3327
  %3634 = vmatpush1.msra.mxu0 %v3326
  %3635 = vmatprep.subr.mxu0 %v3329
  %3636 = vmatpush1.msra.mxu0 %v3328
  %3637 = vmatprep.subr.mxu0 %v3331
  %3638 = vmatpush1.msra.mxu0 %v3330
  %3639 = vmatprep.subr.mxu0 %v3333
  %3640 = vmatpush1.msra.mxu0 %v3332
  %3641 = vmatprep.subr.mxu0 %v3335
  %3642 = vmatpush1.msra.mxu0 %v3334
  %3643 = vmatprep.subr.mxu0 %v3337
  %3644 = vmatpush1.msra.mxu0 %v3336
  %3645 = vmatprep.subr.mxu0 %v3339
  %3646 = vmatpush1.msra.mxu0 %v3338
  %3647 = vmatprep.subr.mxu0 %v3341
  %3648 = vmatpush1.msra.mxu0 %v3340
  %3649 = vmatprep.subr.mxu0 %v3343
  %3650 = vmatpush1.msra.mxu0 %v3342
  %3651 = vmatprep.subr.mxu0 0.0
  %3652 = vmatpush1.msra.mxu0 0.0
  %3653 = vmatprep.subr.mxu0 0.0
  %3654 = vmatpush1.msra.mxu0 0.0
  %3655 = vmatprep.subr.mxu0 0.0
  %3656 = vmatpush1.msra.mxu0 0.0
  %3657 = vmatprep.subr.mxu0 0.0
  %3658 = vmatpush1.msra.mxu0 0.0
  %3659 = vmatprep.subr.mxu0 0.0
  %3660 = vmatpush1.msra.mxu0 0.0
  %3661 = vmatprep.subr.mxu0 0.0
  %3662 = vmatpush1.msra.mxu0 0.0
  %3663 = vmatprep.subr.mxu0 0.0
  %3664 = vmatpush1.msra.mxu0 0.0
  %3665 = vmatprep.subr.mxu0 0.0
  %3666 = vmatpush1.msra.mxu0 0.0
  %3667 = vmatprep.mubr.f32.mxu0 %v3568
  %3668 = vmatmul.mubr.f32.gmra.mrb[0].mxu0 %v3543
  %v3669 = vpop.f32.mrb[0].mxu0
  %v3670 = vadd.f32 0.0, %v3669
  %v3671 = vpop.f32.mrb[0].mxu0
  %v3672 = vadd.f32 0.0, %v3671
  %3673 = vmatprep.mubr.f32.mxu0 %v3571
  %3674 = vmatmul.mubr.f32.gmra.mrb[0].mxu0 %v3545
  %v3675 = vpop.f32.mrb[0].mxu0
  %v3676 = vadd.f32 0.0, %v3675
  %v3677 = vpop.f32.mrb[0].mxu0
  %v3678 = vadd.f32 0.0, %v3677
  %3679 = vmatprep.mubr.f32.mxu0 %v3574
  %3680 = vmatmul.mubr.f32.gmra.mrb[0].mxu0 %v3547
  %v3681 = vpop.f32.mrb[0].mxu0
  %v3682 = vadd.f32 0.0, %v3681
  %v3683 = vpop.f32.mrb[0].mxu0
  %v3684 = vadd.f32 0.0, %v3683
  %3685 = vmatprep.mubr.f32.mxu0 %v3577
  %3686 = vmatmul.mubr.f32.gmra.mrb[0].mxu0 %v3549
  %v3687 = vpop.f32.mrb[0].mxu0
  %v3688 = vadd.f32 0.0, %v3687
  %v3689 = vpop.f32.mrb[0].mxu0
  %v3690 = vadd.f32 0.0, %v3689
  %3691 = vmatprep.mubr.f32.mxu0 %v3580
  %3692 = vmatmul.mubr.f32.gmra.mrb[0].mxu0 %v3551
  %v3693 = vpop.f32.mrb[0].mxu0
  %v3694 = vadd.f32 0.0, %v3693
  %v3695 = vpop.f32.mrb[0].mxu0
  %v3696 = vadd.f32 0.0, %v3695
  %3697 = vmatprep.mubr.f32.mxu0 %v3583
  %3698 = vmatmul.mubr.f32.gmra.mrb[0].mxu0 %v3553
  %v3699 = vpop.f32.mrb[0].mxu0
  %v3700 = vadd.f32 0.0, %v3699
  %v3701 = vpop.f32.mrb[0].mxu0
  %v3702 = vadd.f32 0.0, %v3701
  %3703 = vmatprep.mubr.f32.mxu0 %v3586
  %3704 = vmatmul.mubr.f32.gmra.mrb[0].mxu0 %v3555
  %v3705 = vpop.f32.mrb[0].mxu0
  %v3706 = vadd.f32 0.0, %v3705
  %v3707 = vpop.f32.mrb[0].mxu0
  %v3708 = vadd.f32 0.0, %v3707
  %3709 = vmatprep.mubr.f32.mxu0 %v3589
  %3710 = vmatmul.mubr.f32.gmra.mrb[0].mxu0 %v3557
  %v3711 = vpop.f32.mrb[0].mxu0
  %v3712 = vadd.f32 0.0, %v3711
  %v3713 = vpop.f32.mrb[0].mxu0
  %v3714 = vadd.f32 0.0, %v3713
  %3715 = vmatprep.mubr.f32.mxu0 %v3592
  %3716 = vmatmul.mubr.f32.gmra.mrb[0].mxu0 %v3559
  %v3717 = vpop.f32.mrb[0].mxu0
  %v3718 = vadd.f32 0.0, %v3717
  %v3719 = vpop.f32.mrb[0].mxu0
  %v3720 = vadd.f32 0.0, %v3719
  %3721 = vmatprep.mubr.f32.mxu0 %v3595
  %3722 = vmatmul.mubr.f32.gmra.mrb[0].mxu0 %v3561
  %v3723 = vpop.f32.mrb[0].mxu0
  %v3724 = vadd.f32 0.0, %v3723
  %v3725 = vpop.f32.mrb[0].mxu0
  %v3726 = vadd.f32 0.0, %v3725
  %3727 = vmatprep.mubr.f32.mxu0 %v3598
  %3728 = vmatmul.mubr.f32.gmra.mrb[0].mxu0 %v3563
  %v3729 = vpop.f32.mrb[0].mxu0
  %v3730 = vadd.f32 0.0, %v3729
  %v3731 = vpop.f32.mrb[0].mxu0
  %v3732 = vadd.f32 0.0, %v3731
  %3733 = vmatprep.mubr.f32.mxu0 %v3601
  %3734 = vmatmul.mubr.f32.gmra.mrb[0].mxu0 %v3565
  %v3735 = vpop.f32.mrb[0].mxu0
  %v3736 = vadd.f32 0.0, %v3735
  %v3737 = vpop.f32.mrb[0].mxu0
  %v3738 = vadd.f32 0.0, %v3737
  %3739 = vdwg.mxu0
  %v3740 = vmax.f32 %v3472, %v3670
  %v3741 = vmax.f32 %v3474, %v3672
  %v3742 = vmax.f32 %v3478, %v3676
  %v3743 = vmax.f32 %v3480, %v3678
  %v3744 = vmax.f32 %v3484, %v3682
  %v3745 = vmax.f32 %v3486, %v3684
  %v3746 = vmax.f32 %v3490, %v3688
  %v3747 = vmax.f32 %v3492, %v3690
  %v3748 = vmax.f32 %v3496, %v3694
  %v3749 = vmax.f32 %v3498, %v3696
  %v3750 = vmax.f32 %v3502, %v3700
  %v3751 = vmax.f32 %v3504, %v3702
  %v3752 = vmax.f32 %v3508, %v3706
  %v3753 = vmax.f32 %v3510, %v3708
  %v3754 = vmax.f32 %v3514, %v3712
  %v3755 = vmax.f32 %v3516, %v3714
  %v3756 = vmax.f32 %v3520, %v3718
  %v3757 = vmax.f32 %v3522, %v3720
  %v3758 = vmax.f32 %v3526, %v3724
  %v3759 = vmax.f32 %v3528, %v3726
  %v3760 = vmax.f32 %v3532, %v3730
  %v3761 = vmax.f32 %v3534, %v3732
  %v3762 = vmax.f32 %v3538, %v3736
  %v3763 = vmax.f32 %v3540, %v3738
  %v3764 = vld [vmem:[%s5] sm:$0xff]
  %v3765 = vld [vmem:[%s5 + $0x8] sm:$0xff]
  %v3766 = vld [vmem:[%s5 + $0x10] sm:$0xff]
  %v3767 = vld [vmem:[%s5 + $0x18] sm:$0xff]
  %v3768 = vld [vmem:[%s5 + $0x20] sm:$0xff]
  %v3769 = vld [vmem:[%s5 + $0x28] sm:$0xff]
  %v3770 = vld [vmem:[%s5 + $0x30] sm:$0xff]
  %v3771 = vld [vmem:[%s5 + $0x38] sm:$0xff]
  %v3772 = vld [vmem:[%s5 + $0x40] sm:$0xff]
  %v3773 = vld [vmem:[%s5 + $0x48] sm:$0xff]
  %v3774 = vld [vmem:[%s5 + $0x50] sm:$0xff]
  %v3775 = vld [vmem:[%s5 + $0x58] sm:$0xff]
  %v3776 = vld [vmem:[%s5 + $0x60] sm:$0xff]
  %v3777 = vld [vmem:[%s5 + $0x68] sm:$0xff]
  %v3778 = vld [vmem:[%s5 + $0x70] sm:$0xff]
  %v3779 = vld [vmem:[%s5 + $0x78] sm:$0xff]
  %v3780 = vld [vmem:[%s5 + $0x80] sm:$0xff]
  %v3781 = vld [vmem:[%s5 + $0x88] sm:$0xff]
  %v3782 = vld [vmem:[%s5 + $0x90] sm:$0xff]
  %v3783 = vld [vmem:[%s5 + $0x98] sm:$0xff]
  %v3784 = vld [vmem:[%s5 + $0xa0] sm:$0xff]
  %v3785 = vld [vmem:[%s5 + $0xa8] sm:$0xff]
  %v3786 = vld [vmem:[%s5 + $0xb0] sm:$0xff]
  %v3787 = vld [vmem:[%s5 + $0xb8] sm:$0xff]
  %v3788 = vld [vmem:[%s5 + $0xc0] sm:$0xff]
  %v3789 = vld [vmem:[%s5 + $0xc8] sm:$0xff]
  %v3790 = vld [vmem:[%s5 + $0xd0] sm:$0xff]
  %v3791 = vld [vmem:[%s5 + $0xd8] sm:$0xff]
  %v3792 = vld [vmem:[%s5 + $0xe0] sm:$0xff]
  %v3793 = vld [vmem:[%s5 + $0xe8] sm:$0xff]
  %vm3794 = vcmask 916480
  %v3796 = vsel %vm3794, %v3741, 0
  %v3799 = vsel %vm3794, %v3743, 0
  %v3802 = vsel %vm3794, %v3745, 0
  %v3805 = vsel %vm3794, %v3747, 0
  %v3808 = vsel %vm3794, %v3749, 0
  %v3811 = vsel %vm3794, %v3751, 0
  %v3814 = vsel %vm3794, %v3753, 0
  %v3817 = vsel %vm3794, %v3755, 0
  %v3820 = vsel %vm3794, %v3757, 0
  %v3823 = vsel %vm3794, %v3759, 0
  %v3826 = vsel %vm3794, %v3761, 0
  %v3829 = vsel %vm3794, %v3763, 0
  %3831 = vmatprep.subr.mxu0 0.0
  %3832 = vmatpush1.msra.mxu0 %v3764
  %3833 = vmatprep.subr.mxu0 0.0
  %3834 = vmatpush1.msra.mxu0 %v3765
  %3835 = vmatprep.subr.mxu0 0.0
  %3836 = vmatpush1.msra.mxu0 %v3766
  %3837 = vmatprep.subr.mxu0 0.0
  %3838 = vmatpush1.msra.mxu0 %v3767
  %3839 = vmatprep.subr.mxu0 0.0
  %3840 = vmatpush1.msra.mxu0 %v3768
  %3841 = vmatprep.subr.mxu0 0.0
  %3842 = vmatpush1.msra.mxu0 %v3769
  %3843 = vmatprep.subr.mxu0 0.0
  %3844 = vmatpush1.msra.mxu0 %v3770
  %3845 = vmatprep.subr.mxu0 0.0
  %3846 = vmatpush1.msra.mxu0 %v3771
  %3847 = vmatprep.subr.mxu0 0.0
  %3848 = vmatpush1.msra.mxu0 %v3772
  %3849 = vmatprep.subr.mxu0 0.0
  %3850 = vmatpush1.msra.mxu0 %v3773
  %3851 = vmatprep.subr.mxu0 0.0
  %3852 = vmatpush1.msra.mxu0 %v3774
  %3853 = vmatprep.subr.mxu0 0.0
  %3854 = vmatpush1.msra.mxu0 %v3775
  %3855 = vmatprep.subr.mxu0 0.0
  %3856 = vmatpush1.msra.mxu0 %v3776
  %3857 = vmatprep.subr.mxu0 0.0
  %3858 = vmatpush1.msra.mxu0 %v3777
  %3859 = vmatprep.subr.mxu0 0.0
  %3860 = vmatpush1.msra.mxu0 %v3778
  %3861 = vmatprep.subr.mxu0 0.0
  %3862 = vmatpush1.msra.mxu0 %v3779
  %3863 = vmatprep.subr.mxu0 0.0
  %3864 = vmatpush1.msra.mxu0 %v3780
  %3865 = vmatprep.subr.mxu0 0.0
  %3866 = vmatpush1.msra.mxu0 %v3781
  %3867 = vmatprep.subr.mxu0 0.0
  %3868 = vmatpush1.msra.mxu0 %v3782
  %3869 = vmatprep.subr.mxu0 0.0
  %3870 = vmatpush1.msra.mxu0 %v3783
  %3871 = vmatprep.subr.mxu0 0.0
  %3872 = vmatpush1.msra.mxu0 %v3784
  %3873 = vmatprep.subr.mxu0 0.0
  %3874 = vmatpush1.msra.mxu0 %v3785
  %3875 = vmatprep.subr.mxu0 0.0
  %3876 = vmatpush1.msra.mxu0 %v3786
  %3877 = vmatprep.subr.mxu0 0.0
  %3878 = vmatpush1.msra.mxu0 %v3787
  %3879 = vmatprep.subr.mxu0 0.0
  %3880 = vmatpush1.msra.mxu0 %v3788
  %3881 = vmatprep.subr.mxu0 0.0
  %3882 = vmatpush1.msra.mxu0 %v3789
  %3883 = vmatprep.subr.mxu0 0.0
  %3884 = vmatpush1.msra.mxu0 %v3790
  %3885 = vmatprep.subr.mxu0 0.0
  %3886 = vmatpush1.msra.mxu0 %v3791
  %3887 = vmatprep.subr.mxu0 0.0
  %3888 = vmatpush1.msra.mxu0 %v3792
  %3889 = vmatprep.subr.mxu0 0.0
  %3890 = vmatpush1.msra.mxu0 %v3793
  %3891 = vmatprep.subr.mxu0 0.0
  %3892 = vmatpush1.msra.mxu0 0.0
  %3893 = vmatprep.subr.mxu0 0.0
  %3894 = vmatpush1.msra.mxu0 0.0
  %3895 = vmatprep.mubr.f32.mxu0 %v3796
  %3896 = vmatmul.mubr.f32.gmra.mrb[0].mxu0 %v3740
  %v3897 = vpop.f32.mrb[0].mxu0
  %v3898 = vadd.f32 0.0, %v3897
  %v3899 = vpop.f32.mrb[0].mxu0
  %3900 = vmatprep.mubr.f32.mxu0 %v3799
  %3901 = vmatmul.mubr.f32.gmra.mrb[0].mxu0 %v3742
  %v3902 = vpop.f32.mrb[0].mxu0
  %v3903 = vadd.f32 0.0, %v3902
  %v3904 = vpop.f32.mrb[0].mxu0
  %3905 = vmatprep.mubr.f32.mxu0 %v3802
  %3906 = vmatmul.mubr.f32.gmra.mrb[0].mxu0 %v3744
  %v3907 = vpop.f32.mrb[0].mxu0
  %v3908 = vadd.f32 0.0, %v3907
  %v3909 = vpop.f32.mrb[0].mxu0
  %3910 = vmatprep.mubr.f32.mxu0 %v3805
  %3911 = vmatmul.mubr.f32.gmra.mrb[0].mxu0 %v3746
  %v3912 = vpop.f32.mrb[0].mxu0
  %v3913 = vadd.f32 0.0, %v3912
  %v3914 = vpop.f32.mrb[0].mxu0
  %3915 = vmatprep.mubr.f32.mxu0 %v3808
  %3916 = vmatmul.mubr.f32.gmra.mrb[0].mxu0 %v3748
  %v3917 = vpop.f32.mrb[0].mxu0
  %v3918 = vadd.f32 0.0, %v3917
  %v3919 = vpop.f32.mrb[0].mxu0
  %3920 = vmatprep.mubr.f32.mxu0 %v3811
  %3921 = vmatmul.mubr.f32.gmra.mrb[0].mxu0 %v3750
  %v3922 = vpop.f32.mrb[0].mxu0
  %v3923 = vadd.f32 0.0, %v3922
  %v3924 = vpop.f32.mrb[0].mxu0
  %3925 = vmatprep.mubr.f32.mxu0 %v3814
  %3926 = vmatmul.mubr.f32.gmra.mrb[0].mxu0 %v3752
  %v3927 = vpop.f32.mrb[0].mxu0
  %v3928 = vadd.f32 0.0, %v3927
  %v3929 = vpop.f32.mrb[0].mxu0
  %3930 = vmatprep.mubr.f32.mxu0 %v3817
  %3931 = vmatmul.mubr.f32.gmra.mrb[0].mxu0 %v3754
  %v3932 = vpop.f32.mrb[0].mxu0
  %v3933 = vadd.f32 0.0, %v3932
  %v3934 = vpop.f32.mrb[0].mxu0
  %3935 = vmatprep.mubr.f32.mxu0 %v3820
  %3936 = vmatmul.mubr.f32.gmra.mrb[0].mxu0 %v3756
  %v3937 = vpop.f32.mrb[0].mxu0
  %v3938 = vadd.f32 0.0, %v3937
  %v3939 = vpop.f32.mrb[0].mxu0
  %3940 = vmatprep.mubr.f32.mxu0 %v3823
  %3941 = vmatmul.mubr.f32.gmra.mrb[0].mxu0 %v3758
  %v3942 = vpop.f32.mrb[0].mxu0
  %v3943 = vadd.f32 0.0, %v3942
  %v3944 = vpop.f32.mrb[0].mxu0
  %3945 = vmatprep.mubr.f32.mxu0 %v3826
  %3946 = vmatmul.mubr.f32.gmra.mrb[0].mxu0 %v3760
  %v3947 = vpop.f32.mrb[0].mxu0
  %v3948 = vadd.f32 0.0, %v3947
  %v3949 = vpop.f32.mrb[0].mxu0
  %3950 = vmatprep.mubr.f32.mxu0 %v3829
  %3951 = vmatmul.mubr.f32.gmra.mrb[0].mxu0 %v3762
  %v3952 = vpop.f32.mrb[0].mxu0
  %v3953 = vadd.f32 0.0, %v3952
  %v3954 = vpop.f32.mrb[0].mxu0
  %3955 = vdwg.mxu0
  %s3956 = scalar_lea.vmem %s5, 240
  %v3957 = vld [vmem:[%s3956] sm:$0xff]
  %v3958 = vld [vmem:[%s3956 + $0x8] sm:$0xff]
  %v3959 = vld [vmem:[%s3956 + $0x10] sm:$0xff]
  %v3960 = vld [vmem:[%s3956 + $0x18] sm:$0xff]
  %v3961 = vld [vmem:[%s3956 + $0x20] sm:$0xff]
  %v3962 = vld [vmem:[%s3956 + $0x28] sm:$0xff]
  %v3963 = vld [vmem:[%s3956 + $0x30] sm:$0xff]
  %v3964 = vld [vmem:[%s3956 + $0x38] sm:$0xff]
  %v3965 = vld [vmem:[%s3956 + $0x40] sm:$0xff]
  %v3966 = vld [vmem:[%s3956 + $0x48] sm:$0xff]
  %v3967 = vld [vmem:[%s3956 + $0x50] sm:$0xff]
  %v3968 = vld [vmem:[%s3956 + $0x58] sm:$0xff]
  %v3969 = vld [vmem:[%s3956 + $0x60] sm:$0xff]
  %v3970 = vld [vmem:[%s3956 + $0x68] sm:$0xff]
  %v3971 = vld [vmem:[%s3956 + $0x70] sm:$0xff]
  %v3972 = vld [vmem:[%s3956 + $0x78] sm:$0xff]
  %v3973 = vld [vmem:[%s3956 + $0x80] sm:$0xff]
  %v3974 = vld [vmem:[%s3956 + $0x88] sm:$0xff]
  %v3975 = vld [vmem:[%s3956 + $0x90] sm:$0xff]
  %v3976 = vld [vmem:[%s3956 + $0x98] sm:$0xff]
  %v3977 = vld [vmem:[%s3956 + $0xa0] sm:$0xff]
  %v3978 = vld [vmem:[%s3956 + $0xa8] sm:$0xff]
  %v3979 = vld [vmem:[%s3956 + $0xb0] sm:$0xff]
  %v3980 = vld [vmem:[%s3956 + $0xb8] sm:$0xff]
  %v3981 = vld [vmem:[%s3956 + $0xc0] sm:$0xff]
  %v3982 = vld [vmem:[%s3956 + $0xc8] sm:$0xff]
  %v3983 = vld [vmem:[%s3956 + $0xd0] sm:$0xff]
  %v3984 = vld [vmem:[%s3956 + $0xd8] sm:$0xff]
  %v3985 = vld [vmem:[%s3956 + $0xe0] sm:$0xff]
  %v3986 = vld [vmem:[%s3956 + $0xe8] sm:$0xff]
  %3987 = vmatprep.subr.mxu0 0.0
  %3988 = vmatpush1.msra.mxu0 %v3957
  %3989 = vmatprep.subr.mxu0 0.0
  %3990 = vmatpush1.msra.mxu0 %v3958
  %3991 = vmatprep.subr.mxu0 0.0
  %3992 = vmatpush1.msra.mxu0 %v3959
  %3993 = vmatprep.subr.mxu0 0.0
  %3994 = vmatpush1.msra.mxu0 %v3960
  %3995 = vmatprep.subr.mxu0 0.0
  %3996 = vmatpush1.msra.mxu0 %v3961
  %3997 = vmatprep.subr.mxu0 0.0
  %3998 = vmatpush1.msra.mxu0 %v3962
  %3999 = vmatprep.subr.mxu0 0.0
  %4000 = vmatpush1.msra.mxu0 %v3963
  %4001 = vmatprep.subr.mxu0 0.0
  %4002 = vmatpush1.msra.mxu0 %v3964
  %4003 = vmatprep.subr.mxu0 0.0
  %4004 = vmatpush1.msra.mxu0 %v3965
  %4005 = vmatprep.subr.mxu0 0.0
  %4006 = vmatpush1.msra.mxu0 %v3966
  %4007 = vmatprep.subr.mxu0 0.0
  %4008 = vmatpush1.msra.mxu0 %v3967
  %4009 = vmatprep.subr.mxu0 0.0
  %4010 = vmatpush1.msra.mxu0 %v3968
  %4011 = vmatprep.subr.mxu0 0.0
  %4012 = vmatpush1.msra.mxu0 %v3969
  %4013 = vmatprep.subr.mxu0 0.0
  %4014 = vmatpush1.msra.mxu0 %v3970
  %4015 = vmatprep.subr.mxu0 0.0
  %4016 = vmatpush1.msra.mxu0 %v3971
  %4017 = vmatprep.subr.mxu0 0.0
  %4018 = vmatpush1.msra.mxu0 %v3972
  %4019 = vmatprep.subr.mxu0 0.0
  %4020 = vmatpush1.msra.mxu0 %v3973
  %4021 = vmatprep.subr.mxu0 0.0
  %4022 = vmatpush1.msra.mxu0 %v3974
  %4023 = vmatprep.subr.mxu0 0.0
  %4024 = vmatpush1.msra.mxu0 %v3975
  %4025 = vmatprep.subr.mxu0 0.0
  %4026 = vmatpush1.msra.mxu0 %v3976
  %4027 = vmatprep.subr.mxu0 0.0
  %4028 = vmatpush1.msra.mxu0 %v3977
  %4029 = vmatprep.subr.mxu0 0.0
  %4030 = vmatpush1.msra.mxu0 %v3978
  %4031 = vmatprep.subr.mxu0 0.0
  %4032 = vmatpush1.msra.mxu0 %v3979
  %4033 = vmatprep.subr.mxu0 0.0
  %4034 = vmatpush1.msra.mxu0 %v3980
  %4035 = vmatprep.subr.mxu0 0.0
  %4036 = vmatpush1.msra.mxu0 %v3981
  %4037 = vmatprep.subr.mxu0 0.0
  %4038 = vmatpush1.msra.mxu0 %v3982
  %4039 = vmatprep.subr.mxu0 0.0
  %4040 = vmatpush1.msra.mxu0 %v3983
  %4041 = vmatprep.subr.mxu0 0.0
  %4042 = vmatpush1.msra.mxu0 %v3984
  %4043 = vmatprep.subr.mxu0 0.0
  %4044 = vmatpush1.msra.mxu0 %v3985
  %4045 = vmatprep.subr.mxu0 0.0
  %4046 = vmatpush1.msra.mxu0 %v3986
  %4047 = vmatprep.subr.mxu0 0.0
  %4048 = vmatpush1.msra.mxu0 0.0
  %4049 = vmatprep.subr.mxu0 0.0
  %4050 = vmatpush1.msra.mxu0 0.0
  %4051 = vmatprep.mubr.f32.mxu0 %v3796
  %4052 = vmatmul.mubr.f32.gmra.mrb[0].mxu0 %v3740
  %v4053 = vpop.f32.mrb[0].mxu0
  %v4054 = vadd.f32 0.0, %v4053
  %v4055 = vpop.f32.mrb[0].mxu0
  %4056 = vmatprep.mubr.f32.mxu0 %v3799
  %4057 = vmatmul.mubr.f32.gmra.mrb[0].mxu0 %v3742
  %v4058 = vpop.f32.mrb[0].mxu0
  %v4059 = vadd.f32 0.0, %v4058
  %v4060 = vpop.f32.mrb[0].mxu0
  %4061 = vmatprep.mubr.f32.mxu0 %v3802
  %4062 = vmatmul.mubr.f32.gmra.mrb[0].mxu0 %v3744
  %v4063 = vpop.f32.mrb[0].mxu0
  %v4064 = vadd.f32 0.0, %v4063
  %v4065 = vpop.f32.mrb[0].mxu0
  %4066 = vmatprep.mubr.f32.mxu0 %v3805
  %4067 = vmatmul.mubr.f32.gmra.mrb[0].mxu0 %v3746
  %v4068 = vpop.f32.mrb[0].mxu0
  %v4069 = vadd.f32 0.0, %v4068
  %v4070 = vpop.f32.mrb[0].mxu0
  %4071 = vmatprep.mubr.f32.mxu0 %v3808
  %4072 = vmatmul.mubr.f32.gmra.mrb[0].mxu0 %v3748
  %v4073 = vpop.f32.mrb[0].mxu0
  %v4074 = vadd.f32 0.0, %v4073
  %v4075 = vpop.f32.mrb[0].mxu0
  %4076 = vmatprep.mubr.f32.mxu0 %v3811
  %4077 = vmatmul.mubr.f32.gmra.mrb[0].mxu0 %v3750
  %v4078 = vpop.f32.mrb[0].mxu0
  %v4079 = vadd.f32 0.0, %v4078
  %v4080 = vpop.f32.mrb[0].mxu0
  %4081 = vmatprep.mubr.f32.mxu0 %v3814
  %4082 = vmatmul.mubr.f32.gmra.mrb[0].mxu0 %v3752
  %v4083 = vpop.f32.mrb[0].mxu0
  %v4084 = vadd.f32 0.0, %v4083
  %v4085 = vpop.f32.mrb[0].mxu0
  %4086 = vmatprep.mubr.f32.mxu0 %v3817
  %4087 = vmatmul.mubr.f32.gmra.mrb[0].mxu0 %v3754
  %v4088 = vpop.f32.mrb[0].mxu0
  %v4089 = vadd.f32 0.0, %v4088
  %v4090 = vpop.f32.mrb[0].mxu0
  %4091 = vmatprep.mubr.f32.mxu0 %v3820
  %4092 = vmatmul.mubr.f32.gmra.mrb[0].mxu0 %v3756
  %v4093 = vpop.f32.mrb[0].mxu0
  %v4094 = vadd.f32 0.0, %v4093
  %v4095 = vpop.f32.mrb[0].mxu0
  %4096 = vmatprep.mubr.f32.mxu0 %v3823
  %4097 = vmatmul.mubr.f32.gmra.mrb[0].mxu0 %v3758
  %v4098 = vpop.f32.mrb[0].mxu0
  %v4099 = vadd.f32 0.0, %v4098
  %v4100 = vpop.f32.mrb[0].mxu0
  %4101 = vmatprep.mubr.f32.mxu0 %v3826
  %4102 = vmatmul.mubr.f32.gmra.mrb[0].mxu0 %v3760
  %v4103 = vpop.f32.mrb[0].mxu0
  %v4104 = vadd.f32 0.0, %v4103
  %v4105 = vpop.f32.mrb[0].mxu0
  %4106 = vmatprep.mubr.f32.mxu0 %v3829
  %4107 = vmatmul.mubr.f32.gmra.mrb[0].mxu0 %v3762
  %v4108 = vpop.f32.mrb[0].mxu0
  %v4109 = vadd.f32 0.0, %v4108
  %v4110 = vpop.f32.mrb[0].mxu0
  %4111 = vdwg.mxu0
  %v4112 = vmax.f32 %v3898, %v4054
  %v4113 = vmax.f32 %v3903, %v4059
  %v4114 = vmax.f32 %v3908, %v4064
  %v4115 = vmax.f32 %v3913, %v4069
  %v4116 = vmax.f32 %v3918, %v4074
  %v4117 = vmax.f32 %v3923, %v4079
  %v4118 = vmax.f32 %v3928, %v4084
  %v4119 = vmax.f32 %v3933, %v4089
  %v4120 = vmax.f32 %v3938, %v4094
  %v4121 = vmax.f32 %v3943, %v4099
  %v4122 = vmax.f32 %v3948, %v4104
  %v4123 = vmax.f32 %v3953, %v4109
  %v4124 = vld [vmem:[%s6] sm:$0xff]
  %v4125 = vld [vmem:[%s6 + $0x8] sm:$0xff]
  %v4126 = vld [vmem:[%s6 + $0x10] sm:$0xff]
  %v4127 = vld [vmem:[%s6 + $0x18] sm:$0xff]
  %v4128 = vld [vmem:[%s6 + $0x20] sm:$0xff]
  %v4129 = vld [vmem:[%s6 + $0x28] sm:$0xff]
  %v4130 = vld [vmem:[%s6 + $0x30] sm:$0xff]
  %v4131 = vld [vmem:[%s6 + $0x38] sm:$0xff]
  %v4133 = vsel %vm129, %v4124, 0
  %v4136 = vsel %vm129, %v4125, 0
  %v4139 = vsel %vm129, %v4126, 0
  %v4142 = vsel %vm129, %v4127, 0
  %v4145 = vsel %vm129, %v4128, 0
  %v4148 = vsel %vm129, %v4129, 0
  %v4151 = vsel %vm129, %v4130, 0
  %v4154 = vsel %vm129, %v4131, 0
  %4156 = vmatprep.subr.mxu0 0.0
  %4157 = vmatpush1.msra.mxu0 %v4112
  %4158 = vmatprep.subr.mxu0 0.0
  %4159 = vmatpush1.msra.mxu0 %v4113
  %4160 = vmatprep.subr.mxu0 0.0
  %4161 = vmatpush1.msra.mxu0 %v4114
  %4162 = vmatprep.subr.mxu0 0.0
  %4163 = vmatpush1.msra.mxu0 %v4115
  %4164 = vmatprep.subr.mxu0 0.0
  %4165 = vmatpush1.msra.mxu0 %v4116
  %4166 = vmatprep.subr.mxu0 0.0
  %4167 = vmatpush1.msra.mxu0 %v4117
  %4168 = vmatprep.subr.mxu0 0.0
  %4169 = vmatpush1.msra.mxu0 %v4118
  %4170 = vmatprep.subr.mxu0 0.0
  %4171 = vmatpush1.msra.mxu0 %v4119
  %4172 = vmatprep.subr.mxu0 0.0
  %4173 = vmatpush1.msra.mxu0 %v4120
  %4174 = vmatprep.subr.mxu0 0.0
  %4175 = vmatpush1.msra.mxu0 %v4121
  %4176 = vmatprep.subr.mxu0 0.0
  %4177 = vmatpush1.msra.mxu0 %v4122
  %4178 = vmatprep.subr.mxu0 0.0
  %4179 = vmatpush1.msra.mxu0 %v4123
  %4180 = vmatprep.subr.mxu0 0.0
  %4181 = vmatpush1.msra.mxu0 0.0
  %4182 = vmatprep.subr.mxu0 0.0
  %4183 = vmatpush1.msra.mxu0 0.0
  %4184 = vmatprep.subr.mxu0 0.0
  %4185 = vmatpush1.msra.mxu0 0.0
  %4186 = vmatprep.subr.mxu0 0.0
  %4187 = vmatpush1.msra.mxu0 0.0
  %4188 = vmatprep.subr.mxu0 0.0
  %4189 = vmatpush1.msra.mxu0 0.0
  %4190 = vmatprep.subr.mxu0 0.0
  %4191 = vmatpush1.msra.mxu0 0.0
  %4192 = vmatprep.subr.mxu0 0.0
  %4193 = vmatpush1.msra.mxu0 0.0
  %4194 = vmatprep.subr.mxu0 0.0
  %4195 = vmatpush1.msra.mxu0 0.0
  %4196 = vmatprep.subr.mxu0 0.0
  %4197 = vmatpush1.msra.mxu0 0.0
  %4198 = vmatprep.subr.mxu0 0.0
  %4199 = vmatpush1.msra.mxu0 0.0
  %4200 = vmatprep.subr.mxu0 0.0
  %4201 = vmatpush1.msra.mxu0 0.0
  %4202 = vmatprep.subr.mxu0 0.0
  %4203 = vmatpush1.msra.mxu0 0.0
  %4204 = vmatprep.subr.mxu0 0.0
  %4205 = vmatpush1.msra.mxu0 0.0
  %4206 = vmatprep.subr.mxu0 0.0
  %4207 = vmatpush1.msra.mxu0 0.0
  %4208 = vmatprep.subr.mxu0 0.0
  %4209 = vmatpush1.msra.mxu0 0.0
  %4210 = vmatprep.subr.mxu0 0.0
  %4211 = vmatpush1.msra.mxu0 0.0
  %4212 = vmatprep.subr.mxu0 0.0
  %4213 = vmatpush1.msra.mxu0 0.0
  %4214 = vmatprep.subr.mxu0 0.0
  %4215 = vmatpush1.msra.mxu0 0.0
  %4216 = vmatprep.subr.mxu0 0.0
  %4217 = vmatpush1.msra.mxu0 0.0
  %4218 = vmatprep.subr.mxu0 0.0
  %4219 = vmatpush1.msra.mxu0 0.0
  %4220 = vmatprep.mubr.f32.mxu0 0.0
  %4221 = vmatmul.mubr.f32.gmra.mrb[0].mxu0 %v4133
  %v4222 = vpop.f32.mrb[0].mxu0
  %v4223 = vadd.f32 0.0, %v4222
  %v4224 = vpop.f32.mrb[0].mxu0
  %4225 = vmatprep.mubr.f32.mxu0 0.0
  %4226 = vmatmul.mubr.f32.gmra.mrb[0].mxu0 %v4136
  %v4227 = vpop.f32.mrb[0].mxu0
  %v4228 = vadd.f32 0.0, %v4227
  %v4229 = vpop.f32.mrb[0].mxu0
  %4230 = vmatprep.mubr.f32.mxu0 0.0
  %4231 = vmatmul.mubr.f32.gmra.mrb[0].mxu0 %v4139
  %v4232 = vpop.f32.mrb[0].mxu0
  %v4233 = vadd.f32 0.0, %v4232
  %v4234 = vpop.f32.mrb[0].mxu0
  %4235 = vmatprep.mubr.f32.mxu0 0.0
  %4236 = vmatmul.mubr.f32.gmra.mrb[0].mxu0 %v4142
  %v4237 = vpop.f32.mrb[0].mxu0
  %v4238 = vadd.f32 0.0, %v4237
  %v4239 = vpop.f32.mrb[0].mxu0
  %4240 = vmatprep.mubr.f32.mxu0 0.0
  %4241 = vmatmul.mubr.f32.gmra.mrb[0].mxu0 %v4145
  %v4242 = vpop.f32.mrb[0].mxu0
  %v4243 = vadd.f32 0.0, %v4242
  %v4244 = vpop.f32.mrb[0].mxu0
  %4245 = vmatprep.mubr.f32.mxu0 0.0
  %4246 = vmatmul.mubr.f32.gmra.mrb[0].mxu0 %v4148
  %v4247 = vpop.f32.mrb[0].mxu0
  %v4248 = vadd.f32 0.0, %v4247
  %v4249 = vpop.f32.mrb[0].mxu0
  %4250 = vmatprep.mubr.f32.mxu0 0.0
  %4251 = vmatmul.mubr.f32.gmra.mrb[0].mxu0 %v4151
  %v4252 = vpop.f32.mrb[0].mxu0
  %v4253 = vadd.f32 0.0, %v4252
  %v4254 = vpop.f32.mrb[0].mxu0
  %4255 = vmatprep.mubr.f32.mxu0 0.0
  %4256 = vmatmul.mubr.f32.gmra.mrb[0].mxu0 %v4154
  %v4257 = vpop.f32.mrb[0].mxu0
  %v4258 = vadd.f32 0.0, %v4257
  %v4259 = vpop.f32.mrb[0].mxu0
  %4260 = vdwg.mxu0
  %v4261 = vld [vmem:[%s7] sm:$0xff]
  %v4262 = vld [vmem:[%s7 + $0x8] sm:$0xff]
  %v4263 = vld [vmem:[%s7 + $0x10] sm:$0xff]
  %v4264 = vld [vmem:[%s7 + $0x18] sm:$0xff]
  %v4265 = vld [vmem:[%s7 + $0x20] sm:$0xff]
  %v4266 = vld [vmem:[%s7 + $0x28] sm:$0xff]
  %v4267 = vld [vmem:[%s7 + $0x30] sm:$0xff]
  %v4268 = vld [vmem:[%s7 + $0x38] sm:$0xff]
  %v4269 = vld [vmem:[%s7 + $0x40] sm:$0xff]
  %v4270 = vld [vmem:[%s7 + $0x48] sm:$0xff]
  %v4271 = vld [vmem:[%s7 + $0x50] sm:$0xff]
  %v4272 = vld [vmem:[%s7 + $0x58] sm:$0xff]
  %v4273 = vld [vmem:[%s7 + $0x60] sm:$0xff]
  %v4274 = vld [vmem:[%s7 + $0x68] sm:$0xff]
  %v4275 = vld [vmem:[%s7 + $0x70] sm:$0xff]
  %v4276 = vld [vmem:[%s7 + $0x78] sm:$0xff]
  %v4277 = vld [vmem:[%s7 + $0x80] sm:$0xff]
  %v4278 = vld [vmem:[%s7 + $0x88] sm:$0xff]
  %v4279 = vld [vmem:[%s7 + $0x90] sm:$0xff]
  %v4280 = vld [vmem:[%s7 + $0x98] sm:$0xff]
  %v4281 = vld [vmem:[%s7 + $0xa0] sm:$0xff]
  %v4282 = vld [vmem:[%s7 + $0xa8] sm:$0xff]
  %v4283 = vld [vmem:[%s7 + $0xb0] sm:$0xff]
  %v4284 = vld [vmem:[%s7 + $0xb8] sm:$0xff]
  %v4285 = vld [vmem:[%s7 + $0xc0] sm:$0xff]
  %v4286 = vld [vmem:[%s7 + $0xc8] sm:$0xff]
  %v4287 = vld [vmem:[%s7 + $0xd0] sm:$0xff]
  %v4288 = vld [vmem:[%s7 + $0xd8] sm:$0xff]
  %v4289 = vld [vmem:[%s7 + $0xe0] sm:$0xff]
  %v4290 = vld [vmem:[%s7 + $0xe8] sm:$0xff]
  %s4291 = scalar_lea.vmem %s6, 64
  %v4292 = vld [vmem:[%s4291] sm:$0xff]
  %v4293 = vld [vmem:[%s4291 + $0x8] sm:$0xff]
  %v4294 = vld [vmem:[%s4291 + $0x10] sm:$0xff]
  %v4295 = vld [vmem:[%s4291 + $0x18] sm:$0xff]
  %v4296 = vld [vmem:[%s4291 + $0x20] sm:$0xff]
  %v4297 = vld [vmem:[%s4291 + $0x28] sm:$0xff]
  %v4298 = vld [vmem:[%s4291 + $0x30] sm:$0xff]
  %v4299 = vld [vmem:[%s4291 + $0x38] sm:$0xff]
  %v4301 = vsel %vm129, %v4292, 0
  %v4304 = vsel %vm129, %v4293, 0
  %v4307 = vsel %vm129, %v4294, 0
  %v4310 = vsel %vm129, %v4295, 0
  %v4313 = vsel %vm129, %v4296, 0
  %v4316 = vsel %vm129, %v4297, 0
  %v4319 = vsel %vm129, %v4298, 0
  %v4322 = vsel %vm129, %v4299, 0
  %4324 = vmatprep.subr.mxu0 0.0
  %4325 = vmatpush1.msra.mxu0 %v4112
  %4326 = vmatprep.subr.mxu0 0.0
  %4327 = vmatpush1.msra.mxu0 %v4113
  %4328 = vmatprep.subr.mxu0 0.0
  %4329 = vmatpush1.msra.mxu0 %v4114
  %4330 = vmatprep.subr.mxu0 0.0
  %4331 = vmatpush1.msra.mxu0 %v4115
  %4332 = vmatprep.subr.mxu0 0.0
  %4333 = vmatpush1.msra.mxu0 %v4116
  %4334 = vmatprep.subr.mxu0 0.0
  %4335 = vmatpush1.msra.mxu0 %v4117
  %4336 = vmatprep.subr.mxu0 0.0
  %4337 = vmatpush1.msra.mxu0 %v4118
  %4338 = vmatprep.subr.mxu0 0.0
  %4339 = vmatpush1.msra.mxu0 %v4119
  %4340 = vmatprep.subr.mxu0 0.0
  %4341 = vmatpush1.msra.mxu0 %v4120
  %4342 = vmatprep.subr.mxu0 0.0
  %4343 = vmatpush1.msra.mxu0 %v4121
  %4344 = vmatprep.subr.mxu0 0.0
  %4345 = vmatpush1.msra.mxu0 %v4122
  %4346 = vmatprep.subr.mxu0 0.0
  %4347 = vmatpush1.msra.mxu0 %v4123
  %4348 = vmatprep.subr.mxu0 0.0
  %4349 = vmatpush1.msra.mxu0 0.0
  %4350 = vmatprep.subr.mxu0 0.0
  %4351 = vmatpush1.msra.mxu0 0.0
  %4352 = vmatprep.subr.mxu0 0.0
  %4353 = vmatpush1.msra.mxu0 0.0
  %4354 = vmatprep.subr.mxu0 0.0
  %4355 = vmatpush1.msra.mxu0 0.0
  %4356 = vmatprep.subr.mxu0 0.0
  %4357 = vmatpush1.msra.mxu0 0.0
  %4358 = vmatprep.subr.mxu0 0.0
  %4359 = vmatpush1.msra.mxu0 0.0
  %4360 = vmatprep.subr.mxu0 0.0
  %4361 = vmatpush1.msra.mxu0 0.0
  %4362 = vmatprep.subr.mxu0 0.0
  %4363 = vmatpush1.msra.mxu0 0.0
  %4364 = vmatprep.subr.mxu0 0.0
  %4365 = vmatpush1.msra.mxu0 0.0
  %4366 = vmatprep.subr.mxu0 0.0
  %4367 = vmatpush1.msra.mxu0 0.0
  %4368 = vmatprep.subr.mxu0 0.0
  %4369 = vmatpush1.msra.mxu0 0.0
  %4370 = vmatprep.subr.mxu0 0.0
  %4371 = vmatpush1.msra.mxu0 0.0
  %4372 = vmatprep.subr.mxu0 0.0
  %4373 = vmatpush1.msra.mxu0 0.0
  %4374 = vmatprep.subr.mxu0 0.0
  %4375 = vmatpush1.msra.mxu0 0.0
  %4376 = vmatprep.subr.mxu0 0.0
  %4377 = vmatpush1.msra.mxu0 0.0
  %4378 = vmatprep.subr.mxu0 0.0
  %4379 = vmatpush1.msra.mxu0 0.0
  %4380 = vmatprep.subr.mxu0 0.0
  %4381 = vmatpush1.msra.mxu0 0.0
  %4382 = vmatprep.subr.mxu0 0.0
  %4383 = vmatpush1.msra.mxu0 0.0
  %4384 = vmatprep.subr.mxu0 0.0
  %4385 = vmatpush1.msra.mxu0 0.0
  %4386 = vmatprep.subr.mxu0 0.0
  %4387 = vmatpush1.msra.mxu0 0.0
  %4388 = vmatprep.mubr.f32.mxu0 0.0
  %4389 = vmatmul.mubr.f32.gmra.mrb[0].mxu0 %v4301
  %v4390 = vpop.f32.mrb[0].mxu0
  %v4391 = vadd.f32 0.0, %v4390
  %v4392 = vpop.f32.mrb[0].mxu0
  %4393 = vmatprep.mubr.f32.mxu0 0.0
  %4394 = vmatmul.mubr.f32.gmra.mrb[0].mxu0 %v4304
  %v4395 = vpop.f32.mrb[0].mxu0
  %v4396 = vadd.f32 0.0, %v4395
  %v4397 = vpop.f32.mrb[0].mxu0
  %4398 = vmatprep.mubr.f32.mxu0 0.0
  %4399 = vmatmul.mubr.f32.gmra.mrb[0].mxu0 %v4307
  %v4400 = vpop.f32.mrb[0].mxu0
  %v4401 = vadd.f32 0.0, %v4400
  %v4402 = vpop.f32.mrb[0].mxu0
  %4403 = vmatprep.mubr.f32.mxu0 0.0
  %4404 = vmatmul.mubr.f32.gmra.mrb[0].mxu0 %v4310
  %v4405 = vpop.f32.mrb[0].mxu0
  %v4406 = vadd.f32 0.0, %v4405
  %v4407 = vpop.f32.mrb[0].mxu0
  %4408 = vmatprep.mubr.f32.mxu0 0.0
  %4409 = vmatmul.mubr.f32.gmra.mrb[0].mxu0 %v4313
  %v4410 = vpop.f32.mrb[0].mxu0
  %v4411 = vadd.f32 0.0, %v4410
  %v4412 = vpop.f32.mrb[0].mxu0
  %4413 = vmatprep.mubr.f32.mxu0 0.0
  %4414 = vmatmul.mubr.f32.gmra.mrb[0].mxu0 %v4316
  %v4415 = vpop.f32.mrb[0].mxu0
  %v4416 = vadd.f32 0.0, %v4415
  %v4417 = vpop.f32.mrb[0].mxu0
  %4418 = vmatprep.mubr.f32.mxu0 0.0
  %4419 = vmatmul.mubr.f32.gmra.mrb[0].mxu0 %v4319
  %v4420 = vpop.f32.mrb[0].mxu0
  %v4421 = vadd.f32 0.0, %v4420
  %v4422 = vpop.f32.mrb[0].mxu0
  %4423 = vmatprep.mubr.f32.mxu0 0.0
  %4424 = vmatmul.mubr.f32.gmra.mrb[0].mxu0 %v4322
  %v4425 = vpop.f32.mrb[0].mxu0
  %v4426 = vadd.f32 0.0, %v4425
  %v4427 = vpop.f32.mrb[0].mxu0
  %4428 = vdwg.mxu0
  %s4429 = scalar_lea.vmem %s7, 240
  %v4430 = vld [vmem:[%s4429] sm:$0xff]
  %v4431 = vld [vmem:[%s4429 + $0x8] sm:$0xff]
  %v4432 = vld [vmem:[%s4429 + $0x10] sm:$0xff]
  %v4433 = vld [vmem:[%s4429 + $0x18] sm:$0xff]
  %v4434 = vld [vmem:[%s4429 + $0x20] sm:$0xff]
  %v4435 = vld [vmem:[%s4429 + $0x28] sm:$0xff]
  %v4436 = vld [vmem:[%s4429 + $0x30] sm:$0xff]
  %v4437 = vld [vmem:[%s4429 + $0x38] sm:$0xff]
  %v4438 = vld [vmem:[%s4429 + $0x40] sm:$0xff]
  %v4439 = vld [vmem:[%s4429 + $0x48] sm:$0xff]
  %v4440 = vld [vmem:[%s4429 + $0x50] sm:$0xff]
  %v4441 = vld [vmem:[%s4429 + $0x58] sm:$0xff]
  %v4442 = vld [vmem:[%s4429 + $0x60] sm:$0xff]
  %v4443 = vld [vmem:[%s4429 + $0x68] sm:$0xff]
  %v4444 = vld [vmem:[%s4429 + $0x70] sm:$0xff]
  %v4445 = vld [vmem:[%s4429 + $0x78] sm:$0xff]
  %v4446 = vld [vmem:[%s4429 + $0x80] sm:$0xff]
  %v4447 = vld [vmem:[%s4429 + $0x88] sm:$0xff]
  %v4448 = vld [vmem:[%s4429 + $0x90] sm:$0xff]
  %v4449 = vld [vmem:[%s4429 + $0x98] sm:$0xff]
  %v4450 = vld [vmem:[%s4429 + $0xa0] sm:$0xff]
  %v4451 = vld [vmem:[%s4429 + $0xa8] sm:$0xff]
  %v4452 = vld [vmem:[%s4429 + $0xb0] sm:$0xff]
  %v4453 = vld [vmem:[%s4429 + $0xb8] sm:$0xff]
  %v4454 = vld [vmem:[%s4429 + $0xc0] sm:$0xff]
  %v4455 = vld [vmem:[%s4429 + $0xc8] sm:$0xff]
  %v4456 = vld [vmem:[%s4429 + $0xd0] sm:$0xff]
  %v4457 = vld [vmem:[%s4429 + $0xd8] sm:$0xff]
  %v4458 = vld [vmem:[%s4429 + $0xe0] sm:$0xff]
  %v4459 = vld [vmem:[%s4429 + $0xe8] sm:$0xff]
  %vm4460 = vcmask 982016
  %v4462 = vsel %vm4460, %v4391, 0
  %v4465 = vsel %vm4460, %v4396, 0
  %v4468 = vsel %vm4460, %v4401, 0
  %v4471 = vsel %vm4460, %v4406, 0
  %v4474 = vsel %vm4460, %v4411, 0
  %v4477 = vsel %vm4460, %v4416, 0
  %v4480 = vsel %vm4460, %v4421, 0
  %v4483 = vsel %vm4460, %v4426, 0
  %4485 = vmatprep.subr.mxu0 %v4431
  %4486 = vmatpush1.msra.mxu0 %v4430
  %4487 = vmatprep.subr.mxu0 %v4433
  %4488 = vmatpush1.msra.mxu0 %v4432
  %4489 = vmatprep.subr.mxu0 %v4435
  %4490 = vmatpush1.msra.mxu0 %v4434
  %4491 = vmatprep.subr.mxu0 %v4437
  %4492 = vmatpush1.msra.mxu0 %v4436
  %4493 = vmatprep.subr.mxu0 %v4439
  %4494 = vmatpush1.msra.mxu0 %v4438
  %4495 = vmatprep.subr.mxu0 %v4441
  %4496 = vmatpush1.msra.mxu0 %v4440
  %4497 = vmatprep.subr.mxu0 %v4443
  %4498 = vmatpush1.msra.mxu0 %v4442
  %4499 = vmatprep.subr.mxu0 %v4445
  %4500 = vmatpush1.msra.mxu0 %v4444
  %4501 = vmatprep.subr.mxu0 %v4447
  %4502 = vmatpush1.msra.mxu0 %v4446
  %4503 = vmatprep.subr.mxu0 %v4449
  %4504 = vmatpush1.msra.mxu0 %v4448
  %4505 = vmatprep.subr.mxu0 %v4451
  %4506 = vmatpush1.msra.mxu0 %v4450
  %4507 = vmatprep.subr.mxu0 %v4453
  %4508 = vmatpush1.msra.mxu0 %v4452
  %4509 = vmatprep.subr.mxu0 %v4455
  %4510 = vmatpush1.msra.mxu0 %v4454
  %4511 = vmatprep.subr.mxu0 %v4457
  %4512 = vmatpush1.msra.mxu0 %v4456
  %4513 = vmatprep.subr.mxu0 %v4459
  %4514 = vmatpush1.msra.mxu0 %v4458
  %4515 = vmatprep.subr.mxu0 0.0
  %4516 = vmatpush1.msra.mxu0 0.0
  %4517 = vmatprep.subr.mxu0 0.0
  %4518 = vmatpush1.msra.mxu0 0.0
  %4519 = vmatprep.subr.mxu0 0.0
  %4520 = vmatpush1.msra.mxu0 0.0
  %4521 = vmatprep.subr.mxu0 0.0
  %4522 = vmatpush1.msra.mxu0 0.0
  %4523 = vmatprep.subr.mxu0 0.0
  %4524 = vmatpush1.msra.mxu0 0.0
  %4525 = vmatprep.subr.mxu0 0.0
  %4526 = vmatpush1.msra.mxu0 0.0
  %4527 = vmatprep.subr.mxu0 0.0
  %4528 = vmatpush1.msra.mxu0 0.0
  %4529 = vmatprep.subr.mxu0 0.0
  %4530 = vmatpush1.msra.mxu0 0.0
  %4531 = vmatprep.subr.mxu0 0.0
  %4532 = vmatpush1.msra.mxu0 0.0
  %4533 = vmatprep.subr.mxu0 0.0
  %4534 = vmatpush1.msra.mxu0 0.0
  %4535 = vmatprep.subr.mxu0 0.0
  %4536 = vmatpush1.msra.mxu0 0.0
  %4537 = vmatprep.subr.mxu0 0.0
  %4538 = vmatpush1.msra.mxu0 0.0
  %4539 = vmatprep.subr.mxu0 0.0
  %4540 = vmatpush1.msra.mxu0 0.0
  %4541 = vmatprep.subr.mxu0 0.0
  %4542 = vmatpush1.msra.mxu0 0.0
  %4543 = vmatprep.subr.mxu0 0.0
  %4544 = vmatpush1.msra.mxu0 0.0
  %4545 = vmatprep.subr.mxu0 0.0
  %4546 = vmatpush1.msra.mxu0 0.0
  %4547 = vmatprep.subr.mxu0 0.0
  %4548 = vmatpush1.msra.mxu0 0.0
  %4549 = vmatprep.mubr.f32.mxu0 0.0
  %4550 = vmatmul.mubr.f32.gmra.mrb[0].mxu0 %v4462
  %v4551 = vpop.f32.mrb[0].mxu0
  %v4552 = vadd.f32 0.0, %v4551
  %v4553 = vpop.f32.mrb[0].mxu0
  %v4554 = vadd.f32 0.0, %v4553
  %4555 = vmatprep.mubr.f32.mxu0 0.0
  %4556 = vmatmul.mubr.f32.gmra.mrb[0].mxu0 %v4465
  %v4557 = vpop.f32.mrb[0].mxu0
  %v4558 = vadd.f32 0.0, %v4557
  %v4559 = vpop.f32.mrb[0].mxu0
  %v4560 = vadd.f32 0.0, %v4559
  %4561 = vmatprep.mubr.f32.mxu0 0.0
  %4562 = vmatmul.mubr.f32.gmra.mrb[0].mxu0 %v4468
  %v4563 = vpop.f32.mrb[0].mxu0
  %v4564 = vadd.f32 0.0, %v4563
  %v4565 = vpop.f32.mrb[0].mxu0
  %v4566 = vadd.f32 0.0, %v4565
  %4567 = vmatprep.mubr.f32.mxu0 0.0
  %4568 = vmatmul.mubr.f32.gmra.mrb[0].mxu0 %v4471
  %v4569 = vpop.f32.mrb[0].mxu0
  %v4570 = vadd.f32 0.0, %v4569
  %v4571 = vpop.f32.mrb[0].mxu0
  %v4572 = vadd.f32 0.0, %v4571
  %4573 = vmatprep.mubr.f32.mxu0 0.0
  %4574 = vmatmul.mubr.f32.gmra.mrb[0].mxu0 %v4474
  %v4575 = vpop.f32.mrb[0].mxu0
  %v4576 = vadd.f32 0.0, %v4575
  %v4577 = vpop.f32.mrb[0].mxu0
  %v4578 = vadd.f32 0.0, %v4577
  %4579 = vmatprep.mubr.f32.mxu0 0.0
  %4580 = vmatmul.mubr.f32.gmra.mrb[0].mxu0 %v4477
  %v4581 = vpop.f32.mrb[0].mxu0
  %v4582 = vadd.f32 0.0, %v4581
  %v4583 = vpop.f32.mrb[0].mxu0
  %v4584 = vadd.f32 0.0, %v4583
  %4585 = vmatprep.mubr.f32.mxu0 0.0
  %4586 = vmatmul.mubr.f32.gmra.mrb[0].mxu0 %v4480
  %v4587 = vpop.f32.mrb[0].mxu0
  %v4588 = vadd.f32 0.0, %v4587
  %v4589 = vpop.f32.mrb[0].mxu0
  %v4590 = vadd.f32 0.0, %v4589
  %4591 = vmatprep.mubr.f32.mxu0 0.0
  %4592 = vmatmul.mubr.f32.gmra.mrb[0].mxu0 %v4483
  %v4593 = vpop.f32.mrb[0].mxu0
  %v4594 = vadd.f32 0.0, %v4593
  %v4595 = vpop.f32.mrb[0].mxu0
  %v4596 = vadd.f32 0.0, %v4595
  %4597 = vdwg.mxu0
  %v4599 = vsel %vm4460, %v4223, 0
  %v4602 = vsel %vm4460, %v4228, 0
  %v4605 = vsel %vm4460, %v4233, 0
  %v4608 = vsel %vm4460, %v4238, 0
  %v4611 = vsel %vm4460, %v4243, 0
  %v4614 = vsel %vm4460, %v4248, 0
  %v4617 = vsel %vm4460, %v4253, 0
  %v4620 = vsel %vm4460, %v4258, 0
  %4622 = vmatprep.subr.mxu0 %v4262
  %4623 = vmatpush1.msra.mxu0 %v4261
  %4624 = vmatprep.subr.mxu0 %v4264
  %4625 = vmatpush1.msra.mxu0 %v4263
  %4626 = vmatprep.subr.mxu0 %v4266
  %4627 = vmatpush1.msra.mxu0 %v4265
  %4628 = vmatprep.subr.mxu0 %v4268
  %4629 = vmatpush1.msra.mxu0 %v4267
  %4630 = vmatprep.subr.mxu0 %v4270
  %4631 = vmatpush1.msra.mxu0 %v4269
  %4632 = vmatprep.subr.mxu0 %v4272
  %4633 = vmatpush1.msra.mxu0 %v4271
  %4634 = vmatprep.subr.mxu0 %v4274
  %4635 = vmatpush1.msra.mxu0 %v4273
  %4636 = vmatprep.subr.mxu0 %v4276
  %4637 = vmatpush1.msra.mxu0 %v4275
  %4638 = vmatprep.subr.mxu0 %v4278
  %4639 = vmatpush1.msra.mxu0 %v4277
  %4640 = vmatprep.subr.mxu0 %v4280
  %4641 = vmatpush1.msra.mxu0 %v4279
  %4642 = vmatprep.subr.mxu0 %v4282
  %4643 = vmatpush1.msra.mxu0 %v4281
  %4644 = vmatprep.subr.mxu0 %v4284
  %4645 = vmatpush1.msra.mxu0 %v4283
  %4646 = vmatprep.subr.mxu0 %v4286
  %4647 = vmatpush1.msra.mxu0 %v4285
  %4648 = vmatprep.subr.mxu0 %v4288
  %4649 = vmatpush1.msra.mxu0 %v4287
  %4650 = vmatprep.subr.mxu0 %v4290
  %4651 = vmatpush1.msra.mxu0 %v4289
  %4652 = vmatprep.subr.mxu0 0.0
  %4653 = vmatpush1.msra.mxu0 0.0
  %4654 = vmatprep.subr.mxu0 0.0
  %4655 = vmatpush1.msra.mxu0 0.0
  %4656 = vmatprep.subr.mxu0 0.0
  %4657 = vmatpush1.msra.mxu0 0.0
  %4658 = vmatprep.subr.mxu0 0.0
  %4659 = vmatpush1.msra.mxu0 0.0
  %4660 = vmatprep.subr.mxu0 0.0
  %4661 = vmatpush1.msra.mxu0 0.0
  %4662 = vmatprep.subr.mxu0 0.0
  %4663 = vmatpush1.msra.mxu0 0.0
  %4664 = vmatprep.subr.mxu0 0.0
  %4665 = vmatpush1.msra.mxu0 0.0
  %4666 = vmatprep.subr.mxu0 0.0
  %4667 = vmatpush1.msra.mxu0 0.0
  %4668 = vmatprep.subr.mxu0 0.0
  %4669 = vmatpush1.msra.mxu0 0.0
  %4670 = vmatprep.subr.mxu0 0.0
  %4671 = vmatpush1.msra.mxu0 0.0
  %4672 = vmatprep.subr.mxu0 0.0
  %4673 = vmatpush1.msra.mxu0 0.0
  %4674 = vmatprep.subr.mxu0 0.0
  %4675 = vmatpush1.msra.mxu0 0.0
  %4676 = vmatprep.subr.mxu0 0.0
  %4677 = vmatpush1.msra.mxu0 0.0
  %4678 = vmatprep.subr.mxu0 0.0
  %4679 = vmatpush1.msra.mxu0 0.0
  %4680 = vmatprep.subr.mxu0 0.0
  %4681 = vmatpush1.msra.mxu0 0.0
  %4682 = vmatprep.subr.mxu0 0.0
  %4683 = vmatpush1.msra.mxu0 0.0
  %4684 = vmatprep.subr.mxu0 0.0
  %4685 = vmatpush1.msra.mxu0 0.0
  %4686 = vmatprep.mubr.f32.mxu0 0.0
  %4687 = vmatmul.mubr.f32.gmra.mrb[0].mxu0 %v4599
  %v4688 = vpop.f32.mrb[0].mxu0
  %v4689 = vadd.f32 %v4552, %v4688
  %v4690 = vpop.f32.mrb[0].mxu0
  %v4691 = vadd.f32 %v4554, %v4690
  %4692 = vmatprep.mubr.f32.mxu0 0.0
  %4693 = vmatmul.mubr.f32.gmra.mrb[0].mxu0 %v4602
  %v4694 = vpop.f32.mrb[0].mxu0
  %v4695 = vadd.f32 %v4558, %v4694
  %v4696 = vpop.f32.mrb[0].mxu0
  %v4697 = vadd.f32 %v4560, %v4696
  %4698 = vmatprep.mubr.f32.mxu0 0.0
  %4699 = vmatmul.mubr.f32.gmra.mrb[0].mxu0 %v4605
  %v4700 = vpop.f32.mrb[0].mxu0
  %v4701 = vadd.f32 %v4564, %v4700
  %v4702 = vpop.f32.mrb[0].mxu0
  %v4703 = vadd.f32 %v4566, %v4702
  %4704 = vmatprep.mubr.f32.mxu0 0.0
  %4705 = vmatmul.mubr.f32.gmra.mrb[0].mxu0 %v4608
  %v4706 = vpop.f32.mrb[0].mxu0
  %v4707 = vadd.f32 %v4570, %v4706
  %v4708 = vpop.f32.mrb[0].mxu0
  %v4709 = vadd.f32 %v4572, %v4708
  %4710 = vmatprep.mubr.f32.mxu0 0.0
  %4711 = vmatmul.mubr.f32.gmra.mrb[0].mxu0 %v4611
  %v4712 = vpop.f32.mrb[0].mxu0
  %v4713 = vadd.f32 %v4576, %v4712
  %v4714 = vpop.f32.mrb[0].mxu0
  %v4715 = vadd.f32 %v4578, %v4714
  %4716 = vmatprep.mubr.f32.mxu0 0.0
  %4717 = vmatmul.mubr.f32.gmra.mrb[0].mxu0 %v4614
  %v4718 = vpop.f32.mrb[0].mxu0
  %v4719 = vadd.f32 %v4582, %v4718
  %v4720 = vpop.f32.mrb[0].mxu0
  %v4721 = vadd.f32 %v4584, %v4720
  %4722 = vmatprep.mubr.f32.mxu0 0.0
  %4723 = vmatmul.mubr.f32.gmra.mrb[0].mxu0 %v4617
  %v4724 = vpop.f32.mrb[0].mxu0
  %v4725 = vadd.f32 %v4588, %v4724
  %v4726 = vpop.f32.mrb[0].mxu0
  %v4727 = vadd.f32 %v4590, %v4726
  %4728 = vmatprep.mubr.f32.mxu0 0.0
  %4729 = vmatmul.mubr.f32.gmra.mrb[0].mxu0 %v4620
  %v4730 = vpop.f32.mrb[0].mxu0
  %v4731 = vadd.f32 %v4594, %v4730
  %v4732 = vpop.f32.mrb[0].mxu0
  %v4733 = vadd.f32 %v4596, %v4732
  %4734 = vdwg.mxu0
  %s4735 = scalar_lea.vmem %s6, 128
  %v4736 = vld [vmem:[%s4735] sm:$0xff]
  %v4737 = vld [vmem:[%s4735 + $0x8] sm:$0xff]
  %v4738 = vld [vmem:[%s4735 + $0x10] sm:$0xff]
  %v4739 = vld [vmem:[%s4735 + $0x18] sm:$0xff]
  %v4740 = vld [vmem:[%s4735 + $0x20] sm:$0xff]
  %v4741 = vld [vmem:[%s4735 + $0x28] sm:$0xff]
  %v4742 = vld [vmem:[%s4735 + $0x30] sm:$0xff]
  %v4743 = vld [vmem:[%s4735 + $0x38] sm:$0xff]
  %v4745 = vsel %vm129, %v4736, 0
  %v4748 = vsel %vm129, %v4737, 0
  %v4751 = vsel %vm129, %v4738, 0
  %v4754 = vsel %vm129, %v4739, 0
  %v4757 = vsel %vm129, %v4740, 0
  %v4760 = vsel %vm129, %v4741, 0
  %v4763 = vsel %vm129, %v4742, 0
  %v4766 = vsel %vm129, %v4743, 0
  %4768 = vmatprep.subr.mxu0 0.0
  %4769 = vmatpush1.msra.mxu0 %v4112
  %4770 = vmatprep.subr.mxu0 0.0
  %4771 = vmatpush1.msra.mxu0 %v4113
  %4772 = vmatprep.subr.mxu0 0.0
  %4773 = vmatpush1.msra.mxu0 %v4114
  %4774 = vmatprep.subr.mxu0 0.0
  %4775 = vmatpush1.msra.mxu0 %v4115
  %4776 = vmatprep.subr.mxu0 0.0
  %4777 = vmatpush1.msra.mxu0 %v4116
  %4778 = vmatprep.subr.mxu0 0.0
  %4779 = vmatpush1.msra.mxu0 %v4117
  %4780 = vmatprep.subr.mxu0 0.0
  %4781 = vmatpush1.msra.mxu0 %v4118
  %4782 = vmatprep.subr.mxu0 0.0
  %4783 = vmatpush1.msra.mxu0 %v4119
  %4784 = vmatprep.subr.mxu0 0.0
  %4785 = vmatpush1.msra.mxu0 %v4120
  %4786 = vmatprep.subr.mxu0 0.0
  %4787 = vmatpush1.msra.mxu0 %v4121
  %4788 = vmatprep.subr.mxu0 0.0
  %4789 = vmatpush1.msra.mxu0 %v4122
  %4790 = vmatprep.subr.mxu0 0.0
  %4791 = vmatpush1.msra.mxu0 %v4123
  %4792 = vmatprep.subr.mxu0 0.0
  %4793 = vmatpush1.msra.mxu0 0.0
  %4794 = vmatprep.subr.mxu0 0.0
  %4795 = vmatpush1.msra.mxu0 0.0
  %4796 = vmatprep.subr.mxu0 0.0
  %4797 = vmatpush1.msra.mxu0 0.0
  %4798 = vmatprep.subr.mxu0 0.0
  %4799 = vmatpush1.msra.mxu0 0.0
  %4800 = vmatprep.subr.mxu0 0.0
  %4801 = vmatpush1.msra.mxu0 0.0
  %4802 = vmatprep.subr.mxu0 0.0
  %4803 = vmatpush1.msra.mxu0 0.0
  %4804 = vmatprep.subr.mxu0 0.0
  %4805 = vmatpush1.msra.mxu0 0.0
  %4806 = vmatprep.subr.mxu0 0.0
  %4807 = vmatpush1.msra.mxu0 0.0
  %4808 = vmatprep.subr.mxu0 0.0
  %4809 = vmatpush1.msra.mxu0 0.0
  %4810 = vmatprep.subr.mxu0 0.0
  %4811 = vmatpush1.msra.mxu0 0.0
  %4812 = vmatprep.subr.mxu0 0.0
  %4813 = vmatpush1.msra.mxu0 0.0
  %4814 = vmatprep.subr.mxu0 0.0
  %4815 = vmatpush1.msra.mxu0 0.0
  %4816 = vmatprep.subr.mxu0 0.0
  %4817 = vmatpush1.msra.mxu0 0.0
  %4818 = vmatprep.subr.mxu0 0.0
  %4819 = vmatpush1.msra.mxu0 0.0
  %4820 = vmatprep.subr.mxu0 0.0
  %4821 = vmatpush1.msra.mxu0 0.0
  %4822 = vmatprep.subr.mxu0 0.0
  %4823 = vmatpush1.msra.mxu0 0.0
  %4824 = vmatprep.subr.mxu0 0.0
  %4825 = vmatpush1.msra.mxu0 0.0
  %4826 = vmatprep.subr.mxu0 0.0
  %4827 = vmatpush1.msra.mxu0 0.0
  %4828 = vmatprep.subr.mxu0 0.0
  %4829 = vmatpush1.msra.mxu0 0.0
  %4830 = vmatprep.subr.mxu0 0.0
  %4831 = vmatpush1.msra.mxu0 0.0
  %4832 = vmatprep.mubr.f32.mxu0 0.0
  %4833 = vmatmul.mubr.f32.gmra.mrb[0].mxu0 %v4745
  %v4834 = vpop.f32.mrb[0].mxu0
  %v4835 = vadd.f32 0.0, %v4834
  %v4836 = vpop.f32.mrb[0].mxu0
  %4837 = vmatprep.mubr.f32.mxu0 0.0
  %4838 = vmatmul.mubr.f32.gmra.mrb[0].mxu0 %v4748
  %v4839 = vpop.f32.mrb[0].mxu0
  %v4840 = vadd.f32 0.0, %v4839
  %v4841 = vpop.f32.mrb[0].mxu0
  %4842 = vmatprep.mubr.f32.mxu0 0.0
  %4843 = vmatmul.mubr.f32.gmra.mrb[0].mxu0 %v4751
  %v4844 = vpop.f32.mrb[0].mxu0
  %v4845 = vadd.f32 0.0, %v4844
  %v4846 = vpop.f32.mrb[0].mxu0
  %4847 = vmatprep.mubr.f32.mxu0 0.0
  %4848 = vmatmul.mubr.f32.gmra.mrb[0].mxu0 %v4754
  %v4849 = vpop.f32.mrb[0].mxu0
  %v4850 = vadd.f32 0.0, %v4849
  %v4851 = vpop.f32.mrb[0].mxu0
  %4852 = vmatprep.mubr.f32.mxu0 0.0
  %4853 = vmatmul.mubr.f32.gmra.mrb[0].mxu0 %v4757
  %v4854 = vpop.f32.mrb[0].mxu0
  %v4855 = vadd.f32 0.0, %v4854
  %v4856 = vpop.f32.mrb[0].mxu0
  %4857 = vmatprep.mubr.f32.mxu0 0.0
  %4858 = vmatmul.mubr.f32.gmra.mrb[0].mxu0 %v4760
  %v4859 = vpop.f32.mrb[0].mxu0
  %v4860 = vadd.f32 0.0, %v4859
  %v4861 = vpop.f32.mrb[0].mxu0
  %4862 = vmatprep.mubr.f32.mxu0 0.0
  %4863 = vmatmul.mubr.f32.gmra.mrb[0].mxu0 %v4763
  %v4864 = vpop.f32.mrb[0].mxu0
  %v4865 = vadd.f32 0.0, %v4864
  %v4866 = vpop.f32.mrb[0].mxu0
  %4867 = vmatprep.mubr.f32.mxu0 0.0
  %4868 = vmatmul.mubr.f32.gmra.mrb[0].mxu0 %v4766
  %v4869 = vpop.f32.mrb[0].mxu0
  %v4870 = vadd.f32 0.0, %v4869
  %v4871 = vpop.f32.mrb[0].mxu0
  %4872 = vdwg.mxu0
  %s4873 = scalar_lea.vmem %s7, 480
  %v4874 = vld [vmem:[%s4873] sm:$0xff]
  %v4875 = vld [vmem:[%s4873 + $0x8] sm:$0xff]
  %v4876 = vld [vmem:[%s4873 + $0x10] sm:$0xff]
  %v4877 = vld [vmem:[%s4873 + $0x18] sm:$0xff]
  %v4878 = vld [vmem:[%s4873 + $0x20] sm:$0xff]
  %v4879 = vld [vmem:[%s4873 + $0x28] sm:$0xff]
  %v4880 = vld [vmem:[%s4873 + $0x30] sm:$0xff]
  %v4881 = vld [vmem:[%s4873 + $0x38] sm:$0xff]
  %v4882 = vld [vmem:[%s4873 + $0x40] sm:$0xff]
  %v4883 = vld [vmem:[%s4873 + $0x48] sm:$0xff]
  %v4884 = vld [vmem:[%s4873 + $0x50] sm:$0xff]
  %v4885 = vld [vmem:[%s4873 + $0x58] sm:$0xff]
  %v4886 = vld [vmem:[%s4873 + $0x60] sm:$0xff]
  %v4887 = vld [vmem:[%s4873 + $0x68] sm:$0xff]
  %v4888 = vld [vmem:[%s4873 + $0x70] sm:$0xff]
  %v4889 = vld [vmem:[%s4873 + $0x78] sm:$0xff]
  %v4890 = vld [vmem:[%s4873 + $0x80] sm:$0xff]
  %v4891 = vld [vmem:[%s4873 + $0x88] sm:$0xff]
  %v4892 = vld [vmem:[%s4873 + $0x90] sm:$0xff]
  %v4893 = vld [vmem:[%s4873 + $0x98] sm:$0xff]
  %v4894 = vld [vmem:[%s4873 + $0xa0] sm:$0xff]
  %v4895 = vld [vmem:[%s4873 + $0xa8] sm:$0xff]
  %v4896 = vld [vmem:[%s4873 + $0xb0] sm:$0xff]
  %v4897 = vld [vmem:[%s4873 + $0xb8] sm:$0xff]
  %v4898 = vld [vmem:[%s4873 + $0xc0] sm:$0xff]
  %v4899 = vld [vmem:[%s4873 + $0xc8] sm:$0xff]
  %v4900 = vld [vmem:[%s4873 + $0xd0] sm:$0xff]
  %v4901 = vld [vmem:[%s4873 + $0xd8] sm:$0xff]
  %v4902 = vld [vmem:[%s4873 + $0xe0] sm:$0xff]
  %v4903 = vld [vmem:[%s4873 + $0xe8] sm:$0xff]
  %v4905 = vsel %vm4460, %v4835, 0
  %v4908 = vsel %vm4460, %v4840, 0
  %v4911 = vsel %vm4460, %v4845, 0
  %v4914 = vsel %vm4460, %v4850, 0
  %v4917 = vsel %vm4460, %v4855, 0
  %v4920 = vsel %vm4460, %v4860, 0
  %v4923 = vsel %vm4460, %v4865, 0
  %v4926 = vsel %vm4460, %v4870, 0
  %4928 = vmatprep.subr.mxu0 %v4875
  %4929 = vmatpush1.msra.mxu0 %v4874
  %4930 = vmatprep.subr.mxu0 %v4877
  %4931 = vmatpush1.msra.mxu0 %v4876
  %4932 = vmatprep.subr.mxu0 %v4879
  %4933 = vmatpush1.msra.mxu0 %v4878
  %4934 = vmatprep.subr.mxu0 %v4881
  %4935 = vmatpush1.msra.mxu0 %v4880
  %4936 = vmatprep.subr.mxu0 %v4883
  %4937 = vmatpush1.msra.mxu0 %v4882
  %4938 = vmatprep.subr.mxu0 %v4885
  %4939 = vmatpush1.msra.mxu0 %v4884
  %4940 = vmatprep.subr.mxu0 %v4887
  %4941 = vmatpush1.msra.mxu0 %v4886
  %4942 = vmatprep.subr.mxu0 %v4889
  %4943 = vmatpush1.msra.mxu0 %v4888
  %4944 = vmatprep.subr.mxu0 %v4891
  %4945 = vmatpush1.msra.mxu0 %v4890
  %4946 = vmatprep.subr.mxu0 %v4893
  %4947 = vmatpush1.msra.mxu0 %v4892
  %4948 = vmatprep.subr.mxu0 %v4895
  %4949 = vmatpush1.msra.mxu0 %v4894
  %4950 = vmatprep.subr.mxu0 %v4897
  %4951 = vmatpush1.msra.mxu0 %v4896
  %4952 = vmatprep.subr.mxu0 %v4899
  %4953 = vmatpush1.msra.mxu0 %v4898
  %4954 = vmatprep.subr.mxu0 %v4901
  %4955 = vmatpush1.msra.mxu0 %v4900
  %4956 = vmatprep.subr.mxu0 %v4903
  %4957 = vmatpush1.msra.mxu0 %v4902
  %4958 = vmatprep.subr.mxu0 0.0
  %4959 = vmatpush1.msra.mxu0 0.0
  %4960 = vmatprep.subr.mxu0 0.0
  %4961 = vmatpush1.msra.mxu0 0.0
  %4962 = vmatprep.subr.mxu0 0.0
  %4963 = vmatpush1.msra.mxu0 0.0
  %4964 = vmatprep.subr.mxu0 0.0
  %4965 = vmatpush1.msra.mxu0 0.0
  %4966 = vmatprep.subr.mxu0 0.0
  %4967 = vmatpush1.msra.mxu0 0.0
  %4968 = vmatprep.subr.mxu0 0.0
  %4969 = vmatpush1.msra.mxu0 0.0
  %4970 = vmatprep.subr.mxu0 0.0
  %4971 = vmatpush1.msra.mxu0 0.0
  %4972 = vmatprep.subr.mxu0 0.0
  %4973 = vmatpush1.msra.mxu0 0.0
  %4974 = vmatprep.subr.mxu0 0.0
  %4975 = vmatpush1.msra.mxu0 0.0
  %4976 = vmatprep.subr.mxu0 0.0
  %4977 = vmatpush1.msra.mxu0 0.0
  %4978 = vmatprep.subr.mxu0 0.0
  %4979 = vmatpush1.msra.mxu0 0.0
  %4980 = vmatprep.subr.mxu0 0.0
  %4981 = vmatpush1.msra.mxu0 0.0
  %4982 = vmatprep.subr.mxu0 0.0
  %4983 = vmatpush1.msra.mxu0 0.0
  %4984 = vmatprep.subr.mxu0 0.0
  %4985 = vmatpush1.msra.mxu0 0.0
  %4986 = vmatprep.subr.mxu0 0.0
  %4987 = vmatpush1.msra.mxu0 0.0
  %4988 = vmatprep.subr.mxu0 0.0
  %4989 = vmatpush1.msra.mxu0 0.0
  %4990 = vmatprep.subr.mxu0 0.0
  %4991 = vmatpush1.msra.mxu0 0.0
  %4992 = vmatprep.mubr.f32.mxu0 0.0
  %4993 = vmatmul.mubr.f32.gmra.mrb[0].mxu0 %v4905
  %v4994 = vpop.f32.mrb[0].mxu0
  %v4995 = vadd.f32 0.0, %v4994
  %v4996 = vpop.f32.mrb[0].mxu0
  %v4997 = vadd.f32 0.0, %v4996
  %4998 = vmatprep.mubr.f32.mxu0 0.0
  %4999 = vmatmul.mubr.f32.gmra.mrb[0].mxu0 %v4908
  %v5000 = vpop.f32.mrb[0].mxu0
  %v5001 = vadd.f32 0.0, %v5000
  %v5002 = vpop.f32.mrb[0].mxu0
  %v5003 = vadd.f32 0.0, %v5002
  %5004 = vmatprep.mubr.f32.mxu0 0.0
  %5005 = vmatmul.mubr.f32.gmra.mrb[0].mxu0 %v4911
  %v5006 = vpop.f32.mrb[0].mxu0
  %v5007 = vadd.f32 0.0, %v5006
  %v5008 = vpop.f32.mrb[0].mxu0
  %v5009 = vadd.f32 0.0, %v5008
  %5010 = vmatprep.mubr.f32.mxu0 0.0
  %5011 = vmatmul.mubr.f32.gmra.mrb[0].mxu0 %v4914
  %v5012 = vpop.f32.mrb[0].mxu0
  %v5013 = vadd.f32 0.0, %v5012
  %v5014 = vpop.f32.mrb[0].mxu0
  %v5015 = vadd.f32 0.0, %v5014
  %5016 = vmatprep.mubr.f32.mxu0 0.0
  %5017 = vmatmul.mubr.f32.gmra.mrb[0].mxu0 %v4917
  %v5018 = vpop.f32.mrb[0].mxu0
  %v5019 = vadd.f32 0.0, %v5018
  %v5020 = vpop.f32.mrb[0].mxu0
  %v5021 = vadd.f32 0.0, %v5020
  %5022 = vmatprep.mubr.f32.mxu0 0.0
  %5023 = vmatmul.mubr.f32.gmra.mrb[0].mxu0 %v4920
  %v5024 = vpop.f32.mrb[0].mxu0
  %v5025 = vadd.f32 0.0, %v5024
  %v5026 = vpop.f32.mrb[0].mxu0
  %v5027 = vadd.f32 0.0, %v5026
  %5028 = vmatprep.mubr.f32.mxu0 0.0
  %5029 = vmatmul.mubr.f32.gmra.mrb[0].mxu0 %v4923
  %v5030 = vpop.f32.mrb[0].mxu0
  %v5031 = vadd.f32 0.0, %v5030
  %v5032 = vpop.f32.mrb[0].mxu0
  %v5033 = vadd.f32 0.0, %v5032
  %5034 = vmatprep.mubr.f32.mxu0 0.0
  %5035 = vmatmul.mubr.f32.gmra.mrb[0].mxu0 %v4926
  %v5036 = vpop.f32.mrb[0].mxu0
  %v5037 = vadd.f32 0.0, %v5036
  %v5038 = vpop.f32.mrb[0].mxu0
  %v5039 = vadd.f32 0.0, %v5038
  %5040 = vdwg.mxu0
  %v5041 = vadd.f32 %v4689, %v4995
  %v5042 = vadd.f32 %v4691, %v4997
  %v5043 = vadd.f32 %v4695, %v5001
  %v5044 = vadd.f32 %v4697, %v5003
  %v5045 = vadd.f32 %v4701, %v5007
  %v5046 = vadd.f32 %v4703, %v5009
  %v5047 = vadd.f32 %v4707, %v5013
  %v5048 = vadd.f32 %v4709, %v5015
  %v5049 = vadd.f32 %v4713, %v5019
  %v5050 = vadd.f32 %v4715, %v5021
  %v5051 = vadd.f32 %v4719, %v5025
  %v5052 = vadd.f32 %v4721, %v5027
  %v5053 = vadd.f32 %v4725, %v5031
  %v5054 = vadd.f32 %v4727, %v5033
  %v5055 = vadd.f32 %v4731, %v5037
  %v5056 = vadd.f32 %v4733, %v5039
  %s5057 = scalar_lea.vmem %s6, 192
  %v5058 = vld [vmem:[%s5057] sm:$0xff]
  %v5059 = vld [vmem:[%s5057 + $0x8] sm:$0xff]
  %v5060 = vld [vmem:[%s5057 + $0x10] sm:$0xff]
  %v5061 = vld [vmem:[%s5057 + $0x18] sm:$0xff]
  %v5062 = vld [vmem:[%s5057 + $0x20] sm:$0xff]
  %v5063 = vld [vmem:[%s5057 + $0x28] sm:$0xff]
  %v5064 = vld [vmem:[%s5057 + $0x30] sm:$0xff]
  %v5065 = vld [vmem:[%s5057 + $0x38] sm:$0xff]
  %v5067 = vsel %vm129, %v5058, 0
  %v5070 = vsel %vm129, %v5059, 0
  %v5073 = vsel %vm129, %v5060, 0
  %v5076 = vsel %vm129, %v5061, 0
  %v5079 = vsel %vm129, %v5062, 0
  %v5082 = vsel %vm129, %v5063, 0
  %v5085 = vsel %vm129, %v5064, 0
  %v5088 = vsel %vm129, %v5065, 0
  %5090 = vmatprep.subr.mxu0 0.0
  %5091 = vmatpush1.msra.mxu0 %v4112
  %5092 = vmatprep.subr.mxu0 0.0
  %5093 = vmatpush1.msra.mxu0 %v4113
  %5094 = vmatprep.subr.mxu0 0.0
  %5095 = vmatpush1.msra.mxu0 %v4114
  %5096 = vmatprep.subr.mxu0 0.0
  %5097 = vmatpush1.msra.mxu0 %v4115
  %5098 = vmatprep.subr.mxu0 0.0
  %5099 = vmatpush1.msra.mxu0 %v4116
  %5100 = vmatprep.subr.mxu0 0.0
  %5101 = vmatpush1.msra.mxu0 %v4117
  %5102 = vmatprep.subr.mxu0 0.0
  %5103 = vmatpush1.msra.mxu0 %v4118
  %5104 = vmatprep.subr.mxu0 0.0
  %5105 = vmatpush1.msra.mxu0 %v4119
  %5106 = vmatprep.subr.mxu0 0.0
  %5107 = vmatpush1.msra.mxu0 %v4120
  %5108 = vmatprep.subr.mxu0 0.0
  %5109 = vmatpush1.msra.mxu0 %v4121
  %5110 = vmatprep.subr.mxu0 0.0
  %5111 = vmatpush1.msra.mxu0 %v4122
  %5112 = vmatprep.subr.mxu0 0.0
  %5113 = vmatpush1.msra.mxu0 %v4123
  %5114 = vmatprep.subr.mxu0 0.0
  %5115 = vmatpush1.msra.mxu0 0.0
  %5116 = vmatprep.subr.mxu0 0.0
  %5117 = vmatpush1.msra.mxu0 0.0
  %5118 = vmatprep.subr.mxu0 0.0
  %5119 = vmatpush1.msra.mxu0 0.0
  %5120 = vmatprep.subr.mxu0 0.0
  %5121 = vmatpush1.msra.mxu0 0.0
  %5122 = vmatprep.subr.mxu0 0.0
  %5123 = vmatpush1.msra.mxu0 0.0
  %5124 = vmatprep.subr.mxu0 0.0
  %5125 = vmatpush1.msra.mxu0 0.0
  %5126 = vmatprep.subr.mxu0 0.0
  %5127 = vmatpush1.msra.mxu0 0.0
  %5128 = vmatprep.subr.mxu0 0.0
  %5129 = vmatpush1.msra.mxu0 0.0
  %5130 = vmatprep.subr.mxu0 0.0
  %5131 = vmatpush1.msra.mxu0 0.0
  %5132 = vmatprep.subr.mxu0 0.0
  %5133 = vmatpush1.msra.mxu0 0.0
  %5134 = vmatprep.subr.mxu0 0.0
  %5135 = vmatpush1.msra.mxu0 0.0
  %5136 = vmatprep.subr.mxu0 0.0
  %5137 = vmatpush1.msra.mxu0 0.0
  %5138 = vmatprep.subr.mxu0 0.0
  %5139 = vmatpush1.msra.mxu0 0.0
  %5140 = vmatprep.subr.mxu0 0.0
  %5141 = vmatpush1.msra.mxu0 0.0
  %5142 = vmatprep.subr.mxu0 0.0
  %5143 = vmatpush1.msra.mxu0 0.0
  %5144 = vmatprep.subr.mxu0 0.0
  %5145 = vmatpush1.msra.mxu0 0.0
  %5146 = vmatprep.subr.mxu0 0.0
  %5147 = vmatpush1.msra.mxu0 0.0
  %5148 = vmatprep.subr.mxu0 0.0
  %5149 = vmatpush1.msra.mxu0 0.0
  %5150 = vmatprep.subr.mxu0 0.0
  %5151 = vmatpush1.msra.mxu0 0.0
  %5152 = vmatprep.subr.mxu0 0.0
  %5153 = vmatpush1.msra.mxu0 0.0
  %5154 = vmatprep.mubr.f32.mxu0 0.0
  %5155 = vmatmul.mubr.f32.gmra.mrb[0].mxu0 %v5067
  %v5156 = vpop.f32.mrb[0].mxu0
  %v5157 = vadd.f32 0.0, %v5156
  %v5158 = vpop.f32.mrb[0].mxu0
  %5159 = vmatprep.mubr.f32.mxu0 0.0
  %5160 = vmatmul.mubr.f32.gmra.mrb[0].mxu0 %v5070
  %v5161 = vpop.f32.mrb[0].mxu0
  %v5162 = vadd.f32 0.0, %v5161
  %v5163 = vpop.f32.mrb[0].mxu0
  %5164 = vmatprep.mubr.f32.mxu0 0.0
  %5165 = vmatmul.mubr.f32.gmra.mrb[0].mxu0 %v5073
  %v5166 = vpop.f32.mrb[0].mxu0
  %v5167 = vadd.f32 0.0, %v5166
  %v5168 = vpop.f32.mrb[0].mxu0
  %5169 = vmatprep.mubr.f32.mxu0 0.0
  %5170 = vmatmul.mubr.f32.gmra.mrb[0].mxu0 %v5076
  %v5171 = vpop.f32.mrb[0].mxu0
  %v5172 = vadd.f32 0.0, %v5171
  %v5173 = vpop.f32.mrb[0].mxu0
  %5174 = vmatprep.mubr.f32.mxu0 0.0
  %5175 = vmatmul.mubr.f32.gmra.mrb[0].mxu0 %v5079
  %v5176 = vpop.f32.mrb[0].mxu0
  %v5177 = vadd.f32 0.0, %v5176
  %v5178 = vpop.f32.mrb[0].mxu0
  %5179 = vmatprep.mubr.f32.mxu0 0.0
  %5180 = vmatmul.mubr.f32.gmra.mrb[0].mxu0 %v5082
  %v5181 = vpop.f32.mrb[0].mxu0
  %v5182 = vadd.f32 0.0, %v5181
  %v5183 = vpop.f32.mrb[0].mxu0
  %5184 = vmatprep.mubr.f32.mxu0 0.0
  %5185 = vmatmul.mubr.f32.gmra.mrb[0].mxu0 %v5085
  %v5186 = vpop.f32.mrb[0].mxu0
  %v5187 = vadd.f32 0.0, %v5186
  %v5188 = vpop.f32.mrb[0].mxu0
  %5189 = vmatprep.mubr.f32.mxu0 0.0
  %5190 = vmatmul.mubr.f32.gmra.mrb[0].mxu0 %v5088
  %v5191 = vpop.f32.mrb[0].mxu0
  %v5192 = vadd.f32 0.0, %v5191
  %v5193 = vpop.f32.mrb[0].mxu0
  %5194 = vdwg.mxu0
  %s5195 = scalar_lea.vmem %s7, 720
  %v5196 = vld [vmem:[%s5195] sm:$0xff]
  %v5197 = vld [vmem:[%s5195 + $0x8] sm:$0xff]
  %v5198 = vld [vmem:[%s5195 + $0x10] sm:$0xff]
  %v5199 = vld [vmem:[%s5195 + $0x18] sm:$0xff]
  %v5200 = vld [vmem:[%s5195 + $0x20] sm:$0xff]
  %v5201 = vld [vmem:[%s5195 + $0x28] sm:$0xff]
  %v5202 = vld [vmem:[%s5195 + $0x30] sm:$0xff]
  %v5203 = vld [vmem:[%s5195 + $0x38] sm:$0xff]
  %v5204 = vld [vmem:[%s5195 + $0x40] sm:$0xff]
  %v5205 = vld [vmem:[%s5195 + $0x48] sm:$0xff]
  %v5206 = vld [vmem:[%s5195 + $0x50] sm:$0xff]
  %v5207 = vld [vmem:[%s5195 + $0x58] sm:$0xff]
  %v5208 = vld [vmem:[%s5195 + $0x60] sm:$0xff]
  %v5209 = vld [vmem:[%s5195 + $0x68] sm:$0xff]
  %v5210 = vld [vmem:[%s5195 + $0x70] sm:$0xff]
  %v5211 = vld [vmem:[%s5195 + $0x78] sm:$0xff]
  %v5212 = vld [vmem:[%s5195 + $0x80] sm:$0xff]
  %v5213 = vld [vmem:[%s5195 + $0x88] sm:$0xff]
  %v5214 = vld [vmem:[%s5195 + $0x90] sm:$0xff]
  %v5215 = vld [vmem:[%s5195 + $0x98] sm:$0xff]
  %v5216 = vld [vmem:[%s5195 + $0xa0] sm:$0xff]
  %v5217 = vld [vmem:[%s5195 + $0xa8] sm:$0xff]
  %v5218 = vld [vmem:[%s5195 + $0xb0] sm:$0xff]
  %v5219 = vld [vmem:[%s5195 + $0xb8] sm:$0xff]
  %v5220 = vld [vmem:[%s5195 + $0xc0] sm:$0xff]
  %v5221 = vld [vmem:[%s5195 + $0xc8] sm:$0xff]
  %v5222 = vld [vmem:[%s5195 + $0xd0] sm:$0xff]
  %v5223 = vld [vmem:[%s5195 + $0xd8] sm:$0xff]
  %v5224 = vld [vmem:[%s5195 + $0xe0] sm:$0xff]
  %v5225 = vld [vmem:[%s5195 + $0xe8] sm:$0xff]
  %v5227 = vsel %vm4460, %v5157, 0
  %v5230 = vsel %vm4460, %v5162, 0
  %v5233 = vsel %vm4460, %v5167, 0
  %v5236 = vsel %vm4460, %v5172, 0
  %v5239 = vsel %vm4460, %v5177, 0
  %v5242 = vsel %vm4460, %v5182, 0
  %v5245 = vsel %vm4460, %v5187, 0
  %v5248 = vsel %vm4460, %v5192, 0
  %5250 = vmatprep.subr.mxu0 %v5197
  %5251 = vmatpush1.msra.mxu0 %v5196
  %5252 = vmatprep.subr.mxu0 %v5199
  %5253 = vmatpush1.msra.mxu0 %v5198
  %5254 = vmatprep.subr.mxu0 %v5201
  %5255 = vmatpush1.msra.mxu0 %v5200
  %5256 = vmatprep.subr.mxu0 %v5203
  %5257 = vmatpush1.msra.mxu0 %v5202
  %5258 = vmatprep.subr.mxu0 %v5205
  %5259 = vmatpush1.msra.mxu0 %v5204
  %5260 = vmatprep.subr.mxu0 %v5207
  %5261 = vmatpush1.msra.mxu0 %v5206
  %5262 = vmatprep.subr.mxu0 %v5209
  %5263 = vmatpush1.msra.mxu0 %v5208
  %5264 = vmatprep.subr.mxu0 %v5211
  %5265 = vmatpush1.msra.mxu0 %v5210
  %5266 = vmatprep.subr.mxu0 %v5213
  %5267 = vmatpush1.msra.mxu0 %v5212
  %5268 = vmatprep.subr.mxu0 %v5215
  %5269 = vmatpush1.msra.mxu0 %v5214
  %5270 = vmatprep.subr.mxu0 %v5217
  %5271 = vmatpush1.msra.mxu0 %v5216
  %5272 = vmatprep.subr.mxu0 %v5219
  %5273 = vmatpush1.msra.mxu0 %v5218
  %5274 = vmatprep.subr.mxu0 %v5221
  %5275 = vmatpush1.msra.mxu0 %v5220
  %5276 = vmatprep.subr.mxu0 %v5223
  %5277 = vmatpush1.msra.mxu0 %v5222
  %5278 = vmatprep.subr.mxu0 %v5225
  %5279 = vmatpush1.msra.mxu0 %v5224
  %5280 = vmatprep.subr.mxu0 0.0
  %5281 = vmatpush1.msra.mxu0 0.0
  %5282 = vmatprep.subr.mxu0 0.0
  %5283 = vmatpush1.msra.mxu0 0.0
  %5284 = vmatprep.subr.mxu0 0.0
  %5285 = vmatpush1.msra.mxu0 0.0
  %5286 = vmatprep.subr.mxu0 0.0
  %5287 = vmatpush1.msra.mxu0 0.0
  %5288 = vmatprep.subr.mxu0 0.0
  %5289 = vmatpush1.msra.mxu0 0.0
  %5290 = vmatprep.subr.mxu0 0.0
  %5291 = vmatpush1.msra.mxu0 0.0
  %5292 = vmatprep.subr.mxu0 0.0
  %5293 = vmatpush1.msra.mxu0 0.0
  %5294 = vmatprep.subr.mxu0 0.0
  %5295 = vmatpush1.msra.mxu0 0.0
  %5296 = vmatprep.subr.mxu0 0.0
  %5297 = vmatpush1.msra.mxu0 0.0
  %5298 = vmatprep.subr.mxu0 0.0
  %5299 = vmatpush1.msra.mxu0 0.0
  %5300 = vmatprep.subr.mxu0 0.0
  %5301 = vmatpush1.msra.mxu0 0.0
  %5302 = vmatprep.subr.mxu0 0.0
  %5303 = vmatpush1.msra.mxu0 0.0
  %5304 = vmatprep.subr.mxu0 0.0
  %5305 = vmatpush1.msra.mxu0 0.0
  %5306 = vmatprep.subr.mxu0 0.0
  %5307 = vmatpush1.msra.mxu0 0.0
  %5308 = vmatprep.subr.mxu0 0.0
  %5309 = vmatpush1.msra.mxu0 0.0
  %5310 = vmatprep.subr.mxu0 0.0
  %5311 = vmatpush1.msra.mxu0 0.0
  %5312 = vmatprep.subr.mxu0 0.0
  %5313 = vmatpush1.msra.mxu0 0.0
  %5314 = vmatprep.mubr.f32.mxu0 0.0
  %5315 = vmatmul.mubr.f32.gmra.mrb[0].mxu0 %v5227
  %v5316 = vpop.f32.mrb[0].mxu0
  %v5317 = vadd.f32 0.0, %v5316
  %v5318 = vpop.f32.mrb[0].mxu0
  %v5319 = vadd.f32 0.0, %v5318
  %5320 = vmatprep.mubr.f32.mxu0 0.0
  %5321 = vmatmul.mubr.f32.gmra.mrb[0].mxu0 %v5230
  %v5322 = vpop.f32.mrb[0].mxu0
  %v5323 = vadd.f32 0.0, %v5322
  %v5324 = vpop.f32.mrb[0].mxu0
  %v5325 = vadd.f32 0.0, %v5324
  %5326 = vmatprep.mubr.f32.mxu0 0.0
  %5327 = vmatmul.mubr.f32.gmra.mrb[0].mxu0 %v5233
  %v5328 = vpop.f32.mrb[0].mxu0
  %v5329 = vadd.f32 0.0, %v5328
  %v5330 = vpop.f32.mrb[0].mxu0
  %v5331 = vadd.f32 0.0, %v5330
  %5332 = vmatprep.mubr.f32.mxu0 0.0
  %5333 = vmatmul.mubr.f32.gmra.mrb[0].mxu0 %v5236
  %v5334 = vpop.f32.mrb[0].mxu0
  %v5335 = vadd.f32 0.0, %v5334
  %v5336 = vpop.f32.mrb[0].mxu0
  %v5337 = vadd.f32 0.0, %v5336
  %5338 = vmatprep.mubr.f32.mxu0 0.0
  %5339 = vmatmul.mubr.f32.gmra.mrb[0].mxu0 %v5239
  %v5340 = vpop.f32.mrb[0].mxu0
  %v5341 = vadd.f32 0.0, %v5340
  %v5342 = vpop.f32.mrb[0].mxu0
  %v5343 = vadd.f32 0.0, %v5342
  %5344 = vmatprep.mubr.f32.mxu0 0.0
  %5345 = vmatmul.mubr.f32.gmra.mrb[0].mxu0 %v5242
  %v5346 = vpop.f32.mrb[0].mxu0
  %v5347 = vadd.f32 0.0, %v5346
  %v5348 = vpop.f32.mrb[0].mxu0
  %v5349 = vadd.f32 0.0, %v5348
  %5350 = vmatprep.mubr.f32.mxu0 0.0
  %5351 = vmatmul.mubr.f32.gmra.mrb[0].mxu0 %v5245
  %v5352 = vpop.f32.mrb[0].mxu0
  %v5353 = vadd.f32 0.0, %v5352
  %v5354 = vpop.f32.mrb[0].mxu0
  %v5355 = vadd.f32 0.0, %v5354
  %5356 = vmatprep.mubr.f32.mxu0 0.0
  %5357 = vmatmul.mubr.f32.gmra.mrb[0].mxu0 %v5248
  %v5358 = vpop.f32.mrb[0].mxu0
  %v5359 = vadd.f32 0.0, %v5358
  %v5360 = vpop.f32.mrb[0].mxu0
  %v5361 = vadd.f32 0.0, %v5360
  %5362 = vdwg.mxu0
  %v5363 = vadd.f32 %v5041, %v5317
  %v5364 = vadd.f32 %v5042, %v5319
  %v5365 = vadd.f32 %v5043, %v5323
  %v5366 = vadd.f32 %v5044, %v5325
  %v5367 = vadd.f32 %v5045, %v5329
  %v5368 = vadd.f32 %v5046, %v5331
  %v5369 = vadd.f32 %v5047, %v5335
  %v5370 = vadd.f32 %v5048, %v5337
  %v5371 = vadd.f32 %v5049, %v5341
  %v5372 = vadd.f32 %v5050, %v5343
  %v5373 = vadd.f32 %v5051, %v5347
  %v5374 = vadd.f32 %v5052, %v5349
  %v5375 = vadd.f32 %v5053, %v5353
  %v5376 = vadd.f32 %v5054, %v5355
  %v5377 = vadd.f32 %v5055, %v5359
  %v5378 = vadd.f32 %v5056, %v5361
  %s5379 = scalar_lea.vmem %s6, 256
  %v5380 = vld [vmem:[%s5379] sm:$0xff]
  %v5381 = vld [vmem:[%s5379 + $0x8] sm:$0xff]
  %v5382 = vld [vmem:[%s5379 + $0x10] sm:$0xff]
  %v5383 = vld [vmem:[%s5379 + $0x18] sm:$0xff]
  %v5384 = vld [vmem:[%s5379 + $0x20] sm:$0xff]
  %v5385 = vld [vmem:[%s5379 + $0x28] sm:$0xff]
  %v5386 = vld [vmem:[%s5379 + $0x30] sm:$0xff]
  %v5387 = vld [vmem:[%s5379 + $0x38] sm:$0xff]
  %v5389 = vsel %vm129, %v5380, 0
  %v5392 = vsel %vm129, %v5381, 0
  %v5395 = vsel %vm129, %v5382, 0
  %v5398 = vsel %vm129, %v5383, 0
  %v5401 = vsel %vm129, %v5384, 0
  %v5404 = vsel %vm129, %v5385, 0
  %v5407 = vsel %vm129, %v5386, 0
  %v5410 = vsel %vm129, %v5387, 0
  %5412 = vmatprep.subr.mxu0 0.0
  %5413 = vmatpush1.msra.mxu0 %v4112
  %5414 = vmatprep.subr.mxu0 0.0
  %5415 = vmatpush1.msra.mxu0 %v4113
  %5416 = vmatprep.subr.mxu0 0.0
  %5417 = vmatpush1.msra.mxu0 %v4114
  %5418 = vmatprep.subr.mxu0 0.0
  %5419 = vmatpush1.msra.mxu0 %v4115
  %5420 = vmatprep.subr.mxu0 0.0
  %5421 = vmatpush1.msra.mxu0 %v4116
  %5422 = vmatprep.subr.mxu0 0.0
  %5423 = vmatpush1.msra.mxu0 %v4117
  %5424 = vmatprep.subr.mxu0 0.0
  %5425 = vmatpush1.msra.mxu0 %v4118
  %5426 = vmatprep.subr.mxu0 0.0
  %5427 = vmatpush1.msra.mxu0 %v4119
  %5428 = vmatprep.subr.mxu0 0.0
  %5429 = vmatpush1.msra.mxu0 %v4120
  %5430 = vmatprep.subr.mxu0 0.0
  %5431 = vmatpush1.msra.mxu0 %v4121
  %5432 = vmatprep.subr.mxu0 0.0
  %5433 = vmatpush1.msra.mxu0 %v4122
  %5434 = vmatprep.subr.mxu0 0.0
  %5435 = vmatpush1.msra.mxu0 %v4123
  %5436 = vmatprep.subr.mxu0 0.0
  %5437 = vmatpush1.msra.mxu0 0.0
  %5438 = vmatprep.subr.mxu0 0.0
  %5439 = vmatpush1.msra.mxu0 0.0
  %5440 = vmatprep.subr.mxu0 0.0
  %5441 = vmatpush1.msra.mxu0 0.0
  %5442 = vmatprep.subr.mxu0 0.0
  %5443 = vmatpush1.msra.mxu0 0.0
  %5444 = vmatprep.subr.mxu0 0.0
  %5445 = vmatpush1.msra.mxu0 0.0
  %5446 = vmatprep.subr.mxu0 0.0
  %5447 = vmatpush1.msra.mxu0 0.0
  %5448 = vmatprep.subr.mxu0 0.0
  %5449 = vmatpush1.msra.mxu0 0.0
  %5450 = vmatprep.subr.mxu0 0.0
  %5451 = vmatpush1.msra.mxu0 0.0
  %5452 = vmatprep.subr.mxu0 0.0
  %5453 = vmatpush1.msra.mxu0 0.0
  %5454 = vmatprep.subr.mxu0 0.0
  %5455 = vmatpush1.msra.mxu0 0.0
  %5456 = vmatprep.subr.mxu0 0.0
  %5457 = vmatpush1.msra.mxu0 0.0
  %5458 = vmatprep.subr.mxu0 0.0
  %5459 = vmatpush1.msra.mxu0 0.0
  %5460 = vmatprep.subr.mxu0 0.0
  %5461 = vmatpush1.msra.mxu0 0.0
  %5462 = vmatprep.subr.mxu0 0.0
  %5463 = vmatpush1.msra.mxu0 0.0
  %5464 = vmatprep.subr.mxu0 0.0
  %5465 = vmatpush1.msra.mxu0 0.0
  %5466 = vmatprep.subr.mxu0 0.0
  %5467 = vmatpush1.msra.mxu0 0.0
  %5468 = vmatprep.subr.mxu0 0.0
  %5469 = vmatpush1.msra.mxu0 0.0
  %5470 = vmatprep.subr.mxu0 0.0
  %5471 = vmatpush1.msra.mxu0 0.0
  %5472 = vmatprep.subr.mxu0 0.0
  %5473 = vmatpush1.msra.mxu0 0.0
  %5474 = vmatprep.subr.mxu0 0.0
  %5475 = vmatpush1.msra.mxu0 0.0
  %5476 = vmatprep.mubr.f32.mxu0 0.0
  %5477 = vmatmul.mubr.f32.gmra.mrb[0].mxu0 %v5389
  %v5478 = vpop.f32.mrb[0].mxu0
  %v5479 = vadd.f32 0.0, %v5478
  %v5480 = vpop.f32.mrb[0].mxu0
  %5481 = vmatprep.mubr.f32.mxu0 0.0
  %5482 = vmatmul.mubr.f32.gmra.mrb[0].mxu0 %v5392
  %v5483 = vpop.f32.mrb[0].mxu0
  %v5484 = vadd.f32 0.0, %v5483
  %v5485 = vpop.f32.mrb[0].mxu0
  %5486 = vmatprep.mubr.f32.mxu0 0.0
  %5487 = vmatmul.mubr.f32.gmra.mrb[0].mxu0 %v5395
  %v5488 = vpop.f32.mrb[0].mxu0
  %v5489 = vadd.f32 0.0, %v5488
  %v5490 = vpop.f32.mrb[0].mxu0
  %5491 = vmatprep.mubr.f32.mxu0 0.0
  %5492 = vmatmul.mubr.f32.gmra.mrb[0].mxu0 %v5398
  %v5493 = vpop.f32.mrb[0].mxu0
  %v5494 = vadd.f32 0.0, %v5493
  %v5495 = vpop.f32.mrb[0].mxu0
  %5496 = vmatprep.mubr.f32.mxu0 0.0
  %5497 = vmatmul.mubr.f32.gmra.mrb[0].mxu0 %v5401
  %v5498 = vpop.f32.mrb[0].mxu0
  %v5499 = vadd.f32 0.0, %v5498
  %v5500 = vpop.f32.mrb[0].mxu0
  %5501 = vmatprep.mubr.f32.mxu0 0.0
  %5502 = vmatmul.mubr.f32.gmra.mrb[0].mxu0 %v5404
  %v5503 = vpop.f32.mrb[0].mxu0
  %v5504 = vadd.f32 0.0, %v5503
  %v5505 = vpop.f32.mrb[0].mxu0
  %5506 = vmatprep.mubr.f32.mxu0 0.0
  %5507 = vmatmul.mubr.f32.gmra.mrb[0].mxu0 %v5407
  %v5508 = vpop.f32.mrb[0].mxu0
  %v5509 = vadd.f32 0.0, %v5508
  %v5510 = vpop.f32.mrb[0].mxu0
  %5511 = vmatprep.mubr.f32.mxu0 0.0
  %5512 = vmatmul.mubr.f32.gmra.mrb[0].mxu0 %v5410
  %v5513 = vpop.f32.mrb[0].mxu0
  %v5514 = vadd.f32 0.0, %v5513
  %v5515 = vpop.f32.mrb[0].mxu0
  %5516 = vdwg.mxu0
  %s5517 = scalar_lea.vmem %s7, 960
  %v5518 = vld [vmem:[%s5517] sm:$0xff]
  %v5519 = vld [vmem:[%s5517 + $0x8] sm:$0xff]
  %v5520 = vld [vmem:[%s5517 + $0x10] sm:$0xff]
  %v5521 = vld [vmem:[%s5517 + $0x18] sm:$0xff]
  %v5522 = vld [vmem:[%s5517 + $0x20] sm:$0xff]
  %v5523 = vld [vmem:[%s5517 + $0x28] sm:$0xff]
  %v5524 = vld [vmem:[%s5517 + $0x30] sm:$0xff]
  %v5525 = vld [vmem:[%s5517 + $0x38] sm:$0xff]
  %v5526 = vld [vmem:[%s5517 + $0x40] sm:$0xff]
  %v5527 = vld [vmem:[%s5517 + $0x48] sm:$0xff]
  %v5528 = vld [vmem:[%s5517 + $0x50] sm:$0xff]
  %v5529 = vld [vmem:[%s5517 + $0x58] sm:$0xff]
  %v5530 = vld [vmem:[%s5517 + $0x60] sm:$0xff]
  %v5531 = vld [vmem:[%s5517 + $0x68] sm:$0xff]
  %v5532 = vld [vmem:[%s5517 + $0x70] sm:$0xff]
  %v5533 = vld [vmem:[%s5517 + $0x78] sm:$0xff]
  %v5534 = vld [vmem:[%s5517 + $0x80] sm:$0xff]
  %v5535 = vld [vmem:[%s5517 + $0x88] sm:$0xff]
  %v5536 = vld [vmem:[%s5517 + $0x90] sm:$0xff]
  %v5537 = vld [vmem:[%s5517 + $0x98] sm:$0xff]
  %v5538 = vld [vmem:[%s5517 + $0xa0] sm:$0xff]
  %v5539 = vld [vmem:[%s5517 + $0xa8] sm:$0xff]
  %v5540 = vld [vmem:[%s5517 + $0xb0] sm:$0xff]
  %v5541 = vld [vmem:[%s5517 + $0xb8] sm:$0xff]
  %v5542 = vld [vmem:[%s5517 + $0xc0] sm:$0xff]
  %v5543 = vld [vmem:[%s5517 + $0xc8] sm:$0xff]
  %v5544 = vld [vmem:[%s5517 + $0xd0] sm:$0xff]
  %v5545 = vld [vmem:[%s5517 + $0xd8] sm:$0xff]
  %v5546 = vld [vmem:[%s5517 + $0xe0] sm:$0xff]
  %v5547 = vld [vmem:[%s5517 + $0xe8] sm:$0xff]
  %v5549 = vsel %vm4460, %v5479, 0
  %v5552 = vsel %vm4460, %v5484, 0
  %v5555 = vsel %vm4460, %v5489, 0
  %v5558 = vsel %vm4460, %v5494, 0
  %v5561 = vsel %vm4460, %v5499, 0
  %v5564 = vsel %vm4460, %v5504, 0
  %v5567 = vsel %vm4460, %v5509, 0
  %v5570 = vsel %vm4460, %v5514, 0
  %5572 = vmatprep.subr.mxu0 %v5519
  %5573 = vmatpush1.msra.mxu0 %v5518
  %5574 = vmatprep.subr.mxu0 %v5521
  %5575 = vmatpush1.msra.mxu0 %v5520
  %5576 = vmatprep.subr.mxu0 %v5523
  %5577 = vmatpush1.msra.mxu0 %v5522
  %5578 = vmatprep.subr.mxu0 %v5525
  %5579 = vmatpush1.msra.mxu0 %v5524
  %5580 = vmatprep.subr.mxu0 %v5527
  %5581 = vmatpush1.msra.mxu0 %v5526
  %5582 = vmatprep.subr.mxu0 %v5529
  %5583 = vmatpush1.msra.mxu0 %v5528
  %5584 = vmatprep.subr.mxu0 %v5531
  %5585 = vmatpush1.msra.mxu0 %v5530
  %5586 = vmatprep.subr.mxu0 %v5533
  %5587 = vmatpush1.msra.mxu0 %v5532
  %5588 = vmatprep.subr.mxu0 %v5535
  %5589 = vmatpush1.msra.mxu0 %v5534
  %5590 = vmatprep.subr.mxu0 %v5537
  %5591 = vmatpush1.msra.mxu0 %v5536
  %5592 = vmatprep.subr.mxu0 %v5539
  %5593 = vmatpush1.msra.mxu0 %v5538
  %5594 = vmatprep.subr.mxu0 %v5541
  %5595 = vmatpush1.msra.mxu0 %v5540
  %5596 = vmatprep.subr.mxu0 %v5543
  %5597 = vmatpush1.msra.mxu0 %v5542
  %5598 = vmatprep.subr.mxu0 %v5545
  %5599 = vmatpush1.msra.mxu0 %v5544
  %5600 = vmatprep.subr.mxu0 %v5547
  %5601 = vmatpush1.msra.mxu0 %v5546
  %5602 = vmatprep.subr.mxu0 0.0
  %5603 = vmatpush1.msra.mxu0 0.0
  %5604 = vmatprep.subr.mxu0 0.0
  %5605 = vmatpush1.msra.mxu0 0.0
  %5606 = vmatprep.subr.mxu0 0.0
  %5607 = vmatpush1.msra.mxu0 0.0
  %5608 = vmatprep.subr.mxu0 0.0
  %5609 = vmatpush1.msra.mxu0 0.0
  %5610 = vmatprep.subr.mxu0 0.0
  %5611 = vmatpush1.msra.mxu0 0.0
  %5612 = vmatprep.subr.mxu0 0.0
  %5613 = vmatpush1.msra.mxu0 0.0
  %5614 = vmatprep.subr.mxu0 0.0
  %5615 = vmatpush1.msra.mxu0 0.0
  %5616 = vmatprep.subr.mxu0 0.0
  %5617 = vmatpush1.msra.mxu0 0.0
  %5618 = vmatprep.subr.mxu0 0.0
  %5619 = vmatpush1.msra.mxu0 0.0
  %5620 = vmatprep.subr.mxu0 0.0
  %5621 = vmatpush1.msra.mxu0 0.0
  %5622 = vmatprep.subr.mxu0 0.0
  %5623 = vmatpush1.msra.mxu0 0.0
  %5624 = vmatprep.subr.mxu0 0.0
  %5625 = vmatpush1.msra.mxu0 0.0
  %5626 = vmatprep.subr.mxu0 0.0
  %5627 = vmatpush1.msra.mxu0 0.0
  %5628 = vmatprep.subr.mxu0 0.0
  %5629 = vmatpush1.msra.mxu0 0.0
  %5630 = vmatprep.subr.mxu0 0.0
  %5631 = vmatpush1.msra.mxu0 0.0
  %5632 = vmatprep.subr.mxu0 0.0
  %5633 = vmatpush1.msra.mxu0 0.0
  %5634 = vmatprep.subr.mxu0 0.0
  %5635 = vmatpush1.msra.mxu0 0.0
  %5636 = vmatprep.mubr.f32.mxu0 0.0
  %5637 = vmatmul.mubr.f32.gmra.mrb[0].mxu0 %v5549
  %v5638 = vpop.f32.mrb[0].mxu0
  %v5639 = vadd.f32 0.0, %v5638
  %v5640 = vpop.f32.mrb[0].mxu0
  %v5641 = vadd.f32 0.0, %v5640
  %5642 = vmatprep.mubr.f32.mxu0 0.0
  %5643 = vmatmul.mubr.f32.gmra.mrb[0].mxu0 %v5552
  %v5644 = vpop.f32.mrb[0].mxu0
  %v5645 = vadd.f32 0.0, %v5644
  %v5646 = vpop.f32.mrb[0].mxu0
  %v5647 = vadd.f32 0.0, %v5646
  %5648 = vmatprep.mubr.f32.mxu0 0.0
  %5649 = vmatmul.mubr.f32.gmra.mrb[0].mxu0 %v5555
  %v5650 = vpop.f32.mrb[0].mxu0
  %v5651 = vadd.f32 0.0, %v5650
  %v5652 = vpop.f32.mrb[0].mxu0
  %v5653 = vadd.f32 0.0, %v5652
  %5654 = vmatprep.mubr.f32.mxu0 0.0
  %5655 = vmatmul.mubr.f32.gmra.mrb[0].mxu0 %v5558
  %v5656 = vpop.f32.mrb[0].mxu0
  %v5657 = vadd.f32 0.0, %v5656
  %v5658 = vpop.f32.mrb[0].mxu0
  %v5659 = vadd.f32 0.0, %v5658
  %5660 = vmatprep.mubr.f32.mxu0 0.0
  %5661 = vmatmul.mubr.f32.gmra.mrb[0].mxu0 %v5561
  %v5662 = vpop.f32.mrb[0].mxu0
  %v5663 = vadd.f32 0.0, %v5662
  %v5664 = vpop.f32.mrb[0].mxu0
  %v5665 = vadd.f32 0.0, %v5664
  %5666 = vmatprep.mubr.f32.mxu0 0.0
  %5667 = vmatmul.mubr.f32.gmra.mrb[0].mxu0 %v5564
  %v5668 = vpop.f32.mrb[0].mxu0
  %v5669 = vadd.f32 0.0, %v5668
  %v5670 = vpop.f32.mrb[0].mxu0
  %v5671 = vadd.f32 0.0, %v5670
  %5672 = vmatprep.mubr.f32.mxu0 0.0
  %5673 = vmatmul.mubr.f32.gmra.mrb[0].mxu0 %v5567
  %v5674 = vpop.f32.mrb[0].mxu0
  %v5675 = vadd.f32 0.0, %v5674
  %v5676 = vpop.f32.mrb[0].mxu0
  %v5677 = vadd.f32 0.0, %v5676
  %5678 = vmatprep.mubr.f32.mxu0 0.0
  %5679 = vmatmul.mubr.f32.gmra.mrb[0].mxu0 %v5570
  %v5680 = vpop.f32.mrb[0].mxu0
  %v5681 = vadd.f32 0.0, %v5680
  %v5682 = vpop.f32.mrb[0].mxu0
  %v5683 = vadd.f32 0.0, %v5682
  %5684 = vdwg.mxu0
  %v5685 = vadd.f32 %v5363, %v5639
  %v5686 = vadd.f32 %v5364, %v5641
  %v5687 = vadd.f32 %v5365, %v5645
  %v5688 = vadd.f32 %v5366, %v5647
  %v5689 = vadd.f32 %v5367, %v5651
  %v5690 = vadd.f32 %v5368, %v5653
  %v5691 = vadd.f32 %v5369, %v5657
  %v5692 = vadd.f32 %v5370, %v5659
  %v5693 = vadd.f32 %v5371, %v5663
  %v5694 = vadd.f32 %v5372, %v5665
  %v5695 = vadd.f32 %v5373, %v5669
  %v5696 = vadd.f32 %v5374, %v5671
  %v5697 = vadd.f32 %v5375, %v5675
  %v5698 = vadd.f32 %v5376, %v5677
  %v5699 = vadd.f32 %v5377, %v5681
  %v5700 = vadd.f32 %v5378, %v5683
  %v5701 = vld [vmem:[%s8] sm:$0x3]
  %v5703 = vlaneseq
  %v5704 = vshrl.u32 %v5703, 7
  %v5705 = vsub.s32 0, %v5704
  %v5706 = vrot.slane %v5701, %v5705
  %v5707 = vlaneseq
  %v5708 = vshrl.u32 %v5707, 7
  %v5709 = vsub.s32 1, %v5708
  %v5710 = vrot.slane %v5701, %v5709
  %v5713 = vadd.f32 %v5685, %v5706
  %v5714 = vadd.f32 %v5686, %v5710
  %v5715 = vadd.f32 %v5687, %v5706
  %v5716 = vadd.f32 %v5688, %v5710
  %v5717 = vadd.f32 %v5689, %v5706
  %v5718 = vadd.f32 %v5690, %v5710
  %v5719 = vadd.f32 %v5691, %v5706
  %v5720 = vadd.f32 %v5692, %v5710
  %v5721 = vadd.f32 %v5693, %v5706
  %v5722 = vadd.f32 %v5694, %v5710
  %v5723 = vadd.f32 %v5695, %v5706
  %v5724 = vadd.f32 %v5696, %v5710
  %v5725 = vadd.f32 %v5697, %v5706
  %v5726 = vadd.f32 %v5698, %v5710
  %v5727 = vadd.f32 %v5699, %v5706
  %v5728 = vadd.f32 %v5700, %v5710
  %v5729 = vmax.f32 %v5713, 0.0
  %v5730 = vmax.f32 %v5714, 0.0
  %v5731 = vmax.f32 %v5715, 0.0
  %v5732 = vmax.f32 %v5716, 0.0
  %v5733 = vmax.f32 %v5717, 0.0
  %v5734 = vmax.f32 %v5718, 0.0
  %v5735 = vmax.f32 %v5719, 0.0
  %v5736 = vmax.f32 %v5720, 0.0
  %v5737 = vmax.f32 %v5721, 0.0
  %v5738 = vmax.f32 %v5722, 0.0
  %v5739 = vmax.f32 %v5723, 0.0
  %v5740 = vmax.f32 %v5724, 0.0
  %v5741 = vmax.f32 %v5725, 0.0
  %v5742 = vmax.f32 %v5726, 0.0
  %v5743 = vmax.f32 %v5727, 0.0
  %v5744 = vmax.f32 %v5728, 0.0
  %v5745 = vld [vmem:[%s9] sm:$0xff]
  %v5746 = vld [vmem:[%s9 + $0x8] sm:$0xff]
  %v5747 = vld [vmem:[%s9 + $0x10] sm:$0xff]
  %v5748 = vld [vmem:[%s9 + $0x18] sm:$0xff]
  %v5750 = vsel %vm3368, %v5745, 0
  %v5753 = vsel %vm3368, %v5746, 0
  %v5756 = vsel %vm3368, %v5747, 0
  %v5759 = vsel %vm3368, %v5748, 0
  %5761 = vmatprep.subr.mxu0 %v5730
  %5762 = vmatpush1.msra.mxu0 %v5729
  %5763 = vmatprep.subr.mxu0 %v5732
  %5764 = vmatpush1.msra.mxu0 %v5731
  %5765 = vmatprep.subr.mxu0 %v5734
  %5766 = vmatpush1.msra.mxu0 %v5733
  %5767 = vmatprep.subr.mxu0 %v5736
  %5768 = vmatpush1.msra.mxu0 %v5735
  %5769 = vmatprep.subr.mxu0 %v5738
  %5770 = vmatpush1.msra.mxu0 %v5737
  %5771 = vmatprep.subr.mxu0 %v5740
  %5772 = vmatpush1.msra.mxu0 %v5739
  %5773 = vmatprep.subr.mxu0 %v5742
  %5774 = vmatpush1.msra.mxu0 %v5741
  %5775 = vmatprep.subr.mxu0 %v5744
  %5776 = vmatpush1.msra.mxu0 %v5743
  %5777 = vmatprep.subr.mxu0 0.0
  %5778 = vmatpush1.msra.mxu0 0.0
  %5779 = vmatprep.subr.mxu0 0.0
  %5780 = vmatpush1.msra.mxu0 0.0
  %5781 = vmatprep.subr.mxu0 0.0
  %5782 = vmatpush1.msra.mxu0 0.0
  %5783 = vmatprep.subr.mxu0 0.0
  %5784 = vmatpush1.msra.mxu0 0.0
  %5785 = vmatprep.subr.mxu0 0.0
  %5786 = vmatpush1.msra.mxu0 0.0
  %5787 = vmatprep.subr.mxu0 0.0
  %5788 = vmatpush1.msra.mxu0 0.0
  %5789 = vmatprep.subr.mxu0 0.0
  %5790 = vmatpush1.msra.mxu0 0.0
  %5791 = vmatprep.subr.mxu0 0.0
  %5792 = vmatpush1.msra.mxu0 0.0
  %5793 = vmatprep.subr.mxu0 0.0
  %5794 = vmatpush1.msra.mxu0 0.0
  %5795 = vmatprep.subr.mxu0 0.0
  %5796 = vmatpush1.msra.mxu0 0.0
  %5797 = vmatprep.subr.mxu0 0.0
  %5798 = vmatpush1.msra.mxu0 0.0
  %5799 = vmatprep.subr.mxu0 0.0
  %5800 = vmatpush1.msra.mxu0 0.0
  %5801 = vmatprep.subr.mxu0 0.0
  %5802 = vmatpush1.msra.mxu0 0.0
  %5803 = vmatprep.subr.mxu0 0.0
  %5804 = vmatpush1.msra.mxu0 0.0
  %5805 = vmatprep.subr.mxu0 0.0
  %5806 = vmatpush1.msra.mxu0 0.0
  %5807 = vmatprep.subr.mxu0 0.0
  %5808 = vmatpush1.msra.mxu0 0.0
  %5809 = vmatprep.subr.mxu0 0.0
  %5810 = vmatpush1.msra.mxu0 0.0
  %5811 = vmatprep.subr.mxu0 0.0
  %5812 = vmatpush1.msra.mxu0 0.0
  %5813 = vmatprep.subr.mxu0 0.0
  %5814 = vmatpush1.msra.mxu0 0.0
  %5815 = vmatprep.subr.mxu0 0.0
  %5816 = vmatpush1.msra.mxu0 0.0
  %5817 = vmatprep.subr.mxu0 0.0
  %5818 = vmatpush1.msra.mxu0 0.0
  %5819 = vmatprep.subr.mxu0 0.0
  %5820 = vmatpush1.msra.mxu0 0.0
  %5821 = vmatprep.subr.mxu0 0.0
  %5822 = vmatpush1.msra.mxu0 0.0
  %5823 = vmatprep.subr.mxu0 0.0
  %5824 = vmatpush1.msra.mxu0 0.0
  %5825 = vmatprep.mubr.f32.mxu0 0.0
  %5826 = vmatmul.mubr.f32.gmra.mrb[0].mxu0 %v5750
  %v5827 = vpop.f32.mrb[0].mxu0
  %v5828 = vadd.f32 0.0, %v5827
  %v5829 = vpop.f32.mrb[0].mxu0
  %v5830 = vadd.f32 0.0, %v5829
  %5831 = vmatprep.mubr.f32.mxu0 0.0
  %5832 = vmatmul.mubr.f32.gmra.mrb[0].mxu0 %v5753
  %v5833 = vpop.f32.mrb[0].mxu0
  %v5834 = vadd.f32 0.0, %v5833
  %v5835 = vpop.f32.mrb[0].mxu0
  %v5836 = vadd.f32 0.0, %v5835
  %5837 = vmatprep.mubr.f32.mxu0 0.0
  %5838 = vmatmul.mubr.f32.gmra.mrb[0].mxu0 %v5756
  %v5839 = vpop.f32.mrb[0].mxu0
  %v5840 = vadd.f32 0.0, %v5839
  %v5841 = vpop.f32.mrb[0].mxu0
  %v5842 = vadd.f32 0.0, %v5841
  %5843 = vmatprep.mubr.f32.mxu0 0.0
  %5844 = vmatmul.mubr.f32.gmra.mrb[0].mxu0 %v5759
  %v5845 = vpop.f32.mrb[0].mxu0
  %v5846 = vadd.f32 0.0, %v5845
  %v5847 = vpop.f32.mrb[0].mxu0
  %v5848 = vadd.f32 0.0, %v5847
  %5849 = vdwg.mxu0
  %s5850 = scalar_lea.vmem %s9, 32
  %v5851 = vld [vmem:[%s5850] sm:$0xff]
  %v5852 = vld [vmem:[%s5850 + $0x8] sm:$0xff]
  %v5853 = vld [vmem:[%s5850 + $0x10] sm:$0xff]
  %v5854 = vld [vmem:[%s5850 + $0x18] sm:$0xff]
  %v5856 = vsel %vm3368, %v5851, 0
  %v5859 = vsel %vm3368, %v5852, 0
  %v5862 = vsel %vm3368, %v5853, 0
  %v5865 = vsel %vm3368, %v5854, 0
  %5867 = vmatprep.subr.mxu0 %v5730
  %5868 = vmatpush1.msra.mxu0 %v5729
  %5869 = vmatprep.subr.mxu0 %v5732
  %5870 = vmatpush1.msra.mxu0 %v5731
  %5871 = vmatprep.subr.mxu0 %v5734
  %5872 = vmatpush1.msra.mxu0 %v5733
  %5873 = vmatprep.subr.mxu0 %v5736
  %5874 = vmatpush1.msra.mxu0 %v5735
  %5875 = vmatprep.subr.mxu0 %v5738
  %5876 = vmatpush1.msra.mxu0 %v5737
  %5877 = vmatprep.subr.mxu0 %v5740
  %5878 = vmatpush1.msra.mxu0 %v5739
  %5879 = vmatprep.subr.mxu0 %v5742
  %5880 = vmatpush1.msra.mxu0 %v5741
  %5881 = vmatprep.subr.mxu0 %v5744
  %5882 = vmatpush1.msra.mxu0 %v5743
  %5883 = vmatprep.subr.mxu0 0.0
  %5884 = vmatpush1.msra.mxu0 0.0
  %5885 = vmatprep.subr.mxu0 0.0
  %5886 = vmatpush1.msra.mxu0 0.0
  %5887 = vmatprep.subr.mxu0 0.0
  %5888 = vmatpush1.msra.mxu0 0.0
  %5889 = vmatprep.subr.mxu0 0.0
  %5890 = vmatpush1.msra.mxu0 0.0
  %5891 = vmatprep.subr.mxu0 0.0
  %5892 = vmatpush1.msra.mxu0 0.0
  %5893 = vmatprep.subr.mxu0 0.0
  %5894 = vmatpush1.msra.mxu0 0.0
  %5895 = vmatprep.subr.mxu0 0.0
  %5896 = vmatpush1.msra.mxu0 0.0
  %5897 = vmatprep.subr.mxu0 0.0
  %5898 = vmatpush1.msra.mxu0 0.0
  %5899 = vmatprep.subr.mxu0 0.0
  %5900 = vmatpush1.msra.mxu0 0.0
  %5901 = vmatprep.subr.mxu0 0.0
  %5902 = vmatpush1.msra.mxu0 0.0
  %5903 = vmatprep.subr.mxu0 0.0
  %5904 = vmatpush1.msra.mxu0 0.0
  %5905 = vmatprep.subr.mxu0 0.0
  %5906 = vmatpush1.msra.mxu0 0.0
  %5907 = vmatprep.subr.mxu0 0.0
  %5908 = vmatpush1.msra.mxu0 0.0
  %5909 = vmatprep.subr.mxu0 0.0
  %5910 = vmatpush1.msra.mxu0 0.0
  %5911 = vmatprep.subr.mxu0 0.0
  %5912 = vmatpush1.msra.mxu0 0.0
  %5913 = vmatprep.subr.mxu0 0.0
  %5914 = vmatpush1.msra.mxu0 0.0
  %5915 = vmatprep.subr.mxu0 0.0
  %5916 = vmatpush1.msra.mxu0 0.0
  %5917 = vmatprep.subr.mxu0 0.0
  %5918 = vmatpush1.msra.mxu0 0.0
  %5919 = vmatprep.subr.mxu0 0.0
  %5920 = vmatpush1.msra.mxu0 0.0
  %5921 = vmatprep.subr.mxu0 0.0
  %5922 = vmatpush1.msra.mxu0 0.0
  %5923 = vmatprep.subr.mxu0 0.0
  %5924 = vmatpush1.msra.mxu0 0.0
  %5925 = vmatprep.subr.mxu0 0.0
  %5926 = vmatpush1.msra.mxu0 0.0
  %5927 = vmatprep.subr.mxu0 0.0
  %5928 = vmatpush1.msra.mxu0 0.0
  %5929 = vmatprep.subr.mxu0 0.0
  %5930 = vmatpush1.msra.mxu0 0.0
  %5931 = vmatprep.mubr.f32.mxu0 0.0
  %5932 = vmatmul.mubr.f32.gmra.mrb[0].mxu0 %v5856
  %v5933 = vpop.f32.mrb[0].mxu0
  %v5934 = vadd.f32 0.0, %v5933
  %v5935 = vpop.f32.mrb[0].mxu0
  %v5936 = vadd.f32 0.0, %v5935
  %5937 = vmatprep.mubr.f32.mxu0 0.0
  %5938 = vmatmul.mubr.f32.gmra.mrb[0].mxu0 %v5859
  %v5939 = vpop.f32.mrb[0].mxu0
  %v5940 = vadd.f32 0.0, %v5939
  %v5941 = vpop.f32.mrb[0].mxu0
  %v5942 = vadd.f32 0.0, %v5941
  %5943 = vmatprep.mubr.f32.mxu0 0.0
  %5944 = vmatmul.mubr.f32.gmra.mrb[0].mxu0 %v5862
  %v5945 = vpop.f32.mrb[0].mxu0
  %v5946 = vadd.f32 0.0, %v5945
  %v5947 = vpop.f32.mrb[0].mxu0
  %v5948 = vadd.f32 0.0, %v5947
  %5949 = vmatprep.mubr.f32.mxu0 0.0
  %5950 = vmatmul.mubr.f32.gmra.mrb[0].mxu0 %v5865
  %v5951 = vpop.f32.mrb[0].mxu0
  %v5952 = vadd.f32 0.0, %v5951
  %v5953 = vpop.f32.mrb[0].mxu0
  %v5954 = vadd.f32 0.0, %v5953
  %5955 = vdwg.mxu0
  %v5956 = vmax.f32 %v5828, %v5934
  %v5957 = vmax.f32 %v5830, %v5936
  %v5958 = vmax.f32 %v5834, %v5940
  %v5959 = vmax.f32 %v5836, %v5942
  %v5960 = vmax.f32 %v5840, %v5946
  %v5961 = vmax.f32 %v5842, %v5948
  %v5962 = vmax.f32 %v5846, %v5952
  %v5963 = vmax.f32 %v5848, %v5954
  %v5964 = vld [vmem:[%s10] sm:$0xff]
  %v5965 = vld [vmem:[%s10 + $0x8] sm:$0xff]
  %v5966 = vld [vmem:[%s10 + $0x10] sm:$0xff]
  %v5967 = vld [vmem:[%s10 + $0x18] sm:$0xff]
  %v5968 = vld [vmem:[%s10 + $0x20] sm:$0xff]
  %v5969 = vld [vmem:[%s10 + $0x28] sm:$0xff]
  %v5970 = vld [vmem:[%s10 + $0x30] sm:$0xff]
  %v5971 = vld [vmem:[%s10 + $0x38] sm:$0xff]
  %v5972 = vld [vmem:[%s10 + $0x40] sm:$0xff]
  %v5973 = vld [vmem:[%s10 + $0x48] sm:$0xff]
  %v5974 = vld [vmem:[%s10 + $0x50] sm:$0xff]
  %v5975 = vld [vmem:[%s10 + $0x58] sm:$0xff]
  %v5976 = vld [vmem:[%s10 + $0x60] sm:$0xff]
  %v5977 = vld [vmem:[%s10 + $0x68] sm:$0xff]
  %v5978 = vld [vmem:[%s10 + $0x70] sm:$0xff]
  %v5979 = vld [vmem:[%s10 + $0x78] sm:$0xff]
  %v5980 = vld [vmem:[%s10 + $0x80] sm:$0xff]
  %v5981 = vld [vmem:[%s10 + $0x88] sm:$0xff]
  %v5982 = vld [vmem:[%s10 + $0x90] sm:$0xff]
  %v5983 = vld [vmem:[%s10 + $0x98] sm:$0xff]
  %vm5984 = vcmask 261120
  %v5986 = vsel %vm5984, %v5957, 0
  %v5989 = vsel %vm5984, %v5959, 0
  %v5992 = vsel %vm5984, %v5961, 0
  %v5995 = vsel %vm5984, %v5963, 0
  %5997 = vmatprep.subr.mxu0 0.0
  %5998 = vmatpush1.msra.mxu0 %v5964
  %5999 = vmatprep.subr.mxu0 0.0
  %6000 = vmatpush1.msra.mxu0 %v5965
  %6001 = vmatprep.subr.mxu0 0.0
  %6002 = vmatpush1.msra.mxu0 %v5966
  %6003 = vmatprep.subr.mxu0 0.0
  %6004 = vmatpush1.msra.mxu0 %v5967
  %6005 = vmatprep.subr.mxu0 0.0
  %6006 = vmatpush1.msra.mxu0 %v5968
  %6007 = vmatprep.subr.mxu0 0.0
  %6008 = vmatpush1.msra.mxu0 %v5969
  %6009 = vmatprep.subr.mxu0 0.0
  %6010 = vmatpush1.msra.mxu0 %v5970
  %6011 = vmatprep.subr.mxu0 0.0
  %6012 = vmatpush1.msra.mxu0 %v5971
  %6013 = vmatprep.subr.mxu0 0.0
  %6014 = vmatpush1.msra.mxu0 %v5972
  %6015 = vmatprep.subr.mxu0 0.0
  %6016 = vmatpush1.msra.mxu0 %v5973
  %6017 = vmatprep.subr.mxu0 0.0
  %6018 = vmatpush1.msra.mxu0 %v5974
  %6019 = vmatprep.subr.mxu0 0.0
  %6020 = vmatpush1.msra.mxu0 %v5975
  %6021 = vmatprep.subr.mxu0 0.0
  %6022 = vmatpush1.msra.mxu0 %v5976
  %6023 = vmatprep.subr.mxu0 0.0
  %6024 = vmatpush1.msra.mxu0 %v5977
  %6025 = vmatprep.subr.mxu0 0.0
  %6026 = vmatpush1.msra.mxu0 %v5978
  %6027 = vmatprep.subr.mxu0 0.0
  %6028 = vmatpush1.msra.mxu0 %v5979
  %6029 = vmatprep.subr.mxu0 0.0
  %6030 = vmatpush1.msra.mxu0 %v5980
  %6031 = vmatprep.subr.mxu0 0.0
  %6032 = vmatpush1.msra.mxu0 %v5981
  %6033 = vmatprep.subr.mxu0 0.0
  %6034 = vmatpush1.msra.mxu0 %v5982
  %6035 = vmatprep.subr.mxu0 0.0
  %6036 = vmatpush1.msra.mxu0 %v5983
  %6037 = vmatprep.subr.mxu0 0.0
  %6038 = vmatpush1.msra.mxu0 0.0
  %6039 = vmatprep.subr.mxu0 0.0
  %6040 = vmatpush1.msra.mxu0 0.0
  %6041 = vmatprep.subr.mxu0 0.0
  %6042 = vmatpush1.msra.mxu0 0.0
  %6043 = vmatprep.subr.mxu0 0.0
  %6044 = vmatpush1.msra.mxu0 0.0
  %6045 = vmatprep.subr.mxu0 0.0
  %6046 = vmatpush1.msra.mxu0 0.0
  %6047 = vmatprep.subr.mxu0 0.0
  %6048 = vmatpush1.msra.mxu0 0.0
  %6049 = vmatprep.subr.mxu0 0.0
  %6050 = vmatpush1.msra.mxu0 0.0
  %6051 = vmatprep.subr.mxu0 0.0
  %6052 = vmatpush1.msra.mxu0 0.0
  %6053 = vmatprep.subr.mxu0 0.0
  %6054 = vmatpush1.msra.mxu0 0.0
  %6055 = vmatprep.subr.mxu0 0.0
  %6056 = vmatpush1.msra.mxu0 0.0
  %6057 = vmatprep.subr.mxu0 0.0
  %6058 = vmatpush1.msra.mxu0 0.0
  %6059 = vmatprep.subr.mxu0 0.0
  %6060 = vmatpush1.msra.mxu0 0.0
  %6061 = vmatprep.mubr.f32.mxu0 %v5986
  %6062 = vmatmul.mubr.f32.gmra.mrb[0].mxu0 %v5956
  %v6063 = vpop.f32.mrb[0].mxu0
  %v6064 = vadd.f32 0.0, %v6063
  %v6065 = vpop.f32.mrb[0].mxu0
  %6066 = vmatprep.mubr.f32.mxu0 %v5989
  %6067 = vmatmul.mubr.f32.gmra.mrb[0].mxu0 %v5958
  %v6068 = vpop.f32.mrb[0].mxu0
  %v6069 = vadd.f32 0.0, %v6068
  %v6070 = vpop.f32.mrb[0].mxu0
  %6071 = vmatprep.mubr.f32.mxu0 %v5992
  %6072 = vmatmul.mubr.f32.gmra.mrb[0].mxu0 %v5960
  %v6073 = vpop.f32.mrb[0].mxu0
  %v6074 = vadd.f32 0.0, %v6073
  %v6075 = vpop.f32.mrb[0].mxu0
  %6076 = vmatprep.mubr.f32.mxu0 %v5995
  %6077 = vmatmul.mubr.f32.gmra.mrb[0].mxu0 %v5962
  %v6078 = vpop.f32.mrb[0].mxu0
  %v6079 = vadd.f32 0.0, %v6078
  %v6080 = vpop.f32.mrb[0].mxu0
  %6081 = vdwg.mxu0
  %s6082 = scalar_lea.vmem %s10, 160
  %v6083 = vld [vmem:[%s6082] sm:$0xff]
  %v6084 = vld [vmem:[%s6082 + $0x8] sm:$0xff]
  %v6085 = vld [vmem:[%s6082 + $0x10] sm:$0xff]
  %v6086 = vld [vmem:[%s6082 + $0x18] sm:$0xff]
  %v6087 = vld [vmem:[%s6082 + $0x20] sm:$0xff]
  %v6088 = vld [vmem:[%s6082 + $0x28] sm:$0xff]
  %v6089 = vld [vmem:[%s6082 + $0x30] sm:$0xff]
  %v6090 = vld [vmem:[%s6082 + $0x38] sm:$0xff]
  %v6091 = vld [vmem:[%s6082 + $0x40] sm:$0xff]
  %v6092 = vld [vmem:[%s6082 + $0x48] sm:$0xff]
  %v6093 = vld [vmem:[%s6082 + $0x50] sm:$0xff]
  %v6094 = vld [vmem:[%s6082 + $0x58] sm:$0xff]
  %v6095 = vld [vmem:[%s6082 + $0x60] sm:$0xff]
  %v6096 = vld [vmem:[%s6082 + $0x68] sm:$0xff]
  %v6097 = vld [vmem:[%s6082 + $0x70] sm:$0xff]
  %v6098 = vld [vmem:[%s6082 + $0x78] sm:$0xff]
  %v6099 = vld [vmem:[%s6082 + $0x80] sm:$0xff]
  %v6100 = vld [vmem:[%s6082 + $0x88] sm:$0xff]
  %v6101 = vld [vmem:[%s6082 + $0x90] sm:$0xff]
  %v6102 = vld [vmem:[%s6082 + $0x98] sm:$0xff]
  %6103 = vmatprep.subr.mxu0 0.0
  %6104 = vmatpush1.msra.mxu0 %v6083
  %6105 = vmatprep.subr.mxu0 0.0
  %6106 = vmatpush1.msra.mxu0 %v6084
  %6107 = vmatprep.subr.mxu0 0.0
  %6108 = vmatpush1.msra.mxu0 %v6085
  %6109 = vmatprep.subr.mxu0 0.0
  %6110 = vmatpush1.msra.mxu0 %v6086
  %6111 = vmatprep.subr.mxu0 0.0
  %6112 = vmatpush1.msra.mxu0 %v6087
  %6113 = vmatprep.subr.mxu0 0.0
  %6114 = vmatpush1.msra.mxu0 %v6088
  %6115 = vmatprep.subr.mxu0 0.0
  %6116 = vmatpush1.msra.mxu0 %v6089
  %6117 = vmatprep.subr.mxu0 0.0
  %6118 = vmatpush1.msra.mxu0 %v6090
  %6119 = vmatprep.subr.mxu0 0.0
  %6120 = vmatpush1.msra.mxu0 %v6091
  %6121 = vmatprep.subr.mxu0 0.0
  %6122 = vmatpush1.msra.mxu0 %v6092
  %6123 = vmatprep.subr.mxu0 0.0
  %6124 = vmatpush1.msra.mxu0 %v6093
  %6125 = vmatprep.subr.mxu0 0.0
  %6126 = vmatpush1.msra.mxu0 %v6094
  %6127 = vmatprep.subr.mxu0 0.0
  %6128 = vmatpush1.msra.mxu0 %v6095
  %6129 = vmatprep.subr.mxu0 0.0
  %6130 = vmatpush1.msra.mxu0 %v6096
  %6131 = vmatprep.subr.mxu0 0.0
  %6132 = vmatpush1.msra.mxu0 %v6097
  %6133 = vmatprep.subr.mxu0 0.0
  %6134 = vmatpush1.msra.mxu0 %v6098
  %6135 = vmatprep.subr.mxu0 0.0
  %6136 = vmatpush1.msra.mxu0 %v6099
  %6137 = vmatprep.subr.mxu0 0.0
  %6138 = vmatpush1.msra.mxu0 %v6100
  %6139 = vmatprep.subr.mxu0 0.0
  %6140 = vmatpush1.msra.mxu0 %v6101
  %6141 = vmatprep.subr.mxu0 0.0
  %6142 = vmatpush1.msra.mxu0 %v6102
  %6143 = vmatprep.subr.mxu0 0.0
  %6144 = vmatpush1.msra.mxu0 0.0
  %6145 = vmatprep.subr.mxu0 0.0
  %6146 = vmatpush1.msra.mxu0 0.0
  %6147 = vmatprep.subr.mxu0 0.0
  %6148 = vmatpush1.msra.mxu0 0.0
  %6149 = vmatprep.subr.mxu0 0.0
  %6150 = vmatpush1.msra.mxu0 0.0
  %6151 = vmatprep.subr.mxu0 0.0
  %6152 = vmatpush1.msra.mxu0 0.0
  %6153 = vmatprep.subr.mxu0 0.0
  %6154 = vmatpush1.msra.mxu0 0.0
  %6155 = vmatprep.subr.mxu0 0.0
  %6156 = vmatpush1.msra.mxu0 0.0
  %6157 = vmatprep.subr.mxu0 0.0
  %6158 = vmatpush1.msra.mxu0 0.0
  %6159 = vmatprep.subr.mxu0 0.0
  %6160 = vmatpush1.msra.mxu0 0.0
  %6161 = vmatprep.subr.mxu0 0.0
  %6162 = vmatpush1.msra.mxu0 0.0
  %6163 = vmatprep.subr.mxu0 0.0
  %6164 = vmatpush1.msra.mxu0 0.0
  %6165 = vmatprep.subr.mxu0 0.0
  %6166 = vmatpush1.msra.mxu0 0.0
  %6167 = vmatprep.mubr.f32.mxu0 %v5986
  %6168 = vmatmul.mubr.f32.gmra.mrb[0].mxu0 %v5956
  %v6169 = vpop.f32.mrb[0].mxu0
  %v6170 = vadd.f32 0.0, %v6169
  %v6171 = vpop.f32.mrb[0].mxu0
  %6172 = vmatprep.mubr.f32.mxu0 %v5989
  %6173 = vmatmul.mubr.f32.gmra.mrb[0].mxu0 %v5958
  %v6174 = vpop.f32.mrb[0].mxu0
  %v6175 = vadd.f32 0.0, %v6174
  %v6176 = vpop.f32.mrb[0].mxu0
  %6177 = vmatprep.mubr.f32.mxu0 %v5992
  %6178 = vmatmul.mubr.f32.gmra.mrb[0].mxu0 %v5960
  %v6179 = vpop.f32.mrb[0].mxu0
  %v6180 = vadd.f32 0.0, %v6179
  %v6181 = vpop.f32.mrb[0].mxu0
  %6182 = vmatprep.mubr.f32.mxu0 %v5995
  %6183 = vmatmul.mubr.f32.gmra.mrb[0].mxu0 %v5962
  %v6184 = vpop.f32.mrb[0].mxu0
  %v6185 = vadd.f32 0.0, %v6184
  %v6186 = vpop.f32.mrb[0].mxu0
  %6187 = vdwg.mxu0
  %v6188 = vmax.f32 %v6064, %v6170
  %v6189 = vmax.f32 %v6069, %v6175
  %v6190 = vmax.f32 %v6074, %v6180
  %v6191 = vmax.f32 %v6079, %v6185
  %v6192 = vld [vmem:[%s11] sm:$0xff]
  %v6194 = vsel %vm5984, %v6192, 0
  %6196 = vmatprep.subr.mxu0 0.0
  %6197 = vmatpush1.msra.mxu0 %v6188
  %6198 = vmatprep.subr.mxu0 0.0
  %6199 = vmatpush1.msra.mxu0 %v6189
  %6200 = vmatprep.subr.mxu0 0.0
  %6201 = vmatpush1.msra.mxu0 %v6190
  %6202 = vmatprep.subr.mxu0 0.0
  %6203 = vmatpush1.msra.mxu0 %v6191
  %6204 = vmatprep.subr.mxu0 0.0
  %6205 = vmatpush1.msra.mxu0 0.0
  %6206 = vmatprep.subr.mxu0 0.0
  %6207 = vmatpush1.msra.mxu0 0.0
  %6208 = vmatprep.subr.mxu0 0.0
  %6209 = vmatpush1.msra.mxu0 0.0
  %6210 = vmatprep.subr.mxu0 0.0
  %6211 = vmatpush1.msra.mxu0 0.0
  %6212 = vmatprep.subr.mxu0 0.0
  %6213 = vmatpush1.msra.mxu0 0.0
  %6214 = vmatprep.subr.mxu0 0.0
  %6215 = vmatpush1.msra.mxu0 0.0
  %6216 = vmatprep.subr.mxu0 0.0
  %6217 = vmatpush1.msra.mxu0 0.0
  %6218 = vmatprep.subr.mxu0 0.0
  %6219 = vmatpush1.msra.mxu0 0.0
  %6220 = vmatprep.subr.mxu0 0.0
  %6221 = vmatpush1.msra.mxu0 0.0
  %6222 = vmatprep.subr.mxu0 0.0
  %6223 = vmatpush1.msra.mxu0 0.0
  %6224 = vmatprep.subr.mxu0 0.0
  %6225 = vmatpush1.msra.mxu0 0.0
  %6226 = vmatprep.subr.mxu0 0.0
  %6227 = vmatpush1.msra.mxu0 0.0
  %6228 = vmatprep.subr.mxu0 0.0
  %6229 = vmatpush1.msra.mxu0 0.0
  %6230 = vmatprep.subr.mxu0 0.0
  %6231 = vmatpush1.msra.mxu0 0.0
  %6232 = vmatprep.subr.mxu0 0.0
  %6233 = vmatpush1.msra.mxu0 0.0
  %6234 = vmatprep.subr.mxu0 0.0
  %6235 = vmatpush1.msra.mxu0 0.0
  %6236 = vmatprep.subr.mxu0 0.0
  %6237 = vmatpush1.msra.mxu0 0.0
  %6238 = vmatprep.subr.mxu0 0.0
  %6239 = vmatpush1.msra.mxu0 0.0
  %6240 = vmatprep.subr.mxu0 0.0
  %6241 = vmatpush1.msra.mxu0 0.0
  %6242 = vmatprep.subr.mxu0 0.0
  %6243 = vmatpush1.msra.mxu0 0.0
  %6244 = vmatprep.subr.mxu0 0.0
  %6245 = vmatpush1.msra.mxu0 0.0
  %6246 = vmatprep.subr.mxu0 0.0
  %6247 = vmatpush1.msra.mxu0 0.0
  %6248 = vmatprep.subr.mxu0 0.0
  %6249 = vmatpush1.msra.mxu0 0.0
  %6250 = vmatprep.subr.mxu0 0.0
  %6251 = vmatpush1.msra.mxu0 0.0
  %6252 = vmatprep.subr.mxu0 0.0
  %6253 = vmatpush1.msra.mxu0 0.0
  %6254 = vmatprep.subr.mxu0 0.0
  %6255 = vmatpush1.msra.mxu0 0.0
  %6256 = vmatprep.subr.mxu0 0.0
  %6257 = vmatpush1.msra.mxu0 0.0
  %6258 = vmatprep.subr.mxu0 0.0
  %6259 = vmatpush1.msra.mxu0 0.0
  %6260 = vmatprep.mubr.f32.mxu0 0.0
  %6261 = vmatmul.mubr.f32.gmra.mrb[0].mxu0 %v6194
  %v6262 = vpop.f32.mrb[0].mxu0
  %v6263 = vadd.f32 0.0, %v6262
  %v6264 = vpop.f32.mrb[0].mxu0
  %6265 = vdwg.mxu0
  %v6266 = vld [vmem:[%s12] sm:$0xff]
  %v6267 = vld [vmem:[%s12 + $0x8] sm:$0xff]
  %v6268 = vld [vmem:[%s12 + $0x10] sm:$0xff]
  %v6269 = vld [vmem:[%s12 + $0x18] sm:$0xff]
  %v6270 = vld [vmem:[%s12 + $0x20] sm:$0xff]
  %v6271 = vld [vmem:[%s12 + $0x28] sm:$0xff]
  %v6272 = vld [vmem:[%s12 + $0x30] sm:$0xff]
  %v6273 = vld [vmem:[%s12 + $0x38] sm:$0xff]
  %v6274 = vld [vmem:[%s12 + $0x40] sm:$0xff]
  %v6275 = vld [vmem:[%s12 + $0x48] sm:$0xff]
  %s6276 = scalar_lea.vmem %s11, 8
  %v6277 = vld [vmem:[%s6276] sm:$0xff]
  %v6279 = vsel %vm5984, %v6277, 0
  %6281 = vmatprep.subr.mxu0 0.0
  %6282 = vmatpush1.msra.mxu0 %v6188
  %6283 = vmatprep.subr.mxu0 0.0
  %6284 = vmatpush1.msra.mxu0 %v6189
  %6285 = vmatprep.subr.mxu0 0.0
  %6286 = vmatpush1.msra.mxu0 %v6190
  %6287 = vmatprep.subr.mxu0 0.0
  %6288 = vmatpush1.msra.mxu0 %v6191
  %6289 = vmatprep.subr.mxu0 0.0
  %6290 = vmatpush1.msra.mxu0 0.0
  %6291 = vmatprep.subr.mxu0 0.0
  %6292 = vmatpush1.msra.mxu0 0.0
  %6293 = vmatprep.subr.mxu0 0.0
  %6294 = vmatpush1.msra.mxu0 0.0
  %6295 = vmatprep.subr.mxu0 0.0
  %6296 = vmatpush1.msra.mxu0 0.0
  %6297 = vmatprep.subr.mxu0 0.0
  %6298 = vmatpush1.msra.mxu0 0.0
  %6299 = vmatprep.subr.mxu0 0.0
  %6300 = vmatpush1.msra.mxu0 0.0
  %6301 = vmatprep.subr.mxu0 0.0
  %6302 = vmatpush1.msra.mxu0 0.0
  %6303 = vmatprep.subr.mxu0 0.0
  %6304 = vmatpush1.msra.mxu0 0.0
  %6305 = vmatprep.subr.mxu0 0.0
  %6306 = vmatpush1.msra.mxu0 0.0
  %6307 = vmatprep.subr.mxu0 0.0
  %6308 = vmatpush1.msra.mxu0 0.0
  %6309 = vmatprep.subr.mxu0 0.0
  %6310 = vmatpush1.msra.mxu0 0.0
  %6311 = vmatprep.subr.mxu0 0.0
  %6312 = vmatpush1.msra.mxu0 0.0
  %6313 = vmatprep.subr.mxu0 0.0
  %6314 = vmatpush1.msra.mxu0 0.0
  %6315 = vmatprep.subr.mxu0 0.0
  %6316 = vmatpush1.msra.mxu0 0.0
  %6317 = vmatprep.subr.mxu0 0.0
  %6318 = vmatpush1.msra.mxu0 0.0
  %6319 = vmatprep.subr.mxu0 0.0
  %6320 = vmatpush1.msra.mxu0 0.0
  %6321 = vmatprep.subr.mxu0 0.0
  %6322 = vmatpush1.msra.mxu0 0.0
  %6323 = vmatprep.subr.mxu0 0.0
  %6324 = vmatpush1.msra.mxu0 0.0
  %6325 = vmatprep.subr.mxu0 0.0
  %6326 = vmatpush1.msra.mxu0 0.0
  %6327 = vmatprep.subr.mxu0 0.0
  %6328 = vmatpush1.msra.mxu0 0.0
  %6329 = vmatprep.subr.mxu0 0.0
  %6330 = vmatpush1.msra.mxu0 0.0
  %6331 = vmatprep.subr.mxu0 0.0
  %6332 = vmatpush1.msra.mxu0 0.0
  %6333 = vmatprep.subr.mxu0 0.0
  %6334 = vmatpush1.msra.mxu0 0.0
  %6335 = vmatprep.subr.mxu0 0.0
  %6336 = vmatpush1.msra.mxu0 0.0
  %6337 = vmatprep.subr.mxu0 0.0
  %6338 = vmatpush1.msra.mxu0 0.0
  %6339 = vmatprep.subr.mxu0 0.0
  %6340 = vmatpush1.msra.mxu0 0.0
  %6341 = vmatprep.subr.mxu0 0.0
  %6342 = vmatpush1.msra.mxu0 0.0
  %6343 = vmatprep.subr.mxu0 0.0
  %6344 = vmatpush1.msra.mxu0 0.0
  %6345 = vmatprep.mubr.f32.mxu0 0.0
  %6346 = vmatmul.mubr.f32.gmra.mrb[0].mxu0 %v6279
  %v6347 = vpop.f32.mrb[0].mxu0
  %v6348 = vadd.f32 0.0, %v6347
  %v6349 = vpop.f32.mrb[0].mxu0
  %6350 = vdwg.mxu0
  %s6351 = scalar_lea.vmem %s12, 80
  %v6352 = vld [vmem:[%s6351] sm:$0xff]
  %v6353 = vld [vmem:[%s6351 + $0x8] sm:$0xff]
  %v6354 = vld [vmem:[%s6351 + $0x10] sm:$0xff]
  %v6355 = vld [vmem:[%s6351 + $0x18] sm:$0xff]
  %v6356 = vld [vmem:[%s6351 + $0x20] sm:$0xff]
  %v6357 = vld [vmem:[%s6351 + $0x28] sm:$0xff]
  %v6358 = vld [vmem:[%s6351 + $0x30] sm:$0xff]
  %v6359 = vld [vmem:[%s6351 + $0x38] sm:$0xff]
  %v6360 = vld [vmem:[%s6351 + $0x40] sm:$0xff]
  %v6361 = vld [vmem:[%s6351 + $0x48] sm:$0xff]
  %vm6362 = vcmask 654336
  %v6364 = vsel %vm6362, %v6348, 0
  %6366 = vmatprep.subr.mxu0 0.0
  %6367 = vmatpush1.msra.mxu0 %v6352
  %6368 = vmatprep.subr.mxu0 0.0
  %6369 = vmatpush1.msra.mxu0 %v6353
  %6370 = vmatprep.subr.mxu0 0.0
  %6371 = vmatpush1.msra.mxu0 %v6354
  %6372 = vmatprep.subr.mxu0 0.0
  %6373 = vmatpush1.msra.mxu0 %v6355
  %6374 = vmatprep.subr.mxu0 0.0
  %6375 = vmatpush1.msra.mxu0 %v6356
  %6376 = vmatprep.subr.mxu0 0.0
  %6377 = vmatpush1.msra.mxu0 %v6357
  %6378 = vmatprep.subr.mxu0 0.0
  %6379 = vmatpush1.msra.mxu0 %v6358
  %6380 = vmatprep.subr.mxu0 0.0
  %6381 = vmatpush1.msra.mxu0 %v6359
  %6382 = vmatprep.subr.mxu0 0.0
  %6383 = vmatpush1.msra.mxu0 %v6360
  %6384 = vmatprep.subr.mxu0 0.0
  %6385 = vmatpush1.msra.mxu0 %v6361
  %6386 = vmatprep.subr.mxu0 0.0
  %6387 = vmatpush1.msra.mxu0 0.0
  %6388 = vmatprep.subr.mxu0 0.0
  %6389 = vmatpush1.msra.mxu0 0.0
  %6390 = vmatprep.subr.mxu0 0.0
  %6391 = vmatpush1.msra.mxu0 0.0
  %6392 = vmatprep.subr.mxu0 0.0
  %6393 = vmatpush1.msra.mxu0 0.0
  %6394 = vmatprep.subr.mxu0 0.0
  %6395 = vmatpush1.msra.mxu0 0.0
  %6396 = vmatprep.subr.mxu0 0.0
  %6397 = vmatpush1.msra.mxu0 0.0
  %6398 = vmatprep.subr.mxu0 0.0
  %6399 = vmatpush1.msra.mxu0 0.0
  %6400 = vmatprep.subr.mxu0 0.0
  %6401 = vmatpush1.msra.mxu0 0.0
  %6402 = vmatprep.subr.mxu0 0.0
  %6403 = vmatpush1.msra.mxu0 0.0
  %6404 = vmatprep.subr.mxu0 0.0
  %6405 = vmatpush1.msra.mxu0 0.0
  %6406 = vmatprep.subr.mxu0 0.0
  %6407 = vmatpush1.msra.mxu0 0.0
  %6408 = vmatprep.subr.mxu0 0.0
  %6409 = vmatpush1.msra.mxu0 0.0
  %6410 = vmatprep.subr.mxu0 0.0
  %6411 = vmatpush1.msra.mxu0 0.0
  %6412 = vmatprep.subr.mxu0 0.0
  %6413 = vmatpush1.msra.mxu0 0.0
  %6414 = vmatprep.subr.mxu0 0.0
  %6415 = vmatpush1.msra.mxu0 0.0
  %6416 = vmatprep.subr.mxu0 0.0
  %6417 = vmatpush1.msra.mxu0 0.0
  %6418 = vmatprep.subr.mxu0 0.0
  %6419 = vmatpush1.msra.mxu0 0.0
  %6420 = vmatprep.subr.mxu0 0.0
  %6421 = vmatpush1.msra.mxu0 0.0
  %6422 = vmatprep.subr.mxu0 0.0
  %6423 = vmatpush1.msra.mxu0 0.0
  %6424 = vmatprep.subr.mxu0 0.0
  %6425 = vmatpush1.msra.mxu0 0.0
  %6426 = vmatprep.subr.mxu0 0.0
  %6427 = vmatpush1.msra.mxu0 0.0
  %6428 = vmatprep.subr.mxu0 0.0
  %6429 = vmatpush1.msra.mxu0 0.0
  %6430 = vmatprep.mubr.f32.mxu0 0.0
  %6431 = vmatmul.mubr.f32.gmra.mrb[0].mxu0 %v6364
  %v6432 = vpop.f32.mrb[0].mxu0
  %v6433 = vadd.f32 0.0, %v6432
  %v6434 = vpop.f32.mrb[0].mxu0
  %6435 = vdwg.mxu0
  %v6437 = vsel %vm6362, %v6263, 0
  %6439 = vmatprep.subr.mxu0 0.0
  %6440 = vmatpush1.msra.mxu0 %v6266
  %6441 = vmatprep.subr.mxu0 0.0
  %6442 = vmatpush1.msra.mxu0 %v6267
  %6443 = vmatprep.subr.mxu0 0.0
  %6444 = vmatpush1.msra.mxu0 %v6268
  %6445 = vmatprep.subr.mxu0 0.0
  %6446 = vmatpush1.msra.mxu0 %v6269
  %6447 = vmatprep.subr.mxu0 0.0
  %6448 = vmatpush1.msra.mxu0 %v6270
  %6449 = vmatprep.subr.mxu0 0.0
  %6450 = vmatpush1.msra.mxu0 %v6271
  %6451 = vmatprep.subr.mxu0 0.0
  %6452 = vmatpush1.msra.mxu0 %v6272
  %6453 = vmatprep.subr.mxu0 0.0
  %6454 = vmatpush1.msra.mxu0 %v6273
  %6455 = vmatprep.subr.mxu0 0.0
  %6456 = vmatpush1.msra.mxu0 %v6274
  %6457 = vmatprep.subr.mxu0 0.0
  %6458 = vmatpush1.msra.mxu0 %v6275
  %6459 = vmatprep.subr.mxu0 0.0
  %6460 = vmatpush1.msra.mxu0 0.0
  %6461 = vmatprep.subr.mxu0 0.0
  %6462 = vmatpush1.msra.mxu0 0.0
  %6463 = vmatprep.subr.mxu0 0.0
  %6464 = vmatpush1.msra.mxu0 0.0
  %6465 = vmatprep.subr.mxu0 0.0
  %6466 = vmatpush1.msra.mxu0 0.0
  %6467 = vmatprep.subr.mxu0 0.0
  %6468 = vmatpush1.msra.mxu0 0.0
  %6469 = vmatprep.subr.mxu0 0.0
  %6470 = vmatpush1.msra.mxu0 0.0
  %6471 = vmatprep.subr.mxu0 0.0
  %6472 = vmatpush1.msra.mxu0 0.0
  %6473 = vmatprep.subr.mxu0 0.0
  %6474 = vmatpush1.msra.mxu0 0.0
  %6475 = vmatprep.subr.mxu0 0.0
  %6476 = vmatpush1.msra.mxu0 0.0
  %6477 = vmatprep.subr.mxu0 0.0
  %6478 = vmatpush1.msra.mxu0 0.0
  %6479 = vmatprep.subr.mxu0 0.0
  %6480 = vmatpush1.msra.mxu0 0.0
  %6481 = vmatprep.subr.mxu0 0.0
  %6482 = vmatpush1.msra.mxu0 0.0
  %6483 = vmatprep.subr.mxu0 0.0
  %6484 = vmatpush1.msra.mxu0 0.0
  %6485 = vmatprep.subr.mxu0 0.0
  %6486 = vmatpush1.msra.mxu0 0.0
  %6487 = vmatprep.subr.mxu0 0.0
  %6488 = vmatpush1.msra.mxu0 0.0
  %6489 = vmatprep.subr.mxu0 0.0
  %6490 = vmatpush1.msra.mxu0 0.0
  %6491 = vmatprep.subr.mxu0 0.0
  %6492 = vmatpush1.msra.mxu0 0.0
  %6493 = vmatprep.subr.mxu0 0.0
  %6494 = vmatpush1.msra.mxu0 0.0
  %6495 = vmatprep.subr.mxu0 0.0
  %6496 = vmatpush1.msra.mxu0 0.0
  %6497 = vmatprep.subr.mxu0 0.0
  %6498 = vmatpush1.msra.mxu0 0.0
  %6499 = vmatprep.subr.mxu0 0.0
  %6500 = vmatpush1.msra.mxu0 0.0
  %6501 = vmatprep.subr.mxu0 0.0
  %6502 = vmatpush1.msra.mxu0 0.0
  %6503 = vmatprep.mubr.f32.mxu0 0.0
  %6504 = vmatmul.mubr.f32.gmra.mrb[0].mxu0 %v6437
  %v6505 = vpop.f32.mrb[0].mxu0
  %v6506 = vadd.f32 %v6433, %v6505
  %v6507 = vpop.f32.mrb[0].mxu0
  %6508 = vdwg.mxu0
  %s6509 = scalar_lea.vmem %s11, 16
  %v6510 = vld [vmem:[%s6509] sm:$0xff]
  %v6512 = vsel %vm5984, %v6510, 0
  %6514 = vmatprep.subr.mxu0 0.0
  %6515 = vmatpush1.msra.mxu0 %v6188
  %6516 = vmatprep.subr.mxu0 0.0
  %6517 = vmatpush1.msra.mxu0 %v6189
  %6518 = vmatprep.subr.mxu0 0.0
  %6519 = vmatpush1.msra.mxu0 %v6190
  %6520 = vmatprep.subr.mxu0 0.0
  %6521 = vmatpush1.msra.mxu0 %v6191
  %6522 = vmatprep.subr.mxu0 0.0
  %6523 = vmatpush1.msra.mxu0 0.0
  %6524 = vmatprep.subr.mxu0 0.0
  %6525 = vmatpush1.msra.mxu0 0.0
  %6526 = vmatprep.subr.mxu0 0.0
  %6527 = vmatpush1.msra.mxu0 0.0
  %6528 = vmatprep.subr.mxu0 0.0
  %6529 = vmatpush1.msra.mxu0 0.0
  %6530 = vmatprep.subr.mxu0 0.0
  %6531 = vmatpush1.msra.mxu0 0.0
  %6532 = vmatprep.subr.mxu0 0.0
  %6533 = vmatpush1.msra.mxu0 0.0
  %6534 = vmatprep.subr.mxu0 0.0
  %6535 = vmatpush1.msra.mxu0 0.0
  %6536 = vmatprep.subr.mxu0 0.0
  %6537 = vmatpush1.msra.mxu0 0.0
  %6538 = vmatprep.subr.mxu0 0.0
  %6539 = vmatpush1.msra.mxu0 0.0
  %6540 = vmatprep.subr.mxu0 0.0
  %6541 = vmatpush1.msra.mxu0 0.0
  %6542 = vmatprep.subr.mxu0 0.0
  %6543 = vmatpush1.msra.mxu0 0.0
  %6544 = vmatprep.subr.mxu0 0.0
  %6545 = vmatpush1.msra.mxu0 0.0
  %6546 = vmatprep.subr.mxu0 0.0
  %6547 = vmatpush1.msra.mxu0 0.0
  %6548 = vmatprep.subr.mxu0 0.0
  %6549 = vmatpush1.msra.mxu0 0.0
  %6550 = vmatprep.subr.mxu0 0.0
  %6551 = vmatpush1.msra.mxu0 0.0
  %6552 = vmatprep.subr.mxu0 0.0
  %6553 = vmatpush1.msra.mxu0 0.0
  %6554 = vmatprep.subr.mxu0 0.0
  %6555 = vmatpush1.msra.mxu0 0.0
  %6556 = vmatprep.subr.mxu0 0.0
  %6557 = vmatpush1.msra.mxu0 0.0
  %6558 = vmatprep.subr.mxu0 0.0
  %6559 = vmatpush1.msra.mxu0 0.0
  %6560 = vmatprep.subr.mxu0 0.0
  %6561 = vmatpush1.msra.mxu0 0.0
  %6562 = vmatprep.subr.mxu0 0.0
  %6563 = vmatpush1.msra.mxu0 0.0
  %6564 = vmatprep.subr.mxu0 0.0
  %6565 = vmatpush1.msra.mxu0 0.0
  %6566 = vmatprep.subr.mxu0 0.0
  %6567 = vmatpush1.msra.mxu0 0.0
  %6568 = vmatprep.subr.mxu0 0.0
  %6569 = vmatpush1.msra.mxu0 0.0
  %6570 = vmatprep.subr.mxu0 0.0
  %6571 = vmatpush1.msra.mxu0 0.0
  %6572 = vmatprep.subr.mxu0 0.0
  %6573 = vmatpush1.msra.mxu0 0.0
  %6574 = vmatprep.subr.mxu0 0.0
  %6575 = vmatpush1.msra.mxu0 0.0
  %6576 = vmatprep.subr.mxu0 0.0
  %6577 = vmatpush1.msra.mxu0 0.0
  %6578 = vmatprep.mubr.f32.mxu0 0.0
  %6579 = vmatmul.mubr.f32.gmra.mrb[0].mxu0 %v6512
  %v6580 = vpop.f32.mrb[0].mxu0
  %v6581 = vadd.f32 0.0, %v6580
  %v6582 = vpop.f32.mrb[0].mxu0
  %6583 = vdwg.mxu0
  %s6584 = scalar_lea.vmem %s12, 160
  %v6585 = vld [vmem:[%s6584] sm:$0xff]
  %v6586 = vld [vmem:[%s6584 + $0x8] sm:$0xff]
  %v6587 = vld [vmem:[%s6584 + $0x10] sm:$0xff]
  %v6588 = vld [vmem:[%s6584 + $0x18] sm:$0xff]
  %v6589 = vld [vmem:[%s6584 + $0x20] sm:$0xff]
  %v6590 = vld [vmem:[%s6584 + $0x28] sm:$0xff]
  %v6591 = vld [vmem:[%s6584 + $0x30] sm:$0xff]
  %v6592 = vld [vmem:[%s6584 + $0x38] sm:$0xff]
  %v6593 = vld [vmem:[%s6584 + $0x40] sm:$0xff]
  %v6594 = vld [vmem:[%s6584 + $0x48] sm:$0xff]
  %v6596 = vsel %vm6362, %v6581, 0
  %6598 = vmatprep.subr.mxu0 0.0
  %6599 = vmatpush1.msra.mxu0 %v6585
  %6600 = vmatprep.subr.mxu0 0.0
  %6601 = vmatpush1.msra.mxu0 %v6586
  %6602 = vmatprep.subr.mxu0 0.0
  %6603 = vmatpush1.msra.mxu0 %v6587
  %6604 = vmatprep.subr.mxu0 0.0
  %6605 = vmatpush1.msra.mxu0 %v6588
  %6606 = vmatprep.subr.mxu0 0.0
  %6607 = vmatpush1.msra.mxu0 %v6589
  %6608 = vmatprep.subr.mxu0 0.0
  %6609 = vmatpush1.msra.mxu0 %v6590
  %6610 = vmatprep.subr.mxu0 0.0
  %6611 = vmatpush1.msra.mxu0 %v6591
  %6612 = vmatprep.subr.mxu0 0.0
  %6613 = vmatpush1.msra.mxu0 %v6592
  %6614 = vmatprep.subr.mxu0 0.0
  %6615 = vmatpush1.msra.mxu0 %v6593
  %6616 = vmatprep.subr.mxu0 0.0
  %6617 = vmatpush1.msra.mxu0 %v6594
  %6618 = vmatprep.subr.mxu0 0.0
  %6619 = vmatpush1.msra.mxu0 0.0
  %6620 = vmatprep.subr.mxu0 0.0
  %6621 = vmatpush1.msra.mxu0 0.0
  %6622 = vmatprep.subr.mxu0 0.0
  %6623 = vmatpush1.msra.mxu0 0.0
  %6624 = vmatprep.subr.mxu0 0.0
  %6625 = vmatpush1.msra.mxu0 0.0
  %6626 = vmatprep.subr.mxu0 0.0
  %6627 = vmatpush1.msra.mxu0 0.0
  %6628 = vmatprep.subr.mxu0 0.0
  %6629 = vmatpush1.msra.mxu0 0.0
  %6630 = vmatprep.subr.mxu0 0.0
  %6631 = vmatpush1.msra.mxu0 0.0
  %6632 = vmatprep.subr.mxu0 0.0
  %6633 = vmatpush1.msra.mxu0 0.0
  %6634 = vmatprep.subr.mxu0 0.0
  %6635 = vmatpush1.msra.mxu0 0.0
  %6636 = vmatprep.subr.mxu0 0.0
  %6637 = vmatpush1.msra.mxu0 0.0
  %6638 = vmatprep.subr.mxu0 0.0
  %6639 = vmatpush1.msra.mxu0 0.0
  %6640 = vmatprep.subr.mxu0 0.0
  %6641 = vmatpush1.msra.mxu0 0.0
  %6642 = vmatprep.subr.mxu0 0.0
  %6643 = vmatpush1.msra.mxu0 0.0
  %6644 = vmatprep.subr.mxu0 0.0
  %6645 = vmatpush1.msra.mxu0 0.0
  %6646 = vmatprep.subr.mxu0 0.0
  %6647 = vmatpush1.msra.mxu0 0.0
  %6648 = vmatprep.subr.mxu0 0.0
  %6649 = vmatpush1.msra.mxu0 0.0
  %6650 = vmatprep.subr.mxu0 0.0
  %6651 = vmatpush1.msra.mxu0 0.0
  %6652 = vmatprep.subr.mxu0 0.0
  %6653 = vmatpush1.msra.mxu0 0.0
  %6654 = vmatprep.subr.mxu0 0.0
  %6655 = vmatpush1.msra.mxu0 0.0
  %6656 = vmatprep.subr.mxu0 0.0
  %6657 = vmatpush1.msra.mxu0 0.0
  %6658 = vmatprep.subr.mxu0 0.0
  %6659 = vmatpush1.msra.mxu0 0.0
  %6660 = vmatprep.subr.mxu0 0.0
  %6661 = vmatpush1.msra.mxu0 0.0
  %6662 = vmatprep.mubr.f32.mxu0 0.0
  %6663 = vmatmul.mubr.f32.gmra.mrb[0].mxu0 %v6596
  %v6664 = vpop.f32.mrb[0].mxu0
  %v6665 = vadd.f32 0.0, %v6664
  %v6666 = vpop.f32.mrb[0].mxu0
  %6667 = vdwg.mxu0
  %v6668 = vadd.f32 %v6506, %v6665
  %s6669 = scalar_lea.vmem %s11, 24
  %v6670 = vld [vmem:[%s6669] sm:$0xff]
  %v6672 = vsel %vm5984, %v6670, 0
  %6674 = vmatprep.subr.mxu0 0.0
  %6675 = vmatpush1.msra.mxu0 %v6188
  %6676 = vmatprep.subr.mxu0 0.0
  %6677 = vmatpush1.msra.mxu0 %v6189
  %6678 = vmatprep.subr.mxu0 0.0
  %6679 = vmatpush1.msra.mxu0 %v6190
  %6680 = vmatprep.subr.mxu0 0.0
  %6681 = vmatpush1.msra.mxu0 %v6191
  %6682 = vmatprep.subr.mxu0 0.0
  %6683 = vmatpush1.msra.mxu0 0.0
  %6684 = vmatprep.subr.mxu0 0.0
  %6685 = vmatpush1.msra.mxu0 0.0
  %6686 = vmatprep.subr.mxu0 0.0
  %6687 = vmatpush1.msra.mxu0 0.0
  %6688 = vmatprep.subr.mxu0 0.0
  %6689 = vmatpush1.msra.mxu0 0.0
  %6690 = vmatprep.subr.mxu0 0.0
  %6691 = vmatpush1.msra.mxu0 0.0
  %6692 = vmatprep.subr.mxu0 0.0
  %6693 = vmatpush1.msra.mxu0 0.0
  %6694 = vmatprep.subr.mxu0 0.0
  %6695 = vmatpush1.msra.mxu0 0.0
  %6696 = vmatprep.subr.mxu0 0.0
  %6697 = vmatpush1.msra.mxu0 0.0
  %6698 = vmatprep.subr.mxu0 0.0
  %6699 = vmatpush1.msra.mxu0 0.0
  %6700 = vmatprep.subr.mxu0 0.0
  %6701 = vmatpush1.msra.mxu0 0.0
  %6702 = vmatprep.subr.mxu0 0.0
  %6703 = vmatpush1.msra.mxu0 0.0
  %6704 = vmatprep.subr.mxu0 0.0
  %6705 = vmatpush1.msra.mxu0 0.0
  %6706 = vmatprep.subr.mxu0 0.0
  %6707 = vmatpush1.msra.mxu0 0.0
  %6708 = vmatprep.subr.mxu0 0.0
  %6709 = vmatpush1.msra.mxu0 0.0
  %6710 = vmatprep.subr.mxu0 0.0
  %6711 = vmatpush1.msra.mxu0 0.0
  %6712 = vmatprep.subr.mxu0 0.0
  %6713 = vmatpush1.msra.mxu0 0.0
  %6714 = vmatprep.subr.mxu0 0.0
  %6715 = vmatpush1.msra.mxu0 0.0
  %6716 = vmatprep.subr.mxu0 0.0
  %6717 = vmatpush1.msra.mxu0 0.0
  %6718 = vmatprep.subr.mxu0 0.0
  %6719 = vmatpush1.msra.mxu0 0.0
  %6720 = vmatprep.subr.mxu0 0.0
  %6721 = vmatpush1.msra.mxu0 0.0
  %6722 = vmatprep.subr.mxu0 0.0
  %6723 = vmatpush1.msra.mxu0 0.0
  %6724 = vmatprep.subr.mxu0 0.0
  %6725 = vmatpush1.msra.mxu0 0.0
  %6726 = vmatprep.subr.mxu0 0.0
  %6727 = vmatpush1.msra.mxu0 0.0
  %6728 = vmatprep.subr.mxu0 0.0
  %6729 = vmatpush1.msra.mxu0 0.0
  %6730 = vmatprep.subr.mxu0 0.0
  %6731 = vmatpush1.msra.mxu0 0.0
  %6732 = vmatprep.subr.mxu0 0.0
  %6733 = vmatpush1.msra.mxu0 0.0
  %6734 = vmatprep.subr.mxu0 0.0
  %6735 = vmatpush1.msra.mxu0 0.0
  %6736 = vmatprep.subr.mxu0 0.0
  %6737 = vmatpush1.msra.mxu0 0.0
  %6738 = vmatprep.mubr.f32.mxu0 0.0
  %6739 = vmatmul.mubr.f32.gmra.mrb[0].mxu0 %v6672
  %v6740 = vpop.f32.mrb[0].mxu0
  %v6741 = vadd.f32 0.0, %v6740
  %v6742 = vpop.f32.mrb[0].mxu0
  %6743 = vdwg.mxu0
  %s6744 = scalar_lea.vmem %s12, 240
  %v6745 = vld [vmem:[%s6744] sm:$0xff]
  %v6746 = vld [vmem:[%s6744 + $0x8] sm:$0xff]
  %v6747 = vld [vmem:[%s6744 + $0x10] sm:$0xff]
  %v6748 = vld [vmem:[%s6744 + $0x18] sm:$0xff]
  %v6749 = vld [vmem:[%s6744 + $0x20] sm:$0xff]
  %v6750 = vld [vmem:[%s6744 + $0x28] sm:$0xff]
  %v6751 = vld [vmem:[%s6744 + $0x30] sm:$0xff]
  %v6752 = vld [vmem:[%s6744 + $0x38] sm:$0xff]
  %v6753 = vld [vmem:[%s6744 + $0x40] sm:$0xff]
  %v6754 = vld [vmem:[%s6744 + $0x48] sm:$0xff]
  %v6756 = vsel %vm6362, %v6741, 0
  %6758 = vmatprep.subr.mxu0 0.0
  %6759 = vmatpush1.msra.mxu0 %v6745
  %6760 = vmatprep.subr.mxu0 0.0
  %6761 = vmatpush1.msra.mxu0 %v6746
  %6762 = vmatprep.subr.mxu0 0.0
  %6763 = vmatpush1.msra.mxu0 %v6747
  %6764 = vmatprep.subr.mxu0 0.0
  %6765 = vmatpush1.msra.mxu0 %v6748
  %6766 = vmatprep.subr.mxu0 0.0
  %6767 = vmatpush1.msra.mxu0 %v6749
  %6768 = vmatprep.subr.mxu0 0.0
  %6769 = vmatpush1.msra.mxu0 %v6750
  %6770 = vmatprep.subr.mxu0 0.0
  %6771 = vmatpush1.msra.mxu0 %v6751
  %6772 = vmatprep.subr.mxu0 0.0
  %6773 = vmatpush1.msra.mxu0 %v6752
  %6774 = vmatprep.subr.mxu0 0.0
  %6775 = vmatpush1.msra.mxu0 %v6753
  %6776 = vmatprep.subr.mxu0 0.0
  %6777 = vmatpush1.msra.mxu0 %v6754
  %6778 = vmatprep.subr.mxu0 0.0
  %6779 = vmatpush1.msra.mxu0 0.0
  %6780 = vmatprep.subr.mxu0 0.0
  %6781 = vmatpush1.msra.mxu0 0.0
  %6782 = vmatprep.subr.mxu0 0.0
  %6783 = vmatpush1.msra.mxu0 0.0
  %6784 = vmatprep.subr.mxu0 0.0
  %6785 = vmatpush1.msra.mxu0 0.0
  %6786 = vmatprep.subr.mxu0 0.0
  %6787 = vmatpush1.msra.mxu0 0.0
  %6788 = vmatprep.subr.mxu0 0.0
  %6789 = vmatpush1.msra.mxu0 0.0
  %6790 = vmatprep.subr.mxu0 0.0
  %6791 = vmatpush1.msra.mxu0 0.0
  %6792 = vmatprep.subr.mxu0 0.0
  %6793 = vmatpush1.msra.mxu0 0.0
  %6794 = vmatprep.subr.mxu0 0.0
  %6795 = vmatpush1.msra.mxu0 0.0
  %6796 = vmatprep.subr.mxu0 0.0
  %6797 = vmatpush1.msra.mxu0 0.0
  %6798 = vmatprep.subr.mxu0 0.0
  %6799 = vmatpush1.msra.mxu0 0.0
  %6800 = vmatprep.subr.mxu0 0.0
  %6801 = vmatpush1.msra.mxu0 0.0
  %6802 = vmatprep.subr.mxu0 0.0
  %6803 = vmatpush1.msra.mxu0 0.0
  %6804 = vmatprep.subr.mxu0 0.0
  %6805 = vmatpush1.msra.mxu0 0.0
  %6806 = vmatprep.subr.mxu0 0.0
  %6807 = vmatpush1.msra.mxu0 0.0
  %6808 = vmatprep.subr.mxu0 0.0
  %6809 = vmatpush1.msra.mxu0 0.0
  %6810 = vmatprep.subr.mxu0 0.0
  %6811 = vmatpush1.msra.mxu0 0.0
  %6812 = vmatprep.subr.mxu0 0.0
  %6813 = vmatpush1.msra.mxu0 0.0
  %6814 = vmatprep.subr.mxu0 0.0
  %6815 = vmatpush1.msra.mxu0 0.0
  %6816 = vmatprep.subr.mxu0 0.0
  %6817 = vmatpush1.msra.mxu0 0.0
  %6818 = vmatprep.subr.mxu0 0.0
  %6819 = vmatpush1.msra.mxu0 0.0
  %6820 = vmatprep.subr.mxu0 0.0
  %6821 = vmatpush1.msra.mxu0 0.0
  %6822 = vmatprep.mubr.f32.mxu0 0.0
  %6823 = vmatmul.mubr.f32.gmra.mrb[0].mxu0 %v6756
  %v6824 = vpop.f32.mrb[0].mxu0
  %v6825 = vadd.f32 0.0, %v6824
  %v6826 = vpop.f32.mrb[0].mxu0
  %6827 = vdwg.mxu0
  %v6828 = vadd.f32 %v6668, %v6825
  %v6829 = vld [vmem:[%s13] sm:$0x1]
  %v6831 = vlaneseq
  %v6832 = vshrl.u32 %v6831, 7
  %v6833 = vsub.s32 0, %v6832
  %v6834 = vrot.slane %v6829, %v6833
  %v6836 = vadd.f32 %v6828, %v6834
  %v6837 = vmax.f32 %v6836, 0.0
  %v6838 = vld [vmem:[%s14] sm:$0xff]
  %v6839 = vld [vmem:[%s14 + $0x8] sm:$0xff]
  %v6840 = vld [vmem:[%s14 + $0x10] sm:$0xff]
  %v6841 = vld [vmem:[%s14 + $0x18] sm:$0xff]
  %v6842 = vld [vmem:[%s14 + $0x20] sm:$0xff]
  %v6843 = vld [vmem:[%s14 + $0x28] sm:$0xff]
  %v6844 = vld [vmem:[%s14 + $0x30] sm:$0x3]
  %v6845 = vld [vmem:[%s15] sm:$0x1]
  %v6847 = vlaneseq
  %v6848 = vshrl.u32 %v6847, 7
  %v6849 = vsub.s32 0, %v6848
  %v6850 = vrot.slane %v6845, %v6849
  %vm6852 = vcmask 408576
  %v6854 = vsel %vm6852, %v6837, 0
  %vm6856 = vcmask 1041408
  %v6858 = vsel %vm6856, %v6844, 0
  %6860 = vmatprep.subr.mxu0 0.0
  %6861 = vmatpush1.msra.mxu0 %v6838
  %6862 = vmatprep.subr.mxu0 0.0
  %6863 = vmatpush1.msra.mxu0 %v6839
  %6864 = vmatprep.subr.mxu0 0.0
  %6865 = vmatpush1.msra.mxu0 %v6840
  %6866 = vmatprep.subr.mxu0 0.0
  %6867 = vmatpush1.msra.mxu0 %v6841
  %6868 = vmatprep.subr.mxu0 0.0
  %6869 = vmatpush1.msra.mxu0 %v6842
  %6870 = vmatprep.subr.mxu0 0.0
  %6871 = vmatpush1.msra.mxu0 %v6843
  %6872 = vmatprep.subr.mxu0 0.0
  %6873 = vmatpush1.msra.mxu0 %v6858
  %6874 = vmatprep.subr.mxu0 0.0
  %6875 = vmatpush1.msra.mxu0 0.0
  %6876 = vmatprep.subr.mxu0 0.0
  %6877 = vmatpush1.msra.mxu0 0.0
  %6878 = vmatprep.subr.mxu0 0.0
  %6879 = vmatpush1.msra.mxu0 0.0
  %6880 = vmatprep.subr.mxu0 0.0
  %6881 = vmatpush1.msra.mxu0 0.0
  %6882 = vmatprep.subr.mxu0 0.0
  %6883 = vmatpush1.msra.mxu0 0.0
  %6884 = vmatprep.subr.mxu0 0.0
  %6885 = vmatpush1.msra.mxu0 0.0
  %6886 = vmatprep.subr.mxu0 0.0
  %6887 = vmatpush1.msra.mxu0 0.0
  %6888 = vmatprep.subr.mxu0 0.0
  %6889 = vmatpush1.msra.mxu0 0.0
  %6890 = vmatprep.subr.mxu0 0.0
  %6891 = vmatpush1.msra.mxu0 0.0
  %6892 = vmatprep.subr.mxu0 0.0
  %6893 = vmatpush1.msra.mxu0 0.0
  %6894 = vmatprep.subr.mxu0 0.0
  %6895 = vmatpush1.msra.mxu0 0.0
  %6896 = vmatprep.subr.mxu0 0.0
  %6897 = vmatpush1.msra.mxu0 0.0
  %6898 = vmatprep.subr.mxu0 0.0
  %6899 = vmatpush1.msra.mxu0 0.0
  %6900 = vmatprep.subr.mxu0 0.0
  %6901 = vmatpush1.msra.mxu0 0.0
  %6902 = vmatprep.subr.mxu0 0.0
  %6903 = vmatpush1.msra.mxu0 0.0
  %6904 = vmatprep.subr.mxu0 0.0
  %6905 = vmatpush1.msra.mxu0 0.0
  %6906 = vmatprep.subr.mxu0 0.0
  %6907 = vmatpush1.msra.mxu0 0.0
  %6908 = vmatprep.subr.mxu0 0.0
  %6909 = vmatpush1.msra.mxu0 0.0
  %6910 = vmatprep.subr.mxu0 0.0
  %6911 = vmatpush1.msra.mxu0 0.0
  %6912 = vmatprep.subr.mxu0 0.0
  %6913 = vmatpush1.msra.mxu0 0.0
  %6914 = vmatprep.subr.mxu0 0.0
  %6915 = vmatpush1.msra.mxu0 0.0
  %6916 = vmatprep.subr.mxu0 0.0
  %6917 = vmatpush1.msra.mxu0 0.0
  %6918 = vmatprep.subr.mxu0 0.0
  %6919 = vmatpush1.msra.mxu0 0.0
  %6920 = vmatprep.subr.mxu0 0.0
  %6921 = vmatpush1.msra.mxu0 0.0
  %6922 = vmatprep.subr.mxu0 0.0
  %6923 = vmatpush1.msra.mxu0 0.0
  %6924 = vmatprep.mubr.f32.mxu0 0.0
  %6925 = vmatmul.mubr.f32.gmra.mrb[0].mxu0 %v6854
  %v6926 = vpop.f32.mrb[0].mxu0
  %v6927 = vadd.f32 %v6850, %v6926
  %v6928 = vpop.f32.mrb[0].mxu0
  %6929 = vdwg.mxu0
  %vm6930 = vcmask 80896
  %v6931 = vsel %vm6930, %v6927, -inf
  %6932 = vmax.xlane.f32.xlu0 %v6931
  %v6933 = vpop.xlane.xlu0 %6932
  %v6934 = vsub.f32 %v6927, %v6933
  %v6935 = vmul.f32 %v6934, 1.442695
  %v6936 = vpow.pop %v6935
  %v6937 = vsel %vm6930, %v6936, 0.0
  %6938 = vadd.xlane.f32.xlu0 %v6937
  %v6939 = vpop.xlane.xlu0 %6938
  %v6940 = vlog2.pop %v6939
  %v6941 = vmul.f32 %v6940, 0.6931472
  %v6942 = vsub.f32 %v6934, %v6941
  %6943 = vst.msk [vmem:[%s16] sm:$0xff] %vm6930, %v6942
  // Predicated region
  $region66: #{net_forward.1} parent=0 // pred_check
    _
  $region67: #{net_forward.1} parent=0 // pred_check_branch
    %6945 = sbr.rel (0) target = $region69
  $region68: #{net_forward.1} parent=0 // pred_region
    _
  $region69: #{net_forward.1} parent=0 // pred_fallthru
    _
  // Predicated region
  $region70: #{net_forward.1} parent=0 // pred_check
    _
  $region71: #{net_forward.1} parent=0 // pred_check_branch
    %6947 = sbr.rel (0) target = $region73
  $region72: #{net_forward.1} parent=0 // pred_region
    _
  $region73: #{net_forward.1} parent=0 // pred_fallthru
    _

</llo_original>
